<compile_context>
chip_gen: v7x
topology: tpu7x:2x2x1
jax: 0.10.0
libtpu: 0.0.40
codegen_flags: <defaults>
</compile_context>

<pallas_src>
import functools

import numpy as np

import jax
import jax.numpy as jnp
from jax.experimental import pallas as pl
from jax.experimental.pallas import tpu as pltpu


# ----------------------------------------------------------------------------
# Pallas kernel: convolution as banded-weight row matmul (bf16 MXU, f32 acc)
# ----------------------------------------------------------------------------
def _band_conv_kernel(x_ref, w_ref, bias_ref, o_ref, *stat_refs,
                      kh, ho, want_stats):
    """x_ref:    (1, Hi, Wi*Cin)        bf16  padded, pre-activated input rows
       w_ref:    (kh, Wi*Cin, Wo*Cout)  bf16  block-banded per-H-tap weights
       bias_ref: (1, Wo*Cout)           f32
       o_ref:    (1, Ho, Wo*Cout)       bf16 (f32 for the network output layer)
       stat_refs[0] (optional): (1, 2, Wo*Cout) f32 = [row-sum y ; row-sum y*y]
    """
    acc = None
    for i in range(kh):                                  # static, kh <= 3
        rows = x_ref[0, pl.ds(i, ho), :]                 # (Ho, Wi*Cin) bf16
        part = jnp.dot(rows, w_ref[i], preferred_element_type=jnp.float32)
        acc = part if acc is None else acc + part
    y = acc + bias_ref[...]                              # (Ho, Wo*Cout) f32
    o_ref[0] = y.astype(o_ref.dtype)
    if want_stats:                                       # f32 BN partial sums
        s_ref = stat_refs[0]
        s_ref[0, 0:1, :] = jnp.sum(y, axis=0, keepdims=True)
        s_ref[0, 1:2, :] = jnp.sum(y * y, axis=0, keepdims=True)


def conv_band(xprep, band, bias_flat, ho, *, want_stats, out_dtype=jnp.bfloat16):
    """xprep: (N, Hi, Wi*Cin) bf16; band: (kh, Wi*Cin, Wo*Cout) bf16;
       bias_flat: (1, Wo*Cout) f32.  Returns (y, stats_or_None)."""
    n, hi, li = xprep.shape
    kh, li_b, lo = band.shape
    assert li == li_b and ho + kh - 1 <= hi, (xprep.shape, band.shape, ho)

    out_shape = [jax.ShapeDtypeStruct((n, ho, lo), out_dtype)]
    out_specs = [pl.BlockSpec((1, ho, lo), lambda b: (b, 0, 0))]
    if want_stats:
        out_shape.append(jax.ShapeDtypeStruct((n, 2, lo), jnp.float32))
        out_specs.append(pl.BlockSpec((1, 2, lo), lambda b: (b, 0, 0)))

    out_bytes = n * ho * lo * (2 if out_dtype == jnp.bfloat16 else 4)
    flops = 2 * n * kh * ho * li * lo
    bytes_accessed = (n * hi * li * 2 + kh * li * lo * 2 + lo * 4 + out_bytes
                      + (n * 2 * lo * 4 if want_stats else 0))

    res = pl.pallas_call(
        functools.partial(_band_conv_kernel, kh=kh, ho=ho, want_stats=want_stats),
        out_shape=tuple(out_shape),
        grid=(n,),
        in_specs=[
            pl.BlockSpec((1, hi, li), lambda b: (b, 0, 0)),
            pl.BlockSpec((kh, li, lo), lambda b: (0, 0, 0)),
            pl.BlockSpec((1, lo), lambda b: (0, 0)),
        ],
        out_specs=tuple(out_specs),
        compiler_params=pltpu.CompilerParams(dimension_semantics=("parallel",)),
        cost_estimate=pl.CostEstimate(flops=flops, transcendentals=0,
                                      bytes_accessed=bytes_accessed),
    )(xprep, band, bias_flat)
    return (res[0], res[1]) if want_stats else (res[0], None)


# ----------------------------------------------------------------------------
# numpy weight-layout transforms + banded-weight construction (run once)
# ----------------------------------------------------------------------------
def _make_band_np(taps, wi, wo):
    """taps (kh, kw, cin, cout) -> block-banded (kh, wi*cin, wo*cout), f32.
       B[i, (w+j)*cin+ic, w*cout+oc] = taps[i, j, ic, oc]."""
    kh, kw, cin, cout = taps.shape
    band = np.zeros((kh, wi * cin, wo * cout), np.float32)
    for i in range(kh):
        for j in range(kw):
            t = taps[i, j]
            for w in range(wo):
                band[i, (w + j) * cin:(w + j + 1) * cin,
                     w * cout:(w + 1) * cout] = t
    return band


def _enc_taps_k4_np(w):
    """Conv2d(k=4, s=2) weight (oc, ic, 4, 4) -> space-to-depth(2) taps
       (kh=2, kw=2, 4*ic, oc), channel order (dy, dx, ic)."""
    oc, ic = w.shape[:2]
    t = w.reshape(oc, ic, 2, 2, 2, 2).transpose(2, 4, 3, 5, 1, 0)
    return np.ascontiguousarray(t.reshape(2, 2, 4 * ic, oc))


def _enc_taps_k2_np(w):
    """Conv2d(k=2, s=2) weight (oc, ic, 2, 2) -> (1, 1, 4*ic, oc)."""
    oc, ic = w.shape[:2]
    return np.ascontiguousarray(w.transpose(2, 3, 1, 0).reshape(1, 1, 4 * ic, oc))


def _dec_taps_np(w):
    """Stride-1 Conv2d weight (oc, ic, kh, kw) -> (kh, kw, ic, oc)."""
    return np.ascontiguousarray(w.transpose(2, 3, 1, 0))


def _tconv_combined_taps_np(w):
    """ConvTranspose2d(k=4, s=2, p=1) weight (ic, oc, 4, 4) -> all four output
       phases fused into one tap set (kh=3, kw=3, ic, 4*oc); column block
       ph = dy*2+dx holds phase (dy, dx):
       out[2m+dy, 2n+dx, oc] = sum_{a,b,ic} xpad[m+dy+a, n+dx+b, ic]
                                            * W[ic, oc, 3-dy-2a, 3-dx-2b]."""
    ic, oc = w.shape[0], w.shape[1]
    comb = np.zeros((3, 3, ic, 4 * oc), np.float32)
    for dy in range(2):
        for dx in range(2):
            ph = dy * 2 + dx
            for a in range(2):
                for b in range(2):
                    comb[dy + a, dx + b, :, ph * oc:(ph + 1) * oc] = \
                        w[:, :, 3 - dy - 2 * a, 3 - dx - 2 * b]
    return comb


def prepare(params, H, W, channels):
    """Build bf16 banded weights and f32 flat biases once (numpy, outside the
       jitted forward).  H, W must be divisible by 32."""
    del H, channels  # band widths depend only on W; channels implicit in shapes

    def f32(a):
        return np.asarray(a, np.float32)

    def entry(taps, bias, wi, wo, bn_name=None):
        e = {"band": jnp.asarray(_make_band_np(taps, wi, wo), jnp.bfloat16),
             "bias": jnp.asarray(np.tile(f32(bias), wo)[None, :])}
        if bn_name is not None:
            e["gamma"] = jnp.asarray(f32(params[bn_name]["gamma"]))
            e["beta"] = jnp.asarray(f32(params[bn_name]["beta"]))
        return e

    p = {}
    p["layer1"] = entry(_enc_taps_k4_np(f32(params["layer1"]["w"])),
                        params["layer1"]["b"], W // 2 + 1, W // 2)
    p["layer2"] = entry(_enc_taps_k4_np(f32(params["layer2"]["w"])),
                        params["layer2"]["b"], W // 4 + 1, W // 4, "layer2")
    p["layer3"] = entry(_enc_taps_k4_np(f32(params["layer3"]["w"])),
                        params["layer3"]["b"], W // 8 + 1, W // 8, "layer3")
    p["layer4"] = entry(_enc_taps_k4_np(f32(params["layer4"]["w"])),
                        params["layer4"]["b"], W // 16 + 1, W // 16, "layer4")
    p["layer5"] = entry(_enc_taps_k2_np(f32(params["layer5"]["w"])),
                        params["layer5"]["b"], W // 32, W // 32, "layer5")
    p["dlayer5"] = entry(_dec_taps_np(f32(params["dlayer5"]["w"])),
                         params["dlayer5"]["b"], W // 16, W // 16, "dlayer5")
    p["dlayer4"] = entry(_dec_taps_np(f32(params["dlayer4"]["w"])),
                         params["dlayer4"]["b"], W // 8 + 2, W // 8, "dlayer4")
    p["dlayer3"] = entry(_dec_taps_np(f32(params["dlayer3"]["w"])),
                         params["dlayer3"]["b"], W // 4 + 2, W // 4, "dlayer3")
    p["dlayer2"] = entry(_dec_taps_np(f32(params["dlayer2"]["w"])),
                         params["dlayer2"]["b"], W // 2 + 2, W // 2, "dlayer2")
    p["dlayer1"] = entry(_tconv_combined_taps_np(f32(params["dlayer1"]["w"])),
                         np.tile(f32(params["dlayer1"]["b"]), 4),
                         W // 2 + 2, W // 2)
    return p


# ----------------------------------------------------------------------------
# Plain-JAX glue (cheap fused passes; no standalone BN / concat / act kernels)
# ----------------------------------------------------------------------------
def _space_to_depth2(x):
    n, h, w, c = x.shape
    x = x.reshape(n, h // 2, 2, w // 2, 2, c).transpose(0, 1, 3, 2, 4, 5)
    return x.reshape(n, h // 2, (w // 2) * 4 * c)


def _prep_encoder(x, scale, shift, leaky, pad):
    """Folded BN affine + LeakyReLU + zero pad + space-to-depth(2) + flatten,
       one fused XLA pass -> bf16 (turns the k=4/s=2 conv into k=2/s=1)."""
    x = x.astype(jnp.float32)
    if scale is not None:
        x = x * scale + shift
    if leaky:
        x = jnp.where(x > 0, x, 0.2 * x)
    if pad:
        x = jnp.pad(x, ((0, 0), (pad, pad), (pad, pad), (0, 0)))
    return _space_to_depth2(x).astype(jnp.bfloat16)


def _prep_stride1(x, pad):
    if pad:
        x = jnp.pad(x, ((0, 0), (pad, pad), (pad, pad), (0, 0)))
    n, h, w, c = x.shape
    return x.reshape(n, h, w * c).astype(jnp.bfloat16)


def _upsample_bilinear_2x(x):
    """nn.Upsample(scale_factor=2, mode='bilinear', align_corners=False), NHWC."""
    n, h, w, c = x.shape

    def idx(size):
        j = jnp.arange(2 * size, dtype=jnp.float32)
        src = jnp.maximum((j + 0.5) * 0.5 - 0.5, 0.0)
        i0 = jnp.floor(src).astype(jnp.int32)
        i1 = jnp.minimum(i0 + 1, size - 1)
        return i0, i1, src - i0.astype(jnp.float32)

    h0, h1, fh = idx(h)
    w0, w1, fw = idx(w)
    xh = x[:, h0] * (1.0 - fh)[None, :, None, None] + x[:, h1] * fh[None, :, None, None]
    return (xh[:, :, w0] * (1.0 - fw)[None, None, :, None]
            + xh[:, :, w1] * fw[None, None, :, None])


def _bn_affine_from_stats(stats, ho, wo, gamma, beta, eps=1e-5):
    """Training-mode BatchNorm2d affine from the kernels' f32 [sum, sumsq]
       row-reduced side outputs (biased variance, like PyTorch training BN)."""
    n, _, lo = stats.shape
    cout = lo // wo
    s = stats.reshape(n, 2, wo, cout).sum(axis=(0, 2))          # (2, cout)
    count = n * ho * wo
    mean = s[0] / count
    var = jnp.maximum(s[1] / count - mean * mean, 0.0)
    scale = gamma * jax.lax.rsqrt(var + eps)
    return scale, beta - mean * scale


# ----------------------------------------------------------------------------
# Parameters (deterministic, matches module __init__ shapes; PyTorch layouts)
# ----------------------------------------------------------------------------
def init_params(key, channels):
    c = channels
    ks = jax.random.split(key, 20)

    def conv(i, oc, ic, k):
        return {"w": jax.random.normal(ks[2 * i], (oc, ic, k, k), jnp.float32) * 0.05,
                "b": jax.random.normal(ks[2 * i + 1], (oc,), jnp.float32) * 0.05}

    def bn(oc):  # PyTorch BatchNorm2d default init
        return {"gamma": jnp.ones((oc,), jnp.float32),
                "beta": jnp.zeros((oc,), jnp.float32)}

    p = {}
    p["layer1"] = conv(0, c, 3, 4)
    p["layer2"] = {**conv(1, 2 * c, c, 4), **bn(2 * c)}
    p["layer3"] = {**conv(2, 4 * c, 2 * c, 4), **bn(4 * c)}
    p["layer4"] = {**conv(3, 8 * c, 4 * c, 4), **bn(8 * c)}
    p["layer5"] = {**conv(4, 8 * c, 8 * c, 2), **bn(8 * c)}
    p["dlayer5"] = {**conv(5, 8 * c, 8 * c, 1), **bn(8 * c)}
    p["dlayer4"] = {**conv(6, 4 * c, 16 * c, 3), **bn(4 * c)}
    p["dlayer3"] = {**conv(7, 2 * c, 8 * c, 3), **bn(2 * c)}
    p["dlayer2"] = {**conv(8, c, 4 * c, 3), **bn(c)}
    # ConvTranspose2d(2c, 3, 4, 2, 1): weight layout (in_c, out_c, kh, kw)
    p["dlayer1"] = {"w": jax.random.normal(ks[18], (2 * c, 3, 4, 4), jnp.float32) * 0.05,
                    "b": jax.random.normal(ks[19], (3,), jnp.float32) * 0.05}
    return p


# ----------------------------------------------------------------------------
# Forward pass (matches TurbNetG_student.forward, training-mode BatchNorm)
# ----------------------------------------------------------------------------
def forward(prep, x_nchw):
    x = jnp.transpose(x_nchw, (0, 2, 3, 1)).astype(jnp.float32)     # NCHW->NHWC
    n, H, W, _ = x.shape
    h1, w1 = H // 2, W // 2
    h2, w2 = H // 4, W // 4
    h3, w3 = H // 8, W // 8
    h4, w4 = H // 16, W // 16
    h5, w5 = H // 32, W // 32

    def run(name, xp, ho, wo, want_stats, out_dtype=jnp.bfloat16):
        e = prep[name]
        y, st = conv_band(xp, e["band"], e["bias"], ho,
                          want_stats=want_stats, out_dtype=out_dtype)
        cout = e["band"].shape[2] // wo
        return y.reshape(n, ho, wo, cout), st

    def bn(name, st, ho, wo):
        e = prep[name]
        return _bn_affine_from_stats(st, ho, wo, e["gamma"], e["beta"])

    # -------- encoder: [BN affine +] LeakyReLU -> Conv(k, s=2) ---------------
    out1, _ = run("layer1", _prep_encoder(x, None, None, False, 1), h1, w1, False)
    out2, st2 = run("layer2", _prep_encoder(out1, None, None, True, 1), h2, w2, True)
    s2, t2 = bn("layer2", st2, h2, w2)
    out3, st3 = run("layer3", _prep_encoder(out2, s2, t2, True, 1), h3, w3, True)
    s3, t3 = bn("layer3", st3, h3, w3)
    out4, st4 = run("layer4", _prep_encoder(out3, s3, t3, True, 1), h4, w4, True)
    s4, t4 = bn("layer4", st4, h4, w4)
    out5, st5 = run("layer5", _prep_encoder(out4, s4, t4, True, 0), h5, w5, True)
    s5, t5 = bn("layer5", st5, h5, w5)

    # -------- decoder: ReLU -> bilinear up x2 -> Conv(k, s=1) -> BN ----------
    def dec(name, x_act, pad, ho, wo):
        xp = _prep_stride1(_upsample_bilinear_2x(x_act), pad)
        return run(name, xp, ho, wo, True)

    act5 = jnp.maximum(out5.astype(jnp.float32) * s5 + t5, 0.0)
    dout5, std5 = dec("dlayer5", act5, 0, h4, w4)
    sd5, td5 = bn("dlayer5", std5, h4, w4)

    d4_in = jnp.maximum(jnp.concatenate(
        [dout5.astype(jnp.float32) * sd5 + td5,
         out4.astype(jnp.float32) * s4 + t4], axis=-1), 0.0)
    dout4, std4 = dec("dlayer4", d4_in, 1, h3, w3)
    sd4, td4 = bn("dlayer4", std4, h3, w3)

    d3_in = jnp.maximum(jnp.concatenate(
        [dout4.astype(jnp.float32) * sd4 + td4,
         out3.astype(jnp.float32) * s3 + t3], axis=-1), 0.0)
    dout3, std3 = dec("dlayer3", d3_in, 1, h2, w2)
    sd3, td3 = bn("dlayer3", std3, h2, w2)

    d2_in = jnp.maximum(jnp.concatenate(
        [dout3.astype(jnp.float32) * sd3 + td3,
         out2.astype(jnp.float32) * s2 + t2], axis=-1), 0.0)
    dout2, std2 = dec("dlayer2", d2_in, 1, h1, w1)
    sd2, td2 = bn("dlayer2", std2, h1, w1)

    # -------- dlayer1: ReLU -> ConvTranspose2d(2c, 3, 4, 2, 1), fused phases -
    d1_in = jnp.maximum(jnp.concatenate(
        [dout2.astype(jnp.float32) * sd2 + td2,
         out1.astype(jnp.float32)], axis=-1), 0.0)                 # (n,h1,w1,2c)
    xp1 = _prep_stride1(d1_in, 1)                                  # (n,h1+2,(w1+2)*2c)
    yf, _ = run("dlayer1", xp1, h1, w1, False, out_dtype=jnp.float32)  # (n,h1,w1,12)
    y = (yf.reshape(n, h1, w1, 2, 2, 3)                            # (dy, dx, oc)
         .transpose(0, 1, 3, 2, 4, 5)
         .reshape(n, 2 * h1, 2 * w1, 3))                           # interleave phases
    return jnp.transpose(y, (0, 3, 1, 2))                          # NHWC -> NCHW


# ----------------------------------------------------------------------------
if __name__ == "__main__":
    key = jax.random.PRNGKey(0)
    kx, kp = jax.random.split(key)

    channel_exponent = 3                          # small synthetic config
    channels = int(2 ** channel_exponent + 0.5)   # = 8
    H = W = 32                                    # 5 stride-2 stages => min 32
    x = jax.random.normal(kx, (2, 3, H, W), jnp.float32)   # NCHW like PyTorch

    params = init_params(kp, channels)
    prep = prepare(params, H, W, channels)        # banded weights built once

    fwd = jax.jit(forward)
    out = jax.block_until_ready(fwd(prep, x))

    assert out.shape == (2, 3, H, W), out.shape
    assert bool(jnp.all(jnp.isfinite(out)))
    print("KERNEL_OK")
</pallas_src>

<mosaic_0001>
module attributes {stable_mosaic.version = 11 : i64} {
  func.func @_band_conv_kernel(%arg0: i32, %arg1: memref<1x17x204xbf16, #tpu.memory_space<vmem>>, %arg2: memref<2x204x128xbf16, #tpu.memory_space<vmem>>, %arg3: memref<1x128xf32, #tpu.memory_space<vmem>>, %arg4: memref<1x16x128xbf16, #tpu.memory_space<vmem>>) attributes {dimension_semantics = [#tpu.dimension_semantics<parallel>], iteration_bounds = array<i64: 2>, scalar_prefetch = 0 : i64, scratch_operands = 0 : i64, tpu.core_type = #tpu.core_type<tc>, window_params = [{transform_indices = @transform_0, window_bounds = array<i64: 1, 17, 204>}, {pipeline_mode = #tpu.pipeline_mode<synchronous>, transform_indices = @transform_1, window_bounds = array<i64: 2, 204, 128>}, {pipeline_mode = #tpu.pipeline_mode<synchronous>, transform_indices = @transform_2, window_bounds = array<i64: 1, 128>}, {transform_indices = @transform_3, window_bounds = array<i64: 1, 16, 128>}]} {
    %c0 = arith.constant 0 : index
    %c0_0 = arith.constant 0 : index
    %c0_1 = arith.constant 0 : index
    %0 = vector.load %arg1[%c0, %c0_0, %c0_1] : memref<1x17x204xbf16, #tpu.memory_space<vmem>>, vector<1x16x204xbf16>
    %1 = vector.shape_cast %0 : vector<1x16x204xbf16> to vector<16x204xbf16>
    %c0_2 = arith.constant 0 : index
    %c0_3 = arith.constant 0 : index
    %c0_4 = arith.constant 0 : index
    %2 = vector.load %arg2[%c0_2, %c0_3, %c0_4] : memref<2x204x128xbf16, #tpu.memory_space<vmem>>, vector<1x204x128xbf16>
    %3 = vector.shape_cast %2 : vector<1x204x128xbf16> to vector<204x128xbf16>
    %cst = arith.constant dense<0.000000e+00> : vector<16x128xf32>
    %4 = tpu.matmul %1, %3, %cst {dimension_numbers = #tpu.dot_dimension_numbers<[1], [0], [0], [1], [0, 0, 1, 1], [], []>} : vector<16x204xbf16>, vector<204x128xbf16>, vector<16x128xf32> -> vector<16x128xf32>
    %c0_5 = arith.constant 0 : index
    %c1 = arith.constant 1 : index
    %c0_6 = arith.constant 0 : index
    %5 = vector.load %arg1[%c0_5, %c1, %c0_6] : memref<1x17x204xbf16, #tpu.memory_space<vmem>>, vector<1x16x204xbf16>
    %6 = vector.shape_cast %5 : vector<1x16x204xbf16> to vector<16x204xbf16>
    %c1_7 = arith.constant 1 : index
    %c0_8 = arith.constant 0 : index
    %c0_9 = arith.constant 0 : index
    %7 = vector.load %arg2[%c1_7, %c0_8, %c0_9] : memref<2x204x128xbf16, #tpu.memory_space<vmem>>, vector<1x204x128xbf16>
    %8 = vector.shape_cast %7 : vector<1x204x128xbf16> to vector<204x128xbf16>
    %cst_10 = arith.constant dense<0.000000e+00> : vector<16x128xf32>
    %9 = tpu.matmul %6, %8, %cst_10 {dimension_numbers = #tpu.dot_dimension_numbers<[1], [0], [0], [1], [0, 0, 1, 1], [], []>} : vector<16x204xbf16>, vector<204x128xbf16>, vector<16x128xf32> -> vector<16x128xf32>
    %10 = arith.addf %4, %9 : vector<16x128xf32>
    %c0_11 = arith.constant 0 : index
    %c0_12 = arith.constant 0 : index
    %11 = vector.load %arg3[%c0_11, %c0_12] : memref<1x128xf32, #tpu.memory_space<vmem>>, vector<1x128xf32>
    %12 = vector.broadcast %11 : vector<1x128xf32> to vector<16x128xf32>
    %13 = arith.addf %10, %12 : vector<16x128xf32>
    %14 = arith.truncf %13 : vector<16x128xf32> to vector<16x128xbf16>
    %c0_13 = arith.constant 0 : index
    %c0_14 = arith.constant 0 : index
    %c0_15 = arith.constant 0 : index
    %15 = vector.load %arg4[%c0_13, %c0_14, %c0_15] : memref<1x16x128xbf16, #tpu.memory_space<vmem>>, vector<1x16x128xbf16>
    %16 = vector.shape_cast %15 : vector<1x16x128xbf16> to vector<16x128xbf16>
    %17 = vector.shape_cast %14 : vector<16x128xbf16> to vector<1x16x128xbf16>
    tpu.vector_store %arg4[%c0_13, %c0_14, %c0_15], %17 {strides = array<i32>} : memref<1x16x128xbf16, #tpu.memory_space<vmem>>, vector<1x16x128xbf16>,
    return
  }
  func.func @transform_0(%arg0: i32) -> (i32, i32, i32) {
    %c0_i32 = arith.constant 0 : i32
    %c0_i32_0 = arith.constant 0 : i32
    %c0_i32_1 = arith.constant 0 : i32
    return %arg0, %c0_i32, %c0_i32_0 : i32, i32, i32
  }
  func.func @transform_1(%arg0: i32) -> (i32, i32, i32) {
    %c0_i32 = arith.constant 0 : i32
    %c0_i32_0 = arith.constant 0 : i32
    %c0_i32_1 = arith.constant 0 : i32
    %c0_i32_2 = arith.constant 0 : i32
    return %c0_i32, %c0_i32_0, %c0_i32_1 : i32, i32, i32
  }
  func.func @transform_2(%arg0: i32) -> (i32, i32) {
    %c0_i32 = arith.constant 0 : i32
    %c0_i32_0 = arith.constant 0 : i32
    %c0_i32_1 = arith.constant 0 : i32
    return %c0_i32, %c0_i32_0 : i32, i32
  }
  func.func @transform_3(%arg0: i32) -> (i32, i32, i32) {
    %c0_i32 = arith.constant 0 : i32
    %c0_i32_0 = arith.constant 0 : i32
    %c0_i32_1 = arith.constant 0 : i32
    return %arg0, %c0_i32, %c0_i32_0 : i32, i32, i32
  }
}

module attributes {stable_mosaic.version = 11 : i64} {
  func.func @_band_conv_kernel(%arg0: i32, %arg1: memref<1x9x288xbf16, #tpu.memory_space<vmem>>, %arg2: memref<2x288x128xbf16, #tpu.memory_space<vmem>>, %arg3: memref<1x128xf32, #tpu.memory_space<vmem>>, %arg4: memref<1x8x128xbf16, #tpu.memory_space<vmem>>, %arg5: memref<1x2x128xf32, #tpu.memory_space<vmem>>) attributes {dimension_semantics = [#tpu.dimension_semantics<parallel>], iteration_bounds = array<i64: 2>, scalar_prefetch = 0 : i64, scratch_operands = 0 : i64, tpu.core_type = #tpu.core_type<tc>, window_params = [{transform_indices = @transform_0, window_bounds = array<i64: 1, 9, 288>}, {pipeline_mode = #tpu.pipeline_mode<synchronous>, transform_indices = @transform_1, window_bounds = array<i64: 2, 288, 128>}, {pipeline_mode = #tpu.pipeline_mode<synchronous>, transform_indices = @transform_2, window_bounds = array<i64: 1, 128>}, {transform_indices = @transform_3, window_bounds = array<i64: 1, 8, 128>}, {transform_indices = @transform_4, window_bounds = array<i64: 1, 2, 128>}]} {
    %c0 = arith.constant 0 : index
    %c0_0 = arith.constant 0 : index
    %c0_1 = arith.constant 0 : index
    %0 = vector.load %arg1[%c0, %c0_0, %c0_1] : memref<1x9x288xbf16, #tpu.memory_space<vmem>>, vector<1x8x288xbf16>
    %1 = vector.shape_cast %0 : vector<1x8x288xbf16> to vector<8x288xbf16>
    %c0_2 = arith.constant 0 : index
    %c0_3 = arith.constant 0 : index
    %c0_4 = arith.constant 0 : index
    %2 = vector.load %arg2[%c0_2, %c0_3, %c0_4] : memref<2x288x128xbf16, #tpu.memory_space<vmem>>, vector<1x288x128xbf16>
    %3 = vector.shape_cast %2 : vector<1x288x128xbf16> to vector<288x128xbf16>
    %cst = arith.constant dense<0.000000e+00> : vector<8x128xf32>
    %4 = tpu.matmul %1, %3, %cst {dimension_numbers = #tpu.dot_dimension_numbers<[1], [0], [0], [1], [0, 0, 1, 1], [], []>} : vector<8x288xbf16>, vector<288x128xbf16>, vector<8x128xf32> -> vector<8x128xf32>
    %c0_5 = arith.constant 0 : index
    %c1 = arith.constant 1 : index
    %c0_6 = arith.constant 0 : index
    %5 = vector.load %arg1[%c0_5, %c1, %c0_6] : memref<1x9x288xbf16, #tpu.memory_space<vmem>>, vector<1x8x288xbf16>
    %6 = vector.shape_cast %5 : vector<1x8x288xbf16> to vector<8x288xbf16>
    %c1_7 = arith.constant 1 : index
    %c0_8 = arith.constant 0 : index
    %c0_9 = arith.constant 0 : index
    %7 = vector.load %arg2[%c1_7, %c0_8, %c0_9] : memref<2x288x128xbf16, #tpu.memory_space<vmem>>, vector<1x288x128xbf16>
    %8 = vector.shape_cast %7 : vector<1x288x128xbf16> to vector<288x128xbf16>
    %cst_10 = arith.constant dense<0.000000e+00> : vector<8x128xf32>
    %9 = tpu.matmul %6, %8, %cst_10 {dimension_numbers = #tpu.dot_dimension_numbers<[1], [0], [0], [1], [0, 0, 1, 1], [], []>} : vector<8x288xbf16>, vector<288x128xbf16>, vector<8x128xf32> -> vector<8x128xf32>
    %10 = arith.addf %4, %9 : vector<8x128xf32>
    %c0_11 = arith.constant 0 : index
    %c0_12 = arith.constant 0 : index
    %11 = vector.load %arg3[%c0_11, %c0_12] : memref<1x128xf32, #tpu.memory_space<vmem>>, vector<1x128xf32>
    %12 = vector.broadcast %11 : vector<1x128xf32> to vector<8x128xf32>
    %13 = arith.addf %10, %12 : vector<8x128xf32>
    %14 = arith.truncf %13 : vector<8x128xf32> to vector<8x128xbf16>
    %c0_13 = arith.constant 0 : index
    %c0_14 = arith.constant 0 : index
    %c0_15 = arith.constant 0 : index
    %15 = vector.load %arg4[%c0_13, %c0_14, %c0_15] : memref<1x8x128xbf16, #tpu.memory_space<vmem>>, vector<1x8x128xbf16>
    %16 = vector.shape_cast %15 : vector<1x8x128xbf16> to vector<8x128xbf16>
    %17 = vector.shape_cast %14 : vector<8x128xbf16> to vector<1x8x128xbf16>
    tpu.vector_store %arg4[%c0_13, %c0_14, %c0_15], %17 {strides = array<i32>} : memref<1x8x128xbf16, #tpu.memory_space<vmem>>, vector<1x8x128xbf16>,
    %cst_16 = arith.constant dense<0.000000e+00> : vector<128xf32>
    %18 = vector.multi_reduction <add>, %13, %cst_16 [0] : vector<8x128xf32> to vector<128xf32>
    %19 = vector.shape_cast %18 : vector<128xf32> to vector<1x128xf32>
    %c0_17 = arith.constant 0 : index
    %c0_18 = arith.constant 0 : index
    %c0_19 = arith.constant 0 : index
    %20 = vector.load %arg5[%c0_17, %c0_18, %c0_19] : memref<1x2x128xf32, #tpu.memory_space<vmem>>, vector<1x1x128xf32>
    %21 = vector.shape_cast %20 : vector<1x1x128xf32> to vector<1x128xf32>
    %22 = vector.shape_cast %19 : vector<1x128xf32> to vector<1x1x128xf32>
    tpu.vector_store %arg5[%c0_17, %c0_18, %c0_19], %22 {strides = array<i32>} : memref<1x2x128xf32, #tpu.memory_space<vmem>>, vector<1x1x128xf32>,
    %23 = arith.mulf %13, %13 : vector<8x128xf32>
    %cst_20 = arith.constant dense<0.000000e+00> : vector<128xf32>
    %24 = vector.multi_reduction <add>, %23, %cst_20 [0] : vector<8x128xf32> to vector<128xf32>
    %25 = vector.shape_cast %24 : vector<128xf32> to vector<1x128xf32>
    %c0_21 = arith.constant 0 : index
    %c1_22 = arith.constant 1 : index
    %c0_23 = arith.constant 0 : index
    %26 = vector.load %arg5[%c0_21, %c1_22, %c0_23] : memref<1x2x128xf32, #tpu.memory_space<vmem>>, vector<1x1x128xf32>
    %27 = vector.shape_cast %26 : vector<1x1x128xf32> to vector<1x128xf32>
    %28 = vector.shape_cast %25 : vector<1x128xf32> to vector<1x1x128xf32>
    tpu.vector_store %arg5[%c0_21, %c1_22, %c0_23], %28 {strides = array<i32>} : memref<1x2x128xf32, #tpu.memory_space<vmem>>, vector<1x1x128xf32>,
    return
  }
  func.func @transform_0(%arg0: i32) -> (i32, i32, i32) {
    %c0_i32 = arith.constant 0 : i32
    %c0_i32_0 = arith.constant 0 : i32
    %c0_i32_1 = arith.constant 0 : i32
    return %arg0, %c0_i32, %c0_i32_0 : i32, i32, i32
  }
  func.func @transform_1(%arg0: i32) -> (i32, i32, i32) {
    %c0_i32 = arith.constant 0 : i32
    %c0_i32_0 = arith.constant 0 : i32
    %c0_i32_1 = arith.constant 0 : i32
    %c0_i32_2 = arith.constant 0 : i32
    return %c0_i32, %c0_i32_0, %c0_i32_1 : i32, i32, i32
  }
  func.func @transform_2(%arg0: i32) -> (i32, i32) {
    %c0_i32 = arith.constant 0 : i32
    %c0_i32_0 = arith.constant 0 : i32
    %c0_i32_1 = arith.constant 0 : i32
    return %c0_i32, %c0_i32_0 : i32, i32
  }
  func.func @transform_3(%arg0: i32) -> (i32, i32, i32) {
    %c0_i32 = arith.constant 0 : i32
    %c0_i32_0 = arith.constant 0 : i32
    %c0_i32_1 = arith.constant 0 : i32
    return %arg0, %c0_i32, %c0_i32_0 : i32, i32, i32
  }
  func.func @transform_4(%arg0: i32) -> (i32, i32, i32) {
    %c0_i32 = arith.constant 0 : i32
    %c0_i32_0 = arith.constant 0 : i32
    %c0_i32_1 = arith.constant 0 : i32
    return %arg0, %c0_i32, %c0_i32_0 : i32, i32, i32
  }
}

module attributes {stable_mosaic.version = 11 : i64} {
  func.func @_band_conv_kernel(%arg0: i32, %arg1: memref<1x5x320xbf16, #tpu.memory_space<vmem>>, %arg2: memref<2x320x128xbf16, #tpu.memory_space<vmem>>, %arg3: memref<1x128xf32, #tpu.memory_space<vmem>>, %arg4: memref<1x4x128xbf16, #tpu.memory_space<vmem>>, %arg5: memref<1x2x128xf32, #tpu.memory_space<vmem>>) attributes {dimension_semantics = [#tpu.dimension_semantics<parallel>], iteration_bounds = array<i64: 2>, scalar_prefetch = 0 : i64, scratch_operands = 0 : i64, tpu.core_type = #tpu.core_type<tc>, window_params = [{transform_indices = @transform_0, window_bounds = array<i64: 1, 5, 320>}, {pipeline_mode = #tpu.pipeline_mode<synchronous>, transform_indices = @transform_1, window_bounds = array<i64: 2, 320, 128>}, {pipeline_mode = #tpu.pipeline_mode<synchronous>, transform_indices = @transform_2, window_bounds = array<i64: 1, 128>}, {transform_indices = @transform_3, window_bounds = array<i64: 1, 4, 128>}, {transform_indices = @transform_4, window_bounds = array<i64: 1, 2, 128>}]} {
    %c0 = arith.constant 0 : index
    %c0_0 = arith.constant 0 : index
    %c0_1 = arith.constant 0 : index
    %0 = vector.load %arg1[%c0, %c0_0, %c0_1] : memref<1x5x320xbf16, #tpu.memory_space<vmem>>, vector<1x4x320xbf16>
    %1 = vector.shape_cast %0 : vector<1x4x320xbf16> to vector<4x320xbf16>
    %c0_2 = arith.constant 0 : index
    %c0_3 = arith.constant 0 : index
    %c0_4 = arith.constant 0 : index
    %2 = vector.load %arg2[%c0_2, %c0_3, %c0_4] : memref<2x320x128xbf16, #tpu.memory_space<vmem>>, vector<1x320x128xbf16>
    %3 = vector.shape_cast %2 : vector<1x320x128xbf16> to vector<320x128xbf16>
    %cst = arith.constant dense<0.000000e+00> : vector<4x128xf32>
    %4 = tpu.matmul %1, %3, %cst {dimension_numbers = #tpu.dot_dimension_numbers<[1], [0], [0], [1], [0, 0, 1, 1], [], []>} : vector<4x320xbf16>, vector<320x128xbf16>, vector<4x128xf32> -> vector<4x128xf32>
    %c0_5 = arith.constant 0 : index
    %c1 = arith.constant 1 : index
    %c0_6 = arith.constant 0 : index
    %5 = vector.load %arg1[%c0_5, %c1, %c0_6] : memref<1x5x320xbf16, #tpu.memory_space<vmem>>, vector<1x4x320xbf16>
    %6 = vector.shape_cast %5 : vector<1x4x320xbf16> to vector<4x320xbf16>
    %c1_7 = arith.constant 1 : index
    %c0_8 = arith.constant 0 : index
    %c0_9 = arith.constant 0 : index
    %7 = vector.load %arg2[%c1_7, %c0_8, %c0_9] : memref<2x320x128xbf16, #tpu.memory_space<vmem>>, vector<1x320x128xbf16>
    %8 = vector.shape_cast %7 : vector<1x320x128xbf16> to vector<320x128xbf16>
    %cst_10 = arith.constant dense<0.000000e+00> : vector<4x128xf32>
    %9 = tpu.matmul %6, %8, %cst_10 {dimension_numbers = #tpu.dot_dimension_numbers<[1], [0], [0], [1], [0, 0, 1, 1], [], []>} : vector<4x320xbf16>, vector<320x128xbf16>, vector<4x128xf32> -> vector<4x128xf32>
    %10 = arith.addf %4, %9 : vector<4x128xf32>
    %c0_11 = arith.constant 0 : index
    %c0_12 = arith.constant 0 : index
    %11 = vector.load %arg3[%c0_11, %c0_12] : memref<1x128xf32, #tpu.memory_space<vmem>>, vector<1x128xf32>
    %12 = vector.broadcast %11 : vector<1x128xf32> to vector<4x128xf32>
    %13 = arith.addf %10, %12 : vector<4x128xf32>
    %14 = arith.truncf %13 : vector<4x128xf32> to vector<4x128xbf16>
    %c0_13 = arith.constant 0 : index
    %c0_14 = arith.constant 0 : index
    %c0_15 = arith.constant 0 : index
    %15 = vector.load %arg4[%c0_13, %c0_14, %c0_15] : memref<1x4x128xbf16, #tpu.memory_space<vmem>>, vector<1x4x128xbf16>
    %16 = vector.shape_cast %15 : vector<1x4x128xbf16> to vector<4x128xbf16>
    %17 = vector.shape_cast %14 : vector<4x128xbf16> to vector<1x4x128xbf16>
    tpu.vector_store %arg4[%c0_13, %c0_14, %c0_15], %17 {strides = array<i32>} : memref<1x4x128xbf16, #tpu.memory_space<vmem>>, vector<1x4x128xbf16>,
    %cst_16 = arith.constant dense<0.000000e+00> : vector<128xf32>
    %18 = vector.multi_reduction <add>, %13, %cst_16 [0] : vector<4x128xf32> to vector<128xf32>
    %19 = vector.shape_cast %18 : vector<128xf32> to vector<1x128xf32>
    %c0_17 = arith.constant 0 : index
    %c0_18 = arith.constant 0 : index
    %c0_19 = arith.constant 0 : index
    %20 = vector.load %arg5[%c0_17, %c0_18, %c0_19] : memref<1x2x128xf32, #tpu.memory_space<vmem>>, vector<1x1x128xf32>
    %21 = vector.shape_cast %20 : vector<1x1x128xf32> to vector<1x128xf32>
    %22 = vector.shape_cast %19 : vector<1x128xf32> to vector<1x1x128xf32>
    tpu.vector_store %arg5[%c0_17, %c0_18, %c0_19], %22 {strides = array<i32>} : memref<1x2x128xf32, #tpu.memory_space<vmem>>, vector<1x1x128xf32>,
    %23 = arith.mulf %13, %13 : vector<4x128xf32>
    %cst_20 = arith.constant dense<0.000000e+00> : vector<128xf32>
    %24 = vector.multi_reduction <add>, %23, %cst_20 [0] : vector<4x128xf32> to vector<128xf32>
    %25 = vector.shape_cast %24 : vector<128xf32> to vector<1x128xf32>
    %c0_21 = arith.constant 0 : index
    %c1_22 = arith.constant 1 : index
    %c0_23 = arith.constant 0 : index
    %26 = vector.load %arg5[%c0_21, %c1_22, %c0_23] : memref<1x2x128xf32, #tpu.memory_space<vmem>>, vector<1x1x128xf32>
    %27 = vector.shape_cast %26 : vector<1x1x128xf32> to vector<1x128xf32>
    %28 = vector.shape_cast %25 : vector<1x128xf32> to vector<1x1x128xf32>
    tpu.vector_store %arg5[%c0_21, %c1_22, %c0_23], %28 {strides = array<i32>} : memref<1x2x128xf32, #tpu.memory_space<vmem>>, vector<1x1x128xf32>,
    return
  }
  func.func @transform_0(%arg0: i32) -> (i32, i32, i32) {
    %c0_i32 = arith.constant 0 : i32
    %c0_i32_0 = arith.constant 0 : i32
    %c0_i32_1 = arith.constant 0 : i32
    return %arg0, %c0_i32, %c0_i32_0 : i32, i32, i32
  }
  func.func @transform_1(%arg0: i32) -> (i32, i32, i32) {
    %c0_i32 = arith.constant 0 : i32
    %c0_i32_0 = arith.constant 0 : i32
    %c0_i32_1 = arith.constant 0 : i32
    %c0_i32_2 = arith.constant 0 : i32
    return %c0_i32, %c0_i32_0, %c0_i32_1 : i32, i32, i32
  }
  func.func @transform_2(%arg0: i32) -> (i32, i32) {
    %c0_i32 = arith.constant 0 : i32
    %c0_i32_0 = arith.constant 0 : i32
    %c0_i32_1 = arith.constant 0 : i32
    return %c0_i32, %c0_i32_0 : i32, i32
  }
  func.func @transform_3(%arg0: i32) -> (i32, i32, i32) {
    %c0_i32 = arith.constant 0 : i32
    %c0_i32_0 = arith.constant 0 : i32
    %c0_i32_1 = arith.constant 0 : i32
    return %arg0, %c0_i32, %c0_i32_0 : i32, i32, i32
  }
  func.func @transform_4(%arg0: i32) -> (i32, i32, i32) {
    %c0_i32 = arith.constant 0 : i32
    %c0_i32_0 = arith.constant 0 : i32
    %c0_i32_1 = arith.constant 0 : i32
    return %arg0, %c0_i32, %c0_i32_0 : i32, i32, i32
  }
}

module attributes {stable_mosaic.version = 11 : i64} {
  func.func @_band_conv_kernel(%arg0: i32, %arg1: memref<1x3x384xbf16, #tpu.memory_space<vmem>>, %arg2: memref<2x384x128xbf16, #tpu.memory_space<vmem>>, %arg3: memref<1x128xf32, #tpu.memory_space<vmem>>, %arg4: memref<1x2x128xbf16, #tpu.memory_space<vmem>>, %arg5: memref<1x2x128xf32, #tpu.memory_space<vmem>>) attributes {dimension_semantics = [#tpu.dimension_semantics<parallel>], iteration_bounds = array<i64: 2>, scalar_prefetch = 0 : i64, scratch_operands = 0 : i64, tpu.core_type = #tpu.core_type<tc>, window_params = [{transform_indices = @transform_0, window_bounds = array<i64: 1, 3, 384>}, {pipeline_mode = #tpu.pipeline_mode<synchronous>, transform_indices = @transform_1, window_bounds = array<i64: 2, 384, 128>}, {pipeline_mode = #tpu.pipeline_mode<synchronous>, transform_indices = @transform_2, window_bounds = array<i64: 1, 128>}, {transform_indices = @transform_3, window_bounds = array<i64: 1, 2, 128>}, {transform_indices = @transform_4, window_bounds = array<i64: 1, 2, 128>}]} {
    %c0 = arith.constant 0 : index
    %c0_0 = arith.constant 0 : index
    %c0_1 = arith.constant 0 : index
    %0 = vector.load %arg1[%c0, %c0_0, %c0_1] : memref<1x3x384xbf16, #tpu.memory_space<vmem>>, vector<1x2x384xbf16>
    %1 = vector.shape_cast %0 : vector<1x2x384xbf16> to vector<2x384xbf16>
    %c0_2 = arith.constant 0 : index
    %c0_3 = arith.constant 0 : index
    %c0_4 = arith.constant 0 : index
    %2 = vector.load %arg2[%c0_2, %c0_3, %c0_4] : memref<2x384x128xbf16, #tpu.memory_space<vmem>>, vector<1x384x128xbf16>
    %3 = vector.shape_cast %2 : vector<1x384x128xbf16> to vector<384x128xbf16>
    %cst = arith.constant dense<0.000000e+00> : vector<2x128xf32>
    %4 = tpu.matmul %1, %3, %cst {dimension_numbers = #tpu.dot_dimension_numbers<[1], [0], [0], [1], [0, 0, 1, 1], [], []>} : vector<2x384xbf16>, vector<384x128xbf16>, vector<2x128xf32> -> vector<2x128xf32>
    %c0_5 = arith.constant 0 : index
    %c1 = arith.constant 1 : index
    %c0_6 = arith.constant 0 : index
    %5 = vector.load %arg1[%c0_5, %c1, %c0_6] : memref<1x3x384xbf16, #tpu.memory_space<vmem>>, vector<1x2x384xbf16>
    %6 = vector.shape_cast %5 : vector<1x2x384xbf16> to vector<2x384xbf16>
    %c1_7 = arith.constant 1 : index
    %c0_8 = arith.constant 0 : index
    %c0_9 = arith.constant 0 : index
    %7 = vector.load %arg2[%c1_7, %c0_8, %c0_9] : memref<2x384x128xbf16, #tpu.memory_space<vmem>>, vector<1x384x128xbf16>
    %8 = vector.shape_cast %7 : vector<1x384x128xbf16> to vector<384x128xbf16>
    %cst_10 = arith.constant dense<0.000000e+00> : vector<2x128xf32>
    %9 = tpu.matmul %6, %8, %cst_10 {dimension_numbers = #tpu.dot_dimension_numbers<[1], [0], [0], [1], [0, 0, 1, 1], [], []>} : vector<2x384xbf16>, vector<384x128xbf16>, vector<2x128xf32> -> vector<2x128xf32>
    %10 = arith.addf %4, %9 : vector<2x128xf32>
    %c0_11 = arith.constant 0 : index
    %c0_12 = arith.constant 0 : index
    %11 = vector.load %arg3[%c0_11, %c0_12] : memref<1x128xf32, #tpu.memory_space<vmem>>, vector<1x128xf32>
    %12 = vector.broadcast %11 : vector<1x128xf32> to vector<2x128xf32>
    %13 = arith.addf %10, %12 : vector<2x128xf32>
    %14 = arith.truncf %13 : vector<2x128xf32> to vector<2x128xbf16>
    %c0_13 = arith.constant 0 : index
    %c0_14 = arith.constant 0 : index
    %c0_15 = arith.constant 0 : index
    %15 = vector.load %arg4[%c0_13, %c0_14, %c0_15] : memref<1x2x128xbf16, #tpu.memory_space<vmem>>, vector<1x2x128xbf16>
    %16 = vector.shape_cast %15 : vector<1x2x128xbf16> to vector<2x128xbf16>
    %17 = vector.shape_cast %14 : vector<2x128xbf16> to vector<1x2x128xbf16>
    tpu.vector_store %arg4[%c0_13, %c0_14, %c0_15], %17 {strides = array<i32>} : memref<1x2x128xbf16, #tpu.memory_space<vmem>>, vector<1x2x128xbf16>,
    %cst_16 = arith.constant dense<0.000000e+00> : vector<128xf32>
    %18 = vector.multi_reduction <add>, %13, %cst_16 [0] : vector<2x128xf32> to vector<128xf32>
    %19 = vector.shape_cast %18 : vector<128xf32> to vector<1x128xf32>
    %c0_17 = arith.constant 0 : index
    %c0_18 = arith.constant 0 : index
    %c0_19 = arith.constant 0 : index
    %20 = vector.load %arg5[%c0_17, %c0_18, %c0_19] : memref<1x2x128xf32, #tpu.memory_space<vmem>>, vector<1x1x128xf32>
    %21 = vector.shape_cast %20 : vector<1x1x128xf32> to vector<1x128xf32>
    %22 = vector.shape_cast %19 : vector<1x128xf32> to vector<1x1x128xf32>
    tpu.vector_store %arg5[%c0_17, %c0_18, %c0_19], %22 {strides = array<i32>} : memref<1x2x128xf32, #tpu.memory_space<vmem>>, vector<1x1x128xf32>,
    %23 = arith.mulf %13, %13 : vector<2x128xf32>
    %cst_20 = arith.constant dense<0.000000e+00> : vector<128xf32>
    %24 = vector.multi_reduction <add>, %23, %cst_20 [0] : vector<2x128xf32> to vector<128xf32>
    %25 = vector.shape_cast %24 : vector<128xf32> to vector<1x128xf32>
    %c0_21 = arith.constant 0 : index
    %c1_22 = arith.constant 1 : index
    %c0_23 = arith.constant 0 : index
    %26 = vector.load %arg5[%c0_21, %c1_22, %c0_23] : memref<1x2x128xf32, #tpu.memory_space<vmem>>, vector<1x1x128xf32>
    %27 = vector.shape_cast %26 : vector<1x1x128xf32> to vector<1x128xf32>
    %28 = vector.shape_cast %25 : vector<1x128xf32> to vector<1x1x128xf32>
    tpu.vector_store %arg5[%c0_21, %c1_22, %c0_23], %28 {strides = array<i32>} : memref<1x2x128xf32, #tpu.memory_space<vmem>>, vector<1x1x128xf32>,
    return
  }
  func.func @transform_0(%arg0: i32) -> (i32, i32, i32) {
    %c0_i32 = arith.constant 0 : i32
    %c0_i32_0 = arith.constant 0 : i32
    %c0_i32_1 = arith.constant 0 : i32
    return %arg0, %c0_i32, %c0_i32_0 : i32, i32, i32
  }
  func.func @transform_1(%arg0: i32) -> (i32, i32, i32) {
    %c0_i32 = arith.constant 0 : i32
    %c0_i32_0 = arith.constant 0 : i32
    %c0_i32_1 = arith.constant 0 : i32
    %c0_i32_2 = arith.constant 0 : i32
    return %c0_i32, %c0_i32_0, %c0_i32_1 : i32, i32, i32
  }
  func.func @transform_2(%arg0: i32) -> (i32, i32) {
    %c0_i32 = arith.constant 0 : i32
    %c0_i32_0 = arith.constant 0 : i32
    %c0_i32_1 = arith.constant 0 : i32
    return %c0_i32, %c0_i32_0 : i32, i32
  }
  func.func @transform_3(%arg0: i32) -> (i32, i32, i32) {
    %c0_i32 = arith.constant 0 : i32
    %c0_i32_0 = arith.constant 0 : i32
    %c0_i32_1 = arith.constant 0 : i32
    return %arg0, %c0_i32, %c0_i32_0 : i32, i32, i32
  }
  func.func @transform_4(%arg0: i32) -> (i32, i32, i32) {
    %c0_i32 = arith.constant 0 : i32
    %c0_i32_0 = arith.constant 0 : i32
    %c0_i32_1 = arith.constant 0 : i32
    return %arg0, %c0_i32, %c0_i32_0 : i32, i32, i32
  }
}

module attributes {stable_mosaic.version = 11 : i64} {
  func.func @_band_conv_kernel(%arg0: i32, %arg1: memref<1x1x256xbf16, #tpu.memory_space<vmem>>, %arg2: memref<1x256x64xbf16, #tpu.memory_space<vmem>>, %arg3: memref<1x64xf32, #tpu.memory_space<vmem>>, %arg4: memref<1x1x64xbf16, #tpu.memory_space<vmem>>, %arg5: memref<1x2x64xf32, #tpu.memory_space<vmem>>) attributes {dimension_semantics = [#tpu.dimension_semantics<parallel>], iteration_bounds = array<i64: 2>, scalar_prefetch = 0 : i64, scratch_operands = 0 : i64, tpu.core_type = #tpu.core_type<tc>, window_params = [{transform_indices = @transform_0, window_bounds = array<i64: 1, 1, 256>}, {pipeline_mode = #tpu.pipeline_mode<synchronous>, transform_indices = @transform_1, window_bounds = array<i64: 1, 256, 64>}, {pipeline_mode = #tpu.pipeline_mode<synchronous>, transform_indices = @transform_2, window_bounds = array<i64: 1, 64>}, {transform_indices = @transform_3, window_bounds = array<i64: 1, 1, 64>}, {transform_indices = @transform_4, window_bounds = array<i64: 1, 2, 64>}]} {
    %c0 = arith.constant 0 : index
    %c0_0 = arith.constant 0 : index
    %c0_1 = arith.constant 0 : index
    %0 = vector.load %arg1[%c0, %c0_0, %c0_1] : memref<1x1x256xbf16, #tpu.memory_space<vmem>>, vector<1x1x256xbf16>
    %1 = vector.shape_cast %0 : vector<1x1x256xbf16> to vector<1x256xbf16>
    %c0_2 = arith.constant 0 : index
    %c0_3 = arith.constant 0 : index
    %c0_4 = arith.constant 0 : index
    %2 = vector.load %arg2[%c0_2, %c0_3, %c0_4] : memref<1x256x64xbf16, #tpu.memory_space<vmem>>, vector<1x256x64xbf16>
    %3 = vector.shape_cast %2 : vector<1x256x64xbf16> to vector<256x64xbf16>
    %cst = arith.constant dense<0.000000e+00> : vector<1x64xf32>
    %4 = tpu.matmul %1, %3, %cst {dimension_numbers = #tpu.dot_dimension_numbers<[1], [0], [0], [1], [0, 0, 1, 1], [], []>} : vector<1x256xbf16>, vector<256x64xbf16>, vector<1x64xf32> -> vector<1x64xf32>
    %c0_5 = arith.constant 0 : index
    %c0_6 = arith.constant 0 : index
    %5 = vector.load %arg3[%c0_5, %c0_6] : memref<1x64xf32, #tpu.memory_space<vmem>>, vector<1x64xf32>
    %6 = arith.addf %4, %5 : vector<1x64xf32>
    %7 = arith.truncf %6 : vector<1x64xf32> to vector<1x64xbf16>
    %c0_7 = arith.constant 0 : index
    %c0_8 = arith.constant 0 : index
    %c0_9 = arith.constant 0 : index
    %8 = vector.load %arg4[%c0_7, %c0_8, %c0_9] : memref<1x1x64xbf16, #tpu.memory_space<vmem>>, vector<1x1x64xbf16>
    %9 = vector.shape_cast %8 : vector<1x1x64xbf16> to vector<1x64xbf16>
    %10 = vector.shape_cast %7 : vector<1x64xbf16> to vector<1x1x64xbf16>
    tpu.vector_store %arg4[%c0_7, %c0_8, %c0_9], %10 {strides = array<i32>} : memref<1x1x64xbf16, #tpu.memory_space<vmem>>, vector<1x1x64xbf16>,
    %cst_10 = arith.constant dense<0.000000e+00> : vector<64xf32>
    %11 = vector.multi_reduction <add>, %6, %cst_10 [0] : vector<1x64xf32> to vector<64xf32>
    %12 = vector.shape_cast %11 : vector<64xf32> to vector<1x64xf32>
    %c0_11 = arith.constant 0 : index
    %c0_12 = arith.constant 0 : index
    %c0_13 = arith.constant 0 : index
    %13 = vector.load %arg5[%c0_11, %c0_12, %c0_13] : memref<1x2x64xf32, #tpu.memory_space<vmem>>, vector<1x1x64xf32>
    %14 = vector.shape_cast %13 : vector<1x1x64xf32> to vector<1x64xf32>
    %15 = vector.shape_cast %12 : vector<1x64xf32> to vector<1x1x64xf32>
    tpu.vector_store %arg5[%c0_11, %c0_12, %c0_13], %15 {strides = array<i32>} : memref<1x2x64xf32, #tpu.memory_space<vmem>>, vector<1x1x64xf32>,
    %16 = arith.mulf %6, %6 : vector<1x64xf32>
    %cst_14 = arith.constant dense<0.000000e+00> : vector<64xf32>
    %17 = vector.multi_reduction <add>, %16, %cst_14 [0] : vector<1x64xf32> to vector<64xf32>
    %18 = vector.shape_cast %17 : vector<64xf32> to vector<1x64xf32>
    %c0_15 = arith.constant 0 : index
    %c1 = arith.constant 1 : index
    %c0_16 = arith.constant 0 : index
    %19 = vector.load %arg5[%c0_15, %c1, %c0_16] : memref<1x2x64xf32, #tpu.memory_space<vmem>>, vector<1x1x64xf32>
    %20 = vector.shape_cast %19 : vector<1x1x64xf32> to vector<1x64xf32>
    %21 = vector.shape_cast %18 : vector<1x64xf32> to vector<1x1x64xf32>
    tpu.vector_store %arg5[%c0_15, %c1, %c0_16], %21 {strides = array<i32>} : memref<1x2x64xf32, #tpu.memory_space<vmem>>, vector<1x1x64xf32>,
    return
  }
  func.func @transform_0(%arg0: i32) -> (i32, i32, i32) {
    %c0_i32 = arith.constant 0 : i32
    %c0_i32_0 = arith.constant 0 : i32
    %c0_i32_1 = arith.constant 0 : i32
    return %arg0, %c0_i32, %c0_i32_0 : i32, i32, i32
  }
  func.func @transform_1(%arg0: i32) -> (i32, i32, i32) {
    %c0_i32 = arith.constant 0 : i32
    %c0_i32_0 = arith.constant 0 : i32
    %c0_i32_1 = arith.constant 0 : i32
    %c0_i32_2 = arith.constant 0 : i32
    return %c0_i32, %c0_i32_0, %c0_i32_1 : i32, i32, i32
  }
  func.func @transform_2(%arg0: i32) -> (i32, i32) {
    %c0_i32 = arith.constant 0 : i32
    %c0_i32_0 = arith.constant 0 : i32
    %c0_i32_1 = arith.constant 0 : i32
    return %c0_i32, %c0_i32_0 : i32, i32
  }
  func.func @transform_3(%arg0: i32) -> (i32, i32, i32) {
    %c0_i32 = arith.constant 0 : i32
    %c0_i32_0 = arith.constant 0 : i32
    %c0_i32_1 = arith.constant 0 : i32
    return %arg0, %c0_i32, %c0_i32_0 : i32, i32, i32
  }
  func.func @transform_4(%arg0: i32) -> (i32, i32, i32) {
    %c0_i32 = arith.constant 0 : i32
    %c0_i32_0 = arith.constant 0 : i32
    %c0_i32_1 = arith.constant 0 : i32
    return %arg0, %c0_i32, %c0_i32_0 : i32, i32, i32
  }
}

module attributes {stable_mosaic.version = 11 : i64} {
  func.func @_band_conv_kernel(%arg0: i32, %arg1: memref<1x2x128xbf16, #tpu.memory_space<vmem>>, %arg2: memref<1x128x128xbf16, #tpu.memory_space<vmem>>, %arg3: memref<1x128xf32, #tpu.memory_space<vmem>>, %arg4: memref<1x2x128xbf16, #tpu.memory_space<vmem>>, %arg5: memref<1x2x128xf32, #tpu.memory_space<vmem>>) attributes {dimension_semantics = [#tpu.dimension_semantics<parallel>], iteration_bounds = array<i64: 2>, scalar_prefetch = 0 : i64, scratch_operands = 0 : i64, tpu.core_type = #tpu.core_type<tc>, window_params = [{transform_indices = @transform_0, window_bounds = array<i64: 1, 2, 128>}, {pipeline_mode = #tpu.pipeline_mode<synchronous>, transform_indices = @transform_1, window_bounds = array<i64: 1, 128, 128>}, {pipeline_mode = #tpu.pipeline_mode<synchronous>, transform_indices = @transform_2, window_bounds = array<i64: 1, 128>}, {transform_indices = @transform_3, window_bounds = array<i64: 1, 2, 128>}, {transform_indices = @transform_4, window_bounds = array<i64: 1, 2, 128>}]} {
    %c0 = arith.constant 0 : index
    %c0_0 = arith.constant 0 : index
    %c0_1 = arith.constant 0 : index
    %0 = vector.load %arg1[%c0, %c0_0, %c0_1] : memref<1x2x128xbf16, #tpu.memory_space<vmem>>, vector<1x2x128xbf16>
    %1 = vector.shape_cast %0 : vector<1x2x128xbf16> to vector<2x128xbf16>
    %c0_2 = arith.constant 0 : index
    %c0_3 = arith.constant 0 : index
    %c0_4 = arith.constant 0 : index
    %2 = vector.load %arg2[%c0_2, %c0_3, %c0_4] : memref<1x128x128xbf16, #tpu.memory_space<vmem>>, vector<1x128x128xbf16>
    %3 = vector.shape_cast %2 : vector<1x128x128xbf16> to vector<128x128xbf16>
    %cst = arith.constant dense<0.000000e+00> : vector<2x128xf32>
    %4 = tpu.matmul %1, %3, %cst {dimension_numbers = #tpu.dot_dimension_numbers<[1], [0], [0], [1], [0, 0, 1, 1], [], []>} : vector<2x128xbf16>, vector<128x128xbf16>, vector<2x128xf32> -> vector<2x128xf32>
    %c0_5 = arith.constant 0 : index
    %c0_6 = arith.constant 0 : index
    %5 = vector.load %arg3[%c0_5, %c0_6] : memref<1x128xf32, #tpu.memory_space<vmem>>, vector<1x128xf32>
    %6 = vector.broadcast %5 : vector<1x128xf32> to vector<2x128xf32>
    %7 = arith.addf %4, %6 : vector<2x128xf32>
    %8 = arith.truncf %7 : vector<2x128xf32> to vector<2x128xbf16>
    %c0_7 = arith.constant 0 : index
    %c0_8 = arith.constant 0 : index
    %c0_9 = arith.constant 0 : index
    %9 = vector.load %arg4[%c0_7, %c0_8, %c0_9] : memref<1x2x128xbf16, #tpu.memory_space<vmem>>, vector<1x2x128xbf16>
    %10 = vector.shape_cast %9 : vector<1x2x128xbf16> to vector<2x128xbf16>
    %11 = vector.shape_cast %8 : vector<2x128xbf16> to vector<1x2x128xbf16>
    tpu.vector_store %arg4[%c0_7, %c0_8, %c0_9], %11 {strides = array<i32>} : memref<1x2x128xbf16, #tpu.memory_space<vmem>>, vector<1x2x128xbf16>,
    %cst_10 = arith.constant dense<0.000000e+00> : vector<128xf32>
    %12 = vector.multi_reduction <add>, %7, %cst_10 [0] : vector<2x128xf32> to vector<128xf32>
    %13 = vector.shape_cast %12 : vector<128xf32> to vector<1x128xf32>
    %c0_11 = arith.constant 0 : index
    %c0_12 = arith.constant 0 : index
    %c0_13 = arith.constant 0 : index
    %14 = vector.load %arg5[%c0_11, %c0_12, %c0_13] : memref<1x2x128xf32, #tpu.memory_space<vmem>>, vector<1x1x128xf32>
    %15 = vector.shape_cast %14 : vector<1x1x128xf32> to vector<1x128xf32>
    %16 = vector.shape_cast %13 : vector<1x128xf32> to vector<1x1x128xf32>
    tpu.vector_store %arg5[%c0_11, %c0_12, %c0_13], %16 {strides = array<i32>} : memref<1x2x128xf32, #tpu.memory_space<vmem>>, vector<1x1x128xf32>,
    %17 = arith.mulf %7, %7 : vector<2x128xf32>
    %cst_14 = arith.constant dense<0.000000e+00> : vector<128xf32>
    %18 = vector.multi_reduction <add>, %17, %cst_14 [0] : vector<2x128xf32> to vector<128xf32>
    %19 = vector.shape_cast %18 : vector<128xf32> to vector<1x128xf32>
    %c0_15 = arith.constant 0 : index
    %c1 = arith.constant 1 : index
    %c0_16 = arith.constant 0 : index
    %20 = vector.load %arg5[%c0_15, %c1, %c0_16] : memref<1x2x128xf32, #tpu.memory_space<vmem>>, vector<1x1x128xf32>
    %21 = vector.shape_cast %20 : vector<1x1x128xf32> to vector<1x128xf32>
    %22 = vector.shape_cast %19 : vector<1x128xf32> to vector<1x1x128xf32>
    tpu.vector_store %arg5[%c0_15, %c1, %c0_16], %22 {strides = array<i32>} : memref<1x2x128xf32, #tpu.memory_space<vmem>>, vector<1x1x128xf32>,
    return
  }
  func.func @transform_0(%arg0: i32) -> (i32, i32, i32) {
    %c0_i32 = arith.constant 0 : i32
    %c0_i32_0 = arith.constant 0 : i32
    %c0_i32_1 = arith.constant 0 : i32
    return %arg0, %c0_i32, %c0_i32_0 : i32, i32, i32
  }
  func.func @transform_1(%arg0: i32) -> (i32, i32, i32) {
    %c0_i32 = arith.constant 0 : i32
    %c0_i32_0 = arith.constant 0 : i32
    %c0_i32_1 = arith.constant 0 : i32
    %c0_i32_2 = arith.constant 0 : i32
    return %c0_i32, %c0_i32_0, %c0_i32_1 : i32, i32, i32
  }
  func.func @transform_2(%arg0: i32) -> (i32, i32) {
    %c0_i32 = arith.constant 0 : i32
    %c0_i32_0 = arith.constant 0 : i32
    %c0_i32_1 = arith.constant 0 : i32
    return %c0_i32, %c0_i32_0 : i32, i32
  }
  func.func @transform_3(%arg0: i32) -> (i32, i32, i32) {
    %c0_i32 = arith.constant 0 : i32
    %c0_i32_0 = arith.constant 0 : i32
    %c0_i32_1 = arith.constant 0 : i32
    return %arg0, %c0_i32, %c0_i32_0 : i32, i32, i32
  }
  func.func @transform_4(%arg0: i32) -> (i32, i32, i32) {
    %c0_i32 = arith.constant 0 : i32
    %c0_i32_0 = arith.constant 0 : i32
    %c0_i32_1 = arith.constant 0 : i32
    return %arg0, %c0_i32, %c0_i32_0 : i32, i32, i32
  }
}

module attributes {stable_mosaic.version = 11 : i64} {
  func.func @_band_conv_kernel(%arg0: i32, %arg1: memref<1x6x768xbf16, #tpu.memory_space<vmem>>, %arg2: memref<3x768x128xbf16, #tpu.memory_space<vmem>>, %arg3: memref<1x128xf32, #tpu.memory_space<vmem>>, %arg4: memref<1x4x128xbf16, #tpu.memory_space<vmem>>, %arg5: memref<1x2x128xf32, #tpu.memory_space<vmem>>) attributes {dimension_semantics = [#tpu.dimension_semantics<parallel>], iteration_bounds = array<i64: 2>, scalar_prefetch = 0 : i64, scratch_operands = 0 : i64, tpu.core_type = #tpu.core_type<tc>, window_params = [{transform_indices = @transform_0, window_bounds = array<i64: 1, 6, 768>}, {pipeline_mode = #tpu.pipeline_mode<synchronous>, transform_indices = @transform_1, window_bounds = array<i64: 3, 768, 128>}, {pipeline_mode = #tpu.pipeline_mode<synchronous>, transform_indices = @transform_2, window_bounds = array<i64: 1, 128>}, {transform_indices = @transform_3, window_bounds = array<i64: 1, 4, 128>}, {transform_indices = @transform_4, window_bounds = array<i64: 1, 2, 128>}]} {
    %c0 = arith.constant 0 : index
    %c0_0 = arith.constant 0 : index
    %c0_1 = arith.constant 0 : index
    %0 = vector.load %arg1[%c0, %c0_0, %c0_1] : memref<1x6x768xbf16, #tpu.memory_space<vmem>>, vector<1x4x768xbf16>
    %1 = vector.shape_cast %0 : vector<1x4x768xbf16> to vector<4x768xbf16>
    %c0_2 = arith.constant 0 : index
    %c0_3 = arith.constant 0 : index
    %c0_4 = arith.constant 0 : index
    %2 = vector.load %arg2[%c0_2, %c0_3, %c0_4] : memref<3x768x128xbf16, #tpu.memory_space<vmem>>, vector<1x768x128xbf16>
    %3 = vector.shape_cast %2 : vector<1x768x128xbf16> to vector<768x128xbf16>
    %cst = arith.constant dense<0.000000e+00> : vector<4x128xf32>
    %4 = tpu.matmul %1, %3, %cst {dimension_numbers = #tpu.dot_dimension_numbers<[1], [0], [0], [1], [0, 0, 1, 1], [], []>} : vector<4x768xbf16>, vector<768x128xbf16>, vector<4x128xf32> -> vector<4x128xf32>
    %c0_5 = arith.constant 0 : index
    %c1 = arith.constant 1 : index
    %c0_6 = arith.constant 0 : index
    %5 = vector.load %arg1[%c0_5, %c1, %c0_6] : memref<1x6x768xbf16, #tpu.memory_space<vmem>>, vector<1x4x768xbf16>
    %6 = vector.shape_cast %5 : vector<1x4x768xbf16> to vector<4x768xbf16>
    %c1_7 = arith.constant 1 : index
    %c0_8 = arith.constant 0 : index
    %c0_9 = arith.constant 0 : index
    %7 = vector.load %arg2[%c1_7, %c0_8, %c0_9] : memref<3x768x128xbf16, #tpu.memory_space<vmem>>, vector<1x768x128xbf16>
    %8 = vector.shape_cast %7 : vector<1x768x128xbf16> to vector<768x128xbf16>
    %cst_10 = arith.constant dense<0.000000e+00> : vector<4x128xf32>
    %9 = tpu.matmul %6, %8, %cst_10 {dimension_numbers = #tpu.dot_dimension_numbers<[1], [0], [0], [1], [0, 0, 1, 1], [], []>} : vector<4x768xbf16>, vector<768x128xbf16>, vector<4x128xf32> -> vector<4x128xf32>
    %10 = arith.addf %4, %9 : vector<4x128xf32>
    %c0_11 = arith.constant 0 : index
    %c2 = arith.constant 2 : index
    %c0_12 = arith.constant 0 : index
    %11 = vector.load %arg1[%c0_11, %c2, %c0_12] : memref<1x6x768xbf16, #tpu.memory_space<vmem>>, vector<1x4x768xbf16>
    %12 = vector.shape_cast %11 : vector<1x4x768xbf16> to vector<4x768xbf16>
    %c2_13 = arith.constant 2 : index
    %c0_14 = arith.constant 0 : index
    %c0_15 = arith.constant 0 : index
    %13 = vector.load %arg2[%c2_13, %c0_14, %c0_15] : memref<3x768x128xbf16, #tpu.memory_space<vmem>>, vector<1x768x128xbf16>
    %14 = vector.shape_cast %13 : vector<1x768x128xbf16> to vector<768x128xbf16>
    %cst_16 = arith.constant dense<0.000000e+00> : vector<4x128xf32>
    %15 = tpu.matmul %12, %14, %cst_16 {dimension_numbers = #tpu.dot_dimension_numbers<[1], [0], [0], [1], [0, 0, 1, 1], [], []>} : vector<4x768xbf16>, vector<768x128xbf16>, vector<4x128xf32> -> vector<4x128xf32>
    %16 = arith.addf %10, %15 : vector<4x128xf32>
    %c0_17 = arith.constant 0 : index
    %c0_18 = arith.constant 0 : index
    %17 = vector.load %arg3[%c0_17, %c0_18] : memref<1x128xf32, #tpu.memory_space<vmem>>, vector<1x128xf32>
    %18 = vector.broadcast %17 : vector<1x128xf32> to vector<4x128xf32>
    %19 = arith.addf %16, %18 : vector<4x128xf32>
    %20 = arith.truncf %19 : vector<4x128xf32> to vector<4x128xbf16>
    %c0_19 = arith.constant 0 : index
    %c0_20 = arith.constant 0 : index
    %c0_21 = arith.constant 0 : index
    %21 = vector.load %arg4[%c0_19, %c0_20, %c0_21] : memref<1x4x128xbf16, #tpu.memory_space<vmem>>, vector<1x4x128xbf16>
    %22 = vector.shape_cast %21 : vector<1x4x128xbf16> to vector<4x128xbf16>
    %23 = vector.shape_cast %20 : vector<4x128xbf16> to vector<1x4x128xbf16>
    tpu.vector_store %arg4[%c0_19, %c0_20, %c0_21], %23 {strides = array<i32>} : memref<1x4x128xbf16, #tpu.memory_space<vmem>>, vector<1x4x128xbf16>,
    %cst_22 = arith.constant dense<0.000000e+00> : vector<128xf32>
    %24 = vector.multi_reduction <add>, %19, %cst_22 [0] : vector<4x128xf32> to vector<128xf32>
    %25 = vector.shape_cast %24 : vector<128xf32> to vector<1x128xf32>
    %c0_23 = arith.constant 0 : index
    %c0_24 = arith.constant 0 : index
    %c0_25 = arith.constant 0 : index
    %26 = vector.load %arg5[%c0_23, %c0_24, %c0_25] : memref<1x2x128xf32, #tpu.memory_space<vmem>>, vector<1x1x128xf32>
    %27 = vector.shape_cast %26 : vector<1x1x128xf32> to vector<1x128xf32>
    %28 = vector.shape_cast %25 : vector<1x128xf32> to vector<1x1x128xf32>
    tpu.vector_store %arg5[%c0_23, %c0_24, %c0_25], %28 {strides = array<i32>} : memref<1x2x128xf32, #tpu.memory_space<vmem>>, vector<1x1x128xf32>,
    %29 = arith.mulf %19, %19 : vector<4x128xf32>
    %cst_26 = arith.constant dense<0.000000e+00> : vector<128xf32>
    %30 = vector.multi_reduction <add>, %29, %cst_26 [0] : vector<4x128xf32> to vector<128xf32>
    %31 = vector.shape_cast %30 : vector<128xf32> to vector<1x128xf32>
    %c0_27 = arith.constant 0 : index
    %c1_28 = arith.constant 1 : index
    %c0_29 = arith.constant 0 : index
    %32 = vector.load %arg5[%c0_27, %c1_28, %c0_29] : memref<1x2x128xf32, #tpu.memory_space<vmem>>, vector<1x1x128xf32>
    %33 = vector.shape_cast %32 : vector<1x1x128xf32> to vector<1x128xf32>
    %34 = vector.shape_cast %31 : vector<1x128xf32> to vector<1x1x128xf32>
    tpu.vector_store %arg5[%c0_27, %c1_28, %c0_29], %34 {strides = array<i32>} : memref<1x2x128xf32, #tpu.memory_space<vmem>>, vector<1x1x128xf32>,
    return
  }
  func.func @transform_0(%arg0: i32) -> (i32, i32, i32) {
    %c0_i32 = arith.constant 0 : i32
    %c0_i32_0 = arith.constant 0 : i32
    %c0_i32_1 = arith.constant 0 : i32
    return %arg0, %c0_i32, %c0_i32_0 : i32, i32, i32
  }
  func.func @transform_1(%arg0: i32) -> (i32, i32, i32) {
    %c0_i32 = arith.constant 0 : i32
    %c0_i32_0 = arith.constant 0 : i32
    %c0_i32_1 = arith.constant 0 : i32
    %c0_i32_2 = arith.constant 0 : i32
    return %c0_i32, %c0_i32_0, %c0_i32_1 : i32, i32, i32
  }
  func.func @transform_2(%arg0: i32) -> (i32, i32) {
    %c0_i32 = arith.constant 0 : i32
    %c0_i32_0 = arith.constant 0 : i32
    %c0_i32_1 = arith.constant 0 : i32
    return %c0_i32, %c0_i32_0 : i32, i32
  }
  func.func @transform_3(%arg0: i32) -> (i32, i32, i32) {
    %c0_i32 = arith.constant 0 : i32
    %c0_i32_0 = arith.constant 0 : i32
    %c0_i32_1 = arith.constant 0 : i32
    return %arg0, %c0_i32, %c0_i32_0 : i32, i32, i32
  }
  func.func @transform_4(%arg0: i32) -> (i32, i32, i32) {
    %c0_i32 = arith.constant 0 : i32
    %c0_i32_0 = arith.constant 0 : i32
    %c0_i32_1 = arith.constant 0 : i32
    return %arg0, %c0_i32, %c0_i32_0 : i32, i32, i32
  }
}

module attributes {stable_mosaic.version = 11 : i64} {
  func.func @_band_conv_kernel(%arg0: i32, %arg1: memref<1x10x640xbf16, #tpu.memory_space<vmem>>, %arg2: memref<3x640x128xbf16, #tpu.memory_space<vmem>>, %arg3: memref<1x128xf32, #tpu.memory_space<vmem>>, %arg4: memref<1x8x128xbf16, #tpu.memory_space<vmem>>, %arg5: memref<1x2x128xf32, #tpu.memory_space<vmem>>) attributes {dimension_semantics = [#tpu.dimension_semantics<parallel>], iteration_bounds = array<i64: 2>, scalar_prefetch = 0 : i64, scratch_operands = 0 : i64, tpu.core_type = #tpu.core_type<tc>, window_params = [{transform_indices = @transform_0, window_bounds = array<i64: 1, 10, 640>}, {pipeline_mode = #tpu.pipeline_mode<synchronous>, transform_indices = @transform_1, window_bounds = array<i64: 3, 640, 128>}, {pipeline_mode = #tpu.pipeline_mode<synchronous>, transform_indices = @transform_2, window_bounds = array<i64: 1, 128>}, {transform_indices = @transform_3, window_bounds = array<i64: 1, 8, 128>}, {transform_indices = @transform_4, window_bounds = array<i64: 1, 2, 128>}]} {
    %c0 = arith.constant 0 : index
    %c0_0 = arith.constant 0 : index
    %c0_1 = arith.constant 0 : index
    %0 = vector.load %arg1[%c0, %c0_0, %c0_1] : memref<1x10x640xbf16, #tpu.memory_space<vmem>>, vector<1x8x640xbf16>
    %1 = vector.shape_cast %0 : vector<1x8x640xbf16> to vector<8x640xbf16>
    %c0_2 = arith.constant 0 : index
    %c0_3 = arith.constant 0 : index
    %c0_4 = arith.constant 0 : index
    %2 = vector.load %arg2[%c0_2, %c0_3, %c0_4] : memref<3x640x128xbf16, #tpu.memory_space<vmem>>, vector<1x640x128xbf16>
    %3 = vector.shape_cast %2 : vector<1x640x128xbf16> to vector<640x128xbf16>
    %cst = arith.constant dense<0.000000e+00> : vector<8x128xf32>
    %4 = tpu.matmul %1, %3, %cst {dimension_numbers = #tpu.dot_dimension_numbers<[1], [0], [0], [1], [0, 0, 1, 1], [], []>} : vector<8x640xbf16>, vector<640x128xbf16>, vector<8x128xf32> -> vector<8x128xf32>
    %c0_5 = arith.constant 0 : index
    %c1 = arith.constant 1 : index
    %c0_6 = arith.constant 0 : index
    %5 = vector.load %arg1[%c0_5, %c1, %c0_6] : memref<1x10x640xbf16, #tpu.memory_space<vmem>>, vector<1x8x640xbf16>
    %6 = vector.shape_cast %5 : vector<1x8x640xbf16> to vector<8x640xbf16>
    %c1_7 = arith.constant 1 : index
    %c0_8 = arith.constant 0 : index
    %c0_9 = arith.constant 0 : index
    %7 = vector.load %arg2[%c1_7, %c0_8, %c0_9] : memref<3x640x128xbf16, #tpu.memory_space<vmem>>, vector<1x640x128xbf16>
    %8 = vector.shape_cast %7 : vector<1x640x128xbf16> to vector<640x128xbf16>
    %cst_10 = arith.constant dense<0.000000e+00> : vector<8x128xf32>
    %9 = tpu.matmul %6, %8, %cst_10 {dimension_numbers = #tpu.dot_dimension_numbers<[1], [0], [0], [1], [0, 0, 1, 1], [], []>} : vector<8x640xbf16>, vector<640x128xbf16>, vector<8x128xf32> -> vector<8x128xf32>
    %10 = arith.addf %4, %9 : vector<8x128xf32>
    %c0_11 = arith.constant 0 : index
    %c2 = arith.constant 2 : index
    %c0_12 = arith.constant 0 : index
    %11 = vector.load %arg1[%c0_11, %c2, %c0_12] : memref<1x10x640xbf16, #tpu.memory_space<vmem>>, vector<1x8x640xbf16>
    %12 = vector.shape_cast %11 : vector<1x8x640xbf16> to vector<8x640xbf16>
    %c2_13 = arith.constant 2 : index
    %c0_14 = arith.constant 0 : index
    %c0_15 = arith.constant 0 : index
    %13 = vector.load %arg2[%c2_13, %c0_14, %c0_15] : memref<3x640x128xbf16, #tpu.memory_space<vmem>>, vector<1x640x128xbf16>
    %14 = vector.shape_cast %13 : vector<1x640x128xbf16> to vector<640x128xbf16>
    %cst_16 = arith.constant dense<0.000000e+00> : vector<8x128xf32>
    %15 = tpu.matmul %12, %14, %cst_16 {dimension_numbers = #tpu.dot_dimension_numbers<[1], [0], [0], [1], [0, 0, 1, 1], [], []>} : vector<8x640xbf16>, vector<640x128xbf16>, vector<8x128xf32> -> vector<8x128xf32>
    %16 = arith.addf %10, %15 : vector<8x128xf32>
    %c0_17 = arith.constant 0 : index
    %c0_18 = arith.constant 0 : index
    %17 = vector.load %arg3[%c0_17, %c0_18] : memref<1x128xf32, #tpu.memory_space<vmem>>, vector<1x128xf32>
    %18 = vector.broadcast %17 : vector<1x128xf32> to vector<8x128xf32>
    %19 = arith.addf %16, %18 : vector<8x128xf32>
    %20 = arith.truncf %19 : vector<8x128xf32> to vector<8x128xbf16>
    %c0_19 = arith.constant 0 : index
    %c0_20 = arith.constant 0 : index
    %c0_21 = arith.constant 0 : index
    %21 = vector.load %arg4[%c0_19, %c0_20, %c0_21] : memref<1x8x128xbf16, #tpu.memory_space<vmem>>, vector<1x8x128xbf16>
    %22 = vector.shape_cast %21 : vector<1x8x128xbf16> to vector<8x128xbf16>
    %23 = vector.shape_cast %20 : vector<8x128xbf16> to vector<1x8x128xbf16>
    tpu.vector_store %arg4[%c0_19, %c0_20, %c0_21], %23 {strides = array<i32>} : memref<1x8x128xbf16, #tpu.memory_space<vmem>>, vector<1x8x128xbf16>,
    %cst_22 = arith.constant dense<0.000000e+00> : vector<128xf32>
    %24 = vector.multi_reduction <add>, %19, %cst_22 [0] : vector<8x128xf32> to vector<128xf32>
    %25 = vector.shape_cast %24 : vector<128xf32> to vector<1x128xf32>
    %c0_23 = arith.constant 0 : index
    %c0_24 = arith.constant 0 : index
    %c0_25 = arith.constant 0 : index
    %26 = vector.load %arg5[%c0_23, %c0_24, %c0_25] : memref<1x2x128xf32, #tpu.memory_space<vmem>>, vector<1x1x128xf32>
    %27 = vector.shape_cast %26 : vector<1x1x128xf32> to vector<1x128xf32>
    %28 = vector.shape_cast %25 : vector<1x128xf32> to vector<1x1x128xf32>
    tpu.vector_store %arg5[%c0_23, %c0_24, %c0_25], %28 {strides = array<i32>} : memref<1x2x128xf32, #tpu.memory_space<vmem>>, vector<1x1x128xf32>,
    %29 = arith.mulf %19, %19 : vector<8x128xf32>
    %cst_26 = arith.constant dense<0.000000e+00> : vector<128xf32>
    %30 = vector.multi_reduction <add>, %29, %cst_26 [0] : vector<8x128xf32> to vector<128xf32>
    %31 = vector.shape_cast %30 : vector<128xf32> to vector<1x128xf32>
    %c0_27 = arith.constant 0 : index
    %c1_28 = arith.constant 1 : index
    %c0_29 = arith.constant 0 : index
    %32 = vector.load %arg5[%c0_27, %c1_28, %c0_29] : memref<1x2x128xf32, #tpu.memory_space<vmem>>, vector<1x1x128xf32>
    %33 = vector.shape_cast %32 : vector<1x1x128xf32> to vector<1x128xf32>
    %34 = vector.shape_cast %31 : vector<1x128xf32> to vector<1x1x128xf32>
    tpu.vector_store %arg5[%c0_27, %c1_28, %c0_29], %34 {strides = array<i32>} : memref<1x2x128xf32, #tpu.memory_space<vmem>>, vector<1x1x128xf32>,
    return
  }
  func.func @transform_0(%arg0: i32) -> (i32, i32, i32) {
    %c0_i32 = arith.constant 0 : i32
    %c0_i32_0 = arith.constant 0 : i32
    %c0_i32_1 = arith.constant 0 : i32
    return %arg0, %c0_i32, %c0_i32_0 : i32, i32, i32
  }
  func.func @transform_1(%arg0: i32) -> (i32, i32, i32) {
    %c0_i32 = arith.constant 0 : i32
    %c0_i32_0 = arith.constant 0 : i32
    %c0_i32_1 = arith.constant 0 : i32
    %c0_i32_2 = arith.constant 0 : i32
    return %c0_i32, %c0_i32_0, %c0_i32_1 : i32, i32, i32
  }
  func.func @transform_2(%arg0: i32) -> (i32, i32) {
    %c0_i32 = arith.constant 0 : i32
    %c0_i32_0 = arith.constant 0 : i32
    %c0_i32_1 = arith.constant 0 : i32
    return %c0_i32, %c0_i32_0 : i32, i32
  }
  func.func @transform_3(%arg0: i32) -> (i32, i32, i32) {
    %c0_i32 = arith.constant 0 : i32
    %c0_i32_0 = arith.constant 0 : i32
    %c0_i32_1 = arith.constant 0 : i32
    return %arg0, %c0_i32, %c0_i32_0 : i32, i32, i32
  }
  func.func @transform_4(%arg0: i32) -> (i32, i32, i32) {
    %c0_i32 = arith.constant 0 : i32
    %c0_i32_0 = arith.constant 0 : i32
    %c0_i32_1 = arith.constant 0 : i32
    return %arg0, %c0_i32, %c0_i32_0 : i32, i32, i32
  }
}

module attributes {stable_mosaic.version = 11 : i64} {
  func.func @_band_conv_kernel(%arg0: i32, %arg1: memref<1x18x576xbf16, #tpu.memory_space<vmem>>, %arg2: memref<3x576x128xbf16, #tpu.memory_space<vmem>>, %arg3: memref<1x128xf32, #tpu.memory_space<vmem>>, %arg4: memref<1x16x128xbf16, #tpu.memory_space<vmem>>, %arg5: memref<1x2x128xf32, #tpu.memory_space<vmem>>) attributes {dimension_semantics = [#tpu.dimension_semantics<parallel>], iteration_bounds = array<i64: 2>, scalar_prefetch = 0 : i64, scratch_operands = 0 : i64, tpu.core_type = #tpu.core_type<tc>, window_params = [{transform_indices = @transform_0, window_bounds = array<i64: 1, 18, 576>}, {pipeline_mode = #tpu.pipeline_mode<synchronous>, transform_indices = @transform_1, window_bounds = array<i64: 3, 576, 128>}, {pipeline_mode = #tpu.pipeline_mode<synchronous>, transform_indices = @transform_2, window_bounds = array<i64: 1, 128>}, {transform_indices = @transform_3, window_bounds = array<i64: 1, 16, 128>}, {transform_indices = @transform_4, window_bounds = array<i64: 1, 2, 128>}]} {
    %c0 = arith.constant 0 : index
    %c0_0 = arith.constant 0 : index
    %c0_1 = arith.constant 0 : index
    %0 = vector.load %arg1[%c0, %c0_0, %c0_1] : memref<1x18x576xbf16, #tpu.memory_space<vmem>>, vector<1x16x576xbf16>
    %1 = vector.shape_cast %0 : vector<1x16x576xbf16> to vector<16x576xbf16>
    %c0_2 = arith.constant 0 : index
    %c0_3 = arith.constant 0 : index
    %c0_4 = arith.constant 0 : index
    %2 = vector.load %arg2[%c0_2, %c0_3, %c0_4] : memref<3x576x128xbf16, #tpu.memory_space<vmem>>, vector<1x576x128xbf16>
    %3 = vector.shape_cast %2 : vector<1x576x128xbf16> to vector<576x128xbf16>
    %cst = arith.constant dense<0.000000e+00> : vector<16x128xf32>
    %4 = tpu.matmul %1, %3, %cst {dimension_numbers = #tpu.dot_dimension_numbers<[1], [0], [0], [1], [0, 0, 1, 1], [], []>} : vector<16x576xbf16>, vector<576x128xbf16>, vector<16x128xf32> -> vector<16x128xf32>
    %c0_5 = arith.constant 0 : index
    %c1 = arith.constant 1 : index
    %c0_6 = arith.constant 0 : index
    %5 = vector.load %arg1[%c0_5, %c1, %c0_6] : memref<1x18x576xbf16, #tpu.memory_space<vmem>>, vector<1x16x576xbf16>
    %6 = vector.shape_cast %5 : vector<1x16x576xbf16> to vector<16x576xbf16>
    %c1_7 = arith.constant 1 : index
    %c0_8 = arith.constant 0 : index
    %c0_9 = arith.constant 0 : index
    %7 = vector.load %arg2[%c1_7, %c0_8, %c0_9] : memref<3x576x128xbf16, #tpu.memory_space<vmem>>, vector<1x576x128xbf16>
    %8 = vector.shape_cast %7 : vector<1x576x128xbf16> to vector<576x128xbf16>
    %cst_10 = arith.constant dense<0.000000e+00> : vector<16x128xf32>
    %9 = tpu.matmul %6, %8, %cst_10 {dimension_numbers = #tpu.dot_dimension_numbers<[1], [0], [0], [1], [0, 0, 1, 1], [], []>} : vector<16x576xbf16>, vector<576x128xbf16>, vector<16x128xf32> -> vector<16x128xf32>
    %10 = arith.addf %4, %9 : vector<16x128xf32>
    %c0_11 = arith.constant 0 : index
    %c2 = arith.constant 2 : index
    %c0_12 = arith.constant 0 : index
    %11 = vector.load %arg1[%c0_11, %c2, %c0_12] : memref<1x18x576xbf16, #tpu.memory_space<vmem>>, vector<1x16x576xbf16>
    %12 = vector.shape_cast %11 : vector<1x16x576xbf16> to vector<16x576xbf16>
    %c2_13 = arith.constant 2 : index
    %c0_14 = arith.constant 0 : index
    %c0_15 = arith.constant 0 : index
    %13 = vector.load %arg2[%c2_13, %c0_14, %c0_15] : memref<3x576x128xbf16, #tpu.memory_space<vmem>>, vector<1x576x128xbf16>
    %14 = vector.shape_cast %13 : vector<1x576x128xbf16> to vector<576x128xbf16>
    %cst_16 = arith.constant dense<0.000000e+00> : vector<16x128xf32>
    %15 = tpu.matmul %12, %14, %cst_16 {dimension_numbers = #tpu.dot_dimension_numbers<[1], [0], [0], [1], [0, 0, 1, 1], [], []>} : vector<16x576xbf16>, vector<576x128xbf16>, vector<16x128xf32> -> vector<16x128xf32>
    %16 = arith.addf %10, %15 : vector<16x128xf32>
    %c0_17 = arith.constant 0 : index
    %c0_18 = arith.constant 0 : index
    %17 = vector.load %arg3[%c0_17, %c0_18] : memref<1x128xf32, #tpu.memory_space<vmem>>, vector<1x128xf32>
    %18 = vector.broadcast %17 : vector<1x128xf32> to vector<16x128xf32>
    %19 = arith.addf %16, %18 : vector<16x128xf32>
    %20 = arith.truncf %19 : vector<16x128xf32> to vector<16x128xbf16>
    %c0_19 = arith.constant 0 : index
    %c0_20 = arith.constant 0 : index
    %c0_21 = arith.constant 0 : index
    %21 = vector.load %arg4[%c0_19, %c0_20, %c0_21] : memref<1x16x128xbf16, #tpu.memory_space<vmem>>, vector<1x16x128xbf16>
    %22 = vector.shape_cast %21 : vector<1x16x128xbf16> to vector<16x128xbf16>
    %23 = vector.shape_cast %20 : vector<16x128xbf16> to vector<1x16x128xbf16>
    tpu.vector_store %arg4[%c0_19, %c0_20, %c0_21], %23 {strides = array<i32>} : memref<1x16x128xbf16, #tpu.memory_space<vmem>>, vector<1x16x128xbf16>,
    %cst_22 = arith.constant dense<0.000000e+00> : vector<128xf32>
    %24 = vector.multi_reduction <add>, %19, %cst_22 [0] : vector<16x128xf32> to vector<128xf32>
    %25 = vector.shape_cast %24 : vector<128xf32> to vector<1x128xf32>
    %c0_23 = arith.constant 0 : index
    %c0_24 = arith.constant 0 : index
    %c0_25 = arith.constant 0 : index
    %26 = vector.load %arg5[%c0_23, %c0_24, %c0_25] : memref<1x2x128xf32, #tpu.memory_space<vmem>>, vector<1x1x128xf32>
    %27 = vector.shape_cast %26 : vector<1x1x128xf32> to vector<1x128xf32>
    %28 = vector.shape_cast %25 : vector<1x128xf32> to vector<1x1x128xf32>
    tpu.vector_store %arg5[%c0_23, %c0_24, %c0_25], %28 {strides = array<i32>} : memref<1x2x128xf32, #tpu.memory_space<vmem>>, vector<1x1x128xf32>,
    %29 = arith.mulf %19, %19 : vector<16x128xf32>
    %cst_26 = arith.constant dense<0.000000e+00> : vector<128xf32>
    %30 = vector.multi_reduction <add>, %29, %cst_26 [0] : vector<16x128xf32> to vector<128xf32>
    %31 = vector.shape_cast %30 : vector<128xf32> to vector<1x128xf32>
    %c0_27 = arith.constant 0 : index
    %c1_28 = arith.constant 1 : index
    %c0_29 = arith.constant 0 : index
    %32 = vector.load %arg5[%c0_27, %c1_28, %c0_29] : memref<1x2x128xf32, #tpu.memory_space<vmem>>, vector<1x1x128xf32>
    %33 = vector.shape_cast %32 : vector<1x1x128xf32> to vector<1x128xf32>
    %34 = vector.shape_cast %31 : vector<1x128xf32> to vector<1x1x128xf32>
    tpu.vector_store %arg5[%c0_27, %c1_28, %c0_29], %34 {strides = array<i32>} : memref<1x2x128xf32, #tpu.memory_space<vmem>>, vector<1x1x128xf32>,
    return
  }
  func.func @transform_0(%arg0: i32) -> (i32, i32, i32) {
    %c0_i32 = arith.constant 0 : i32
    %c0_i32_0 = arith.constant 0 : i32
    %c0_i32_1 = arith.constant 0 : i32
    return %arg0, %c0_i32, %c0_i32_0 : i32, i32, i32
  }
  func.func @transform_1(%arg0: i32) -> (i32, i32, i32) {
    %c0_i32 = arith.constant 0 : i32
    %c0_i32_0 = arith.constant 0 : i32
    %c0_i32_1 = arith.constant 0 : i32
    %c0_i32_2 = arith.constant 0 : i32
    return %c0_i32, %c0_i32_0, %c0_i32_1 : i32, i32, i32
  }
  func.func @transform_2(%arg0: i32) -> (i32, i32) {
    %c0_i32 = arith.constant 0 : i32
    %c0_i32_0 = arith.constant 0 : i32
    %c0_i32_1 = arith.constant 0 : i32
    return %c0_i32, %c0_i32_0 : i32, i32
  }
  func.func @transform_3(%arg0: i32) -> (i32, i32, i32) {
    %c0_i32 = arith.constant 0 : i32
    %c0_i32_0 = arith.constant 0 : i32
    %c0_i32_1 = arith.constant 0 : i32
    return %arg0, %c0_i32, %c0_i32_0 : i32, i32, i32
  }
  func.func @transform_4(%arg0: i32) -> (i32, i32, i32) {
    %c0_i32 = arith.constant 0 : i32
    %c0_i32_0 = arith.constant 0 : i32
    %c0_i32_1 = arith.constant 0 : i32
    return %arg0, %c0_i32, %c0_i32_0 : i32, i32, i32
  }
}

module attributes {stable_mosaic.version = 11 : i64} {
  func.func @_band_conv_kernel(%arg0: i32, %arg1: memref<1x18x288xbf16, #tpu.memory_space<vmem>>, %arg2: memref<3x288x192xbf16, #tpu.memory_space<vmem>>, %arg3: memref<1x192xf32, #tpu.memory_space<vmem>>, %arg4: memref<1x16x192xf32, #tpu.memory_space<vmem>>) attributes {dimension_semantics = [#tpu.dimension_semantics<parallel>], iteration_bounds = array<i64: 2>, scalar_prefetch = 0 : i64, scratch_operands = 0 : i64, tpu.core_type = #tpu.core_type<tc>, window_params = [{transform_indices = @transform_0, window_bounds = array<i64: 1, 18, 288>}, {pipeline_mode = #tpu.pipeline_mode<synchronous>, transform_indices = @transform_1, window_bounds = array<i64: 3, 288, 192>}, {pipeline_mode = #tpu.pipeline_mode<synchronous>, transform_indices = @transform_2, window_bounds = array<i64: 1, 192>}, {transform_indices = @transform_3, window_bounds = array<i64: 1, 16, 192>}]} {
    %c0 = arith.constant 0 : index
    %c0_0 = arith.constant 0 : index
    %c0_1 = arith.constant 0 : index
    %0 = vector.load %arg1[%c0, %c0_0, %c0_1] : memref<1x18x288xbf16, #tpu.memory_space<vmem>>, vector<1x16x288xbf16>
    %1 = vector.shape_cast %0 : vector<1x16x288xbf16> to vector<16x288xbf16>
    %c0_2 = arith.constant 0 : index
    %c0_3 = arith.constant 0 : index
    %c0_4 = arith.constant 0 : index
    %2 = vector.load %arg2[%c0_2, %c0_3, %c0_4] : memref<3x288x192xbf16, #tpu.memory_space<vmem>>, vector<1x288x192xbf16>
    %3 = vector.shape_cast %2 : vector<1x288x192xbf16> to vector<288x192xbf16>
    %cst = arith.constant dense<0.000000e+00> : vector<16x192xf32>
    %4 = tpu.matmul %1, %3, %cst {dimension_numbers = #tpu.dot_dimension_numbers<[1], [0], [0], [1], [0, 0, 1, 1], [], []>} : vector<16x288xbf16>, vector<288x192xbf16>, vector<16x192xf32> -> vector<16x192xf32>
    %c0_5 = arith.constant 0 : index
    %c1 = arith.constant 1 : index
    %c0_6 = arith.constant 0 : index
    %5 = vector.load %arg1[%c0_5, %c1, %c0_6] : memref<1x18x288xbf16, #tpu.memory_space<vmem>>, vector<1x16x288xbf16>
    %6 = vector.shape_cast %5 : vector<1x16x288xbf16> to vector<16x288xbf16>
    %c1_7 = arith.constant 1 : index
    %c0_8 = arith.constant 0 : index
    %c0_9 = arith.constant 0 : index
    %7 = vector.load %arg2[%c1_7, %c0_8, %c0_9] : memref<3x288x192xbf16, #tpu.memory_space<vmem>>, vector<1x288x192xbf16>
    %8 = vector.shape_cast %7 : vector<1x288x192xbf16> to vector<288x192xbf16>
    %cst_10 = arith.constant dense<0.000000e+00> : vector<16x192xf32>
    %9 = tpu.matmul %6, %8, %cst_10 {dimension_numbers = #tpu.dot_dimension_numbers<[1], [0], [0], [1], [0, 0, 1, 1], [], []>} : vector<16x288xbf16>, vector<288x192xbf16>, vector<16x192xf32> -> vector<16x192xf32>
    %10 = arith.addf %4, %9 : vector<16x192xf32>
    %c0_11 = arith.constant 0 : index
    %c2 = arith.constant 2 : index
    %c0_12 = arith.constant 0 : index
    %11 = vector.load %arg1[%c0_11, %c2, %c0_12] : memref<1x18x288xbf16, #tpu.memory_space<vmem>>, vector<1x16x288xbf16>
    %12 = vector.shape_cast %11 : vector<1x16x288xbf16> to vector<16x288xbf16>
    %c2_13 = arith.constant 2 : index
    %c0_14 = arith.constant 0 : index
    %c0_15 = arith.constant 0 : index
    %13 = vector.load %arg2[%c2_13, %c0_14, %c0_15] : memref<3x288x192xbf16, #tpu.memory_space<vmem>>, vector<1x288x192xbf16>
    %14 = vector.shape_cast %13 : vector<1x288x192xbf16> to vector<288x192xbf16>
    %cst_16 = arith.constant dense<0.000000e+00> : vector<16x192xf32>
    %15 = tpu.matmul %12, %14, %cst_16 {dimension_numbers = #tpu.dot_dimension_numbers<[1], [0], [0], [1], [0, 0, 1, 1], [], []>} : vector<16x288xbf16>, vector<288x192xbf16>, vector<16x192xf32> -> vector<16x192xf32>
    %16 = arith.addf %10, %15 : vector<16x192xf32>
    %c0_17 = arith.constant 0 : index
    %c0_18 = arith.constant 0 : index
    %17 = vector.load %arg3[%c0_17, %c0_18] : memref<1x192xf32, #tpu.memory_space<vmem>>, vector<1x192xf32>
    %18 = vector.broadcast %17 : vector<1x192xf32> to vector<16x192xf32>
    %19 = arith.addf %16, %18 : vector<16x192xf32>
    %c0_19 = arith.constant 0 : index
    %c0_20 = arith.constant 0 : index
    %c0_21 = arith.constant 0 : index
    %20 = vector.load %arg4[%c0_19, %c0_20, %c0_21] : memref<1x16x192xf32, #tpu.memory_space<vmem>>, vector<1x16x192xf32>
    %21 = vector.shape_cast %20 : vector<1x16x192xf32> to vector<16x192xf32>
    %22 = vector.shape_cast %19 : vector<16x192xf32> to vector<1x16x192xf32>
    tpu.vector_store %arg4[%c0_19, %c0_20, %c0_21], %22 {strides = array<i32>} : memref<1x16x192xf32, #tpu.memory_space<vmem>>, vector<1x16x192xf32>,
    return
  }
  func.func @transform_0(%arg0: i32) -> (i32, i32, i32) {
    %c0_i32 = arith.constant 0 : i32
    %c0_i32_0 = arith.constant 0 : i32
    %c0_i32_1 = arith.constant 0 : i32
    return %arg0, %c0_i32, %c0_i32_0 : i32, i32, i32
  }
  func.func @transform_1(%arg0: i32) -> (i32, i32, i32) {
    %c0_i32 = arith.constant 0 : i32
    %c0_i32_0 = arith.constant 0 : i32
    %c0_i32_1 = arith.constant 0 : i32
    %c0_i32_2 = arith.constant 0 : i32
    return %c0_i32, %c0_i32_0, %c0_i32_1 : i32, i32, i32
  }
  func.func @transform_2(%arg0: i32) -> (i32, i32) {
    %c0_i32 = arith.constant 0 : i32
    %c0_i32_0 = arith.constant 0 : i32
    %c0_i32_1 = arith.constant 0 : i32
    return %c0_i32, %c0_i32_0 : i32, i32
  }
  func.func @transform_3(%arg0: i32) -> (i32, i32, i32) {
    %c0_i32 = arith.constant 0 : i32
    %c0_i32_0 = arith.constant 0 : i32
    %c0_i32_1 = arith.constant 0 : i32
    return %arg0, %c0_i32, %c0_i32_0 : i32, i32, i32
  }
}

</mosaic_0001>

<llo_original>
// kernel: forward.10
$region0: #{forward.10}
  #allocation0 [shape = 'u32[]', space=smem, size = 0x4, offset = 0x4, fixed_abs, tag = 'smem constant byte address 0x4 - core index']
  #allocation1 [shape = 'u32[144,128]{1,0:T(1,128)}', space=vmem, size = 0x12000, scoped, tag = 'internal scratch']
  %s0 = inlined_call_operand.vmem [shape: bf16[2,17,204], index: 0, kind: input, shape index: {}]
  %s1 = inlined_call_operand.vmem [shape: bf16[2,204,128], index: 1, kind: input, shape index: {}]
  %s2 = inlined_call_operand.vmem [shape: f32[1,128], index: 2, kind: input, shape index: {}]
  %s3 = inlined_call_operand.vmem [shape: bf16[2,16,128], index: 3, kind: output, shape index: {}]
  %s4 = sld [smem:[#allocation0]]
  $region45: #{forward.10} parent=0
    _
  %s6 = ssub.s32 1, %s4
  %s7 = scalar_select 0, %s6, %s4
  loop: start=0, step=1, limit=4
  $region2: #{forward.10} parent=0 // loop_pre_header
    _
  $region3: #{forward.10} parent=0 // loop_header
    %s9 = sphi 0, %s13
    %p10 = scmp.ge.s32.totalorder %s9, 4
    %s19 = sphi 0, %s21
    %s22 = sphi 0, %s19
    %s23 = sphi 0, %s22
    %s39 = sphi 0, %s23
    %s43 = sphi 0, %s43
    %s45 = sphi 0, %s43
    %s46 = sphi 0, %s45
    %s60 = sphi 0, %s46
    %s64 = sphi 0, %s64
    %s66 = sphi 0, %s64
    %s67 = sphi 0, %s66
    %s81 = sphi 0, %s67
    %s87 = sphi 0, %s89
    %s90 = sphi 0, %s87
    %s91 = sphi 0, %s90
    %s107 = sphi 0, %s91
  $region4: #{forward.10} parent=0 // loop_header_branch
    %12 = sbr.rel (%p10) target = $region8
  $region5: #{forward.10} parent=0 // loop_body
    %s14 = ssub.s32 %s9, 1
    %s15 = ssub.s32 %s9, 2
    %s16 = sadd.s32 %s9, 1
    %s17 = ssub.s32 %s9, %s16
    %p18 = scmp.eq.s32.totalorder %s17, 0
    %s20 = sadd.s32 %s19, 1
    %s21 = scalar_select %p18, %s19, %s20
    %p24 = pneg %p18
    %p25 = scmp.eq.s32.totalorder %s9, 1
    %p26 = por %p24, %p25
    %p27 = scmp.ne.s32.totalorder %s19, %s22
    %p28 = scmp.eq.s32.totalorder %s9, 0
    %p29 = por %p27, %p28
    %p30 = scmp.ne.s32.totalorder %s19, %s22
    %p31 = scmp.eq.s32.totalorder %s14, 1
    %p32 = por %p30, %p31
    %p33 = scmp.ne.s32.totalorder %s22, %s23
    %p34 = scmp.eq.s32.totalorder %s14, 0
    %p35 = por %p33, %p34
    %p36 = scmp.ne.s32.totalorder %s22, %s23
    %p37 = scmp.eq.s32.totalorder %s15, 1
    %p38 = por %p36, %p37
    %p40 = scmp.ne.s32.totalorder %s23, %s39
    %p41 = scmp.eq.s32.totalorder %s15, 0
    %p42 = por %p40, %p41
    %s44 = sadd.s32 %s43, 1
    %p47 = scmp.eq.s32.totalorder %s9, 1
    %p48 = scmp.ne.s32.totalorder %s43, %s45
    %p49 = scmp.eq.s32.totalorder %s9, 0
    %p50 = por %p48, %p49
    %p51 = scmp.ne.s32.totalorder %s43, %s45
    %p52 = scmp.eq.s32.totalorder %s14, 1
    %p53 = por %p51, %p52
    %p54 = scmp.ne.s32.totalorder %s45, %s46
    %p55 = scmp.eq.s32.totalorder %s14, 0
    %p56 = por %p54, %p55
    %p57 = scmp.ne.s32.totalorder %s45, %s46
    %p58 = scmp.eq.s32.totalorder %s15, 1
    %p59 = por %p57, %p58
    %p61 = scmp.ne.s32.totalorder %s46, %s60
    %p62 = scmp.eq.s32.totalorder %s15, 0
    %p63 = por %p61, %p62
    %s65 = sadd.s32 %s64, 1
    %p68 = scmp.eq.s32.totalorder %s9, 1
    %p69 = scmp.ne.s32.totalorder %s64, %s66
    %p70 = scmp.eq.s32.totalorder %s9, 0
    %p71 = por %p69, %p70
    %p72 = scmp.ne.s32.totalorder %s64, %s66
    %p73 = scmp.eq.s32.totalorder %s14, 1
    %p74 = por %p72, %p73
    %p75 = scmp.ne.s32.totalorder %s66, %s67
    %p76 = scmp.eq.s32.totalorder %s14, 0
    %p77 = por %p75, %p76
    %p78 = scmp.ne.s32.totalorder %s66, %s67
    %p79 = scmp.eq.s32.totalorder %s15, 1
    %p80 = por %p78, %p79
    %p82 = scmp.ne.s32.totalorder %s67, %s81
    %p83 = scmp.eq.s32.totalorder %s15, 0
    %p84 = por %p82, %p83
    %s85 = ssub.s32 %s9, %s16
    %p86 = scmp.eq.s32.totalorder %s85, 0
    %s88 = sadd.s32 %s87, 1
    %s89 = scalar_select %p86, %s87, %s88
    %p92 = pneg %p86
    %p93 = scmp.eq.s32.totalorder %s9, 1
    %p94 = por %p92, %p93
    %p95 = scmp.ne.s32.totalorder %s87, %s90
    %p96 = scmp.eq.s32.totalorder %s9, 0
    %p97 = por %p95, %p96
    %p98 = scmp.ne.s32.totalorder %s87, %s90
    %p99 = scmp.eq.s32.totalorder %s14, 1
    %p100 = por %p98, %p99
    %p101 = scmp.ne.s32.totalorder %s90, %s91
    %p102 = scmp.eq.s32.totalorder %s14, 0
    %p103 = por %p101, %p102
    %p104 = scmp.ne.s32.totalorder %s90, %s91
    %p105 = scmp.eq.s32.totalorder %s15, 1
    %p106 = por %p104, %p105
    %p108 = scmp.ne.s32.totalorder %s91, %s107
    %p109 = scmp.eq.s32.totalorder %s15, 0
    %p110 = por %p108, %p109
    %p111 = scmp.le.s32.totalorder 1, %s9
    %p112 = scmp.lt.s32.totalorder %s9, 3
    %p113 = pnand %p111, %p112
    %p114 = pneg %p113
    // Predicated region
    $region9: #{forward.10} parent=5 // pred_check
      _
    $region10: #{forward.10} parent=5 // pred_check_branch
      %116 = sbr.rel (%p113) target = $region12
    $region11: #{forward.10} parent=5 // pred_region
      %s117 = ssub.s32 %s9, 1
      // Predicated region
      $region13: #{forward.10} parent=11 // pred_check
        %p118 = pneg %p56
      $region14: #{forward.10} parent=11 // pred_check_branch
        %120 = sbr.rel (%p118) target = $region16
      $region15: #{forward.10} parent=11 // pred_region
        _
      $region16: #{forward.10} parent=11 // pred_fallthru
        _
      // Predicated region
      $region17: #{forward.10} parent=11 // pred_check
        %p121 = pneg %p77
      $region18: #{forward.10} parent=11 // pred_check_branch
        %123 = sbr.rel (%p121) target = $region20
      $region19: #{forward.10} parent=11 // pred_region
        _
      $region20: #{forward.10} parent=11 // pred_fallthru
        _
    $region12: #{forward.10} parent=5 // pred_fallthru
      _
    %p124 = scmp.lt.s32.totalorder %s9, 2
    // Predicated region
    $region21: #{forward.10} parent=5 // pred_check
      %p125 = pneg %p124
    $region22: #{forward.10} parent=5 // pred_check_branch
      %127 = sbr.rel (%p125) target = $region24
    $region23: #{forward.10} parent=5 // pred_region
      // Predicated region
      $region25: #{forward.10} parent=23 // pred_check
        %p128 = pneg %p29
      $region26: #{forward.10} parent=23 // pred_check_branch
        %130 = sbr.rel (%p128) target = $region28
      $region27: #{forward.10} parent=23 // pred_region
        %p131 = scmp.lt.s32.totalorder %s9, 1
        %s132 = scalar_select %p131, %s9, 1
        %s133 = smul.addr %s132, 6
        %s134 = smul.addr %s133, 4
        %s135 = scalar_lea.vmem %s0, %s134
      $region28: #{forward.10} parent=23 // pred_fallthru
        _
    $region24: #{forward.10} parent=5 // pred_fallthru
      _
    %p136 = scmp.le.s32.totalorder 1, %s9
    %p137 = scmp.lt.s32.totalorder %s9, 3
    %p138 = pnand %p136, %p137
    %p139 = pneg %p138
    // Predicated region
    $region29: #{forward.10} parent=5 // pred_check
      _
    $region30: #{forward.10} parent=5 // pred_check_branch
      %141 = sbr.rel (%p138) target = $region32
    $region31: #{forward.10} parent=5 // pred_region
      %s142 = ssub.s32 %s9, 1
      %p143 = scmp.lt.s32.totalorder %s14, 1
      %s144 = scalar_select %p143, %s14, 1
      %s145 = smul.addr %s144, 6
      %s146 = smul.addr %s145, 4
      %s147 = scalar_lea.vmem %s0, %s146
      %p148 = pneg %p35
      %p149 = pneg %p32
      %p150 = pneg %p56
      %p151 = pneg %p53
      %p152 = pneg %p77
      %p153 = pneg %p74
      %p154 = pneg %p103
      %p155 = pneg %p100
      %p156 = scmp.lt.s32.totalorder %s14, 1
      %s157 = scalar_select %p156, %s14, 1
      %s158 = smul.addr %s157, 2
      %s159 = smul.addr %s158, 4
      %s160 = scalar_lea.vmem %s3, %s159
      %p161 = scmp.lt.s32.totalorder %s14, 1
      %s162 = scalar_select %p161, %s14, 1
      %s163 = smul.addr %s162, 6
      %s164 = smul.addr %s163, 4
      %s165 = scalar_lea.vmem %s0, %s164
      %p166 = scmp.lt.s32.totalorder %s14, 1
      %s167 = scalar_select %p166, %s14, 1
      %s168 = smul.addr %s167, 2
      %s169 = smul.addr %s168, 4
      %s170 = scalar_lea.vmem %s3, %s169
      %v172 = vld [vmem:[%s165] sm:$0xff]
      %v173 = vld [vmem:[%s165 + $0x8] sm:$0xff]
      %v174 = vld [vmem:[%s1] sm:$0xf]
      %v175 = vld [vmem:[%s1 + $0x4] sm:$0xf]
      %v176 = vld [vmem:[%s1 + $0x8] sm:$0xf]
      %v177 = vld [vmem:[%s1 + $0xc] sm:$0xf]
      %v178 = vld [vmem:[%s1 + $0x10] sm:$0xf]
      %v179 = vld [vmem:[%s1 + $0x14] sm:$0xf]
      %v180 = vld [vmem:[%s1 + $0x18] sm:$0xf]
      %v181 = vld [vmem:[%s1 + $0x1c] sm:$0xf]
      %v182 = vld [vmem:[%s1 + $0x20] sm:$0xf]
      %v183 = vld [vmem:[%s1 + $0x24] sm:$0xf]
      %v184 = vld [vmem:[%s1 + $0x28] sm:$0xf]
      %v185 = vld [vmem:[%s1 + $0x2c] sm:$0xf]
      %v186 = vld [vmem:[%s1 + $0x30] sm:$0xf]
      %v187 = vld [vmem:[%s1 + $0x34] sm:$0xf]
      %v188 = vld [vmem:[%s1 + $0x38] sm:$0xf]
      %v189 = vld [vmem:[%s1 + $0x3c] sm:$0xf]
      %v190 = vld [vmem:[%s1 + $0x40] sm:$0xf]
      %v191 = vld [vmem:[%s1 + $0x44] sm:$0xf]
      %v192 = vld [vmem:[%s1 + $0x48] sm:$0xf]
      %v193 = vld [vmem:[%s1 + $0x4c] sm:$0xf]
      %v194 = vld [vmem:[%s1 + $0x50] sm:$0xf]
      %v195 = vld [vmem:[%s1 + $0x54] sm:$0xf]
      %v196 = vld [vmem:[%s1 + $0x58] sm:$0xf]
      %v197 = vld [vmem:[%s1 + $0x5c] sm:$0xf]
      %v198 = vld [vmem:[%s1 + $0x60] sm:$0xf]
      %v199 = vld [vmem:[%s1 + $0x64] sm:$0x3]
      %v200 = vld [vmem:[%s165 + $0x10] sm:$0x11]
      %s201 = scalar_lea.vmem %s1, 104
      %v202 = vld [vmem:[%s201] sm:$0xf]
      %v203 = vld [vmem:[%s201 + $0x4] sm:$0xf]
      %v204 = vld [vmem:[%s201 + $0x8] sm:$0xf]
      %v205 = vld [vmem:[%s201 + $0xc] sm:$0xf]
      %v206 = vld [vmem:[%s201 + $0x10] sm:$0xf]
      %v207 = vld [vmem:[%s201 + $0x14] sm:$0xf]
      %v208 = vld [vmem:[%s201 + $0x18] sm:$0xf]
      %v209 = vld [vmem:[%s201 + $0x1c] sm:$0xf]
      %v210 = vld [vmem:[%s201 + $0x20] sm:$0xf]
      %v211 = vld [vmem:[%s201 + $0x24] sm:$0xf]
      %v212 = vld [vmem:[%s201 + $0x28] sm:$0xf]
      %v213 = vld [vmem:[%s201 + $0x2c] sm:$0xf]
      %v214 = vld [vmem:[%s201 + $0x30] sm:$0xf]
      %v215 = vld [vmem:[%s201 + $0x34] sm:$0xf]
      %v216 = vld [vmem:[%s201 + $0x38] sm:$0xf]
      %v217 = vld [vmem:[%s201 + $0x3c] sm:$0xf]
      %v218 = vld [vmem:[%s201 + $0x40] sm:$0xf]
      %v219 = vld [vmem:[%s201 + $0x44] sm:$0xf]
      %v220 = vld [vmem:[%s201 + $0x48] sm:$0xf]
      %v221 = vld [vmem:[%s201 + $0x4c] sm:$0xf]
      %v222 = vld [vmem:[%s201 + $0x50] sm:$0xf]
      %v223 = vld [vmem:[%s201 + $0x54] sm:$0xf]
      %v224 = vld [vmem:[%s201 + $0x58] sm:$0xf]
      %v225 = vld [vmem:[%s201 + $0x5c] sm:$0xf]
      %v226 = vld [vmem:[%s201 + $0x60] sm:$0xf]
      %v227 = vld [vmem:[%s201 + $0x64] sm:$0x3]
      %v231 = vunpack.c.l.b16 %v172
      %v232 = vunpack.c.h.b16 %v172
      %v233 = vunpack.c.l.b16 %v173
      %v234 = vunpack.c.h.b16 %v173
      %v235 = vunpack.c.l.b16 %v200
      %v236 = vunpack.c.h.b16 %v200
      %v237 = vpack.c.b16 %v233, %v231
      %v238 = vpack.c.b16 %v234, %v232
      %v239 = vpack.c.b16 %v235, %v235
      %v240 = vpack.c.b16 %v236, %v236
      %vm241 = vsmask.f32 7424
      %v243 = vshrl.u32 %v237, 16
      %v245 = vshll.u32 %v237, 16
      %v247 = vrot.slane %v245, 1
      %v248 = vor.u32 %v243, %v247
      %v250 = vshll.u32 %v239, 16
      %v252 = vrot.slane %v250, 1
      %v253 = vsel %vm241, %v248, %v252
      %v255 = vshrl.u32 %v238, 16
      %v257 = vshll.u32 %v238, 16
      %v259 = vrot.slane %v257, 1
      %v260 = vor.u32 %v255, %v259
      %v262 = vshll.u32 %v240, 16
      %v264 = vrot.slane %v262, 1
      %v265 = vsel %vm241, %v260, %v264
      %v293 = vunpack.c.l.b16 %v202
      %v294 = vunpack.c.l.b16 %v203
      %v295 = vunpack.c.l.b16 %v204
      %v296 = vunpack.c.l.b16 %v205
      %v297 = vunpack.c.l.b16 %v206
      %v298 = vunpack.c.l.b16 %v207
      %v299 = vunpack.c.l.b16 %v208
      %v300 = vunpack.c.l.b16 %v209
      %v301 = vunpack.c.l.b16 %v210
      %v302 = vunpack.c.l.b16 %v211
      %v303 = vunpack.c.l.b16 %v212
      %v304 = vunpack.c.l.b16 %v213
      %v305 = vunpack.c.l.b16 %v214
      %v306 = vunpack.c.l.b16 %v215
      %v307 = vunpack.c.l.b16 %v216
      %v308 = vunpack.c.l.b16 %v217
      %v309 = vunpack.c.l.b16 %v218
      %v310 = vunpack.c.l.b16 %v219
      %v311 = vunpack.c.l.b16 %v220
      %v312 = vunpack.c.l.b16 %v221
      %v313 = vunpack.c.l.b16 %v222
      %v314 = vunpack.c.l.b16 %v223
      %v315 = vunpack.c.l.b16 %v224
      %v316 = vunpack.c.l.b16 %v225
      %v317 = vunpack.c.l.b16 %v226
      %v318 = vunpack.c.l.b16 %v227
      %v319 = vpack.c.b16 %v294, %v293
      %v320 = vpack.c.b16 %v296, %v295
      %v321 = vpack.c.b16 %v298, %v297
      %v322 = vpack.c.b16 %v300, %v299
      %v323 = vpack.c.b16 %v302, %v301
      %v324 = vpack.c.b16 %v304, %v303
      %v325 = vpack.c.b16 %v306, %v305
      %v326 = vpack.c.b16 %v308, %v307
      %v327 = vpack.c.b16 %v310, %v309
      %v328 = vpack.c.b16 %v312, %v311
      %v329 = vpack.c.b16 %v314, %v313
      %v330 = vpack.c.b16 %v316, %v315
      %v331 = vpack.c.b16 %v318, %v317
      %vm344 = vcmask 621568
      %v346 = vsel %vm344, %v265, 0
      %vm348 = vcmask 1045504
      %v350 = vsel %vm348, %v331, 0
      %352 = vmatprep.subr.bf16.mxu0 0
      %353 = vmatpush1.bf16.msra.mxu0 %v319
      %354 = vmatprep.subr.bf16.mxu0 0
      %355 = vmatpush1.bf16.msra.mxu0 %v320
      %356 = vmatprep.subr.bf16.mxu0 0
      %357 = vmatpush1.bf16.msra.mxu0 %v321
      %358 = vmatprep.subr.bf16.mxu0 0
      %359 = vmatpush1.bf16.msra.mxu0 %v322
      %360 = vmatprep.subr.bf16.mxu0 0
      %361 = vmatpush1.bf16.msra.mxu0 %v323
      %362 = vmatprep.subr.bf16.mxu0 0
      %363 = vmatpush1.bf16.msra.mxu0 %v324
      %364 = vmatprep.subr.bf16.mxu0 0
      %365 = vmatpush1.bf16.msra.mxu0 %v325
      %366 = vmatprep.subr.bf16.mxu0 0
      %367 = vmatpush1.bf16.msra.mxu0 %v326
      %368 = vmatprep.subr.bf16.mxu0 0
      %369 = vmatpush1.bf16.msra.mxu0 %v327
      %370 = vmatprep.subr.bf16.mxu0 0
      %371 = vmatpush1.bf16.msra.mxu0 %v328
      %372 = vmatprep.subr.bf16.mxu0 0
      %373 = vmatpush1.bf16.msra.mxu0 %v329
      %374 = vmatprep.subr.bf16.mxu0 0
      %375 = vmatpush1.bf16.msra.mxu0 %v330
      %376 = vmatprep.subr.bf16.mxu0 0
      %377 = vmatpush1.bf16.msra.mxu0 %v350
      %378 = vmatprep.subr.bf16.mxu0 0
      %379 = vmatpush1.bf16.msra.mxu0 0
      %380 = vmatprep.subr.bf16.mxu0 0
      %381 = vmatpush1.bf16.msra.mxu0 0
      %382 = vmatprep.subr.bf16.mxu0 0
      %383 = vmatpush1.bf16.msra.mxu0 0
      %384 = vmatprep.mubr.bf16.mxu0 %v346
      %385 = vmatmul.mubr.bf16.gmra.mrb[0].mxu0 %v253
      %v386 = vpop.f32.mrb[0].mxu0
      %v387 = vadd.f32 0.0, %v386
      %v388 = vpop.f32.mrb[0].mxu0
      %v389 = vpop.f32.mrb[0].mxu0
      %v390 = vadd.f32 0.0, %v389
      %v391 = vpop.f32.mrb[0].mxu0
      %392 = vdwg.mxu0
      %v420 = vunpack.c.l.b16 %v174
      %v421 = vunpack.c.l.b16 %v175
      %v422 = vunpack.c.l.b16 %v176
      %v423 = vunpack.c.l.b16 %v177
      %v424 = vunpack.c.l.b16 %v178
      %v425 = vunpack.c.l.b16 %v179
      %v426 = vunpack.c.l.b16 %v180
      %v427 = vunpack.c.l.b16 %v181
      %v428 = vunpack.c.l.b16 %v182
      %v429 = vunpack.c.l.b16 %v183
      %v430 = vunpack.c.l.b16 %v184
      %v431 = vunpack.c.l.b16 %v185
      %v432 = vunpack.c.l.b16 %v186
      %v433 = vunpack.c.l.b16 %v187
      %v434 = vunpack.c.l.b16 %v188
      %v435 = vunpack.c.l.b16 %v189
      %v436 = vunpack.c.l.b16 %v190
      %v437 = vunpack.c.l.b16 %v191
      %v438 = vunpack.c.l.b16 %v192
      %v439 = vunpack.c.l.b16 %v193
      %v440 = vunpack.c.l.b16 %v194
      %v441 = vunpack.c.l.b16 %v195
      %v442 = vunpack.c.l.b16 %v196
      %v443 = vunpack.c.l.b16 %v197
      %v444 = vunpack.c.l.b16 %v198
      %v445 = vunpack.c.l.b16 %v199
      %v446 = vpack.c.b16 %v421, %v420
      %v447 = vpack.c.b16 %v423, %v422
      %v448 = vpack.c.b16 %v425, %v424
      %v449 = vpack.c.b16 %v427, %v426
      %v450 = vpack.c.b16 %v429, %v428
      %v451 = vpack.c.b16 %v431, %v430
      %v452 = vpack.c.b16 %v433, %v432
      %v453 = vpack.c.b16 %v435, %v434
      %v454 = vpack.c.b16 %v437, %v436
      %v455 = vpack.c.b16 %v439, %v438
      %v456 = vpack.c.b16 %v441, %v440
      %v457 = vpack.c.b16 %v443, %v442
      %v458 = vpack.c.b16 %v445, %v444
      %v471 = vsel %vm344, %v238, 0
      %v474 = vsel %vm348, %v458, 0
      %476 = vmatprep.subr.bf16.mxu0 0
      %477 = vmatpush1.bf16.msra.mxu0 %v446
      %478 = vmatprep.subr.bf16.mxu0 0
      %479 = vmatpush1.bf16.msra.mxu0 %v447
      %480 = vmatprep.subr.bf16.mxu0 0
      %481 = vmatpush1.bf16.msra.mxu0 %v448
      %482 = vmatprep.subr.bf16.mxu0 0
      %483 = vmatpush1.bf16.msra.mxu0 %v449
      %484 = vmatprep.subr.bf16.mxu0 0
      %485 = vmatpush1.bf16.msra.mxu0 %v450
      %486 = vmatprep.subr.bf16.mxu0 0
      %487 = vmatpush1.bf16.msra.mxu0 %v451
      %488 = vmatprep.subr.bf16.mxu0 0
      %489 = vmatpush1.bf16.msra.mxu0 %v452
      %490 = vmatprep.subr.bf16.mxu0 0
      %491 = vmatpush1.bf16.msra.mxu0 %v453
      %492 = vmatprep.subr.bf16.mxu0 0
      %493 = vmatpush1.bf16.msra.mxu0 %v454
      %494 = vmatprep.subr.bf16.mxu0 0
      %495 = vmatpush1.bf16.msra.mxu0 %v455
      %496 = vmatprep.subr.bf16.mxu0 0
      %497 = vmatpush1.bf16.msra.mxu0 %v456
      %498 = vmatprep.subr.bf16.mxu0 0
      %499 = vmatpush1.bf16.msra.mxu0 %v457
      %500 = vmatprep.subr.bf16.mxu0 0
      %501 = vmatpush1.bf16.msra.mxu0 %v474
      %502 = vmatprep.subr.bf16.mxu0 0
      %503 = vmatpush1.bf16.msra.mxu0 0
      %504 = vmatprep.subr.bf16.mxu0 0
      %505 = vmatpush1.bf16.msra.mxu0 0
      %506 = vmatprep.subr.bf16.mxu0 0
      %507 = vmatpush1.bf16.msra.mxu0 0
      %508 = vmatprep.mubr.bf16.mxu0 %v471
      %509 = vmatmul.mubr.bf16.gmra.mrb[0].mxu0 %v237
      %v510 = vpop.f32.mrb[0].mxu0
      %v511 = vadd.f32 %v387, %v510
      %v512 = vpop.f32.mrb[0].mxu0
      %v513 = vpop.f32.mrb[0].mxu0
      %v514 = vadd.f32 %v390, %v513
      %v515 = vpop.f32.mrb[0].mxu0
      %516 = vdwg.mxu0
      %v517 = vld [vmem:[%s2] sm:$0x1]
      %v519 = vlaneseq
      %v520 = vshrl.u32 %v519, 7
      %v521 = vsub.s32 0, %v520
      %v522 = vrot.slane %v517, %v521
      %v524 = vadd.f32 %v511, %v522
      %v525 = vadd.f32 %v514, %v522
      %v526 = vpack.c.bf16 %v525, %v524
      %v528 = vunpack.c.l.b16 %v526
      %v529 = vunpack.c.h.b16 %v526
      %v530 = vpack.c.b16 %v528, %v528
      %v531 = vpack.c.b16 %v529, %v529
      %534 = vst [vmem:[%s170] sm:$0xf] %v530
      %535 = vst [vmem:[%s170 + $0x4] sm:$0xf] %v531
      %p536 = scmp.lt.s32.totalorder %s14, 1
      %s537 = scalar_select %p536, %s14, 1
      %s538 = smul.addr %s537, 2
      %s539 = smul.addr %s538, 4
      %s540 = scalar_lea.vmem %s3, %s539
      // Predicated region
      $region33: #{forward.10} parent=31 // pred_check
        %p541 = pneg %p100
      $region34: #{forward.10} parent=31 // pred_check_branch
        %543 = sbr.rel (%p541) target = $region36
      $region35: #{forward.10} parent=31 // pred_region
        _
      $region36: #{forward.10} parent=31 // pred_fallthru
        _
    $region32: #{forward.10} parent=5 // pred_fallthru
      _
    %p544 = scmp.le.s32.totalorder 2, %s9
    // Predicated region
    $region37: #{forward.10} parent=5 // pred_check
      %p545 = pneg %p544
    $region38: #{forward.10} parent=5 // pred_check_branch
      %547 = sbr.rel (%p545) target = $region40
    $region39: #{forward.10} parent=5 // pred_region
      %s548 = ssub.s32 %s9, 2
      // Predicated region
      $region41: #{forward.10} parent=39 // pred_check
        %p549 = pneg %p106
      $region42: #{forward.10} parent=39 // pred_check_branch
        %551 = sbr.rel (%p549) target = $region44
      $region43: #{forward.10} parent=39 // pred_region
        %p552 = scmp.lt.s32.totalorder %s15, 1
        %s553 = scalar_select %p552, %s15, 1
        %s554 = smul.addr %s553, 2
        %s555 = smul.addr %s554, 4
        %s556 = scalar_lea.vmem %s3, %s555
      $region44: #{forward.10} parent=39 // pred_fallthru
        _
    $region40: #{forward.10} parent=5 // pred_fallthru
      _
  $region6: #{forward.10} parent=0 // loop_footer
    %s13 = sadd.s32 1, %s9
  $region7: #{forward.10} parent=0 // loop_footer_branch
    %8 = sbr.rel target = $region3
  $region8: #{forward.10} parent=0 // loop_exit
    _

// kernel: forward.11
$region0: #{forward.11}
  #allocation0 [shape = 'u32[]', space=smem, size = 0x4, offset = 0x4, fixed_abs, tag = 'smem constant byte address 0x4 - core index']
  #allocation1 [shape = 'u32[144,128]{1,0:T(1,128)}', space=vmem, size = 0x12000, scoped, tag = 'internal scratch']
  %s0 = inlined_call_operand.vmem [shape: bf16[2,9,288], index: 0, kind: input, shape index: {}]
  %s1 = inlined_call_operand.vmem [shape: bf16[2,288,128], index: 1, kind: input, shape index: {}]
  %s2 = inlined_call_operand.vmem [shape: f32[1,128], index: 2, kind: input, shape index: {}]
  %s3 = inlined_call_operand.vmem [shape: bf16[2,8,128], index: 3, kind: output, shape index: {0}]
  %s4 = inlined_call_operand.vmem [shape: f32[2,2,128], index: 4, kind: output, shape index: {1}]
  %5 = xla_tuple %s3, %s4
  %s6 = sld [smem:[#allocation0]]
  $region53: #{forward.11} parent=0
    _
  %s8 = ssub.s32 1, %s6
  %s9 = scalar_select 0, %s8, %s6
  loop: start=0, step=1, limit=4
  $region2: #{forward.11} parent=0 // loop_pre_header
    _
  $region3: #{forward.11} parent=0 // loop_header
    %s11 = sphi 0, %s15
    %p12 = scmp.ge.s32.totalorder %s11, 4
    %s21 = sphi 0, %s23
    %s24 = sphi 0, %s21
    %s25 = sphi 0, %s24
    %s41 = sphi 0, %s25
    %s45 = sphi 0, %s45
    %s47 = sphi 0, %s45
    %s48 = sphi 0, %s47
    %s62 = sphi 0, %s48
    %s66 = sphi 0, %s66
    %s68 = sphi 0, %s66
    %s69 = sphi 0, %s68
    %s83 = sphi 0, %s69
    %s89 = sphi 0, %s91
    %s92 = sphi 0, %s89
    %s93 = sphi 0, %s92
    %s109 = sphi 0, %s93
    %s115 = sphi 0, %s117
    %s118 = sphi 0, %s115
    %s119 = sphi 0, %s118
    %s135 = sphi 0, %s119
  $region4: #{forward.11} parent=0 // loop_header_branch
    %14 = sbr.rel (%p12) target = $region8
  $region5: #{forward.11} parent=0 // loop_body
    %s16 = ssub.s32 %s11, 1
    %s17 = ssub.s32 %s11, 2
    %s18 = sadd.s32 %s11, 1
    %s19 = ssub.s32 %s11, %s18
    %p20 = scmp.eq.s32.totalorder %s19, 0
    %s22 = sadd.s32 %s21, 1
    %s23 = scalar_select %p20, %s21, %s22
    %p26 = pneg %p20
    %p27 = scmp.eq.s32.totalorder %s11, 1
    %p28 = por %p26, %p27
    %p29 = scmp.ne.s32.totalorder %s21, %s24
    %p30 = scmp.eq.s32.totalorder %s11, 0
    %p31 = por %p29, %p30
    %p32 = scmp.ne.s32.totalorder %s21, %s24
    %p33 = scmp.eq.s32.totalorder %s16, 1
    %p34 = por %p32, %p33
    %p35 = scmp.ne.s32.totalorder %s24, %s25
    %p36 = scmp.eq.s32.totalorder %s16, 0
    %p37 = por %p35, %p36
    %p38 = scmp.ne.s32.totalorder %s24, %s25
    %p39 = scmp.eq.s32.totalorder %s17, 1
    %p40 = por %p38, %p39
    %p42 = scmp.ne.s32.totalorder %s25, %s41
    %p43 = scmp.eq.s32.totalorder %s17, 0
    %p44 = por %p42, %p43
    %s46 = sadd.s32 %s45, 1
    %p49 = scmp.eq.s32.totalorder %s11, 1
    %p50 = scmp.ne.s32.totalorder %s45, %s47
    %p51 = scmp.eq.s32.totalorder %s11, 0
    %p52 = por %p50, %p51
    %p53 = scmp.ne.s32.totalorder %s45, %s47
    %p54 = scmp.eq.s32.totalorder %s16, 1
    %p55 = por %p53, %p54
    %p56 = scmp.ne.s32.totalorder %s47, %s48
    %p57 = scmp.eq.s32.totalorder %s16, 0
    %p58 = por %p56, %p57
    %p59 = scmp.ne.s32.totalorder %s47, %s48
    %p60 = scmp.eq.s32.totalorder %s17, 1
    %p61 = por %p59, %p60
    %p63 = scmp.ne.s32.totalorder %s48, %s62
    %p64 = scmp.eq.s32.totalorder %s17, 0
    %p65 = por %p63, %p64
    %s67 = sadd.s32 %s66, 1
    %p70 = scmp.eq.s32.totalorder %s11, 1
    %p71 = scmp.ne.s32.totalorder %s66, %s68
    %p72 = scmp.eq.s32.totalorder %s11, 0
    %p73 = por %p71, %p72
    %p74 = scmp.ne.s32.totalorder %s66, %s68
    %p75 = scmp.eq.s32.totalorder %s16, 1
    %p76 = por %p74, %p75
    %p77 = scmp.ne.s32.totalorder %s68, %s69
    %p78 = scmp.eq.s32.totalorder %s16, 0
    %p79 = por %p77, %p78
    %p80 = scmp.ne.s32.totalorder %s68, %s69
    %p81 = scmp.eq.s32.totalorder %s17, 1
    %p82 = por %p80, %p81
    %p84 = scmp.ne.s32.totalorder %s69, %s83
    %p85 = scmp.eq.s32.totalorder %s17, 0
    %p86 = por %p84, %p85
    %s87 = ssub.s32 %s11, %s18
    %p88 = scmp.eq.s32.totalorder %s87, 0
    %s90 = sadd.s32 %s89, 1
    %s91 = scalar_select %p88, %s89, %s90
    %p94 = pneg %p88
    %p95 = scmp.eq.s32.totalorder %s11, 1
    %p96 = por %p94, %p95
    %p97 = scmp.ne.s32.totalorder %s89, %s92
    %p98 = scmp.eq.s32.totalorder %s11, 0
    %p99 = por %p97, %p98
    %p100 = scmp.ne.s32.totalorder %s89, %s92
    %p101 = scmp.eq.s32.totalorder %s16, 1
    %p102 = por %p100, %p101
    %p103 = scmp.ne.s32.totalorder %s92, %s93
    %p104 = scmp.eq.s32.totalorder %s16, 0
    %p105 = por %p103, %p104
    %p106 = scmp.ne.s32.totalorder %s92, %s93
    %p107 = scmp.eq.s32.totalorder %s17, 1
    %p108 = por %p106, %p107
    %p110 = scmp.ne.s32.totalorder %s93, %s109
    %p111 = scmp.eq.s32.totalorder %s17, 0
    %p112 = por %p110, %p111
    %s113 = ssub.s32 %s11, %s18
    %p114 = scmp.eq.s32.totalorder %s113, 0
    %s116 = sadd.s32 %s115, 1
    %s117 = scalar_select %p114, %s115, %s116
    %p120 = pneg %p114
    %p121 = scmp.eq.s32.totalorder %s11, 1
    %p122 = por %p120, %p121
    %p123 = scmp.ne.s32.totalorder %s115, %s118
    %p124 = scmp.eq.s32.totalorder %s11, 0
    %p125 = por %p123, %p124
    %p126 = scmp.ne.s32.totalorder %s115, %s118
    %p127 = scmp.eq.s32.totalorder %s16, 1
    %p128 = por %p126, %p127
    %p129 = scmp.ne.s32.totalorder %s118, %s119
    %p130 = scmp.eq.s32.totalorder %s16, 0
    %p131 = por %p129, %p130
    %p132 = scmp.ne.s32.totalorder %s118, %s119
    %p133 = scmp.eq.s32.totalorder %s17, 1
    %p134 = por %p132, %p133
    %p136 = scmp.ne.s32.totalorder %s119, %s135
    %p137 = scmp.eq.s32.totalorder %s17, 0
    %p138 = por %p136, %p137
    %p139 = scmp.le.s32.totalorder 1, %s11
    %p140 = scmp.lt.s32.totalorder %s11, 3
    %p141 = pnand %p139, %p140
    %p142 = pneg %p141
    // Predicated region
    $region9: #{forward.11} parent=5 // pred_check
      _
    $region10: #{forward.11} parent=5 // pred_check_branch
      %144 = sbr.rel (%p141) target = $region12
    $region11: #{forward.11} parent=5 // pred_region
      %s145 = ssub.s32 %s11, 1
      // Predicated region
      $region13: #{forward.11} parent=11 // pred_check
        %p146 = pneg %p58
      $region14: #{forward.11} parent=11 // pred_check_branch
        %148 = sbr.rel (%p146) target = $region16
      $region15: #{forward.11} parent=11 // pred_region
        _
      $region16: #{forward.11} parent=11 // pred_fallthru
        _
      // Predicated region
      $region17: #{forward.11} parent=11 // pred_check
        %p149 = pneg %p79
      $region18: #{forward.11} parent=11 // pred_check_branch
        %151 = sbr.rel (%p149) target = $region20
      $region19: #{forward.11} parent=11 // pred_region
        _
      $region20: #{forward.11} parent=11 // pred_fallthru
        _
    $region12: #{forward.11} parent=5 // pred_fallthru
      _
    %p152 = scmp.lt.s32.totalorder %s11, 2
    // Predicated region
    $region21: #{forward.11} parent=5 // pred_check
      %p153 = pneg %p152
    $region22: #{forward.11} parent=5 // pred_check_branch
      %155 = sbr.rel (%p153) target = $region24
    $region23: #{forward.11} parent=5 // pred_region
      // Predicated region
      $region25: #{forward.11} parent=23 // pred_check
        %p156 = pneg %p31
      $region26: #{forward.11} parent=23 // pred_check_branch
        %158 = sbr.rel (%p156) target = $region28
      $region27: #{forward.11} parent=23 // pred_region
        %p159 = scmp.lt.s32.totalorder %s11, 1
        %s160 = scalar_select %p159, %s11, 1
        %s161 = smul.addr %s160, 6
        %s162 = smul.addr %s161, 4
        %s163 = scalar_lea.vmem %s0, %s162
      $region28: #{forward.11} parent=23 // pred_fallthru
        _
    $region24: #{forward.11} parent=5 // pred_fallthru
      _
    %p164 = scmp.le.s32.totalorder 1, %s11
    %p165 = scmp.lt.s32.totalorder %s11, 3
    %p166 = pnand %p164, %p165
    %p167 = pneg %p166
    // Predicated region
    $region29: #{forward.11} parent=5 // pred_check
      _
    $region30: #{forward.11} parent=5 // pred_check_branch
      %169 = sbr.rel (%p166) target = $region32
    $region31: #{forward.11} parent=5 // pred_region
      %s170 = ssub.s32 %s11, 1
      %p171 = scmp.lt.s32.totalorder %s16, 1
      %s172 = scalar_select %p171, %s16, 1
      %s173 = smul.addr %s172, 6
      %s174 = smul.addr %s173, 4
      %s175 = scalar_lea.vmem %s0, %s174
      %p176 = pneg %p37
      %p177 = pneg %p34
      %p178 = pneg %p58
      %p179 = pneg %p55
      %p180 = pneg %p79
      %p181 = pneg %p76
      %p182 = pneg %p105
      %p183 = pneg %p102
      %p184 = scmp.lt.s32.totalorder %s16, 1
      %s185 = scalar_select %p184, %s16, 1
      %s186 = smul.addr %s185, 4
      %s187 = scalar_lea.vmem %s3, %s186
      %p188 = pneg %p131
      %p189 = pneg %p128
      %p190 = scmp.lt.s32.totalorder %s16, 1
      %s191 = scalar_select %p190, %s16, 1
      %s192 = smul.addr %s191, 2
      %s193 = scalar_lea.vmem %s4, %s192
      %p194 = scmp.lt.s32.totalorder %s16, 1
      %s195 = scalar_select %p194, %s16, 1
      %s196 = smul.addr %s195, 6
      %s197 = smul.addr %s196, 4
      %s198 = scalar_lea.vmem %s0, %s197
      %p199 = scmp.lt.s32.totalorder %s16, 1
      %s200 = scalar_select %p199, %s16, 1
      %s201 = smul.addr %s200, 4
      %s202 = scalar_lea.vmem %s3, %s201
      %p203 = scmp.lt.s32.totalorder %s16, 1
      %s204 = scalar_select %p203, %s16, 1
      %s205 = smul.addr %s204, 2
      %s206 = scalar_lea.vmem %s4, %s205
      %v208 = vld [vmem:[%s198] sm:$0xff]
      %v209 = vld [vmem:[%s198 + $0x8] sm:$0xf]
      %v210 = vld [vmem:[%s1] sm:$0xf]
      %v211 = vld [vmem:[%s1 + $0x4] sm:$0xf]
      %v212 = vld [vmem:[%s1 + $0x8] sm:$0xf]
      %v213 = vld [vmem:[%s1 + $0xc] sm:$0xf]
      %v214 = vld [vmem:[%s1 + $0x10] sm:$0xf]
      %v215 = vld [vmem:[%s1 + $0x14] sm:$0xf]
      %v216 = vld [vmem:[%s1 + $0x18] sm:$0xf]
      %v217 = vld [vmem:[%s1 + $0x1c] sm:$0xf]
      %v218 = vld [vmem:[%s1 + $0x20] sm:$0xf]
      %v219 = vld [vmem:[%s1 + $0x24] sm:$0xf]
      %v220 = vld [vmem:[%s1 + $0x28] sm:$0xf]
      %v221 = vld [vmem:[%s1 + $0x2c] sm:$0xf]
      %v222 = vld [vmem:[%s1 + $0x30] sm:$0xf]
      %v223 = vld [vmem:[%s1 + $0x34] sm:$0xf]
      %v224 = vld [vmem:[%s1 + $0x38] sm:$0xf]
      %v225 = vld [vmem:[%s1 + $0x3c] sm:$0xf]
      %v226 = vld [vmem:[%s1 + $0x40] sm:$0xf]
      %v227 = vld [vmem:[%s1 + $0x44] sm:$0xf]
      %v228 = vld [vmem:[%s1 + $0x48] sm:$0xf]
      %v229 = vld [vmem:[%s1 + $0x4c] sm:$0xf]
      %v230 = vld [vmem:[%s1 + $0x50] sm:$0xf]
      %v231 = vld [vmem:[%s1 + $0x54] sm:$0xf]
      %v232 = vld [vmem:[%s1 + $0x58] sm:$0xf]
      %v233 = vld [vmem:[%s1 + $0x5c] sm:$0xf]
      %v234 = vld [vmem:[%s1 + $0x60] sm:$0xf]
      %v235 = vld [vmem:[%s1 + $0x64] sm:$0xf]
      %v236 = vld [vmem:[%s1 + $0x68] sm:$0xf]
      %v237 = vld [vmem:[%s1 + $0x6c] sm:$0xf]
      %v238 = vld [vmem:[%s1 + $0x70] sm:$0xf]
      %v239 = vld [vmem:[%s1 + $0x74] sm:$0xf]
      %v240 = vld [vmem:[%s1 + $0x78] sm:$0xf]
      %v241 = vld [vmem:[%s1 + $0x7c] sm:$0xf]
      %v242 = vld [vmem:[%s1 + $0x80] sm:$0xf]
      %v243 = vld [vmem:[%s1 + $0x84] sm:$0xf]
      %v244 = vld [vmem:[%s1 + $0x88] sm:$0xf]
      %v245 = vld [vmem:[%s1 + $0x8c] sm:$0xf]
      %v246 = vld [vmem:[%s198 + $0xc] sm:$0x11]
      %v247 = vld [vmem:[%s198 + $0x14] sm:$0x1]
      %s248 = scalar_lea.vmem %s1, 144
      %v249 = vld [vmem:[%s248] sm:$0xf]
      %v250 = vld [vmem:[%s248 + $0x4] sm:$0xf]
      %v251 = vld [vmem:[%s248 + $0x8] sm:$0xf]
      %v252 = vld [vmem:[%s248 + $0xc] sm:$0xf]
      %v253 = vld [vmem:[%s248 + $0x10] sm:$0xf]
      %v254 = vld [vmem:[%s248 + $0x14] sm:$0xf]
      %v255 = vld [vmem:[%s248 + $0x18] sm:$0xf]
      %v256 = vld [vmem:[%s248 + $0x1c] sm:$0xf]
      %v257 = vld [vmem:[%s248 + $0x20] sm:$0xf]
      %v258 = vld [vmem:[%s248 + $0x24] sm:$0xf]
      %v259 = vld [vmem:[%s248 + $0x28] sm:$0xf]
      %v260 = vld [vmem:[%s248 + $0x2c] sm:$0xf]
      %v261 = vld [vmem:[%s248 + $0x30] sm:$0xf]
      %v262 = vld [vmem:[%s248 + $0x34] sm:$0xf]
      %v263 = vld [vmem:[%s248 + $0x38] sm:$0xf]
      %v264 = vld [vmem:[%s248 + $0x3c] sm:$0xf]
      %v265 = vld [vmem:[%s248 + $0x40] sm:$0xf]
      %v266 = vld [vmem:[%s248 + $0x44] sm:$0xf]
      %v267 = vld [vmem:[%s248 + $0x48] sm:$0xf]
      %v268 = vld [vmem:[%s248 + $0x4c] sm:$0xf]
      %v269 = vld [vmem:[%s248 + $0x50] sm:$0xf]
      %v270 = vld [vmem:[%s248 + $0x54] sm:$0xf]
      %v271 = vld [vmem:[%s248 + $0x58] sm:$0xf]
      %v272 = vld [vmem:[%s248 + $0x5c] sm:$0xf]
      %v273 = vld [vmem:[%s248 + $0x60] sm:$0xf]
      %v274 = vld [vmem:[%s248 + $0x64] sm:$0xf]
      %v275 = vld [vmem:[%s248 + $0x68] sm:$0xf]
      %v276 = vld [vmem:[%s248 + $0x6c] sm:$0xf]
      %v277 = vld [vmem:[%s248 + $0x70] sm:$0xf]
      %v278 = vld [vmem:[%s248 + $0x74] sm:$0xf]
      %v279 = vld [vmem:[%s248 + $0x78] sm:$0xf]
      %v280 = vld [vmem:[%s248 + $0x7c] sm:$0xf]
      %v281 = vld [vmem:[%s248 + $0x80] sm:$0xf]
      %v282 = vld [vmem:[%s248 + $0x84] sm:$0xf]
      %v283 = vld [vmem:[%s248 + $0x88] sm:$0xf]
      %v284 = vld [vmem:[%s248 + $0x8c] sm:$0xf]
      %v289 = vunpack.c.l.b16 %v208
      %v290 = vunpack.c.h.b16 %v208
      %v291 = vunpack.c.l.b16 %v209
      %v292 = vunpack.c.l.b16 %v246
      %v293 = vunpack.c.h.b16 %v246
      %v294 = vunpack.c.l.b16 %v247
      %v295 = vpack.c.b16 %v292, %v289
      %v296 = vpack.c.b16 %v293, %v290
      %v297 = vpack.c.b16 %v294, %v291
      %v299 = vshrl.u32 %v295, 16
      %v301 = vshll.u32 %v295, 16
      %v303 = vrot.slane %v301, 1
      %v304 = vor.u32 %v299, %v303
      %v306 = vshrl.u32 %v296, 16
      %v308 = vshll.u32 %v296, 16
      %v310 = vrot.slane %v308, 1
      %v311 = vor.u32 %v306, %v310
      %v313 = vshrl.u32 %v297, 16
      %v315 = vshll.u32 %v297, 16
      %v317 = vrot.slane %v315, 1
      %v318 = vor.u32 %v313, %v317
      %v357 = vunpack.c.l.b16 %v249
      %v358 = vunpack.c.l.b16 %v250
      %v359 = vunpack.c.l.b16 %v251
      %v360 = vunpack.c.l.b16 %v252
      %v361 = vunpack.c.l.b16 %v253
      %v362 = vunpack.c.l.b16 %v254
      %v363 = vunpack.c.l.b16 %v255
      %v364 = vunpack.c.l.b16 %v256
      %v365 = vunpack.c.l.b16 %v257
      %v366 = vunpack.c.l.b16 %v258
      %v367 = vunpack.c.l.b16 %v259
      %v368 = vunpack.c.l.b16 %v260
      %v369 = vunpack.c.l.b16 %v261
      %v370 = vunpack.c.l.b16 %v262
      %v371 = vunpack.c.l.b16 %v263
      %v372 = vunpack.c.l.b16 %v264
      %v373 = vunpack.c.l.b16 %v265
      %v374 = vunpack.c.l.b16 %v266
      %v375 = vunpack.c.l.b16 %v267
      %v376 = vunpack.c.l.b16 %v268
      %v377 = vunpack.c.l.b16 %v269
      %v378 = vunpack.c.l.b16 %v270
      %v379 = vunpack.c.l.b16 %v271
      %v380 = vunpack.c.l.b16 %v272
      %v381 = vunpack.c.l.b16 %v273
      %v382 = vunpack.c.l.b16 %v274
      %v383 = vunpack.c.l.b16 %v275
      %v384 = vunpack.c.l.b16 %v276
      %v385 = vunpack.c.l.b16 %v277
      %v386 = vunpack.c.l.b16 %v278
      %v387 = vunpack.c.l.b16 %v279
      %v388 = vunpack.c.l.b16 %v280
      %v389 = vunpack.c.l.b16 %v281
      %v390 = vunpack.c.l.b16 %v282
      %v391 = vunpack.c.l.b16 %v283
      %v392 = vunpack.c.l.b16 %v284
      %v393 = vpack.c.b16 %v358, %v357
      %v394 = vpack.c.b16 %v360, %v359
      %v395 = vpack.c.b16 %v362, %v361
      %v396 = vpack.c.b16 %v364, %v363
      %v397 = vpack.c.b16 %v366, %v365
      %v398 = vpack.c.b16 %v368, %v367
      %v399 = vpack.c.b16 %v370, %v369
      %v400 = vpack.c.b16 %v372, %v371
      %v401 = vpack.c.b16 %v374, %v373
      %v402 = vpack.c.b16 %v376, %v375
      %v403 = vpack.c.b16 %v378, %v377
      %v404 = vpack.c.b16 %v380, %v379
      %v405 = vpack.c.b16 %v382, %v381
      %v406 = vpack.c.b16 %v384, %v383
      %v407 = vpack.c.b16 %v386, %v385
      %v408 = vpack.c.b16 %v388, %v387
      %v409 = vpack.c.b16 %v390, %v389
      %v410 = vpack.c.b16 %v392, %v391
      %vm429 = vcmask 261120
      %v431 = vsel %vm429, %v318, 0
      %433 = vmatprep.subr.bf16.mxu0 0
      %434 = vmatpush1.bf16.msra.mxu0 %v393
      %435 = vmatprep.subr.bf16.mxu0 0
      %436 = vmatpush1.bf16.msra.mxu0 %v394
      %437 = vmatprep.subr.bf16.mxu0 0
      %438 = vmatpush1.bf16.msra.mxu0 %v395
      %439 = vmatprep.subr.bf16.mxu0 0
      %440 = vmatpush1.bf16.msra.mxu0 %v396
      %441 = vmatprep.subr.bf16.mxu0 0
      %442 = vmatpush1.bf16.msra.mxu0 %v397
      %443 = vmatprep.subr.bf16.mxu0 0
      %444 = vmatpush1.bf16.msra.mxu0 %v398
      %445 = vmatprep.subr.bf16.mxu0 0
      %446 = vmatpush1.bf16.msra.mxu0 %v399
      %447 = vmatprep.subr.bf16.mxu0 0
      %448 = vmatpush1.bf16.msra.mxu0 %v400
      %449 = vmatprep.subr.bf16.mxu0 0
      %450 = vmatpush1.bf16.msra.mxu0 %v401
      %451 = vmatprep.subr.bf16.mxu0 0
      %452 = vmatpush1.bf16.msra.mxu0 %v402
      %453 = vmatprep.subr.bf16.mxu0 0
      %454 = vmatpush1.bf16.msra.mxu0 %v403
      %455 = vmatprep.subr.bf16.mxu0 0
      %456 = vmatpush1.bf16.msra.mxu0 %v404
      %457 = vmatprep.subr.bf16.mxu0 0
      %458 = vmatpush1.bf16.msra.mxu0 %v405
      %459 = vmatprep.subr.bf16.mxu0 0
      %460 = vmatpush1.bf16.msra.mxu0 %v406
      %461 = vmatprep.subr.bf16.mxu0 0
      %462 = vmatpush1.bf16.msra.mxu0 %v407
      %463 = vmatprep.subr.bf16.mxu0 0
      %464 = vmatpush1.bf16.msra.mxu0 %v408
      %465 = vmatprep.mubr.bf16.mxu0 %v311
      %466 = vmatmul.mubr.bf16.gmra.mrb[0].mxu0 %v304
      %v467 = vpop.f32.mrb[0].mxu0
      %v468 = vadd.f32 0.0, %v467
      %v469 = vpop.f32.mrb[0].mxu0
      %v470 = vpop.f32.mrb[0].mxu0
      %v471 = vpop.f32.mrb[0].mxu0
      %472 = vdwg.mxu0
      %473 = vmatprep.subr.bf16.mxu0 0
      %474 = vmatpush1.bf16.msra.mxu0 %v409
      %475 = vmatprep.subr.bf16.mxu0 0
      %476 = vmatpush1.bf16.msra.mxu0 %v410
      %477 = vmatprep.subr.bf16.mxu0 0
      %478 = vmatpush1.bf16.msra.mxu0 0
      %479 = vmatprep.subr.bf16.mxu0 0
      %480 = vmatpush1.bf16.msra.mxu0 0
      %481 = vmatprep.subr.bf16.mxu0 0
      %482 = vmatpush1.bf16.msra.mxu0 0
      %483 = vmatprep.subr.bf16.mxu0 0
      %484 = vmatpush1.bf16.msra.mxu0 0
      %485 = vmatprep.subr.bf16.mxu0 0
      %486 = vmatpush1.bf16.msra.mxu0 0
      %487 = vmatprep.subr.bf16.mxu0 0
      %488 = vmatpush1.bf16.msra.mxu0 0
      %489 = vmatprep.subr.bf16.mxu0 0
      %490 = vmatpush1.bf16.msra.mxu0 0
      %491 = vmatprep.subr.bf16.mxu0 0
      %492 = vmatpush1.bf16.msra.mxu0 0
      %493 = vmatprep.subr.bf16.mxu0 0
      %494 = vmatpush1.bf16.msra.mxu0 0
      %495 = vmatprep.subr.bf16.mxu0 0
      %496 = vmatpush1.bf16.msra.mxu0 0
      %497 = vmatprep.subr.bf16.mxu0 0
      %498 = vmatpush1.bf16.msra.mxu0 0
      %499 = vmatprep.subr.bf16.mxu0 0
      %500 = vmatpush1.bf16.msra.mxu0 0
      %501 = vmatprep.subr.bf16.mxu0 0
      %502 = vmatpush1.bf16.msra.mxu0 0
      %503 = vmatprep.subr.bf16.mxu0 0
      %504 = vmatpush1.bf16.msra.mxu0 0
      %505 = vmatprep.mubr.bf16.mxu0 0
      %506 = vmatmul.mubr.bf16.gmra.mrb[0].mxu0 %v431
      %v507 = vpop.f32.mrb[0].mxu0
      %v508 = vadd.f32 %v468, %v507
      %v509 = vpop.f32.mrb[0].mxu0
      %v510 = vpop.f32.mrb[0].mxu0
      %v511 = vpop.f32.mrb[0].mxu0
      %512 = vdwg.mxu0
      %v513 = vpack.c.b16 %v289, %v289
      %v514 = vpack.c.b16 %v290, %v290
      %v515 = vpack.c.b16 %v291, %v291
      %v554 = vunpack.c.l.b16 %v210
      %v555 = vunpack.c.l.b16 %v211
      %v556 = vunpack.c.l.b16 %v212
      %v557 = vunpack.c.l.b16 %v213
      %v558 = vunpack.c.l.b16 %v214
      %v559 = vunpack.c.l.b16 %v215
      %v560 = vunpack.c.l.b16 %v216
      %v561 = vunpack.c.l.b16 %v217
      %v562 = vunpack.c.l.b16 %v218
      %v563 = vunpack.c.l.b16 %v219
      %v564 = vunpack.c.l.b16 %v220
      %v565 = vunpack.c.l.b16 %v221
      %v566 = vunpack.c.l.b16 %v222
      %v567 = vunpack.c.l.b16 %v223
      %v568 = vunpack.c.l.b16 %v224
      %v569 = vunpack.c.l.b16 %v225
      %v570 = vunpack.c.l.b16 %v226
      %v571 = vunpack.c.l.b16 %v227
      %v572 = vunpack.c.l.b16 %v228
      %v573 = vunpack.c.l.b16 %v229
      %v574 = vunpack.c.l.b16 %v230
      %v575 = vunpack.c.l.b16 %v231
      %v576 = vunpack.c.l.b16 %v232
      %v577 = vunpack.c.l.b16 %v233
      %v578 = vunpack.c.l.b16 %v234
      %v579 = vunpack.c.l.b16 %v235
      %v580 = vunpack.c.l.b16 %v236
      %v581 = vunpack.c.l.b16 %v237
      %v582 = vunpack.c.l.b16 %v238
      %v583 = vunpack.c.l.b16 %v239
      %v584 = vunpack.c.l.b16 %v240
      %v585 = vunpack.c.l.b16 %v241
      %v586 = vunpack.c.l.b16 %v242
      %v587 = vunpack.c.l.b16 %v243
      %v588 = vunpack.c.l.b16 %v244
      %v589 = vunpack.c.l.b16 %v245
      %v590 = vpack.c.b16 %v555, %v554
      %v591 = vpack.c.b16 %v557, %v556
      %v592 = vpack.c.b16 %v559, %v558
      %v593 = vpack.c.b16 %v561, %v560
      %v594 = vpack.c.b16 %v563, %v562
      %v595 = vpack.c.b16 %v565, %v564
      %v596 = vpack.c.b16 %v567, %v566
      %v597 = vpack.c.b16 %v569, %v568
      %v598 = vpack.c.b16 %v571, %v570
      %v599 = vpack.c.b16 %v573, %v572
      %v600 = vpack.c.b16 %v575, %v574
      %v601 = vpack.c.b16 %v577, %v576
      %v602 = vpack.c.b16 %v579, %v578
      %v603 = vpack.c.b16 %v581, %v580
      %v604 = vpack.c.b16 %v583, %v582
      %v605 = vpack.c.b16 %v585, %v584
      %v606 = vpack.c.b16 %v587, %v586
      %v607 = vpack.c.b16 %v589, %v588
      %v627 = vsel %vm429, %v515, 0
      %629 = vmatprep.subr.bf16.mxu0 0
      %630 = vmatpush1.bf16.msra.mxu0 %v590
      %631 = vmatprep.subr.bf16.mxu0 0
      %632 = vmatpush1.bf16.msra.mxu0 %v591
      %633 = vmatprep.subr.bf16.mxu0 0
      %634 = vmatpush1.bf16.msra.mxu0 %v592
      %635 = vmatprep.subr.bf16.mxu0 0
      %636 = vmatpush1.bf16.msra.mxu0 %v593
      %637 = vmatprep.subr.bf16.mxu0 0
      %638 = vmatpush1.bf16.msra.mxu0 %v594
      %639 = vmatprep.subr.bf16.mxu0 0
      %640 = vmatpush1.bf16.msra.mxu0 %v595
      %641 = vmatprep.subr.bf16.mxu0 0
      %642 = vmatpush1.bf16.msra.mxu0 %v596
      %643 = vmatprep.subr.bf16.mxu0 0
      %644 = vmatpush1.bf16.msra.mxu0 %v597
      %645 = vmatprep.subr.bf16.mxu0 0
      %646 = vmatpush1.bf16.msra.mxu0 %v598
      %647 = vmatprep.subr.bf16.mxu0 0
      %648 = vmatpush1.bf16.msra.mxu0 %v599
      %649 = vmatprep.subr.bf16.mxu0 0
      %650 = vmatpush1.bf16.msra.mxu0 %v600
      %651 = vmatprep.subr.bf16.mxu0 0
      %652 = vmatpush1.bf16.msra.mxu0 %v601
      %653 = vmatprep.subr.bf16.mxu0 0
      %654 = vmatpush1.bf16.msra.mxu0 %v602
      %655 = vmatprep.subr.bf16.mxu0 0
      %656 = vmatpush1.bf16.msra.mxu0 %v603
      %657 = vmatprep.subr.bf16.mxu0 0
      %658 = vmatpush1.bf16.msra.mxu0 %v604
      %659 = vmatprep.subr.bf16.mxu0 0
      %660 = vmatpush1.bf16.msra.mxu0 %v605
      %661 = vmatprep.mubr.bf16.mxu0 %v514
      %662 = vmatmul.mubr.bf16.gmra.mrb[0].mxu0 %v513
      %v663 = vpop.f32.mrb[0].mxu0
      %v664 = vadd.f32 %v508, %v663
      %v665 = vpop.f32.mrb[0].mxu0
      %v666 = vpop.f32.mrb[0].mxu0
      %v667 = vpop.f32.mrb[0].mxu0
      %668 = vdwg.mxu0
      %669 = vmatprep.subr.bf16.mxu0 0
      %670 = vmatpush1.bf16.msra.mxu0 %v606
      %671 = vmatprep.subr.bf16.mxu0 0
      %672 = vmatpush1.bf16.msra.mxu0 %v607
      %673 = vmatprep.subr.bf16.mxu0 0
      %674 = vmatpush1.bf16.msra.mxu0 0
      %675 = vmatprep.subr.bf16.mxu0 0
      %676 = vmatpush1.bf16.msra.mxu0 0
      %677 = vmatprep.subr.bf16.mxu0 0
      %678 = vmatpush1.bf16.msra.mxu0 0
      %679 = vmatprep.subr.bf16.mxu0 0
      %680 = vmatpush1.bf16.msra.mxu0 0
      %681 = vmatprep.subr.bf16.mxu0 0
      %682 = vmatpush1.bf16.msra.mxu0 0
      %683 = vmatprep.subr.bf16.mxu0 0
      %684 = vmatpush1.bf16.msra.mxu0 0
      %685 = vmatprep.subr.bf16.mxu0 0
      %686 = vmatpush1.bf16.msra.mxu0 0
      %687 = vmatprep.subr.bf16.mxu0 0
      %688 = vmatpush1.bf16.msra.mxu0 0
      %689 = vmatprep.subr.bf16.mxu0 0
      %690 = vmatpush1.bf16.msra.mxu0 0
      %691 = vmatprep.subr.bf16.mxu0 0
      %692 = vmatpush1.bf16.msra.mxu0 0
      %693 = vmatprep.subr.bf16.mxu0 0
      %694 = vmatpush1.bf16.msra.mxu0 0
      %695 = vmatprep.subr.bf16.mxu0 0
      %696 = vmatpush1.bf16.msra.mxu0 0
      %697 = vmatprep.subr.bf16.mxu0 0
      %698 = vmatpush1.bf16.msra.mxu0 0
      %699 = vmatprep.subr.bf16.mxu0 0
      %700 = vmatpush1.bf16.msra.mxu0 0
      %701 = vmatprep.mubr.bf16.mxu0 0
      %702 = vmatmul.mubr.bf16.gmra.mrb[0].mxu0 %v627
      %v703 = vpop.f32.mrb[0].mxu0
      %v704 = vadd.f32 %v664, %v703
      %v705 = vpop.f32.mrb[0].mxu0
      %v706 = vpop.f32.mrb[0].mxu0
      %v707 = vpop.f32.mrb[0].mxu0
      %708 = vdwg.mxu0
      %v709 = vld [vmem:[%s2] sm:$0x1]
      %v711 = vlaneseq
      %v712 = vshrl.u32 %v711, 7
      %v713 = vsub.s32 0, %v712
      %v714 = vrot.slane %v709, %v713
      %v716 = vadd.f32 %v704, %v714
      %v717 = vpack.c.bf16 %v716, %v716
      %718 = vst [vmem:[%s202] sm:$0xf] %v717
      %v719 = vrot.slane %v716, 4
      %v720 = vadd.f32 %v716, %v719
      %v721 = vrot.slane %v720, 2
      %v722 = vadd.f32 %v720, %v721
      %v723 = vrot.slane %v722, 1
      %v724 = vadd.f32 %v722, %v723
      %725 = vst [vmem:[%s206] sm:$0x1] %v724
      %v726 = vmul.f32 %v716, %v716
      %v727 = vrot.slane %v726, 4
      %v728 = vadd.f32 %v726, %v727
      %v729 = vrot.slane %v728, 2
      %v730 = vadd.f32 %v728, %v729
      %v731 = vrot.slane %v730, 1
      %v732 = vadd.f32 %v730, %v731
      %733 = vst [vmem:[%s206 + $0x1] sm:$0x1] %v732
      %p734 = scmp.lt.s32.totalorder %s16, 1
      %s735 = scalar_select %p734, %s16, 1
      %s736 = smul.addr %s735, 4
      %s737 = scalar_lea.vmem %s3, %s736
      %p738 = scmp.lt.s32.totalorder %s16, 1
      %s739 = scalar_select %p738, %s16, 1
      %s740 = smul.addr %s739, 2
      %s741 = scalar_lea.vmem %s4, %s740
      // Predicated region
      $region33: #{forward.11} parent=31 // pred_check
        %p742 = pneg %p102
      $region34: #{forward.11} parent=31 // pred_check_branch
        %744 = sbr.rel (%p742) target = $region36
      $region35: #{forward.11} parent=31 // pred_region
        _
      $region36: #{forward.11} parent=31 // pred_fallthru
        _
      // Predicated region
      $region37: #{forward.11} parent=31 // pred_check
        %p745 = pneg %p128
      $region38: #{forward.11} parent=31 // pred_check_branch
        %747 = sbr.rel (%p745) target = $region40
      $region39: #{forward.11} parent=31 // pred_region
        _
      $region40: #{forward.11} parent=31 // pred_fallthru
        _
    $region32: #{forward.11} parent=5 // pred_fallthru
      _
    %p748 = scmp.le.s32.totalorder 2, %s11
    // Predicated region
    $region41: #{forward.11} parent=5 // pred_check
      %p749 = pneg %p748
    $region42: #{forward.11} parent=5 // pred_check_branch
      %751 = sbr.rel (%p749) target = $region44
    $region43: #{forward.11} parent=5 // pred_region
      %s752 = ssub.s32 %s11, 2
      // Predicated region
      $region45: #{forward.11} parent=43 // pred_check
        %p753 = pneg %p108
      $region46: #{forward.11} parent=43 // pred_check_branch
        %755 = sbr.rel (%p753) target = $region48
      $region47: #{forward.11} parent=43 // pred_region
        %p756 = scmp.lt.s32.totalorder %s17, 1
        %s757 = scalar_select %p756, %s17, 1
        %s758 = smul.addr %s757, 4
        %s759 = scalar_lea.vmem %s3, %s758
      $region48: #{forward.11} parent=43 // pred_fallthru
        _
      // Predicated region
      $region49: #{forward.11} parent=43 // pred_check
        %p760 = pneg %p134
      $region50: #{forward.11} parent=43 // pred_check_branch
        %762 = sbr.rel (%p760) target = $region52
      $region51: #{forward.11} parent=43 // pred_region
        %p763 = scmp.lt.s32.totalorder %s17, 1
        %s764 = scalar_select %p763, %s17, 1
        %s765 = smul.addr %s764, 2
        %s766 = scalar_lea.vmem %s4, %s765
      $region52: #{forward.11} parent=43 // pred_fallthru
        _
    $region44: #{forward.11} parent=5 // pred_fallthru
      _
  $region6: #{forward.11} parent=0 // loop_footer
    %s15 = sadd.s32 1, %s11
  $region7: #{forward.11} parent=0 // loop_footer_branch
    %10 = sbr.rel target = $region3
  $region8: #{forward.11} parent=0 // loop_exit
    _

// kernel: forward.12
$region0: #{forward.12}
  #allocation0 [shape = 'u32[]', space=smem, size = 0x4, offset = 0x4, fixed_abs, tag = 'smem constant byte address 0x4 - core index']
  #allocation1 [shape = 'u32[144,128]{1,0:T(1,128)}', space=vmem, size = 0x12000, scoped, tag = 'internal scratch']
  %s0 = inlined_call_operand.vmem [shape: bf16[2,5,320], index: 0, kind: input, shape index: {}]
  %s1 = inlined_call_operand.vmem [shape: bf16[2,320,128], index: 1, kind: input, shape index: {}]
  %s2 = inlined_call_operand.vmem [shape: f32[1,128], index: 2, kind: input, shape index: {}]
  %s3 = inlined_call_operand.vmem [shape: bf16[2,4,128], index: 3, kind: output, shape index: {0}]
  %s4 = inlined_call_operand.vmem [shape: f32[2,2,128], index: 4, kind: output, shape index: {1}]
  %5 = xla_tuple %s3, %s4
  %s6 = sld [smem:[#allocation0]]
  $region53: #{forward.12} parent=0
    _
  %s8 = ssub.s32 1, %s6
  %s9 = scalar_select 0, %s8, %s6
  loop: start=0, step=1, limit=4
  $region2: #{forward.12} parent=0 // loop_pre_header
    _
  $region3: #{forward.12} parent=0 // loop_header
    %s11 = sphi 0, %s15
    %p12 = scmp.ge.s32.totalorder %s11, 4
    %s21 = sphi 0, %s23
    %s24 = sphi 0, %s21
    %s25 = sphi 0, %s24
    %s41 = sphi 0, %s25
    %s45 = sphi 0, %s45
    %s47 = sphi 0, %s45
    %s48 = sphi 0, %s47
    %s62 = sphi 0, %s48
    %s66 = sphi 0, %s66
    %s68 = sphi 0, %s66
    %s69 = sphi 0, %s68
    %s83 = sphi 0, %s69
    %s89 = sphi 0, %s91
    %s92 = sphi 0, %s89
    %s93 = sphi 0, %s92
    %s109 = sphi 0, %s93
    %s115 = sphi 0, %s117
    %s118 = sphi 0, %s115
    %s119 = sphi 0, %s118
    %s135 = sphi 0, %s119
  $region4: #{forward.12} parent=0 // loop_header_branch
    %14 = sbr.rel (%p12) target = $region8
  $region5: #{forward.12} parent=0 // loop_body
    %s16 = ssub.s32 %s11, 1
    %s17 = ssub.s32 %s11, 2
    %s18 = sadd.s32 %s11, 1
    %s19 = ssub.s32 %s11, %s18
    %p20 = scmp.eq.s32.totalorder %s19, 0
    %s22 = sadd.s32 %s21, 1
    %s23 = scalar_select %p20, %s21, %s22
    %p26 = pneg %p20
    %p27 = scmp.eq.s32.totalorder %s11, 1
    %p28 = por %p26, %p27
    %p29 = scmp.ne.s32.totalorder %s21, %s24
    %p30 = scmp.eq.s32.totalorder %s11, 0
    %p31 = por %p29, %p30
    %p32 = scmp.ne.s32.totalorder %s21, %s24
    %p33 = scmp.eq.s32.totalorder %s16, 1
    %p34 = por %p32, %p33
    %p35 = scmp.ne.s32.totalorder %s24, %s25
    %p36 = scmp.eq.s32.totalorder %s16, 0
    %p37 = por %p35, %p36
    %p38 = scmp.ne.s32.totalorder %s24, %s25
    %p39 = scmp.eq.s32.totalorder %s17, 1
    %p40 = por %p38, %p39
    %p42 = scmp.ne.s32.totalorder %s25, %s41
    %p43 = scmp.eq.s32.totalorder %s17, 0
    %p44 = por %p42, %p43
    %s46 = sadd.s32 %s45, 1
    %p49 = scmp.eq.s32.totalorder %s11, 1
    %p50 = scmp.ne.s32.totalorder %s45, %s47
    %p51 = scmp.eq.s32.totalorder %s11, 0
    %p52 = por %p50, %p51
    %p53 = scmp.ne.s32.totalorder %s45, %s47
    %p54 = scmp.eq.s32.totalorder %s16, 1
    %p55 = por %p53, %p54
    %p56 = scmp.ne.s32.totalorder %s47, %s48
    %p57 = scmp.eq.s32.totalorder %s16, 0
    %p58 = por %p56, %p57
    %p59 = scmp.ne.s32.totalorder %s47, %s48
    %p60 = scmp.eq.s32.totalorder %s17, 1
    %p61 = por %p59, %p60
    %p63 = scmp.ne.s32.totalorder %s48, %s62
    %p64 = scmp.eq.s32.totalorder %s17, 0
    %p65 = por %p63, %p64
    %s67 = sadd.s32 %s66, 1
    %p70 = scmp.eq.s32.totalorder %s11, 1
    %p71 = scmp.ne.s32.totalorder %s66, %s68
    %p72 = scmp.eq.s32.totalorder %s11, 0
    %p73 = por %p71, %p72
    %p74 = scmp.ne.s32.totalorder %s66, %s68
    %p75 = scmp.eq.s32.totalorder %s16, 1
    %p76 = por %p74, %p75
    %p77 = scmp.ne.s32.totalorder %s68, %s69
    %p78 = scmp.eq.s32.totalorder %s16, 0
    %p79 = por %p77, %p78
    %p80 = scmp.ne.s32.totalorder %s68, %s69
    %p81 = scmp.eq.s32.totalorder %s17, 1
    %p82 = por %p80, %p81
    %p84 = scmp.ne.s32.totalorder %s69, %s83
    %p85 = scmp.eq.s32.totalorder %s17, 0
    %p86 = por %p84, %p85
    %s87 = ssub.s32 %s11, %s18
    %p88 = scmp.eq.s32.totalorder %s87, 0
    %s90 = sadd.s32 %s89, 1
    %s91 = scalar_select %p88, %s89, %s90
    %p94 = pneg %p88
    %p95 = scmp.eq.s32.totalorder %s11, 1
    %p96 = por %p94, %p95
    %p97 = scmp.ne.s32.totalorder %s89, %s92
    %p98 = scmp.eq.s32.totalorder %s11, 0
    %p99 = por %p97, %p98
    %p100 = scmp.ne.s32.totalorder %s89, %s92
    %p101 = scmp.eq.s32.totalorder %s16, 1
    %p102 = por %p100, %p101
    %p103 = scmp.ne.s32.totalorder %s92, %s93
    %p104 = scmp.eq.s32.totalorder %s16, 0
    %p105 = por %p103, %p104
    %p106 = scmp.ne.s32.totalorder %s92, %s93
    %p107 = scmp.eq.s32.totalorder %s17, 1
    %p108 = por %p106, %p107
    %p110 = scmp.ne.s32.totalorder %s93, %s109
    %p111 = scmp.eq.s32.totalorder %s17, 0
    %p112 = por %p110, %p111
    %s113 = ssub.s32 %s11, %s18
    %p114 = scmp.eq.s32.totalorder %s113, 0
    %s116 = sadd.s32 %s115, 1
    %s117 = scalar_select %p114, %s115, %s116
    %p120 = pneg %p114
    %p121 = scmp.eq.s32.totalorder %s11, 1
    %p122 = por %p120, %p121
    %p123 = scmp.ne.s32.totalorder %s115, %s118
    %p124 = scmp.eq.s32.totalorder %s11, 0
    %p125 = por %p123, %p124
    %p126 = scmp.ne.s32.totalorder %s115, %s118
    %p127 = scmp.eq.s32.totalorder %s16, 1
    %p128 = por %p126, %p127
    %p129 = scmp.ne.s32.totalorder %s118, %s119
    %p130 = scmp.eq.s32.totalorder %s16, 0
    %p131 = por %p129, %p130
    %p132 = scmp.ne.s32.totalorder %s118, %s119
    %p133 = scmp.eq.s32.totalorder %s17, 1
    %p134 = por %p132, %p133
    %p136 = scmp.ne.s32.totalorder %s119, %s135
    %p137 = scmp.eq.s32.totalorder %s17, 0
    %p138 = por %p136, %p137
    %p139 = scmp.le.s32.totalorder 1, %s11
    %p140 = scmp.lt.s32.totalorder %s11, 3
    %p141 = pnand %p139, %p140
    %p142 = pneg %p141
    // Predicated region
    $region9: #{forward.12} parent=5 // pred_check
      _
    $region10: #{forward.12} parent=5 // pred_check_branch
      %144 = sbr.rel (%p141) target = $region12
    $region11: #{forward.12} parent=5 // pred_region
      %s145 = ssub.s32 %s11, 1
      // Predicated region
      $region13: #{forward.12} parent=11 // pred_check
        %p146 = pneg %p58
      $region14: #{forward.12} parent=11 // pred_check_branch
        %148 = sbr.rel (%p146) target = $region16
      $region15: #{forward.12} parent=11 // pred_region
        _
      $region16: #{forward.12} parent=11 // pred_fallthru
        _
      // Predicated region
      $region17: #{forward.12} parent=11 // pred_check
        %p149 = pneg %p79
      $region18: #{forward.12} parent=11 // pred_check_branch
        %151 = sbr.rel (%p149) target = $region20
      $region19: #{forward.12} parent=11 // pred_region
        _
      $region20: #{forward.12} parent=11 // pred_fallthru
        _
    $region12: #{forward.12} parent=5 // pred_fallthru
      _
    %p152 = scmp.lt.s32.totalorder %s11, 2
    // Predicated region
    $region21: #{forward.12} parent=5 // pred_check
      %p153 = pneg %p152
    $region22: #{forward.12} parent=5 // pred_check_branch
      %155 = sbr.rel (%p153) target = $region24
    $region23: #{forward.12} parent=5 // pred_region
      // Predicated region
      $region25: #{forward.12} parent=23 // pred_check
        %p156 = pneg %p31
      $region26: #{forward.12} parent=23 // pred_check_branch
        %158 = sbr.rel (%p156) target = $region28
      $region27: #{forward.12} parent=23 // pred_region
        %p159 = scmp.lt.s32.totalorder %s11, 1
        %s160 = scalar_select %p159, %s11, 1
        %s161 = smul.addr %s160, 3
        %s162 = smul.addr %s161, 4
        %s163 = scalar_lea.vmem %s0, %s162
      $region28: #{forward.12} parent=23 // pred_fallthru
        _
    $region24: #{forward.12} parent=5 // pred_fallthru
      _
    %p164 = scmp.le.s32.totalorder 1, %s11
    %p165 = scmp.lt.s32.totalorder %s11, 3
    %p166 = pnand %p164, %p165
    %p167 = pneg %p166
    // Predicated region
    $region29: #{forward.12} parent=5 // pred_check
      _
    $region30: #{forward.12} parent=5 // pred_check_branch
      %169 = sbr.rel (%p166) target = $region32
    $region31: #{forward.12} parent=5 // pred_region
      %s170 = ssub.s32 %s11, 1
      %p171 = scmp.lt.s32.totalorder %s16, 1
      %s172 = scalar_select %p171, %s16, 1
      %s173 = smul.addr %s172, 3
      %s174 = smul.addr %s173, 4
      %s175 = scalar_lea.vmem %s0, %s174
      %p176 = pneg %p37
      %p177 = pneg %p34
      %p178 = pneg %p58
      %p179 = pneg %p55
      %p180 = pneg %p79
      %p181 = pneg %p76
      %p182 = pneg %p105
      %p183 = pneg %p102
      %p184 = scmp.lt.s32.totalorder %s16, 1
      %s185 = scalar_select %p184, %s16, 1
      %s186 = smul.addr %s185, 2
      %s187 = scalar_lea.vmem %s3, %s186
      %p188 = pneg %p131
      %p189 = pneg %p128
      %p190 = scmp.lt.s32.totalorder %s16, 1
      %s191 = scalar_select %p190, %s16, 1
      %s192 = smul.addr %s191, 2
      %s193 = scalar_lea.vmem %s4, %s192
      %p194 = scmp.lt.s32.totalorder %s16, 1
      %s195 = scalar_select %p194, %s16, 1
      %s196 = smul.addr %s195, 3
      %s197 = smul.addr %s196, 4
      %s198 = scalar_lea.vmem %s0, %s197
      %p199 = scmp.lt.s32.totalorder %s16, 1
      %s200 = scalar_select %p199, %s16, 1
      %s201 = smul.addr %s200, 2
      %s202 = scalar_lea.vmem %s3, %s201
      %p203 = scmp.lt.s32.totalorder %s16, 1
      %s204 = scalar_select %p203, %s16, 1
      %s205 = smul.addr %s204, 2
      %s206 = scalar_lea.vmem %s4, %s205
      %v208 = vld [vmem:[%s198] sm:$0x33]
      %v209 = vld [vmem:[%s198 + $0x8] sm:$0x3]
      %v210 = vld [vmem:[%s1] sm:$0xf]
      %v211 = vld [vmem:[%s1 + $0x4] sm:$0xf]
      %v212 = vld [vmem:[%s1 + $0x8] sm:$0xf]
      %v213 = vld [vmem:[%s1 + $0xc] sm:$0xf]
      %v214 = vld [vmem:[%s1 + $0x10] sm:$0xf]
      %v215 = vld [vmem:[%s1 + $0x14] sm:$0xf]
      %v216 = vld [vmem:[%s1 + $0x18] sm:$0xf]
      %v217 = vld [vmem:[%s1 + $0x1c] sm:$0xf]
      %v218 = vld [vmem:[%s1 + $0x20] sm:$0xf]
      %v219 = vld [vmem:[%s1 + $0x24] sm:$0xf]
      %v220 = vld [vmem:[%s1 + $0x28] sm:$0xf]
      %v221 = vld [vmem:[%s1 + $0x2c] sm:$0xf]
      %v222 = vld [vmem:[%s1 + $0x30] sm:$0xf]
      %v223 = vld [vmem:[%s1 + $0x34] sm:$0xf]
      %v224 = vld [vmem:[%s1 + $0x38] sm:$0xf]
      %v225 = vld [vmem:[%s1 + $0x3c] sm:$0xf]
      %v226 = vld [vmem:[%s1 + $0x40] sm:$0xf]
      %v227 = vld [vmem:[%s1 + $0x44] sm:$0xf]
      %v228 = vld [vmem:[%s1 + $0x48] sm:$0xf]
      %v229 = vld [vmem:[%s1 + $0x4c] sm:$0xf]
      %v230 = vld [vmem:[%s1 + $0x50] sm:$0xf]
      %v231 = vld [vmem:[%s1 + $0x54] sm:$0xf]
      %v232 = vld [vmem:[%s1 + $0x58] sm:$0xf]
      %v233 = vld [vmem:[%s1 + $0x5c] sm:$0xf]
      %v234 = vld [vmem:[%s1 + $0x60] sm:$0xf]
      %v235 = vld [vmem:[%s1 + $0x64] sm:$0xf]
      %v236 = vld [vmem:[%s1 + $0x68] sm:$0xf]
      %v237 = vld [vmem:[%s1 + $0x6c] sm:$0xf]
      %v238 = vld [vmem:[%s1 + $0x70] sm:$0xf]
      %v239 = vld [vmem:[%s1 + $0x74] sm:$0xf]
      %v240 = vld [vmem:[%s1 + $0x78] sm:$0xf]
      %v241 = vld [vmem:[%s1 + $0x7c] sm:$0xf]
      %v242 = vld [vmem:[%s1 + $0x80] sm:$0xf]
      %v243 = vld [vmem:[%s1 + $0x84] sm:$0xf]
      %v244 = vld [vmem:[%s1 + $0x88] sm:$0xf]
      %v245 = vld [vmem:[%s1 + $0x8c] sm:$0xf]
      %v246 = vld [vmem:[%s1 + $0x90] sm:$0xf]
      %v247 = vld [vmem:[%s1 + $0x94] sm:$0xf]
      %v248 = vld [vmem:[%s1 + $0x98] sm:$0xf]
      %v249 = vld [vmem:[%s1 + $0x9c] sm:$0xf]
      %v250 = vld [vmem:[%s198] sm:$0x77]
      %v251 = vld [vmem:[%s198 + $0x8] sm:$0x7]
      %s252 = scalar_lea.vmem %s1, 160
      %v253 = vld [vmem:[%s252] sm:$0xf]
      %v254 = vld [vmem:[%s252 + $0x4] sm:$0xf]
      %v255 = vld [vmem:[%s252 + $0x8] sm:$0xf]
      %v256 = vld [vmem:[%s252 + $0xc] sm:$0xf]
      %v257 = vld [vmem:[%s252 + $0x10] sm:$0xf]
      %v258 = vld [vmem:[%s252 + $0x14] sm:$0xf]
      %v259 = vld [vmem:[%s252 + $0x18] sm:$0xf]
      %v260 = vld [vmem:[%s252 + $0x1c] sm:$0xf]
      %v261 = vld [vmem:[%s252 + $0x20] sm:$0xf]
      %v262 = vld [vmem:[%s252 + $0x24] sm:$0xf]
      %v263 = vld [vmem:[%s252 + $0x28] sm:$0xf]
      %v264 = vld [vmem:[%s252 + $0x2c] sm:$0xf]
      %v265 = vld [vmem:[%s252 + $0x30] sm:$0xf]
      %v266 = vld [vmem:[%s252 + $0x34] sm:$0xf]
      %v267 = vld [vmem:[%s252 + $0x38] sm:$0xf]
      %v268 = vld [vmem:[%s252 + $0x3c] sm:$0xf]
      %v269 = vld [vmem:[%s252 + $0x40] sm:$0xf]
      %v270 = vld [vmem:[%s252 + $0x44] sm:$0xf]
      %v271 = vld [vmem:[%s252 + $0x48] sm:$0xf]
      %v272 = vld [vmem:[%s252 + $0x4c] sm:$0xf]
      %v273 = vld [vmem:[%s252 + $0x50] sm:$0xf]
      %v274 = vld [vmem:[%s252 + $0x54] sm:$0xf]
      %v275 = vld [vmem:[%s252 + $0x58] sm:$0xf]
      %v276 = vld [vmem:[%s252 + $0x5c] sm:$0xf]
      %v277 = vld [vmem:[%s252 + $0x60] sm:$0xf]
      %v278 = vld [vmem:[%s252 + $0x64] sm:$0xf]
      %v279 = vld [vmem:[%s252 + $0x68] sm:$0xf]
      %v280 = vld [vmem:[%s252 + $0x6c] sm:$0xf]
      %v281 = vld [vmem:[%s252 + $0x70] sm:$0xf]
      %v282 = vld [vmem:[%s252 + $0x74] sm:$0xf]
      %v283 = vld [vmem:[%s252 + $0x78] sm:$0xf]
      %v284 = vld [vmem:[%s252 + $0x7c] sm:$0xf]
      %v285 = vld [vmem:[%s252 + $0x80] sm:$0xf]
      %v286 = vld [vmem:[%s252 + $0x84] sm:$0xf]
      %v287 = vld [vmem:[%s252 + $0x88] sm:$0xf]
      %v288 = vld [vmem:[%s252 + $0x8c] sm:$0xf]
      %v289 = vld [vmem:[%s252 + $0x90] sm:$0xf]
      %v290 = vld [vmem:[%s252 + $0x94] sm:$0xf]
      %v291 = vld [vmem:[%s252 + $0x98] sm:$0xf]
      %v292 = vld [vmem:[%s252 + $0x9c] sm:$0xf]
      %v295 = vunpack.c.l.b16 %v250
      %v296 = vunpack.c.h.b16 %v250
      %v297 = vunpack.c.l.b16 %v251
      %v298 = vpack.c.b16 %v295, %v295
      %v299 = vpack.c.b16 %v296, %v296
      %v300 = vpack.c.b16 %v297, %v297
      %v302 = vshrl.u32 %v298, 16
      %v304 = vshll.u32 %v298, 16
      %v306 = vrot.slane %v304, 1
      %v307 = vor.u32 %v302, %v306
      %v309 = vshrl.u32 %v299, 16
      %v311 = vshll.u32 %v299, 16
      %v313 = vrot.slane %v311, 1
      %v314 = vor.u32 %v309, %v313
      %v316 = vshrl.u32 %v300, 16
      %v318 = vshll.u32 %v300, 16
      %v320 = vrot.slane %v318, 1
      %v321 = vor.u32 %v316, %v320
      %v364 = vunpack.c.l.b16 %v253
      %v365 = vunpack.c.l.b16 %v254
      %v366 = vunpack.c.l.b16 %v255
      %v367 = vunpack.c.l.b16 %v256
      %v368 = vunpack.c.l.b16 %v257
      %v369 = vunpack.c.l.b16 %v258
      %v370 = vunpack.c.l.b16 %v259
      %v371 = vunpack.c.l.b16 %v260
      %v372 = vunpack.c.l.b16 %v261
      %v373 = vunpack.c.l.b16 %v262
      %v374 = vunpack.c.l.b16 %v263
      %v375 = vunpack.c.l.b16 %v264
      %v376 = vunpack.c.l.b16 %v265
      %v377 = vunpack.c.l.b16 %v266
      %v378 = vunpack.c.l.b16 %v267
      %v379 = vunpack.c.l.b16 %v268
      %v380 = vunpack.c.l.b16 %v269
      %v381 = vunpack.c.l.b16 %v270
      %v382 = vunpack.c.l.b16 %v271
      %v383 = vunpack.c.l.b16 %v272
      %v384 = vunpack.c.l.b16 %v273
      %v385 = vunpack.c.l.b16 %v274
      %v386 = vunpack.c.l.b16 %v275
      %v387 = vunpack.c.l.b16 %v276
      %v388 = vunpack.c.l.b16 %v277
      %v389 = vunpack.c.l.b16 %v278
      %v390 = vunpack.c.l.b16 %v279
      %v391 = vunpack.c.l.b16 %v280
      %v392 = vunpack.c.l.b16 %v281
      %v393 = vunpack.c.l.b16 %v282
      %v394 = vunpack.c.l.b16 %v283
      %v395 = vunpack.c.l.b16 %v284
      %v396 = vunpack.c.l.b16 %v285
      %v397 = vunpack.c.l.b16 %v286
      %v398 = vunpack.c.l.b16 %v287
      %v399 = vunpack.c.l.b16 %v288
      %v400 = vunpack.c.l.b16 %v289
      %v401 = vunpack.c.l.b16 %v290
      %v402 = vunpack.c.l.b16 %v291
      %v403 = vunpack.c.l.b16 %v292
      %v404 = vpack.c.b16 %v365, %v364
      %v405 = vpack.c.b16 %v367, %v366
      %v406 = vpack.c.b16 %v369, %v368
      %v407 = vpack.c.b16 %v371, %v370
      %v408 = vpack.c.b16 %v373, %v372
      %v409 = vpack.c.b16 %v375, %v374
      %v410 = vpack.c.b16 %v377, %v376
      %v411 = vpack.c.b16 %v379, %v378
      %v412 = vpack.c.b16 %v381, %v380
      %v413 = vpack.c.b16 %v383, %v382
      %v414 = vpack.c.b16 %v385, %v384
      %v415 = vpack.c.b16 %v387, %v386
      %v416 = vpack.c.b16 %v389, %v388
      %v417 = vpack.c.b16 %v391, %v390
      %v418 = vpack.c.b16 %v393, %v392
      %v419 = vpack.c.b16 %v395, %v394
      %v420 = vpack.c.b16 %v397, %v396
      %v421 = vpack.c.b16 %v399, %v398
      %v422 = vpack.c.b16 %v401, %v400
      %v423 = vpack.c.b16 %v403, %v402
      %vm444 = vcmask 523264
      %v446 = vsel %vm444, %v321, 0
      %448 = vmatprep.subr.bf16.mxu0 0
      %449 = vmatpush1.bf16.msra.mxu0 %v404
      %450 = vmatprep.subr.bf16.mxu0 0
      %451 = vmatpush1.bf16.msra.mxu0 %v405
      %452 = vmatprep.subr.bf16.mxu0 0
      %453 = vmatpush1.bf16.msra.mxu0 %v406
      %454 = vmatprep.subr.bf16.mxu0 0
      %455 = vmatpush1.bf16.msra.mxu0 %v407
      %456 = vmatprep.subr.bf16.mxu0 0
      %457 = vmatpush1.bf16.msra.mxu0 %v408
      %458 = vmatprep.subr.bf16.mxu0 0
      %459 = vmatpush1.bf16.msra.mxu0 %v409
      %460 = vmatprep.subr.bf16.mxu0 0
      %461 = vmatpush1.bf16.msra.mxu0 %v410
      %462 = vmatprep.subr.bf16.mxu0 0
      %463 = vmatpush1.bf16.msra.mxu0 %v411
      %464 = vmatprep.subr.bf16.mxu0 0
      %465 = vmatpush1.bf16.msra.mxu0 %v412
      %466 = vmatprep.subr.bf16.mxu0 0
      %467 = vmatpush1.bf16.msra.mxu0 %v413
      %468 = vmatprep.subr.bf16.mxu0 0
      %469 = vmatpush1.bf16.msra.mxu0 %v414
      %470 = vmatprep.subr.bf16.mxu0 0
      %471 = vmatpush1.bf16.msra.mxu0 %v415
      %472 = vmatprep.subr.bf16.mxu0 0
      %473 = vmatpush1.bf16.msra.mxu0 %v416
      %474 = vmatprep.subr.bf16.mxu0 0
      %475 = vmatpush1.bf16.msra.mxu0 %v417
      %476 = vmatprep.subr.bf16.mxu0 0
      %477 = vmatpush1.bf16.msra.mxu0 %v418
      %478 = vmatprep.subr.bf16.mxu0 0
      %479 = vmatpush1.bf16.msra.mxu0 %v419
      %480 = vmatprep.mubr.bf16.mxu0 %v314
      %481 = vmatmul.mubr.bf16.gmra.mrb[0].mxu0 %v307
      %v482 = vpop.f32.mrb[0].mxu0
      %v483 = vadd.f32 0.0, %v482
      %v484 = vpop.f32.mrb[0].mxu0
      %v485 = vpop.f32.mrb[0].mxu0
      %v486 = vpop.f32.mrb[0].mxu0
      %487 = vdwg.mxu0
      %488 = vmatprep.subr.bf16.mxu0 0
      %489 = vmatpush1.bf16.msra.mxu0 %v420
      %490 = vmatprep.subr.bf16.mxu0 0
      %491 = vmatpush1.bf16.msra.mxu0 %v421
      %492 = vmatprep.subr.bf16.mxu0 0
      %493 = vmatpush1.bf16.msra.mxu0 %v422
      %494 = vmatprep.subr.bf16.mxu0 0
      %495 = vmatpush1.bf16.msra.mxu0 %v423
      %496 = vmatprep.subr.bf16.mxu0 0
      %497 = vmatpush1.bf16.msra.mxu0 0
      %498 = vmatprep.subr.bf16.mxu0 0
      %499 = vmatpush1.bf16.msra.mxu0 0
      %500 = vmatprep.subr.bf16.mxu0 0
      %501 = vmatpush1.bf16.msra.mxu0 0
      %502 = vmatprep.subr.bf16.mxu0 0
      %503 = vmatpush1.bf16.msra.mxu0 0
      %504 = vmatprep.subr.bf16.mxu0 0
      %505 = vmatpush1.bf16.msra.mxu0 0
      %506 = vmatprep.subr.bf16.mxu0 0
      %507 = vmatpush1.bf16.msra.mxu0 0
      %508 = vmatprep.subr.bf16.mxu0 0
      %509 = vmatpush1.bf16.msra.mxu0 0
      %510 = vmatprep.subr.bf16.mxu0 0
      %511 = vmatpush1.bf16.msra.mxu0 0
      %512 = vmatprep.subr.bf16.mxu0 0
      %513 = vmatpush1.bf16.msra.mxu0 0
      %514 = vmatprep.subr.bf16.mxu0 0
      %515 = vmatpush1.bf16.msra.mxu0 0
      %516 = vmatprep.subr.bf16.mxu0 0
      %517 = vmatpush1.bf16.msra.mxu0 0
      %518 = vmatprep.subr.bf16.mxu0 0
      %519 = vmatpush1.bf16.msra.mxu0 0
      %520 = vmatprep.mubr.bf16.mxu0 0
      %521 = vmatmul.mubr.bf16.gmra.mrb[0].mxu0 %v446
      %v522 = vpop.f32.mrb[0].mxu0
      %v523 = vadd.f32 %v483, %v522
      %v524 = vpop.f32.mrb[0].mxu0
      %v525 = vpop.f32.mrb[0].mxu0
      %v526 = vpop.f32.mrb[0].mxu0
      %527 = vdwg.mxu0
      %v530 = vunpack.c.l.b16 %v208
      %v531 = vunpack.c.h.b16 %v208
      %v532 = vunpack.c.l.b16 %v209
      %v533 = vpack.c.b16 %v530, %v530
      %v534 = vpack.c.b16 %v531, %v531
      %v535 = vpack.c.b16 %v532, %v532
      %v578 = vunpack.c.l.b16 %v210
      %v579 = vunpack.c.l.b16 %v211
      %v580 = vunpack.c.l.b16 %v212
      %v581 = vunpack.c.l.b16 %v213
      %v582 = vunpack.c.l.b16 %v214
      %v583 = vunpack.c.l.b16 %v215
      %v584 = vunpack.c.l.b16 %v216
      %v585 = vunpack.c.l.b16 %v217
      %v586 = vunpack.c.l.b16 %v218
      %v587 = vunpack.c.l.b16 %v219
      %v588 = vunpack.c.l.b16 %v220
      %v589 = vunpack.c.l.b16 %v221
      %v590 = vunpack.c.l.b16 %v222
      %v591 = vunpack.c.l.b16 %v223
      %v592 = vunpack.c.l.b16 %v224
      %v593 = vunpack.c.l.b16 %v225
      %v594 = vunpack.c.l.b16 %v226
      %v595 = vunpack.c.l.b16 %v227
      %v596 = vunpack.c.l.b16 %v228
      %v597 = vunpack.c.l.b16 %v229
      %v598 = vunpack.c.l.b16 %v230
      %v599 = vunpack.c.l.b16 %v231
      %v600 = vunpack.c.l.b16 %v232
      %v601 = vunpack.c.l.b16 %v233
      %v602 = vunpack.c.l.b16 %v234
      %v603 = vunpack.c.l.b16 %v235
      %v604 = vunpack.c.l.b16 %v236
      %v605 = vunpack.c.l.b16 %v237
      %v606 = vunpack.c.l.b16 %v238
      %v607 = vunpack.c.l.b16 %v239
      %v608 = vunpack.c.l.b16 %v240
      %v609 = vunpack.c.l.b16 %v241
      %v610 = vunpack.c.l.b16 %v242
      %v611 = vunpack.c.l.b16 %v243
      %v612 = vunpack.c.l.b16 %v244
      %v613 = vunpack.c.l.b16 %v245
      %v614 = vunpack.c.l.b16 %v246
      %v615 = vunpack.c.l.b16 %v247
      %v616 = vunpack.c.l.b16 %v248
      %v617 = vunpack.c.l.b16 %v249
      %v618 = vpack.c.b16 %v579, %v578
      %v619 = vpack.c.b16 %v581, %v580
      %v620 = vpack.c.b16 %v583, %v582
      %v621 = vpack.c.b16 %v585, %v584
      %v622 = vpack.c.b16 %v587, %v586
      %v623 = vpack.c.b16 %v589, %v588
      %v624 = vpack.c.b16 %v591, %v590
      %v625 = vpack.c.b16 %v593, %v592
      %v626 = vpack.c.b16 %v595, %v594
      %v627 = vpack.c.b16 %v597, %v596
      %v628 = vpack.c.b16 %v599, %v598
      %v629 = vpack.c.b16 %v601, %v600
      %v630 = vpack.c.b16 %v603, %v602
      %v631 = vpack.c.b16 %v605, %v604
      %v632 = vpack.c.b16 %v607, %v606
      %v633 = vpack.c.b16 %v609, %v608
      %v634 = vpack.c.b16 %v611, %v610
      %v635 = vpack.c.b16 %v613, %v612
      %v636 = vpack.c.b16 %v615, %v614
      %v637 = vpack.c.b16 %v617, %v616
      %v659 = vsel %vm444, %v535, 0
      %661 = vmatprep.subr.bf16.mxu0 0
      %662 = vmatpush1.bf16.msra.mxu0 %v618
      %663 = vmatprep.subr.bf16.mxu0 0
      %664 = vmatpush1.bf16.msra.mxu0 %v619
      %665 = vmatprep.subr.bf16.mxu0 0
      %666 = vmatpush1.bf16.msra.mxu0 %v620
      %667 = vmatprep.subr.bf16.mxu0 0
      %668 = vmatpush1.bf16.msra.mxu0 %v621
      %669 = vmatprep.subr.bf16.mxu0 0
      %670 = vmatpush1.bf16.msra.mxu0 %v622
      %671 = vmatprep.subr.bf16.mxu0 0
      %672 = vmatpush1.bf16.msra.mxu0 %v623
      %673 = vmatprep.subr.bf16.mxu0 0
      %674 = vmatpush1.bf16.msra.mxu0 %v624
      %675 = vmatprep.subr.bf16.mxu0 0
      %676 = vmatpush1.bf16.msra.mxu0 %v625
      %677 = vmatprep.subr.bf16.mxu0 0
      %678 = vmatpush1.bf16.msra.mxu0 %v626
      %679 = vmatprep.subr.bf16.mxu0 0
      %680 = vmatpush1.bf16.msra.mxu0 %v627
      %681 = vmatprep.subr.bf16.mxu0 0
      %682 = vmatpush1.bf16.msra.mxu0 %v628
      %683 = vmatprep.subr.bf16.mxu0 0
      %684 = vmatpush1.bf16.msra.mxu0 %v629
      %685 = vmatprep.subr.bf16.mxu0 0
      %686 = vmatpush1.bf16.msra.mxu0 %v630
      %687 = vmatprep.subr.bf16.mxu0 0
      %688 = vmatpush1.bf16.msra.mxu0 %v631
      %689 = vmatprep.subr.bf16.mxu0 0
      %690 = vmatpush1.bf16.msra.mxu0 %v632
      %691 = vmatprep.subr.bf16.mxu0 0
      %692 = vmatpush1.bf16.msra.mxu0 %v633
      %693 = vmatprep.mubr.bf16.mxu0 %v534
      %694 = vmatmul.mubr.bf16.gmra.mrb[0].mxu0 %v533
      %v695 = vpop.f32.mrb[0].mxu0
      %v696 = vadd.f32 %v523, %v695
      %v697 = vpop.f32.mrb[0].mxu0
      %v698 = vpop.f32.mrb[0].mxu0
      %v699 = vpop.f32.mrb[0].mxu0
      %700 = vdwg.mxu0
      %701 = vmatprep.subr.bf16.mxu0 0
      %702 = vmatpush1.bf16.msra.mxu0 %v634
      %703 = vmatprep.subr.bf16.mxu0 0
      %704 = vmatpush1.bf16.msra.mxu0 %v635
      %705 = vmatprep.subr.bf16.mxu0 0
      %706 = vmatpush1.bf16.msra.mxu0 %v636
      %707 = vmatprep.subr.bf16.mxu0 0
      %708 = vmatpush1.bf16.msra.mxu0 %v637
      %709 = vmatprep.subr.bf16.mxu0 0
      %710 = vmatpush1.bf16.msra.mxu0 0
      %711 = vmatprep.subr.bf16.mxu0 0
      %712 = vmatpush1.bf16.msra.mxu0 0
      %713 = vmatprep.subr.bf16.mxu0 0
      %714 = vmatpush1.bf16.msra.mxu0 0
      %715 = vmatprep.subr.bf16.mxu0 0
      %716 = vmatpush1.bf16.msra.mxu0 0
      %717 = vmatprep.subr.bf16.mxu0 0
      %718 = vmatpush1.bf16.msra.mxu0 0
      %719 = vmatprep.subr.bf16.mxu0 0
      %720 = vmatpush1.bf16.msra.mxu0 0
      %721 = vmatprep.subr.bf16.mxu0 0
      %722 = vmatpush1.bf16.msra.mxu0 0
      %723 = vmatprep.subr.bf16.mxu0 0
      %724 = vmatpush1.bf16.msra.mxu0 0
      %725 = vmatprep.subr.bf16.mxu0 0
      %726 = vmatpush1.bf16.msra.mxu0 0
      %727 = vmatprep.subr.bf16.mxu0 0
      %728 = vmatpush1.bf16.msra.mxu0 0
      %729 = vmatprep.subr.bf16.mxu0 0
      %730 = vmatpush1.bf16.msra.mxu0 0
      %731 = vmatprep.subr.bf16.mxu0 0
      %732 = vmatpush1.bf16.msra.mxu0 0
      %733 = vmatprep.mubr.bf16.mxu0 0
      %734 = vmatmul.mubr.bf16.gmra.mrb[0].mxu0 %v659
      %v735 = vpop.f32.mrb[0].mxu0
      %v736 = vadd.f32 %v696, %v735
      %v737 = vpop.f32.mrb[0].mxu0
      %v738 = vpop.f32.mrb[0].mxu0
      %v739 = vpop.f32.mrb[0].mxu0
      %740 = vdwg.mxu0
      %v741 = vld [vmem:[%s2] sm:$0x1]
      %v743 = vlaneseq
      %v744 = vshrl.u32 %v743, 7
      %v745 = vsub.s32 0, %v744
      %v746 = vrot.slane %v741, %v745
      %v748 = vadd.f32 %v736, %v746
      %v749 = vpack.c.bf16 %v748, %v748
      %750 = vst [vmem:[%s202] sm:$0x3] %v749
      %vm751 = vcmask 1043456
      %v752 = vsel %vm751, %v748, 0.0
      %v753 = vrot.slane %v752, 4
      %v754 = vadd.f32 %v752, %v753
      %v755 = vrot.slane %v754, 2
      %v756 = vadd.f32 %v754, %v755
      %v757 = vrot.slane %v756, 1
      %v758 = vadd.f32 %v756, %v757
      %759 = vst [vmem:[%s206] sm:$0x1] %v758
      %v760 = vmul.f32 %v748, %v748
      %v761 = vsel %vm751, %v760, 0.0
      %v762 = vrot.slane %v761, 4
      %v763 = vadd.f32 %v761, %v762
      %v764 = vrot.slane %v763, 2
      %v765 = vadd.f32 %v763, %v764
      %v766 = vrot.slane %v765, 1
      %v767 = vadd.f32 %v765, %v766
      %768 = vst [vmem:[%s206 + $0x1] sm:$0x1] %v767
      %p769 = scmp.lt.s32.totalorder %s16, 1
      %s770 = scalar_select %p769, %s16, 1
      %s771 = smul.addr %s770, 2
      %s772 = scalar_lea.vmem %s3, %s771
      %p773 = scmp.lt.s32.totalorder %s16, 1
      %s774 = scalar_select %p773, %s16, 1
      %s775 = smul.addr %s774, 2
      %s776 = scalar_lea.vmem %s4, %s775
      // Predicated region
      $region33: #{forward.12} parent=31 // pred_check
        %p777 = pneg %p102
      $region34: #{forward.12} parent=31 // pred_check_branch
        %779 = sbr.rel (%p777) target = $region36
      $region35: #{forward.12} parent=31 // pred_region
        _
      $region36: #{forward.12} parent=31 // pred_fallthru
        _
      // Predicated region
      $region37: #{forward.12} parent=31 // pred_check
        %p780 = pneg %p128
      $region38: #{forward.12} parent=31 // pred_check_branch
        %782 = sbr.rel (%p780) target = $region40
      $region39: #{forward.12} parent=31 // pred_region
        _
      $region40: #{forward.12} parent=31 // pred_fallthru
        _
    $region32: #{forward.12} parent=5 // pred_fallthru
      _
    %p783 = scmp.le.s32.totalorder 2, %s11
    // Predicated region
    $region41: #{forward.12} parent=5 // pred_check
      %p784 = pneg %p783
    $region42: #{forward.12} parent=5 // pred_check_branch
      %786 = sbr.rel (%p784) target = $region44
    $region43: #{forward.12} parent=5 // pred_region
      %s787 = ssub.s32 %s11, 2
      // Predicated region
      $region45: #{forward.12} parent=43 // pred_check
        %p788 = pneg %p108
      $region46: #{forward.12} parent=43 // pred_check_branch
        %790 = sbr.rel (%p788) target = $region48
      $region47: #{forward.12} parent=43 // pred_region
        %p791 = scmp.lt.s32.totalorder %s17, 1
        %s792 = scalar_select %p791, %s17, 1
        %s793 = smul.addr %s792, 2
        %s794 = scalar_lea.vmem %s3, %s793
      $region48: #{forward.12} parent=43 // pred_fallthru
        _
      // Predicated region
      $region49: #{forward.12} parent=43 // pred_check
        %p795 = pneg %p134
      $region50: #{forward.12} parent=43 // pred_check_branch
        %797 = sbr.rel (%p795) target = $region52
      $region51: #{forward.12} parent=43 // pred_region
        %p798 = scmp.lt.s32.totalorder %s17, 1
        %s799 = scalar_select %p798, %s17, 1
        %s800 = smul.addr %s799, 2
        %s801 = scalar_lea.vmem %s4, %s800
      $region52: #{forward.12} parent=43 // pred_fallthru
        _
    $region44: #{forward.12} parent=5 // pred_fallthru
      _
  $region6: #{forward.12} parent=0 // loop_footer
    %s15 = sadd.s32 1, %s11
  $region7: #{forward.12} parent=0 // loop_footer_branch
    %10 = sbr.rel target = $region3
  $region8: #{forward.12} parent=0 // loop_exit
    _

// kernel: forward.13
$region0: #{forward.13}
  #allocation0 [shape = 'u32[]', space=smem, size = 0x4, offset = 0x4, fixed_abs, tag = 'smem constant byte address 0x4 - core index']
  #allocation1 [shape = 'u32[144,128]{1,0:T(1,128)}', space=vmem, size = 0x12000, scoped, tag = 'internal scratch']
  %s0 = inlined_call_operand.vmem [shape: bf16[2,3,384], index: 0, kind: input, shape index: {}]
  %s1 = inlined_call_operand.vmem [shape: bf16[2,384,128], index: 1, kind: input, shape index: {}]
  %s2 = inlined_call_operand.vmem [shape: f32[1,128], index: 2, kind: input, shape index: {}]
  %s3 = inlined_call_operand.vmem [shape: bf16[2,2,128], index: 3, kind: output, shape index: {0}]
  %s4 = inlined_call_operand.vmem [shape: f32[2,2,128], index: 4, kind: output, shape index: {1}]
  %5 = xla_tuple %s3, %s4
  %s6 = sld [smem:[#allocation0]]
  $region53: #{forward.13} parent=0
    _
  %s8 = ssub.s32 1, %s6
  %s9 = scalar_select 0, %s8, %s6
  loop: start=0, step=1, limit=4
  $region2: #{forward.13} parent=0 // loop_pre_header
    _
  $region3: #{forward.13} parent=0 // loop_header
    %s11 = sphi 0, %s15
    %p12 = scmp.ge.s32.totalorder %s11, 4
    %s21 = sphi 0, %s23
    %s24 = sphi 0, %s21
    %s25 = sphi 0, %s24
    %s41 = sphi 0, %s25
    %s45 = sphi 0, %s45
    %s47 = sphi 0, %s45
    %s48 = sphi 0, %s47
    %s62 = sphi 0, %s48
    %s66 = sphi 0, %s66
    %s68 = sphi 0, %s66
    %s69 = sphi 0, %s68
    %s83 = sphi 0, %s69
    %s89 = sphi 0, %s91
    %s92 = sphi 0, %s89
    %s93 = sphi 0, %s92
    %s109 = sphi 0, %s93
    %s115 = sphi 0, %s117
    %s118 = sphi 0, %s115
    %s119 = sphi 0, %s118
    %s135 = sphi 0, %s119
  $region4: #{forward.13} parent=0 // loop_header_branch
    %14 = sbr.rel (%p12) target = $region8
  $region5: #{forward.13} parent=0 // loop_body
    %s16 = ssub.s32 %s11, 1
    %s17 = ssub.s32 %s11, 2
    %s18 = sadd.s32 %s11, 1
    %s19 = ssub.s32 %s11, %s18
    %p20 = scmp.eq.s32.totalorder %s19, 0
    %s22 = sadd.s32 %s21, 1
    %s23 = scalar_select %p20, %s21, %s22
    %p26 = pneg %p20
    %p27 = scmp.eq.s32.totalorder %s11, 1
    %p28 = por %p26, %p27
    %p29 = scmp.ne.s32.totalorder %s21, %s24
    %p30 = scmp.eq.s32.totalorder %s11, 0
    %p31 = por %p29, %p30
    %p32 = scmp.ne.s32.totalorder %s21, %s24
    %p33 = scmp.eq.s32.totalorder %s16, 1
    %p34 = por %p32, %p33
    %p35 = scmp.ne.s32.totalorder %s24, %s25
    %p36 = scmp.eq.s32.totalorder %s16, 0
    %p37 = por %p35, %p36
    %p38 = scmp.ne.s32.totalorder %s24, %s25
    %p39 = scmp.eq.s32.totalorder %s17, 1
    %p40 = por %p38, %p39
    %p42 = scmp.ne.s32.totalorder %s25, %s41
    %p43 = scmp.eq.s32.totalorder %s17, 0
    %p44 = por %p42, %p43
    %s46 = sadd.s32 %s45, 1
    %p49 = scmp.eq.s32.totalorder %s11, 1
    %p50 = scmp.ne.s32.totalorder %s45, %s47
    %p51 = scmp.eq.s32.totalorder %s11, 0
    %p52 = por %p50, %p51
    %p53 = scmp.ne.s32.totalorder %s45, %s47
    %p54 = scmp.eq.s32.totalorder %s16, 1
    %p55 = por %p53, %p54
    %p56 = scmp.ne.s32.totalorder %s47, %s48
    %p57 = scmp.eq.s32.totalorder %s16, 0
    %p58 = por %p56, %p57
    %p59 = scmp.ne.s32.totalorder %s47, %s48
    %p60 = scmp.eq.s32.totalorder %s17, 1
    %p61 = por %p59, %p60
    %p63 = scmp.ne.s32.totalorder %s48, %s62
    %p64 = scmp.eq.s32.totalorder %s17, 0
    %p65 = por %p63, %p64
    %s67 = sadd.s32 %s66, 1
    %p70 = scmp.eq.s32.totalorder %s11, 1
    %p71 = scmp.ne.s32.totalorder %s66, %s68
    %p72 = scmp.eq.s32.totalorder %s11, 0
    %p73 = por %p71, %p72
    %p74 = scmp.ne.s32.totalorder %s66, %s68
    %p75 = scmp.eq.s32.totalorder %s16, 1
    %p76 = por %p74, %p75
    %p77 = scmp.ne.s32.totalorder %s68, %s69
    %p78 = scmp.eq.s32.totalorder %s16, 0
    %p79 = por %p77, %p78
    %p80 = scmp.ne.s32.totalorder %s68, %s69
    %p81 = scmp.eq.s32.totalorder %s17, 1
    %p82 = por %p80, %p81
    %p84 = scmp.ne.s32.totalorder %s69, %s83
    %p85 = scmp.eq.s32.totalorder %s17, 0
    %p86 = por %p84, %p85
    %s87 = ssub.s32 %s11, %s18
    %p88 = scmp.eq.s32.totalorder %s87, 0
    %s90 = sadd.s32 %s89, 1
    %s91 = scalar_select %p88, %s89, %s90
    %p94 = pneg %p88
    %p95 = scmp.eq.s32.totalorder %s11, 1
    %p96 = por %p94, %p95
    %p97 = scmp.ne.s32.totalorder %s89, %s92
    %p98 = scmp.eq.s32.totalorder %s11, 0
    %p99 = por %p97, %p98
    %p100 = scmp.ne.s32.totalorder %s89, %s92
    %p101 = scmp.eq.s32.totalorder %s16, 1
    %p102 = por %p100, %p101
    %p103 = scmp.ne.s32.totalorder %s92, %s93
    %p104 = scmp.eq.s32.totalorder %s16, 0
    %p105 = por %p103, %p104
    %p106 = scmp.ne.s32.totalorder %s92, %s93
    %p107 = scmp.eq.s32.totalorder %s17, 1
    %p108 = por %p106, %p107
    %p110 = scmp.ne.s32.totalorder %s93, %s109
    %p111 = scmp.eq.s32.totalorder %s17, 0
    %p112 = por %p110, %p111
    %s113 = ssub.s32 %s11, %s18
    %p114 = scmp.eq.s32.totalorder %s113, 0
    %s116 = sadd.s32 %s115, 1
    %s117 = scalar_select %p114, %s115, %s116
    %p120 = pneg %p114
    %p121 = scmp.eq.s32.totalorder %s11, 1
    %p122 = por %p120, %p121
    %p123 = scmp.ne.s32.totalorder %s115, %s118
    %p124 = scmp.eq.s32.totalorder %s11, 0
    %p125 = por %p123, %p124
    %p126 = scmp.ne.s32.totalorder %s115, %s118
    %p127 = scmp.eq.s32.totalorder %s16, 1
    %p128 = por %p126, %p127
    %p129 = scmp.ne.s32.totalorder %s118, %s119
    %p130 = scmp.eq.s32.totalorder %s16, 0
    %p131 = por %p129, %p130
    %p132 = scmp.ne.s32.totalorder %s118, %s119
    %p133 = scmp.eq.s32.totalorder %s17, 1
    %p134 = por %p132, %p133
    %p136 = scmp.ne.s32.totalorder %s119, %s135
    %p137 = scmp.eq.s32.totalorder %s17, 0
    %p138 = por %p136, %p137
    %p139 = scmp.le.s32.totalorder 1, %s11
    %p140 = scmp.lt.s32.totalorder %s11, 3
    %p141 = pnand %p139, %p140
    %p142 = pneg %p141
    // Predicated region
    $region9: #{forward.13} parent=5 // pred_check
      _
    $region10: #{forward.13} parent=5 // pred_check_branch
      %144 = sbr.rel (%p141) target = $region12
    $region11: #{forward.13} parent=5 // pred_region
      %s145 = ssub.s32 %s11, 1
      // Predicated region
      $region13: #{forward.13} parent=11 // pred_check
        %p146 = pneg %p58
      $region14: #{forward.13} parent=11 // pred_check_branch
        %148 = sbr.rel (%p146) target = $region16
      $region15: #{forward.13} parent=11 // pred_region
        _
      $region16: #{forward.13} parent=11 // pred_fallthru
        _
      // Predicated region
      $region17: #{forward.13} parent=11 // pred_check
        %p149 = pneg %p79
      $region18: #{forward.13} parent=11 // pred_check_branch
        %151 = sbr.rel (%p149) target = $region20
      $region19: #{forward.13} parent=11 // pred_region
        _
      $region20: #{forward.13} parent=11 // pred_fallthru
        _
    $region12: #{forward.13} parent=5 // pred_fallthru
      _
    %p152 = scmp.lt.s32.totalorder %s11, 2
    // Predicated region
    $region21: #{forward.13} parent=5 // pred_check
      %p153 = pneg %p152
    $region22: #{forward.13} parent=5 // pred_check_branch
      %155 = sbr.rel (%p153) target = $region24
    $region23: #{forward.13} parent=5 // pred_region
      // Predicated region
      $region25: #{forward.13} parent=23 // pred_check
        %p156 = pneg %p31
      $region26: #{forward.13} parent=23 // pred_check_branch
        %158 = sbr.rel (%p156) target = $region28
      $region27: #{forward.13} parent=23 // pred_region
        %p159 = scmp.lt.s32.totalorder %s11, 1
        %s160 = scalar_select %p159, %s11, 1
        %s161 = smul.addr %s160, 3
        %s162 = smul.addr %s161, 2
        %s163 = scalar_lea.vmem %s0, %s162
      $region28: #{forward.13} parent=23 // pred_fallthru
        _
    $region24: #{forward.13} parent=5 // pred_fallthru
      _
    %p164 = scmp.le.s32.totalorder 1, %s11
    %p165 = scmp.lt.s32.totalorder %s11, 3
    %p166 = pnand %p164, %p165
    %p167 = pneg %p166
    // Predicated region
    $region29: #{forward.13} parent=5 // pred_check
      _
    $region30: #{forward.13} parent=5 // pred_check_branch
      %169 = sbr.rel (%p166) target = $region32
    $region31: #{forward.13} parent=5 // pred_region
      %s170 = ssub.s32 %s11, 1
      %p171 = scmp.lt.s32.totalorder %s16, 1
      %s172 = scalar_select %p171, %s16, 1
      %s173 = smul.addr %s172, 3
      %s174 = smul.addr %s173, 2
      %s175 = scalar_lea.vmem %s0, %s174
      %p176 = pneg %p37
      %p177 = pneg %p34
      %p178 = pneg %p58
      %p179 = pneg %p55
      %p180 = pneg %p79
      %p181 = pneg %p76
      %p182 = pneg %p105
      %p183 = pneg %p102
      %p184 = scmp.lt.s32.totalorder %s16, 1
      %s185 = scalar_select %p184, %s16, 1
      %s186 = scalar_lea.vmem %s3, %s185
      %p187 = pneg %p131
      %p188 = pneg %p128
      %p189 = scmp.lt.s32.totalorder %s16, 1
      %s190 = scalar_select %p189, %s16, 1
      %s191 = smul.addr %s190, 2
      %s192 = scalar_lea.vmem %s4, %s191
      %p193 = scmp.lt.s32.totalorder %s16, 1
      %s194 = scalar_select %p193, %s16, 1
      %s195 = smul.addr %s194, 3
      %s196 = smul.addr %s195, 2
      %s197 = scalar_lea.vmem %s0, %s196
      %p198 = scmp.lt.s32.totalorder %s16, 1
      %s199 = scalar_select %p198, %s16, 1
      %s200 = scalar_lea.vmem %s3, %s199
      %p201 = scmp.lt.s32.totalorder %s16, 1
      %s202 = scalar_select %p201, %s16, 1
      %s203 = smul.addr %s202, 2
      %s204 = scalar_lea.vmem %s4, %s203
      %v206 = vld [vmem:[%s197] sm:$0x15]
      %v207 = vld [vmem:[%s1] sm:$0xf]
      %v208 = vld [vmem:[%s1 + $0x4] sm:$0xf]
      %v209 = vld [vmem:[%s1 + $0x8] sm:$0xf]
      %v210 = vld [vmem:[%s1 + $0xc] sm:$0xf]
      %v211 = vld [vmem:[%s1 + $0x10] sm:$0xf]
      %v212 = vld [vmem:[%s1 + $0x14] sm:$0xf]
      %v213 = vld [vmem:[%s1 + $0x18] sm:$0xf]
      %v214 = vld [vmem:[%s1 + $0x1c] sm:$0xf]
      %v215 = vld [vmem:[%s1 + $0x20] sm:$0xf]
      %v216 = vld [vmem:[%s1 + $0x24] sm:$0xf]
      %v217 = vld [vmem:[%s1 + $0x28] sm:$0xf]
      %v218 = vld [vmem:[%s1 + $0x2c] sm:$0xf]
      %v219 = vld [vmem:[%s1 + $0x30] sm:$0xf]
      %v220 = vld [vmem:[%s1 + $0x34] sm:$0xf]
      %v221 = vld [vmem:[%s1 + $0x38] sm:$0xf]
      %v222 = vld [vmem:[%s1 + $0x3c] sm:$0xf]
      %v223 = vld [vmem:[%s1 + $0x40] sm:$0xf]
      %v224 = vld [vmem:[%s1 + $0x44] sm:$0xf]
      %v225 = vld [vmem:[%s1 + $0x48] sm:$0xf]
      %v226 = vld [vmem:[%s1 + $0x4c] sm:$0xf]
      %v227 = vld [vmem:[%s1 + $0x50] sm:$0xf]
      %v228 = vld [vmem:[%s1 + $0x54] sm:$0xf]
      %v229 = vld [vmem:[%s1 + $0x58] sm:$0xf]
      %v230 = vld [vmem:[%s1 + $0x5c] sm:$0xf]
      %v231 = vld [vmem:[%s1 + $0x60] sm:$0xf]
      %v232 = vld [vmem:[%s1 + $0x64] sm:$0xf]
      %v233 = vld [vmem:[%s1 + $0x68] sm:$0xf]
      %v234 = vld [vmem:[%s1 + $0x6c] sm:$0xf]
      %v235 = vld [vmem:[%s1 + $0x70] sm:$0xf]
      %v236 = vld [vmem:[%s1 + $0x74] sm:$0xf]
      %v237 = vld [vmem:[%s1 + $0x78] sm:$0xf]
      %v238 = vld [vmem:[%s1 + $0x7c] sm:$0xf]
      %v239 = vld [vmem:[%s1 + $0x80] sm:$0xf]
      %v240 = vld [vmem:[%s1 + $0x84] sm:$0xf]
      %v241 = vld [vmem:[%s1 + $0x88] sm:$0xf]
      %v242 = vld [vmem:[%s1 + $0x8c] sm:$0xf]
      %v243 = vld [vmem:[%s1 + $0x90] sm:$0xf]
      %v244 = vld [vmem:[%s1 + $0x94] sm:$0xf]
      %v245 = vld [vmem:[%s1 + $0x98] sm:$0xf]
      %v246 = vld [vmem:[%s1 + $0x9c] sm:$0xf]
      %v247 = vld [vmem:[%s1 + $0xa0] sm:$0xf]
      %v248 = vld [vmem:[%s1 + $0xa4] sm:$0xf]
      %v249 = vld [vmem:[%s1 + $0xa8] sm:$0xf]
      %v250 = vld [vmem:[%s1 + $0xac] sm:$0xf]
      %v251 = vld [vmem:[%s1 + $0xb0] sm:$0xf]
      %v252 = vld [vmem:[%s1 + $0xb4] sm:$0xf]
      %v253 = vld [vmem:[%s1 + $0xb8] sm:$0xf]
      %v254 = vld [vmem:[%s1 + $0xbc] sm:$0xf]
      %v255 = vld [vmem:[%s197] sm:$0x3f]
      %s256 = scalar_lea.vmem %s1, 192
      %v257 = vld [vmem:[%s256] sm:$0xf]
      %v258 = vld [vmem:[%s256 + $0x4] sm:$0xf]
      %v259 = vld [vmem:[%s256 + $0x8] sm:$0xf]
      %v260 = vld [vmem:[%s256 + $0xc] sm:$0xf]
      %v261 = vld [vmem:[%s256 + $0x10] sm:$0xf]
      %v262 = vld [vmem:[%s256 + $0x14] sm:$0xf]
      %v263 = vld [vmem:[%s256 + $0x18] sm:$0xf]
      %v264 = vld [vmem:[%s256 + $0x1c] sm:$0xf]
      %v265 = vld [vmem:[%s256 + $0x20] sm:$0xf]
      %v266 = vld [vmem:[%s256 + $0x24] sm:$0xf]
      %v267 = vld [vmem:[%s256 + $0x28] sm:$0xf]
      %v268 = vld [vmem:[%s256 + $0x2c] sm:$0xf]
      %v269 = vld [vmem:[%s256 + $0x30] sm:$0xf]
      %v270 = vld [vmem:[%s256 + $0x34] sm:$0xf]
      %v271 = vld [vmem:[%s256 + $0x38] sm:$0xf]
      %v272 = vld [vmem:[%s256 + $0x3c] sm:$0xf]
      %v273 = vld [vmem:[%s256 + $0x40] sm:$0xf]
      %v274 = vld [vmem:[%s256 + $0x44] sm:$0xf]
      %v275 = vld [vmem:[%s256 + $0x48] sm:$0xf]
      %v276 = vld [vmem:[%s256 + $0x4c] sm:$0xf]
      %v277 = vld [vmem:[%s256 + $0x50] sm:$0xf]
      %v278 = vld [vmem:[%s256 + $0x54] sm:$0xf]
      %v279 = vld [vmem:[%s256 + $0x58] sm:$0xf]
      %v280 = vld [vmem:[%s256 + $0x5c] sm:$0xf]
      %v281 = vld [vmem:[%s256 + $0x60] sm:$0xf]
      %v282 = vld [vmem:[%s256 + $0x64] sm:$0xf]
      %v283 = vld [vmem:[%s256 + $0x68] sm:$0xf]
      %v284 = vld [vmem:[%s256 + $0x6c] sm:$0xf]
      %v285 = vld [vmem:[%s256 + $0x70] sm:$0xf]
      %v286 = vld [vmem:[%s256 + $0x74] sm:$0xf]
      %v287 = vld [vmem:[%s256 + $0x78] sm:$0xf]
      %v288 = vld [vmem:[%s256 + $0x7c] sm:$0xf]
      %v289 = vld [vmem:[%s256 + $0x80] sm:$0xf]
      %v290 = vld [vmem:[%s256 + $0x84] sm:$0xf]
      %v291 = vld [vmem:[%s256 + $0x88] sm:$0xf]
      %v292 = vld [vmem:[%s256 + $0x8c] sm:$0xf]
      %v293 = vld [vmem:[%s256 + $0x90] sm:$0xf]
      %v294 = vld [vmem:[%s256 + $0x94] sm:$0xf]
      %v295 = vld [vmem:[%s256 + $0x98] sm:$0xf]
      %v296 = vld [vmem:[%s256 + $0x9c] sm:$0xf]
      %v297 = vld [vmem:[%s256 + $0xa0] sm:$0xf]
      %v298 = vld [vmem:[%s256 + $0xa4] sm:$0xf]
      %v299 = vld [vmem:[%s256 + $0xa8] sm:$0xf]
      %v300 = vld [vmem:[%s256 + $0xac] sm:$0xf]
      %v301 = vld [vmem:[%s256 + $0xb0] sm:$0xf]
      %v302 = vld [vmem:[%s256 + $0xb4] sm:$0xf]
      %v303 = vld [vmem:[%s256 + $0xb8] sm:$0xf]
      %v304 = vld [vmem:[%s256 + $0xbc] sm:$0xf]
      %v306 = vcombine.high %v255, %v255
      %v308 = vunpack.c.l.s4 1983009808
      %v309 = vunpack.c.0.s8 %v308
      %v310 = vlaneseq
      %v311 = vshrl.u32 %v310, 7
      %v312 = vsub.s32 %v309, %v311
      %v313 = vrot.slane %v255, %v312
      %v315 = vunpack.c.l.s4 1983009808
      %v316 = vunpack.c.0.s8 %v315
      %v317 = vlaneseq
      %v318 = vshrl.u32 %v317, 7
      %v319 = vsub.s32 %v316, %v318
      %v320 = vrot.slane %v306, %v319
      %v321 = vcombine.high %v313, %v313
      %v323 = vshrl.u32 %v313, 16
      %v325 = vshll.u32 %v313, 16
      %v327 = vrot.slane %v325, 1
      %v328 = vor.u32 %v323, %v327
      %v330 = vshrl.u32 %v321, 16
      %v332 = vshll.u32 %v321, 16
      %v334 = vrot.slane %v332, 1
      %v335 = vor.u32 %v330, %v334
      %v337 = vshrl.u32 %v320, 16
      %v339 = vshll.u32 %v320, 16
      %v341 = vrot.slane %v339, 1
      %v342 = vor.u32 %v337, %v341
      %v394 = vunpack.c.l.b16 %v257
      %v395 = vunpack.c.l.b16 %v258
      %v396 = vunpack.c.l.b16 %v259
      %v397 = vunpack.c.l.b16 %v260
      %v398 = vunpack.c.l.b16 %v261
      %v399 = vunpack.c.l.b16 %v262
      %v400 = vunpack.c.l.b16 %v263
      %v401 = vunpack.c.l.b16 %v264
      %v402 = vunpack.c.l.b16 %v265
      %v403 = vunpack.c.l.b16 %v266
      %v404 = vunpack.c.l.b16 %v267
      %v405 = vunpack.c.l.b16 %v268
      %v406 = vunpack.c.l.b16 %v269
      %v407 = vunpack.c.l.b16 %v270
      %v408 = vunpack.c.l.b16 %v271
      %v409 = vunpack.c.l.b16 %v272
      %v410 = vunpack.c.l.b16 %v273
      %v411 = vunpack.c.l.b16 %v274
      %v412 = vunpack.c.l.b16 %v275
      %v413 = vunpack.c.l.b16 %v276
      %v414 = vunpack.c.l.b16 %v277
      %v415 = vunpack.c.l.b16 %v278
      %v416 = vunpack.c.l.b16 %v279
      %v417 = vunpack.c.l.b16 %v280
      %v418 = vunpack.c.l.b16 %v281
      %v419 = vunpack.c.l.b16 %v282
      %v420 = vunpack.c.l.b16 %v283
      %v421 = vunpack.c.l.b16 %v284
      %v422 = vunpack.c.l.b16 %v285
      %v423 = vunpack.c.l.b16 %v286
      %v424 = vunpack.c.l.b16 %v287
      %v425 = vunpack.c.l.b16 %v288
      %v426 = vunpack.c.l.b16 %v289
      %v427 = vunpack.c.l.b16 %v290
      %v428 = vunpack.c.l.b16 %v291
      %v429 = vunpack.c.l.b16 %v292
      %v430 = vunpack.c.l.b16 %v293
      %v431 = vunpack.c.l.b16 %v294
      %v432 = vunpack.c.l.b16 %v295
      %v433 = vunpack.c.l.b16 %v296
      %v434 = vunpack.c.l.b16 %v297
      %v435 = vunpack.c.l.b16 %v298
      %v436 = vunpack.c.l.b16 %v299
      %v437 = vunpack.c.l.b16 %v300
      %v438 = vunpack.c.l.b16 %v301
      %v439 = vunpack.c.l.b16 %v302
      %v440 = vunpack.c.l.b16 %v303
      %v441 = vunpack.c.l.b16 %v304
      %v442 = vpack.c.b16 %v395, %v394
      %v443 = vpack.c.b16 %v397, %v396
      %v444 = vpack.c.b16 %v399, %v398
      %v445 = vpack.c.b16 %v401, %v400
      %v446 = vpack.c.b16 %v403, %v402
      %v447 = vpack.c.b16 %v405, %v404
      %v448 = vpack.c.b16 %v407, %v406
      %v449 = vpack.c.b16 %v409, %v408
      %v450 = vpack.c.b16 %v411, %v410
      %v451 = vpack.c.b16 %v413, %v412
      %v452 = vpack.c.b16 %v415, %v414
      %v453 = vpack.c.b16 %v417, %v416
      %v454 = vpack.c.b16 %v419, %v418
      %v455 = vpack.c.b16 %v421, %v420
      %v456 = vpack.c.b16 %v423, %v422
      %v457 = vpack.c.b16 %v425, %v424
      %v458 = vpack.c.b16 %v427, %v426
      %v459 = vpack.c.b16 %v429, %v428
      %v460 = vpack.c.b16 %v431, %v430
      %v461 = vpack.c.b16 %v433, %v432
      %v462 = vpack.c.b16 %v435, %v434
      %v463 = vpack.c.b16 %v437, %v436
      %v464 = vpack.c.b16 %v439, %v438
      %v465 = vpack.c.b16 %v441, %v440
      %490 = vmatprep.subr.bf16.mxu0 0
      %491 = vmatpush1.bf16.msra.mxu0 %v442
      %492 = vmatprep.subr.bf16.mxu0 0
      %493 = vmatpush1.bf16.msra.mxu0 %v443
      %494 = vmatprep.subr.bf16.mxu0 0
      %495 = vmatpush1.bf16.msra.mxu0 %v444
      %496 = vmatprep.subr.bf16.mxu0 0
      %497 = vmatpush1.bf16.msra.mxu0 %v445
      %498 = vmatprep.subr.bf16.mxu0 0
      %499 = vmatpush1.bf16.msra.mxu0 %v446
      %500 = vmatprep.subr.bf16.mxu0 0
      %501 = vmatpush1.bf16.msra.mxu0 %v447
      %502 = vmatprep.subr.bf16.mxu0 0
      %503 = vmatpush1.bf16.msra.mxu0 %v448
      %504 = vmatprep.subr.bf16.mxu0 0
      %505 = vmatpush1.bf16.msra.mxu0 %v449
      %506 = vmatprep.subr.bf16.mxu0 0
      %507 = vmatpush1.bf16.msra.mxu0 %v450
      %508 = vmatprep.subr.bf16.mxu0 0
      %509 = vmatpush1.bf16.msra.mxu0 %v451
      %510 = vmatprep.subr.bf16.mxu0 0
      %511 = vmatpush1.bf16.msra.mxu0 %v452
      %512 = vmatprep.subr.bf16.mxu0 0
      %513 = vmatpush1.bf16.msra.mxu0 %v453
      %514 = vmatprep.subr.bf16.mxu0 0
      %515 = vmatpush1.bf16.msra.mxu0 %v454
      %516 = vmatprep.subr.bf16.mxu0 0
      %517 = vmatpush1.bf16.msra.mxu0 %v455
      %518 = vmatprep.subr.bf16.mxu0 0
      %519 = vmatpush1.bf16.msra.mxu0 %v456
      %520 = vmatprep.subr.bf16.mxu0 0
      %521 = vmatpush1.bf16.msra.mxu0 %v457
      %522 = vmatprep.mubr.bf16.mxu0 %v335
      %523 = vmatmul.mubr.bf16.gmra.mrb[0].mxu0 %v328
      %v524 = vpop.f32.mrb[0].mxu0
      %v525 = vadd.f32 0.0, %v524
      %v526 = vpop.f32.mrb[0].mxu0
      %v527 = vpop.f32.mrb[0].mxu0
      %v528 = vpop.f32.mrb[0].mxu0
      %529 = vdwg.mxu0
      %530 = vmatprep.subr.bf16.mxu0 0
      %531 = vmatpush1.bf16.msra.mxu0 %v458
      %532 = vmatprep.subr.bf16.mxu0 0
      %533 = vmatpush1.bf16.msra.mxu0 %v459
      %534 = vmatprep.subr.bf16.mxu0 0
      %535 = vmatpush1.bf16.msra.mxu0 %v460
      %536 = vmatprep.subr.bf16.mxu0 0
      %537 = vmatpush1.bf16.msra.mxu0 %v461
      %538 = vmatprep.subr.bf16.mxu0 0
      %539 = vmatpush1.bf16.msra.mxu0 %v462
      %540 = vmatprep.subr.bf16.mxu0 0
      %541 = vmatpush1.bf16.msra.mxu0 %v463
      %542 = vmatprep.subr.bf16.mxu0 0
      %543 = vmatpush1.bf16.msra.mxu0 %v464
      %544 = vmatprep.subr.bf16.mxu0 0
      %545 = vmatpush1.bf16.msra.mxu0 %v465
      %546 = vmatprep.subr.bf16.mxu0 0
      %547 = vmatpush1.bf16.msra.mxu0 0
      %548 = vmatprep.subr.bf16.mxu0 0
      %549 = vmatpush1.bf16.msra.mxu0 0
      %550 = vmatprep.subr.bf16.mxu0 0
      %551 = vmatpush1.bf16.msra.mxu0 0
      %552 = vmatprep.subr.bf16.mxu0 0
      %553 = vmatpush1.bf16.msra.mxu0 0
      %554 = vmatprep.subr.bf16.mxu0 0
      %555 = vmatpush1.bf16.msra.mxu0 0
      %556 = vmatprep.subr.bf16.mxu0 0
      %557 = vmatpush1.bf16.msra.mxu0 0
      %558 = vmatprep.subr.bf16.mxu0 0
      %559 = vmatpush1.bf16.msra.mxu0 0
      %560 = vmatprep.subr.bf16.mxu0 0
      %561 = vmatpush1.bf16.msra.mxu0 0
      %562 = vmatprep.mubr.bf16.mxu0 0
      %563 = vmatmul.mubr.bf16.gmra.mrb[0].mxu0 %v342
      %v564 = vpop.f32.mrb[0].mxu0
      %v565 = vadd.f32 %v525, %v564
      %v566 = vpop.f32.mrb[0].mxu0
      %v567 = vpop.f32.mrb[0].mxu0
      %v568 = vpop.f32.mrb[0].mxu0
      %569 = vdwg.mxu0
      %v571 = vcombine.high %v206, %v206
      %v573 = vunpack.c.l.s4 1983009808
      %v574 = vunpack.c.0.s8 %v573
      %v575 = vlaneseq
      %v576 = vshrl.u32 %v575, 7
      %v577 = vsub.s32 %v574, %v576
      %v578 = vrot.slane %v206, %v577
      %v580 = vunpack.c.l.s4 1983009808
      %v581 = vunpack.c.0.s8 %v580
      %v582 = vlaneseq
      %v583 = vshrl.u32 %v582, 7
      %v584 = vsub.s32 %v581, %v583
      %v585 = vrot.slane %v571, %v584
      %v586 = vcombine.high %v578, %v578
      %v638 = vunpack.c.l.b16 %v207
      %v639 = vunpack.c.l.b16 %v208
      %v640 = vunpack.c.l.b16 %v209
      %v641 = vunpack.c.l.b16 %v210
      %v642 = vunpack.c.l.b16 %v211
      %v643 = vunpack.c.l.b16 %v212
      %v644 = vunpack.c.l.b16 %v213
      %v645 = vunpack.c.l.b16 %v214
      %v646 = vunpack.c.l.b16 %v215
      %v647 = vunpack.c.l.b16 %v216
      %v648 = vunpack.c.l.b16 %v217
      %v649 = vunpack.c.l.b16 %v218
      %v650 = vunpack.c.l.b16 %v219
      %v651 = vunpack.c.l.b16 %v220
      %v652 = vunpack.c.l.b16 %v221
      %v653 = vunpack.c.l.b16 %v222
      %v654 = vunpack.c.l.b16 %v223
      %v655 = vunpack.c.l.b16 %v224
      %v656 = vunpack.c.l.b16 %v225
      %v657 = vunpack.c.l.b16 %v226
      %v658 = vunpack.c.l.b16 %v227
      %v659 = vunpack.c.l.b16 %v228
      %v660 = vunpack.c.l.b16 %v229
      %v661 = vunpack.c.l.b16 %v230
      %v662 = vunpack.c.l.b16 %v231
      %v663 = vunpack.c.l.b16 %v232
      %v664 = vunpack.c.l.b16 %v233
      %v665 = vunpack.c.l.b16 %v234
      %v666 = vunpack.c.l.b16 %v235
      %v667 = vunpack.c.l.b16 %v236
      %v668 = vunpack.c.l.b16 %v237
      %v669 = vunpack.c.l.b16 %v238
      %v670 = vunpack.c.l.b16 %v239
      %v671 = vunpack.c.l.b16 %v240
      %v672 = vunpack.c.l.b16 %v241
      %v673 = vunpack.c.l.b16 %v242
      %v674 = vunpack.c.l.b16 %v243
      %v675 = vunpack.c.l.b16 %v244
      %v676 = vunpack.c.l.b16 %v245
      %v677 = vunpack.c.l.b16 %v246
      %v678 = vunpack.c.l.b16 %v247
      %v679 = vunpack.c.l.b16 %v248
      %v680 = vunpack.c.l.b16 %v249
      %v681 = vunpack.c.l.b16 %v250
      %v682 = vunpack.c.l.b16 %v251
      %v683 = vunpack.c.l.b16 %v252
      %v684 = vunpack.c.l.b16 %v253
      %v685 = vunpack.c.l.b16 %v254
      %v686 = vpack.c.b16 %v639, %v638
      %v687 = vpack.c.b16 %v641, %v640
      %v688 = vpack.c.b16 %v643, %v642
      %v689 = vpack.c.b16 %v645, %v644
      %v690 = vpack.c.b16 %v647, %v646
      %v691 = vpack.c.b16 %v649, %v648
      %v692 = vpack.c.b16 %v651, %v650
      %v693 = vpack.c.b16 %v653, %v652
      %v694 = vpack.c.b16 %v655, %v654
      %v695 = vpack.c.b16 %v657, %v656
      %v696 = vpack.c.b16 %v659, %v658
      %v697 = vpack.c.b16 %v661, %v660
      %v698 = vpack.c.b16 %v663, %v662
      %v699 = vpack.c.b16 %v665, %v664
      %v700 = vpack.c.b16 %v667, %v666
      %v701 = vpack.c.b16 %v669, %v668
      %v702 = vpack.c.b16 %v671, %v670
      %v703 = vpack.c.b16 %v673, %v672
      %v704 = vpack.c.b16 %v675, %v674
      %v705 = vpack.c.b16 %v677, %v676
      %v706 = vpack.c.b16 %v679, %v678
      %v707 = vpack.c.b16 %v681, %v680
      %v708 = vpack.c.b16 %v683, %v682
      %v709 = vpack.c.b16 %v685, %v684
      %734 = vmatprep.subr.bf16.mxu0 0
      %735 = vmatpush1.bf16.msra.mxu0 %v686
      %736 = vmatprep.subr.bf16.mxu0 0
      %737 = vmatpush1.bf16.msra.mxu0 %v687
      %738 = vmatprep.subr.bf16.mxu0 0
      %739 = vmatpush1.bf16.msra.mxu0 %v688
      %740 = vmatprep.subr.bf16.mxu0 0
      %741 = vmatpush1.bf16.msra.mxu0 %v689
      %742 = vmatprep.subr.bf16.mxu0 0
      %743 = vmatpush1.bf16.msra.mxu0 %v690
      %744 = vmatprep.subr.bf16.mxu0 0
      %745 = vmatpush1.bf16.msra.mxu0 %v691
      %746 = vmatprep.subr.bf16.mxu0 0
      %747 = vmatpush1.bf16.msra.mxu0 %v692
      %748 = vmatprep.subr.bf16.mxu0 0
      %749 = vmatpush1.bf16.msra.mxu0 %v693
      %750 = vmatprep.subr.bf16.mxu0 0
      %751 = vmatpush1.bf16.msra.mxu0 %v694
      %752 = vmatprep.subr.bf16.mxu0 0
      %753 = vmatpush1.bf16.msra.mxu0 %v695
      %754 = vmatprep.subr.bf16.mxu0 0
      %755 = vmatpush1.bf16.msra.mxu0 %v696
      %756 = vmatprep.subr.bf16.mxu0 0
      %757 = vmatpush1.bf16.msra.mxu0 %v697
      %758 = vmatprep.subr.bf16.mxu0 0
      %759 = vmatpush1.bf16.msra.mxu0 %v698
      %760 = vmatprep.subr.bf16.mxu0 0
      %761 = vmatpush1.bf16.msra.mxu0 %v699
      %762 = vmatprep.subr.bf16.mxu0 0
      %763 = vmatpush1.bf16.msra.mxu0 %v700
      %764 = vmatprep.subr.bf16.mxu0 0
      %765 = vmatpush1.bf16.msra.mxu0 %v701
      %766 = vmatprep.mubr.bf16.mxu0 %v586
      %767 = vmatmul.mubr.bf16.gmra.mrb[0].mxu0 %v578
      %v768 = vpop.f32.mrb[0].mxu0
      %v769 = vadd.f32 %v565, %v768
      %v770 = vpop.f32.mrb[0].mxu0
      %v771 = vpop.f32.mrb[0].mxu0
      %v772 = vpop.f32.mrb[0].mxu0
      %773 = vdwg.mxu0
      %774 = vmatprep.subr.bf16.mxu0 0
      %775 = vmatpush1.bf16.msra.mxu0 %v702
      %776 = vmatprep.subr.bf16.mxu0 0
      %777 = vmatpush1.bf16.msra.mxu0 %v703
      %778 = vmatprep.subr.bf16.mxu0 0
      %779 = vmatpush1.bf16.msra.mxu0 %v704
      %780 = vmatprep.subr.bf16.mxu0 0
      %781 = vmatpush1.bf16.msra.mxu0 %v705
      %782 = vmatprep.subr.bf16.mxu0 0
      %783 = vmatpush1.bf16.msra.mxu0 %v706
      %784 = vmatprep.subr.bf16.mxu0 0
      %785 = vmatpush1.bf16.msra.mxu0 %v707
      %786 = vmatprep.subr.bf16.mxu0 0
      %787 = vmatpush1.bf16.msra.mxu0 %v708
      %788 = vmatprep.subr.bf16.mxu0 0
      %789 = vmatpush1.bf16.msra.mxu0 %v709
      %790 = vmatprep.subr.bf16.mxu0 0
      %791 = vmatpush1.bf16.msra.mxu0 0
      %792 = vmatprep.subr.bf16.mxu0 0
      %793 = vmatpush1.bf16.msra.mxu0 0
      %794 = vmatprep.subr.bf16.mxu0 0
      %795 = vmatpush1.bf16.msra.mxu0 0
      %796 = vmatprep.subr.bf16.mxu0 0
      %797 = vmatpush1.bf16.msra.mxu0 0
      %798 = vmatprep.subr.bf16.mxu0 0
      %799 = vmatpush1.bf16.msra.mxu0 0
      %800 = vmatprep.subr.bf16.mxu0 0
      %801 = vmatpush1.bf16.msra.mxu0 0
      %802 = vmatprep.subr.bf16.mxu0 0
      %803 = vmatpush1.bf16.msra.mxu0 0
      %804 = vmatprep.subr.bf16.mxu0 0
      %805 = vmatpush1.bf16.msra.mxu0 0
      %806 = vmatprep.mubr.bf16.mxu0 0
      %807 = vmatmul.mubr.bf16.gmra.mrb[0].mxu0 %v585
      %v808 = vpop.f32.mrb[0].mxu0
      %v809 = vadd.f32 %v769, %v808
      %v810 = vpop.f32.mrb[0].mxu0
      %v811 = vpop.f32.mrb[0].mxu0
      %v812 = vpop.f32.mrb[0].mxu0
      %813 = vdwg.mxu0
      %v814 = vld [vmem:[%s2] sm:$0x1]
      %v816 = vlaneseq
      %v817 = vshrl.u32 %v816, 7
      %v818 = vsub.s32 0, %v817
      %v819 = vrot.slane %v814, %v818
      %v821 = vadd.f32 %v809, %v819
      %v822 = vpack.c.bf16 %v821, %v821
      %823 = vst [vmem:[%s200] sm:$0x1] %v822
      %vm824 = vcmask 1041408
      %v825 = vsel %vm824, %v821, 0.0
      %v826 = vrot.slane %v825, 4
      %v827 = vadd.f32 %v825, %v826
      %v828 = vrot.slane %v827, 2
      %v829 = vadd.f32 %v827, %v828
      %v830 = vrot.slane %v829, 1
      %v831 = vadd.f32 %v829, %v830
      %832 = vst [vmem:[%s204] sm:$0x1] %v831
      %v833 = vmul.f32 %v821, %v821
      %v834 = vsel %vm824, %v833, 0.0
      %v835 = vrot.slane %v834, 4
      %v836 = vadd.f32 %v834, %v835
      %v837 = vrot.slane %v836, 2
      %v838 = vadd.f32 %v836, %v837
      %v839 = vrot.slane %v838, 1
      %v840 = vadd.f32 %v838, %v839
      %841 = vst [vmem:[%s204 + $0x1] sm:$0x1] %v840
      %p842 = scmp.lt.s32.totalorder %s16, 1
      %s843 = scalar_select %p842, %s16, 1
      %s844 = scalar_lea.vmem %s3, %s843
      %p845 = scmp.lt.s32.totalorder %s16, 1
      %s846 = scalar_select %p845, %s16, 1
      %s847 = smul.addr %s846, 2
      %s848 = scalar_lea.vmem %s4, %s847
      // Predicated region
      $region33: #{forward.13} parent=31 // pred_check
        %p849 = pneg %p102
      $region34: #{forward.13} parent=31 // pred_check_branch
        %851 = sbr.rel (%p849) target = $region36
      $region35: #{forward.13} parent=31 // pred_region
        _
      $region36: #{forward.13} parent=31 // pred_fallthru
        _
      // Predicated region
      $region37: #{forward.13} parent=31 // pred_check
        %p852 = pneg %p128
      $region38: #{forward.13} parent=31 // pred_check_branch
        %854 = sbr.rel (%p852) target = $region40
      $region39: #{forward.13} parent=31 // pred_region
        _
      $region40: #{forward.13} parent=31 // pred_fallthru
        _
    $region32: #{forward.13} parent=5 // pred_fallthru
      _
    %p855 = scmp.le.s32.totalorder 2, %s11
    // Predicated region
    $region41: #{forward.13} parent=5 // pred_check
      %p856 = pneg %p855
    $region42: #{forward.13} parent=5 // pred_check_branch
      %858 = sbr.rel (%p856) target = $region44
    $region43: #{forward.13} parent=5 // pred_region
      %s859 = ssub.s32 %s11, 2
      // Predicated region
      $region45: #{forward.13} parent=43 // pred_check
        %p860 = pneg %p108
      $region46: #{forward.13} parent=43 // pred_check_branch
        %862 = sbr.rel (%p860) target = $region48
      $region47: #{forward.13} parent=43 // pred_region
        %p863 = scmp.lt.s32.totalorder %s17, 1
        %s864 = scalar_select %p863, %s17, 1
        %s865 = scalar_lea.vmem %s3, %s864
      $region48: #{forward.13} parent=43 // pred_fallthru
        _
      // Predicated region
      $region49: #{forward.13} parent=43 // pred_check
        %p866 = pneg %p134
      $region50: #{forward.13} parent=43 // pred_check_branch
        %868 = sbr.rel (%p866) target = $region52
      $region51: #{forward.13} parent=43 // pred_region
        %p869 = scmp.lt.s32.totalorder %s17, 1
        %s870 = scalar_select %p869, %s17, 1
        %s871 = smul.addr %s870, 2
        %s872 = scalar_lea.vmem %s4, %s871
      $region52: #{forward.13} parent=43 // pred_fallthru
        _
    $region44: #{forward.13} parent=5 // pred_fallthru
      _
  $region6: #{forward.13} parent=0 // loop_footer
    %s15 = sadd.s32 1, %s11
  $region7: #{forward.13} parent=0 // loop_footer_branch
    %10 = sbr.rel target = $region3
  $region8: #{forward.13} parent=0 // loop_exit
    _

// kernel: forward.14
$region0: #{forward.14}
  #allocation0 [shape = 'u32[]', space=smem, size = 0x4, offset = 0x4, fixed_abs, tag = 'smem constant byte address 0x4 - core index']
  #allocation1 [shape = 'u32[144,128]{1,0:T(1,128)}', space=vmem, size = 0x12000, scoped, tag = 'internal scratch']
  %s0 = inlined_call_operand.vmem [shape: bf16[2,1,256], index: 0, kind: input, shape index: {}]
  %s1 = inlined_call_operand.vmem [shape: bf16[1,256,64], index: 1, kind: input, shape index: {}]
  %s2 = inlined_call_operand.vmem [shape: f32[1,64], index: 2, kind: input, shape index: {}]
  %s3 = inlined_call_operand.vmem [shape: bf16[2,1,64], index: 3, kind: output, shape index: {0}]
  %s4 = inlined_call_operand.vmem [shape: f32[2,2,64], index: 4, kind: output, shape index: {1}]
  %5 = xla_tuple %s3, %s4
  %s6 = sld [smem:[#allocation0]]
  $region53: #{forward.14} parent=0
    _
  %s8 = ssub.s32 1, %s6
  %s9 = scalar_select 0, %s8, %s6
  loop: start=0, step=1, limit=4
  $region2: #{forward.14} parent=0 // loop_pre_header
    _
  $region3: #{forward.14} parent=0 // loop_header
    %s11 = sphi 0, %s15
    %p12 = scmp.ge.s32.totalorder %s11, 4
    %s21 = sphi 0, %s23
    %s24 = sphi 0, %s21
    %s25 = sphi 0, %s24
    %s41 = sphi 0, %s25
    %s45 = sphi 0, %s45
    %s47 = sphi 0, %s45
    %s48 = sphi 0, %s47
    %s62 = sphi 0, %s48
    %s66 = sphi 0, %s66
    %s68 = sphi 0, %s66
    %s69 = sphi 0, %s68
    %s83 = sphi 0, %s69
    %s89 = sphi 0, %s91
    %s92 = sphi 0, %s89
    %s93 = sphi 0, %s92
    %s109 = sphi 0, %s93
    %s115 = sphi 0, %s117
    %s118 = sphi 0, %s115
    %s119 = sphi 0, %s118
    %s135 = sphi 0, %s119
  $region4: #{forward.14} parent=0 // loop_header_branch
    %14 = sbr.rel (%p12) target = $region8
  $region5: #{forward.14} parent=0 // loop_body
    %s16 = ssub.s32 %s11, 1
    %s17 = ssub.s32 %s11, 2
    %s18 = sadd.s32 %s11, 1
    %s19 = ssub.s32 %s11, %s18
    %p20 = scmp.eq.s32.totalorder %s19, 0
    %s22 = sadd.s32 %s21, 1
    %s23 = scalar_select %p20, %s21, %s22
    %p26 = pneg %p20
    %p27 = scmp.eq.s32.totalorder %s11, 1
    %p28 = por %p26, %p27
    %p29 = scmp.ne.s32.totalorder %s21, %s24
    %p30 = scmp.eq.s32.totalorder %s11, 0
    %p31 = por %p29, %p30
    %p32 = scmp.ne.s32.totalorder %s21, %s24
    %p33 = scmp.eq.s32.totalorder %s16, 1
    %p34 = por %p32, %p33
    %p35 = scmp.ne.s32.totalorder %s24, %s25
    %p36 = scmp.eq.s32.totalorder %s16, 0
    %p37 = por %p35, %p36
    %p38 = scmp.ne.s32.totalorder %s24, %s25
    %p39 = scmp.eq.s32.totalorder %s17, 1
    %p40 = por %p38, %p39
    %p42 = scmp.ne.s32.totalorder %s25, %s41
    %p43 = scmp.eq.s32.totalorder %s17, 0
    %p44 = por %p42, %p43
    %s46 = sadd.s32 %s45, 1
    %p49 = scmp.eq.s32.totalorder %s11, 1
    %p50 = scmp.ne.s32.totalorder %s45, %s47
    %p51 = scmp.eq.s32.totalorder %s11, 0
    %p52 = por %p50, %p51
    %p53 = scmp.ne.s32.totalorder %s45, %s47
    %p54 = scmp.eq.s32.totalorder %s16, 1
    %p55 = por %p53, %p54
    %p56 = scmp.ne.s32.totalorder %s47, %s48
    %p57 = scmp.eq.s32.totalorder %s16, 0
    %p58 = por %p56, %p57
    %p59 = scmp.ne.s32.totalorder %s47, %s48
    %p60 = scmp.eq.s32.totalorder %s17, 1
    %p61 = por %p59, %p60
    %p63 = scmp.ne.s32.totalorder %s48, %s62
    %p64 = scmp.eq.s32.totalorder %s17, 0
    %p65 = por %p63, %p64
    %s67 = sadd.s32 %s66, 1
    %p70 = scmp.eq.s32.totalorder %s11, 1
    %p71 = scmp.ne.s32.totalorder %s66, %s68
    %p72 = scmp.eq.s32.totalorder %s11, 0
    %p73 = por %p71, %p72
    %p74 = scmp.ne.s32.totalorder %s66, %s68
    %p75 = scmp.eq.s32.totalorder %s16, 1
    %p76 = por %p74, %p75
    %p77 = scmp.ne.s32.totalorder %s68, %s69
    %p78 = scmp.eq.s32.totalorder %s16, 0
    %p79 = por %p77, %p78
    %p80 = scmp.ne.s32.totalorder %s68, %s69
    %p81 = scmp.eq.s32.totalorder %s17, 1
    %p82 = por %p80, %p81
    %p84 = scmp.ne.s32.totalorder %s69, %s83
    %p85 = scmp.eq.s32.totalorder %s17, 0
    %p86 = por %p84, %p85
    %s87 = ssub.s32 %s11, %s18
    %p88 = scmp.eq.s32.totalorder %s87, 0
    %s90 = sadd.s32 %s89, 1
    %s91 = scalar_select %p88, %s89, %s90
    %p94 = pneg %p88
    %p95 = scmp.eq.s32.totalorder %s11, 1
    %p96 = por %p94, %p95
    %p97 = scmp.ne.s32.totalorder %s89, %s92
    %p98 = scmp.eq.s32.totalorder %s11, 0
    %p99 = por %p97, %p98
    %p100 = scmp.ne.s32.totalorder %s89, %s92
    %p101 = scmp.eq.s32.totalorder %s16, 1
    %p102 = por %p100, %p101
    %p103 = scmp.ne.s32.totalorder %s92, %s93
    %p104 = scmp.eq.s32.totalorder %s16, 0
    %p105 = por %p103, %p104
    %p106 = scmp.ne.s32.totalorder %s92, %s93
    %p107 = scmp.eq.s32.totalorder %s17, 1
    %p108 = por %p106, %p107
    %p110 = scmp.ne.s32.totalorder %s93, %s109
    %p111 = scmp.eq.s32.totalorder %s17, 0
    %p112 = por %p110, %p111
    %s113 = ssub.s32 %s11, %s18
    %p114 = scmp.eq.s32.totalorder %s113, 0
    %s116 = sadd.s32 %s115, 1
    %s117 = scalar_select %p114, %s115, %s116
    %p120 = pneg %p114
    %p121 = scmp.eq.s32.totalorder %s11, 1
    %p122 = por %p120, %p121
    %p123 = scmp.ne.s32.totalorder %s115, %s118
    %p124 = scmp.eq.s32.totalorder %s11, 0
    %p125 = por %p123, %p124
    %p126 = scmp.ne.s32.totalorder %s115, %s118
    %p127 = scmp.eq.s32.totalorder %s16, 1
    %p128 = por %p126, %p127
    %p129 = scmp.ne.s32.totalorder %s118, %s119
    %p130 = scmp.eq.s32.totalorder %s16, 0
    %p131 = por %p129, %p130
    %p132 = scmp.ne.s32.totalorder %s118, %s119
    %p133 = scmp.eq.s32.totalorder %s17, 1
    %p134 = por %p132, %p133
    %p136 = scmp.ne.s32.totalorder %s119, %s135
    %p137 = scmp.eq.s32.totalorder %s17, 0
    %p138 = por %p136, %p137
    %p139 = scmp.le.s32.totalorder 1, %s11
    %p140 = scmp.lt.s32.totalorder %s11, 3
    %p141 = pnand %p139, %p140
    %p142 = pneg %p141
    // Predicated region
    $region9: #{forward.14} parent=5 // pred_check
      _
    $region10: #{forward.14} parent=5 // pred_check_branch
      %144 = sbr.rel (%p141) target = $region12
    $region11: #{forward.14} parent=5 // pred_region
      %s145 = ssub.s32 %s11, 1
      // Predicated region
      $region13: #{forward.14} parent=11 // pred_check
        %p146 = pneg %p58
      $region14: #{forward.14} parent=11 // pred_check_branch
        %148 = sbr.rel (%p146) target = $region16
      $region15: #{forward.14} parent=11 // pred_region
        _
      $region16: #{forward.14} parent=11 // pred_fallthru
        _
      // Predicated region
      $region17: #{forward.14} parent=11 // pred_check
        %p149 = pneg %p79
      $region18: #{forward.14} parent=11 // pred_check_branch
        %151 = sbr.rel (%p149) target = $region20
      $region19: #{forward.14} parent=11 // pred_region
        _
      $region20: #{forward.14} parent=11 // pred_fallthru
        _
    $region12: #{forward.14} parent=5 // pred_fallthru
      _
    %p152 = scmp.lt.s32.totalorder %s11, 2
    // Predicated region
    $region21: #{forward.14} parent=5 // pred_check
      %p153 = pneg %p152
    $region22: #{forward.14} parent=5 // pred_check_branch
      %155 = sbr.rel (%p153) target = $region24
    $region23: #{forward.14} parent=5 // pred_region
      // Predicated region
      $region25: #{forward.14} parent=23 // pred_check
        %p156 = pneg %p31
      $region26: #{forward.14} parent=23 // pred_check_branch
        %158 = sbr.rel (%p156) target = $region28
      $region27: #{forward.14} parent=23 // pred_region
        %p159 = scmp.lt.s32.totalorder %s11, 1
        %s160 = scalar_select %p159, %s11, 1
        %s161 = smul.addr %s160, 2
        %s162 = scalar_lea.vmem %s0, %s161
      $region28: #{forward.14} parent=23 // pred_fallthru
        _
    $region24: #{forward.14} parent=5 // pred_fallthru
      _
    %p163 = scmp.le.s32.totalorder 1, %s11
    %p164 = scmp.lt.s32.totalorder %s11, 3
    %p165 = pnand %p163, %p164
    %p166 = pneg %p165
    // Predicated region
    $region29: #{forward.14} parent=5 // pred_check
      _
    $region30: #{forward.14} parent=5 // pred_check_branch
      %168 = sbr.rel (%p165) target = $region32
    $region31: #{forward.14} parent=5 // pred_region
      %s169 = ssub.s32 %s11, 1
      %p170 = scmp.lt.s32.totalorder %s16, 1
      %s171 = scalar_select %p170, %s16, 1
      %s172 = smul.addr %s171, 2
      %s173 = scalar_lea.vmem %s0, %s172
      %p174 = pneg %p37
      %p175 = pneg %p34
      %p176 = pneg %p58
      %p177 = pneg %p55
      %p178 = pneg %p79
      %p179 = pneg %p76
      %p180 = pneg %p105
      %p181 = pneg %p102
      %p182 = scmp.lt.s32.totalorder %s16, 1
      %s183 = scalar_select %p182, %s16, 1
      %s184 = scalar_lea.vmem %s3, %s183
      %p185 = pneg %p131
      %p186 = pneg %p128
      %p187 = scmp.lt.s32.totalorder %s16, 1
      %s188 = scalar_select %p187, %s16, 1
      %s189 = smul.addr %s188, 2
      %s190 = scalar_lea.vmem %s4, %s189
      %p191 = scmp.lt.s32.totalorder %s16, 1
      %s192 = scalar_select %p191, %s16, 1
      %s193 = smul.addr %s192, 2
      %s194 = scalar_lea.vmem %s0, %s193
      %p195 = scmp.lt.s32.totalorder %s16, 1
      %s196 = scalar_select %p195, %s16, 1
      %s197 = scalar_lea.vmem %s3, %s196
      %p198 = scmp.lt.s32.totalorder %s16, 1
      %s199 = scalar_select %p198, %s16, 1
      %s200 = smul.addr %s199, 2
      %s201 = scalar_lea.vmem %s4, %s200
      %v203 = vld [vmem:[%s194] sm:$0x3]
      %v204 = vld [vmem:[%s1] sm:$0xf]
      %v205 = vld [vmem:[%s1 + $0x4] sm:$0xf]
      %v206 = vld [vmem:[%s1 + $0x8] sm:$0xf]
      %v207 = vld [vmem:[%s1 + $0xc] sm:$0xf]
      %v208 = vld [vmem:[%s1 + $0x10] sm:$0xf]
      %v209 = vld [vmem:[%s1 + $0x14] sm:$0xf]
      %v210 = vld [vmem:[%s1 + $0x18] sm:$0xf]
      %v211 = vld [vmem:[%s1 + $0x1c] sm:$0xf]
      %v212 = vld [vmem:[%s1 + $0x20] sm:$0xf]
      %v213 = vld [vmem:[%s1 + $0x24] sm:$0xf]
      %v214 = vld [vmem:[%s1 + $0x28] sm:$0xf]
      %v215 = vld [vmem:[%s1 + $0x2c] sm:$0xf]
      %v216 = vld [vmem:[%s1 + $0x30] sm:$0xf]
      %v217 = vld [vmem:[%s1 + $0x34] sm:$0xf]
      %v218 = vld [vmem:[%s1 + $0x38] sm:$0xf]
      %v219 = vld [vmem:[%s1 + $0x3c] sm:$0xf]
      %v220 = vld [vmem:[%s1 + $0x40] sm:$0xf]
      %v221 = vld [vmem:[%s1 + $0x44] sm:$0xf]
      %v222 = vld [vmem:[%s1 + $0x48] sm:$0xf]
      %v223 = vld [vmem:[%s1 + $0x4c] sm:$0xf]
      %v224 = vld [vmem:[%s1 + $0x50] sm:$0xf]
      %v225 = vld [vmem:[%s1 + $0x54] sm:$0xf]
      %v226 = vld [vmem:[%s1 + $0x58] sm:$0xf]
      %v227 = vld [vmem:[%s1 + $0x5c] sm:$0xf]
      %v228 = vld [vmem:[%s1 + $0x60] sm:$0xf]
      %v229 = vld [vmem:[%s1 + $0x64] sm:$0xf]
      %v230 = vld [vmem:[%s1 + $0x68] sm:$0xf]
      %v231 = vld [vmem:[%s1 + $0x6c] sm:$0xf]
      %v232 = vld [vmem:[%s1 + $0x70] sm:$0xf]
      %v233 = vld [vmem:[%s1 + $0x74] sm:$0xf]
      %v234 = vld [vmem:[%s1 + $0x78] sm:$0xf]
      %v235 = vld [vmem:[%s1 + $0x7c] sm:$0xf]
      %v236 = vld [vmem:[%s2] sm:$0x1]
      %v239 = vunpack.c.l.s4 1966171168
      %v240 = vunpack.c.0.s8 %v239
      %v241 = vlaneseq
      %v242 = vshrl.u32 %v241, 7
      %v243 = vsub.s32 %v240, %v242
      %v244 = vrot.slane %v203, %v243
      %v245 = vcombine.high %v244, %v244
      %v247 = vunpack.c.l.s4 1966171168
      %v248 = vunpack.c.0.s8 %v247
      %v249 = vlaneseq
      %v250 = vshrl.u32 %v249, 7
      %v251 = vsub.s32 %v248, %v250
      %v252 = vrot.slane %v244, %v251
      %v254 = vunpack.c.l.s4 1966171168
      %v255 = vunpack.c.0.s8 %v254
      %v256 = vlaneseq
      %v257 = vshrl.u32 %v256, 7
      %v258 = vsub.s32 %v255, %v257
      %v259 = vrot.slane %v245, %v258
      %v294 = vunpack.c.l.b16 %v204
      %v295 = vunpack.c.l.b16 %v205
      %v296 = vunpack.c.l.b16 %v206
      %v297 = vunpack.c.l.b16 %v207
      %v298 = vunpack.c.l.b16 %v208
      %v299 = vunpack.c.l.b16 %v209
      %v300 = vunpack.c.l.b16 %v210
      %v301 = vunpack.c.l.b16 %v211
      %v302 = vunpack.c.l.b16 %v212
      %v303 = vunpack.c.l.b16 %v213
      %v304 = vunpack.c.l.b16 %v214
      %v305 = vunpack.c.l.b16 %v215
      %v306 = vunpack.c.l.b16 %v216
      %v307 = vunpack.c.l.b16 %v217
      %v308 = vunpack.c.l.b16 %v218
      %v309 = vunpack.c.l.b16 %v219
      %v310 = vunpack.c.l.b16 %v220
      %v311 = vunpack.c.l.b16 %v221
      %v312 = vunpack.c.l.b16 %v222
      %v313 = vunpack.c.l.b16 %v223
      %v314 = vunpack.c.l.b16 %v224
      %v315 = vunpack.c.l.b16 %v225
      %v316 = vunpack.c.l.b16 %v226
      %v317 = vunpack.c.l.b16 %v227
      %v318 = vunpack.c.l.b16 %v228
      %v319 = vunpack.c.l.b16 %v229
      %v320 = vunpack.c.l.b16 %v230
      %v321 = vunpack.c.l.b16 %v231
      %v322 = vunpack.c.l.b16 %v232
      %v323 = vunpack.c.l.b16 %v233
      %v324 = vunpack.c.l.b16 %v234
      %v325 = vunpack.c.l.b16 %v235
      %v326 = vpack.c.b16 %v295, %v294
      %v327 = vpack.c.b16 %v297, %v296
      %v328 = vpack.c.b16 %v299, %v298
      %v329 = vpack.c.b16 %v301, %v300
      %v330 = vpack.c.b16 %v303, %v302
      %v331 = vpack.c.b16 %v305, %v304
      %v332 = vpack.c.b16 %v307, %v306
      %v333 = vpack.c.b16 %v309, %v308
      %v334 = vpack.c.b16 %v311, %v310
      %v335 = vpack.c.b16 %v313, %v312
      %v336 = vpack.c.b16 %v315, %v314
      %v337 = vpack.c.b16 %v317, %v316
      %v338 = vpack.c.b16 %v319, %v318
      %v339 = vpack.c.b16 %v321, %v320
      %v340 = vpack.c.b16 %v323, %v322
      %v341 = vpack.c.b16 %v325, %v324
      %358 = vmatprep.subr.bf16.mxu0 0
      %359 = vmatpush1.bf16.msra.mxu0 %v326
      %360 = vmatprep.subr.bf16.mxu0 0
      %361 = vmatpush1.bf16.msra.mxu0 %v327
      %362 = vmatprep.subr.bf16.mxu0 0
      %363 = vmatpush1.bf16.msra.mxu0 %v328
      %364 = vmatprep.subr.bf16.mxu0 0
      %365 = vmatpush1.bf16.msra.mxu0 %v329
      %366 = vmatprep.subr.bf16.mxu0 0
      %367 = vmatpush1.bf16.msra.mxu0 %v330
      %368 = vmatprep.subr.bf16.mxu0 0
      %369 = vmatpush1.bf16.msra.mxu0 %v331
      %370 = vmatprep.subr.bf16.mxu0 0
      %371 = vmatpush1.bf16.msra.mxu0 %v332
      %372 = vmatprep.subr.bf16.mxu0 0
      %373 = vmatpush1.bf16.msra.mxu0 %v333
      %374 = vmatprep.subr.bf16.mxu0 0
      %375 = vmatpush1.bf16.msra.mxu0 %v334
      %376 = vmatprep.subr.bf16.mxu0 0
      %377 = vmatpush1.bf16.msra.mxu0 %v335
      %378 = vmatprep.subr.bf16.mxu0 0
      %379 = vmatpush1.bf16.msra.mxu0 %v336
      %380 = vmatprep.subr.bf16.mxu0 0
      %381 = vmatpush1.bf16.msra.mxu0 %v337
      %382 = vmatprep.subr.bf16.mxu0 0
      %383 = vmatpush1.bf16.msra.mxu0 %v338
      %384 = vmatprep.subr.bf16.mxu0 0
      %385 = vmatpush1.bf16.msra.mxu0 %v339
      %386 = vmatprep.subr.bf16.mxu0 0
      %387 = vmatpush1.bf16.msra.mxu0 %v340
      %388 = vmatprep.subr.bf16.mxu0 0
      %389 = vmatpush1.bf16.msra.mxu0 %v341
      %390 = vmatprep.mubr.bf16.mxu0 %v259
      %391 = vmatmul.mubr.bf16.gmra.mrb[0].mxu0 %v252
      %v392 = vpop.f32.mrb[0].mxu0
      %v393 = vadd.f32 %v236, %v392
      %v394 = vpop.f32.mrb[0].mxu0
      %v395 = vpop.f32.mrb[0].mxu0
      %v396 = vpop.f32.mrb[0].mxu0
      %397 = vdwg.mxu0
      %v398 = vpack.c.bf16 %v393, %v393
      %vm399 = vcmask 516096
      %vm400 = vsmask.f32 256
      %vm401 = vmand %vm399, %vm400
      %v402 = vld [vmem:[%s197] sm:$0x1]
      %v403 = vsel %vm401, %v398, %v402
      %404 = vst [vmem:[%s197] sm:$0x1] %v403
      %v405 = vadd.f32 %v393, 0.0
      %vm406 = vcmask 516096
      %407 = vst.msk [vmem:[%s201] sm:$0x1] %vm406, %v405
      %v408 = vmul.f32 %v393, %v393
      %v409 = vadd.f32 %v408, 0.0
      %410 = vst.msk [vmem:[%s201 + $0x1] sm:$0x1] %vm406, %v409
      %p411 = scmp.lt.s32.totalorder %s16, 1
      %s412 = scalar_select %p411, %s16, 1
      %s413 = scalar_lea.vmem %s3, %s412
      %p414 = scmp.lt.s32.totalorder %s16, 1
      %s415 = scalar_select %p414, %s16, 1
      %s416 = smul.addr %s415, 2
      %s417 = scalar_lea.vmem %s4, %s416
      // Predicated region
      $region33: #{forward.14} parent=31 // pred_check
        %p418 = pneg %p102
      $region34: #{forward.14} parent=31 // pred_check_branch
        %420 = sbr.rel (%p418) target = $region36
      $region35: #{forward.14} parent=31 // pred_region
        _
      $region36: #{forward.14} parent=31 // pred_fallthru
        _
      // Predicated region
      $region37: #{forward.14} parent=31 // pred_check
        %p421 = pneg %p128
      $region38: #{forward.14} parent=31 // pred_check_branch
        %423 = sbr.rel (%p421) target = $region40
      $region39: #{forward.14} parent=31 // pred_region
        _
      $region40: #{forward.14} parent=31 // pred_fallthru
        _
    $region32: #{forward.14} parent=5 // pred_fallthru
      _
    %p424 = scmp.le.s32.totalorder 2, %s11
    // Predicated region
    $region41: #{forward.14} parent=5 // pred_check
      %p425 = pneg %p424
    $region42: #{forward.14} parent=5 // pred_check_branch
      %427 = sbr.rel (%p425) target = $region44
    $region43: #{forward.14} parent=5 // pred_region
      %s428 = ssub.s32 %s11, 2
      // Predicated region
      $region45: #{forward.14} parent=43 // pred_check
        %p429 = pneg %p108
      $region46: #{forward.14} parent=43 // pred_check_branch
        %431 = sbr.rel (%p429) target = $region48
      $region47: #{forward.14} parent=43 // pred_region
        %p432 = scmp.lt.s32.totalorder %s17, 1
        %s433 = scalar_select %p432, %s17, 1
        %s434 = scalar_lea.vmem %s3, %s433
      $region48: #{forward.14} parent=43 // pred_fallthru
        _
      // Predicated region
      $region49: #{forward.14} parent=43 // pred_check
        %p435 = pneg %p134
      $region50: #{forward.14} parent=43 // pred_check_branch
        %437 = sbr.rel (%p435) target = $region52
      $region51: #{forward.14} parent=43 // pred_region
        %p438 = scmp.lt.s32.totalorder %s17, 1
        %s439 = scalar_select %p438, %s17, 1
        %s440 = smul.addr %s439, 2
        %s441 = scalar_lea.vmem %s4, %s440
      $region52: #{forward.14} parent=43 // pred_fallthru
        _
    $region44: #{forward.14} parent=5 // pred_fallthru
      _
  $region6: #{forward.14} parent=0 // loop_footer
    %s15 = sadd.s32 1, %s11
  $region7: #{forward.14} parent=0 // loop_footer_branch
    %10 = sbr.rel target = $region3
  $region8: #{forward.14} parent=0 // loop_exit
    _

// kernel: forward.15
$region0: #{forward.15}
  #allocation0 [shape = 'u32[]', space=smem, size = 0x4, offset = 0x4, fixed_abs, tag = 'smem constant byte address 0x4 - core index']
  #allocation1 [shape = 'u32[144,128]{1,0:T(1,128)}', space=vmem, size = 0x12000, scoped, tag = 'internal scratch']
  %s0 = inlined_call_operand.vmem [shape: bf16[2,2,128], index: 0, kind: input, shape index: {}]
  %s1 = inlined_call_operand.vmem [shape: bf16[1,128,128], index: 1, kind: input, shape index: {}]
  %s2 = inlined_call_operand.vmem [shape: f32[1,128], index: 2, kind: input, shape index: {}]
  %s3 = inlined_call_operand.vmem [shape: bf16[2,2,128], index: 3, kind: output, shape index: {0}]
  %s4 = inlined_call_operand.vmem [shape: f32[2,2,128], index: 4, kind: output, shape index: {1}]
  %5 = xla_tuple %s3, %s4
  %s6 = sld [smem:[#allocation0]]
  $region53: #{forward.15} parent=0
    _
  %s8 = ssub.s32 1, %s6
  %s9 = scalar_select 0, %s8, %s6
  loop: start=0, step=1, limit=4
  $region2: #{forward.15} parent=0 // loop_pre_header
    _
  $region3: #{forward.15} parent=0 // loop_header
    %s11 = sphi 0, %s15
    %p12 = scmp.ge.s32.totalorder %s11, 4
    %s21 = sphi 0, %s23
    %s24 = sphi 0, %s21
    %s25 = sphi 0, %s24
    %s41 = sphi 0, %s25
    %s45 = sphi 0, %s45
    %s47 = sphi 0, %s45
    %s48 = sphi 0, %s47
    %s62 = sphi 0, %s48
    %s66 = sphi 0, %s66
    %s68 = sphi 0, %s66
    %s69 = sphi 0, %s68
    %s83 = sphi 0, %s69
    %s89 = sphi 0, %s91
    %s92 = sphi 0, %s89
    %s93 = sphi 0, %s92
    %s109 = sphi 0, %s93
    %s115 = sphi 0, %s117
    %s118 = sphi 0, %s115
    %s119 = sphi 0, %s118
    %s135 = sphi 0, %s119
  $region4: #{forward.15} parent=0 // loop_header_branch
    %14 = sbr.rel (%p12) target = $region8
  $region5: #{forward.15} parent=0 // loop_body
    %s16 = ssub.s32 %s11, 1
    %s17 = ssub.s32 %s11, 2
    %s18 = sadd.s32 %s11, 1
    %s19 = ssub.s32 %s11, %s18
    %p20 = scmp.eq.s32.totalorder %s19, 0
    %s22 = sadd.s32 %s21, 1
    %s23 = scalar_select %p20, %s21, %s22
    %p26 = pneg %p20
    %p27 = scmp.eq.s32.totalorder %s11, 1
    %p28 = por %p26, %p27
    %p29 = scmp.ne.s32.totalorder %s21, %s24
    %p30 = scmp.eq.s32.totalorder %s11, 0
    %p31 = por %p29, %p30
    %p32 = scmp.ne.s32.totalorder %s21, %s24
    %p33 = scmp.eq.s32.totalorder %s16, 1
    %p34 = por %p32, %p33
    %p35 = scmp.ne.s32.totalorder %s24, %s25
    %p36 = scmp.eq.s32.totalorder %s16, 0
    %p37 = por %p35, %p36
    %p38 = scmp.ne.s32.totalorder %s24, %s25
    %p39 = scmp.eq.s32.totalorder %s17, 1
    %p40 = por %p38, %p39
    %p42 = scmp.ne.s32.totalorder %s25, %s41
    %p43 = scmp.eq.s32.totalorder %s17, 0
    %p44 = por %p42, %p43
    %s46 = sadd.s32 %s45, 1
    %p49 = scmp.eq.s32.totalorder %s11, 1
    %p50 = scmp.ne.s32.totalorder %s45, %s47
    %p51 = scmp.eq.s32.totalorder %s11, 0
    %p52 = por %p50, %p51
    %p53 = scmp.ne.s32.totalorder %s45, %s47
    %p54 = scmp.eq.s32.totalorder %s16, 1
    %p55 = por %p53, %p54
    %p56 = scmp.ne.s32.totalorder %s47, %s48
    %p57 = scmp.eq.s32.totalorder %s16, 0
    %p58 = por %p56, %p57
    %p59 = scmp.ne.s32.totalorder %s47, %s48
    %p60 = scmp.eq.s32.totalorder %s17, 1
    %p61 = por %p59, %p60
    %p63 = scmp.ne.s32.totalorder %s48, %s62
    %p64 = scmp.eq.s32.totalorder %s17, 0
    %p65 = por %p63, %p64
    %s67 = sadd.s32 %s66, 1
    %p70 = scmp.eq.s32.totalorder %s11, 1
    %p71 = scmp.ne.s32.totalorder %s66, %s68
    %p72 = scmp.eq.s32.totalorder %s11, 0
    %p73 = por %p71, %p72
    %p74 = scmp.ne.s32.totalorder %s66, %s68
    %p75 = scmp.eq.s32.totalorder %s16, 1
    %p76 = por %p74, %p75
    %p77 = scmp.ne.s32.totalorder %s68, %s69
    %p78 = scmp.eq.s32.totalorder %s16, 0
    %p79 = por %p77, %p78
    %p80 = scmp.ne.s32.totalorder %s68, %s69
    %p81 = scmp.eq.s32.totalorder %s17, 1
    %p82 = por %p80, %p81
    %p84 = scmp.ne.s32.totalorder %s69, %s83
    %p85 = scmp.eq.s32.totalorder %s17, 0
    %p86 = por %p84, %p85
    %s87 = ssub.s32 %s11, %s18
    %p88 = scmp.eq.s32.totalorder %s87, 0
    %s90 = sadd.s32 %s89, 1
    %s91 = scalar_select %p88, %s89, %s90
    %p94 = pneg %p88
    %p95 = scmp.eq.s32.totalorder %s11, 1
    %p96 = por %p94, %p95
    %p97 = scmp.ne.s32.totalorder %s89, %s92
    %p98 = scmp.eq.s32.totalorder %s11, 0
    %p99 = por %p97, %p98
    %p100 = scmp.ne.s32.totalorder %s89, %s92
    %p101 = scmp.eq.s32.totalorder %s16, 1
    %p102 = por %p100, %p101
    %p103 = scmp.ne.s32.totalorder %s92, %s93
    %p104 = scmp.eq.s32.totalorder %s16, 0
    %p105 = por %p103, %p104
    %p106 = scmp.ne.s32.totalorder %s92, %s93
    %p107 = scmp.eq.s32.totalorder %s17, 1
    %p108 = por %p106, %p107
    %p110 = scmp.ne.s32.totalorder %s93, %s109
    %p111 = scmp.eq.s32.totalorder %s17, 0
    %p112 = por %p110, %p111
    %s113 = ssub.s32 %s11, %s18
    %p114 = scmp.eq.s32.totalorder %s113, 0
    %s116 = sadd.s32 %s115, 1
    %s117 = scalar_select %p114, %s115, %s116
    %p120 = pneg %p114
    %p121 = scmp.eq.s32.totalorder %s11, 1
    %p122 = por %p120, %p121
    %p123 = scmp.ne.s32.totalorder %s115, %s118
    %p124 = scmp.eq.s32.totalorder %s11, 0
    %p125 = por %p123, %p124
    %p126 = scmp.ne.s32.totalorder %s115, %s118
    %p127 = scmp.eq.s32.totalorder %s16, 1
    %p128 = por %p126, %p127
    %p129 = scmp.ne.s32.totalorder %s118, %s119
    %p130 = scmp.eq.s32.totalorder %s16, 0
    %p131 = por %p129, %p130
    %p132 = scmp.ne.s32.totalorder %s118, %s119
    %p133 = scmp.eq.s32.totalorder %s17, 1
    %p134 = por %p132, %p133
    %p136 = scmp.ne.s32.totalorder %s119, %s135
    %p137 = scmp.eq.s32.totalorder %s17, 0
    %p138 = por %p136, %p137
    %p139 = scmp.le.s32.totalorder 1, %s11
    %p140 = scmp.lt.s32.totalorder %s11, 3
    %p141 = pnand %p139, %p140
    %p142 = pneg %p141
    // Predicated region
    $region9: #{forward.15} parent=5 // pred_check
      _
    $region10: #{forward.15} parent=5 // pred_check_branch
      %144 = sbr.rel (%p141) target = $region12
    $region11: #{forward.15} parent=5 // pred_region
      %s145 = ssub.s32 %s11, 1
      // Predicated region
      $region13: #{forward.15} parent=11 // pred_check
        %p146 = pneg %p58
      $region14: #{forward.15} parent=11 // pred_check_branch
        %148 = sbr.rel (%p146) target = $region16
      $region15: #{forward.15} parent=11 // pred_region
        _
      $region16: #{forward.15} parent=11 // pred_fallthru
        _
      // Predicated region
      $region17: #{forward.15} parent=11 // pred_check
        %p149 = pneg %p79
      $region18: #{forward.15} parent=11 // pred_check_branch
        %151 = sbr.rel (%p149) target = $region20
      $region19: #{forward.15} parent=11 // pred_region
        _
      $region20: #{forward.15} parent=11 // pred_fallthru
        _
    $region12: #{forward.15} parent=5 // pred_fallthru
      _
    %p152 = scmp.lt.s32.totalorder %s11, 2
    // Predicated region
    $region21: #{forward.15} parent=5 // pred_check
      %p153 = pneg %p152
    $region22: #{forward.15} parent=5 // pred_check_branch
      %155 = sbr.rel (%p153) target = $region24
    $region23: #{forward.15} parent=5 // pred_region
      // Predicated region
      $region25: #{forward.15} parent=23 // pred_check
        %p156 = pneg %p31
      $region26: #{forward.15} parent=23 // pred_check_branch
        %158 = sbr.rel (%p156) target = $region28
      $region27: #{forward.15} parent=23 // pred_region
        %p159 = scmp.lt.s32.totalorder %s11, 1
        %s160 = scalar_select %p159, %s11, 1
        %s161 = scalar_lea.vmem %s0, %s160
      $region28: #{forward.15} parent=23 // pred_fallthru
        _
    $region24: #{forward.15} parent=5 // pred_fallthru
      _
    %p162 = scmp.le.s32.totalorder 1, %s11
    %p163 = scmp.lt.s32.totalorder %s11, 3
    %p164 = pnand %p162, %p163
    %p165 = pneg %p164
    // Predicated region
    $region29: #{forward.15} parent=5 // pred_check
      _
    $region30: #{forward.15} parent=5 // pred_check_branch
      %167 = sbr.rel (%p164) target = $region32
    $region31: #{forward.15} parent=5 // pred_region
      %s168 = ssub.s32 %s11, 1
      %p169 = scmp.lt.s32.totalorder %s16, 1
      %s170 = scalar_select %p169, %s16, 1
      %s171 = scalar_lea.vmem %s0, %s170
      %p172 = pneg %p37
      %p173 = pneg %p34
      %p174 = pneg %p58
      %p175 = pneg %p55
      %p176 = pneg %p79
      %p177 = pneg %p76
      %p178 = pneg %p105
      %p179 = pneg %p102
      %p180 = scmp.lt.s32.totalorder %s16, 1
      %s181 = scalar_select %p180, %s16, 1
      %s182 = scalar_lea.vmem %s3, %s181
      %p183 = pneg %p131
      %p184 = pneg %p128
      %p185 = scmp.lt.s32.totalorder %s16, 1
      %s186 = scalar_select %p185, %s16, 1
      %s187 = smul.addr %s186, 2
      %s188 = scalar_lea.vmem %s4, %s187
      %p189 = scmp.lt.s32.totalorder %s16, 1
      %s190 = scalar_select %p189, %s16, 1
      %s191 = scalar_lea.vmem %s0, %s190
      %p192 = scmp.lt.s32.totalorder %s16, 1
      %s193 = scalar_select %p192, %s16, 1
      %s194 = scalar_lea.vmem %s3, %s193
      %p195 = scmp.lt.s32.totalorder %s16, 1
      %s196 = scalar_select %p195, %s16, 1
      %s197 = smul.addr %s196, 2
      %s198 = scalar_lea.vmem %s4, %s197
      %v200 = vld [vmem:[%s191] sm:$0x1]
      %v201 = vld [vmem:[%s1] sm:$0xf]
      %v202 = vld [vmem:[%s1 + $0x4] sm:$0xf]
      %v203 = vld [vmem:[%s1 + $0x8] sm:$0xf]
      %v204 = vld [vmem:[%s1 + $0xc] sm:$0xf]
      %v205 = vld [vmem:[%s1 + $0x10] sm:$0xf]
      %v206 = vld [vmem:[%s1 + $0x14] sm:$0xf]
      %v207 = vld [vmem:[%s1 + $0x18] sm:$0xf]
      %v208 = vld [vmem:[%s1 + $0x1c] sm:$0xf]
      %v209 = vld [vmem:[%s1 + $0x20] sm:$0xf]
      %v210 = vld [vmem:[%s1 + $0x24] sm:$0xf]
      %v211 = vld [vmem:[%s1 + $0x28] sm:$0xf]
      %v212 = vld [vmem:[%s1 + $0x2c] sm:$0xf]
      %v213 = vld [vmem:[%s1 + $0x30] sm:$0xf]
      %v214 = vld [vmem:[%s1 + $0x34] sm:$0xf]
      %v215 = vld [vmem:[%s1 + $0x38] sm:$0xf]
      %v216 = vld [vmem:[%s1 + $0x3c] sm:$0xf]
      %v217 = vld [vmem:[%s2] sm:$0x1]
      %v219 = vlaneseq
      %v220 = vshrl.u32 %v219, 7
      %v221 = vsub.s32 0, %v220
      %v222 = vrot.slane %v217, %v221
      %v240 = vunpack.c.l.b16 %v201
      %v241 = vunpack.c.l.b16 %v202
      %v242 = vunpack.c.l.b16 %v203
      %v243 = vunpack.c.l.b16 %v204
      %v244 = vunpack.c.l.b16 %v205
      %v245 = vunpack.c.l.b16 %v206
      %v246 = vunpack.c.l.b16 %v207
      %v247 = vunpack.c.l.b16 %v208
      %v248 = vunpack.c.l.b16 %v209
      %v249 = vunpack.c.l.b16 %v210
      %v250 = vunpack.c.l.b16 %v211
      %v251 = vunpack.c.l.b16 %v212
      %v252 = vunpack.c.l.b16 %v213
      %v253 = vunpack.c.l.b16 %v214
      %v254 = vunpack.c.l.b16 %v215
      %v255 = vunpack.c.l.b16 %v216
      %v256 = vpack.c.b16 %v241, %v240
      %v257 = vpack.c.b16 %v243, %v242
      %v258 = vpack.c.b16 %v245, %v244
      %v259 = vpack.c.b16 %v247, %v246
      %v260 = vpack.c.b16 %v249, %v248
      %v261 = vpack.c.b16 %v251, %v250
      %v262 = vpack.c.b16 %v253, %v252
      %v263 = vpack.c.b16 %v255, %v254
      %272 = vmatprep.subr.bf16.mxu0 0
      %273 = vmatpush1.bf16.msra.mxu0 %v256
      %274 = vmatprep.subr.bf16.mxu0 0
      %275 = vmatpush1.bf16.msra.mxu0 %v257
      %276 = vmatprep.subr.bf16.mxu0 0
      %277 = vmatpush1.bf16.msra.mxu0 %v258
      %278 = vmatprep.subr.bf16.mxu0 0
      %279 = vmatpush1.bf16.msra.mxu0 %v259
      %280 = vmatprep.subr.bf16.mxu0 0
      %281 = vmatpush1.bf16.msra.mxu0 %v260
      %282 = vmatprep.subr.bf16.mxu0 0
      %283 = vmatpush1.bf16.msra.mxu0 %v261
      %284 = vmatprep.subr.bf16.mxu0 0
      %285 = vmatpush1.bf16.msra.mxu0 %v262
      %286 = vmatprep.subr.bf16.mxu0 0
      %287 = vmatpush1.bf16.msra.mxu0 %v263
      %288 = vmatprep.subr.bf16.mxu0 0
      %289 = vmatpush1.bf16.msra.mxu0 0
      %290 = vmatprep.subr.bf16.mxu0 0
      %291 = vmatpush1.bf16.msra.mxu0 0
      %292 = vmatprep.subr.bf16.mxu0 0
      %293 = vmatpush1.bf16.msra.mxu0 0
      %294 = vmatprep.subr.bf16.mxu0 0
      %295 = vmatpush1.bf16.msra.mxu0 0
      %296 = vmatprep.subr.bf16.mxu0 0
      %297 = vmatpush1.bf16.msra.mxu0 0
      %298 = vmatprep.subr.bf16.mxu0 0
      %299 = vmatpush1.bf16.msra.mxu0 0
      %300 = vmatprep.subr.bf16.mxu0 0
      %301 = vmatpush1.bf16.msra.mxu0 0
      %302 = vmatprep.subr.bf16.mxu0 0
      %303 = vmatpush1.bf16.msra.mxu0 0
      %304 = vmatprep.mubr.bf16.mxu0 0
      %305 = vmatmul.mubr.bf16.gmra.mrb[0].mxu0 %v200
      %v306 = vpop.f32.mrb[0].mxu0
      %v307 = vadd.f32 %v222, %v306
      %v308 = vpop.f32.mrb[0].mxu0
      %v309 = vpop.f32.mrb[0].mxu0
      %v310 = vpop.f32.mrb[0].mxu0
      %311 = vdwg.mxu0
      %v312 = vpack.c.bf16 %v307, %v307
      %313 = vst [vmem:[%s194] sm:$0x1] %v312
      %vm314 = vcmask 1041408
      %v315 = vsel %vm314, %v307, 0.0
      %v316 = vrot.slane %v315, 4
      %v317 = vadd.f32 %v315, %v316
      %v318 = vrot.slane %v317, 2
      %v319 = vadd.f32 %v317, %v318
      %v320 = vrot.slane %v319, 1
      %v321 = vadd.f32 %v319, %v320
      %322 = vst [vmem:[%s198] sm:$0x1] %v321
      %v323 = vmul.f32 %v307, %v307
      %v324 = vsel %vm314, %v323, 0.0
      %v325 = vrot.slane %v324, 4
      %v326 = vadd.f32 %v324, %v325
      %v327 = vrot.slane %v326, 2
      %v328 = vadd.f32 %v326, %v327
      %v329 = vrot.slane %v328, 1
      %v330 = vadd.f32 %v328, %v329
      %331 = vst [vmem:[%s198 + $0x1] sm:$0x1] %v330
      %p332 = scmp.lt.s32.totalorder %s16, 1
      %s333 = scalar_select %p332, %s16, 1
      %s334 = scalar_lea.vmem %s3, %s333
      %p335 = scmp.lt.s32.totalorder %s16, 1
      %s336 = scalar_select %p335, %s16, 1
      %s337 = smul.addr %s336, 2
      %s338 = scalar_lea.vmem %s4, %s337
      // Predicated region
      $region33: #{forward.15} parent=31 // pred_check
        %p339 = pneg %p102
      $region34: #{forward.15} parent=31 // pred_check_branch
        %341 = sbr.rel (%p339) target = $region36
      $region35: #{forward.15} parent=31 // pred_region
        _
      $region36: #{forward.15} parent=31 // pred_fallthru
        _
      // Predicated region
      $region37: #{forward.15} parent=31 // pred_check
        %p342 = pneg %p128
      $region38: #{forward.15} parent=31 // pred_check_branch
        %344 = sbr.rel (%p342) target = $region40
      $region39: #{forward.15} parent=31 // pred_region
        _
      $region40: #{forward.15} parent=31 // pred_fallthru
        _
    $region32: #{forward.15} parent=5 // pred_fallthru
      _
    %p345 = scmp.le.s32.totalorder 2, %s11
    // Predicated region
    $region41: #{forward.15} parent=5 // pred_check
      %p346 = pneg %p345
    $region42: #{forward.15} parent=5 // pred_check_branch
      %348 = sbr.rel (%p346) target = $region44
    $region43: #{forward.15} parent=5 // pred_region
      %s349 = ssub.s32 %s11, 2
      // Predicated region
      $region45: #{forward.15} parent=43 // pred_check
        %p350 = pneg %p108
      $region46: #{forward.15} parent=43 // pred_check_branch
        %352 = sbr.rel (%p350) target = $region48
      $region47: #{forward.15} parent=43 // pred_region
        %p353 = scmp.lt.s32.totalorder %s17, 1
        %s354 = scalar_select %p353, %s17, 1
        %s355 = scalar_lea.vmem %s3, %s354
      $region48: #{forward.15} parent=43 // pred_fallthru
        _
      // Predicated region
      $region49: #{forward.15} parent=43 // pred_check
        %p356 = pneg %p134
      $region50: #{forward.15} parent=43 // pred_check_branch
        %358 = sbr.rel (%p356) target = $region52
      $region51: #{forward.15} parent=43 // pred_region
        %p359 = scmp.lt.s32.totalorder %s17, 1
        %s360 = scalar_select %p359, %s17, 1
        %s361 = smul.addr %s360, 2
        %s362 = scalar_lea.vmem %s4, %s361
      $region52: #{forward.15} parent=43 // pred_fallthru
        _
    $region44: #{forward.15} parent=5 // pred_fallthru
      _
  $region6: #{forward.15} parent=0 // loop_footer
    %s15 = sadd.s32 1, %s11
  $region7: #{forward.15} parent=0 // loop_footer_branch
    %10 = sbr.rel target = $region3
  $region8: #{forward.15} parent=0 // loop_exit
    _

// kernel: forward.16
$region0: #{forward.16}
  #allocation0 [shape = 'u32[]', space=smem, size = 0x4, offset = 0x4, fixed_abs, tag = 'smem constant byte address 0x4 - core index']
  #allocation1 [shape = 'u32[144,128]{1,0:T(1,128)}', space=vmem, size = 0x12000, scoped, tag = 'internal scratch']
  %s0 = inlined_call_operand.vmem [shape: bf16[2,6,768], index: 0, kind: input, shape index: {}]
  %s1 = inlined_call_operand.vmem [shape: bf16[3,768,128], index: 1, kind: input, shape index: {}]
  %s2 = inlined_call_operand.vmem [shape: f32[1,128], index: 2, kind: input, shape index: {}]
  %s3 = inlined_call_operand.vmem [shape: bf16[2,4,128], index: 3, kind: output, shape index: {0}]
  %s4 = inlined_call_operand.vmem [shape: f32[2,2,128], index: 4, kind: output, shape index: {1}]
  %5 = xla_tuple %s3, %s4
  %s6 = sld [smem:[#allocation0]]
  $region53: #{forward.16} parent=0
    _
  %s8 = ssub.s32 1, %s6
  %s9 = scalar_select 0, %s8, %s6
  loop: start=0, step=1, limit=4
  $region2: #{forward.16} parent=0 // loop_pre_header
    _
  $region3: #{forward.16} parent=0 // loop_header
    %s11 = sphi 0, %s15
    %p12 = scmp.ge.s32.totalorder %s11, 4
    %s21 = sphi 0, %s23
    %s24 = sphi 0, %s21
    %s25 = sphi 0, %s24
    %s41 = sphi 0, %s25
    %s45 = sphi 0, %s45
    %s47 = sphi 0, %s45
    %s48 = sphi 0, %s47
    %s62 = sphi 0, %s48
    %s66 = sphi 0, %s66
    %s68 = sphi 0, %s66
    %s69 = sphi 0, %s68
    %s83 = sphi 0, %s69
    %s89 = sphi 0, %s91
    %s92 = sphi 0, %s89
    %s93 = sphi 0, %s92
    %s109 = sphi 0, %s93
    %s115 = sphi 0, %s117
    %s118 = sphi 0, %s115
    %s119 = sphi 0, %s118
    %s135 = sphi 0, %s119
  $region4: #{forward.16} parent=0 // loop_header_branch
    %14 = sbr.rel (%p12) target = $region8
  $region5: #{forward.16} parent=0 // loop_body
    %s16 = ssub.s32 %s11, 1
    %s17 = ssub.s32 %s11, 2
    %s18 = sadd.s32 %s11, 1
    %s19 = ssub.s32 %s11, %s18
    %p20 = scmp.eq.s32.totalorder %s19, 0
    %s22 = sadd.s32 %s21, 1
    %s23 = scalar_select %p20, %s21, %s22
    %p26 = pneg %p20
    %p27 = scmp.eq.s32.totalorder %s11, 1
    %p28 = por %p26, %p27
    %p29 = scmp.ne.s32.totalorder %s21, %s24
    %p30 = scmp.eq.s32.totalorder %s11, 0
    %p31 = por %p29, %p30
    %p32 = scmp.ne.s32.totalorder %s21, %s24
    %p33 = scmp.eq.s32.totalorder %s16, 1
    %p34 = por %p32, %p33
    %p35 = scmp.ne.s32.totalorder %s24, %s25
    %p36 = scmp.eq.s32.totalorder %s16, 0
    %p37 = por %p35, %p36
    %p38 = scmp.ne.s32.totalorder %s24, %s25
    %p39 = scmp.eq.s32.totalorder %s17, 1
    %p40 = por %p38, %p39
    %p42 = scmp.ne.s32.totalorder %s25, %s41
    %p43 = scmp.eq.s32.totalorder %s17, 0
    %p44 = por %p42, %p43
    %s46 = sadd.s32 %s45, 1
    %p49 = scmp.eq.s32.totalorder %s11, 1
    %p50 = scmp.ne.s32.totalorder %s45, %s47
    %p51 = scmp.eq.s32.totalorder %s11, 0
    %p52 = por %p50, %p51
    %p53 = scmp.ne.s32.totalorder %s45, %s47
    %p54 = scmp.eq.s32.totalorder %s16, 1
    %p55 = por %p53, %p54
    %p56 = scmp.ne.s32.totalorder %s47, %s48
    %p57 = scmp.eq.s32.totalorder %s16, 0
    %p58 = por %p56, %p57
    %p59 = scmp.ne.s32.totalorder %s47, %s48
    %p60 = scmp.eq.s32.totalorder %s17, 1
    %p61 = por %p59, %p60
    %p63 = scmp.ne.s32.totalorder %s48, %s62
    %p64 = scmp.eq.s32.totalorder %s17, 0
    %p65 = por %p63, %p64
    %s67 = sadd.s32 %s66, 1
    %p70 = scmp.eq.s32.totalorder %s11, 1
    %p71 = scmp.ne.s32.totalorder %s66, %s68
    %p72 = scmp.eq.s32.totalorder %s11, 0
    %p73 = por %p71, %p72
    %p74 = scmp.ne.s32.totalorder %s66, %s68
    %p75 = scmp.eq.s32.totalorder %s16, 1
    %p76 = por %p74, %p75
    %p77 = scmp.ne.s32.totalorder %s68, %s69
    %p78 = scmp.eq.s32.totalorder %s16, 0
    %p79 = por %p77, %p78
    %p80 = scmp.ne.s32.totalorder %s68, %s69
    %p81 = scmp.eq.s32.totalorder %s17, 1
    %p82 = por %p80, %p81
    %p84 = scmp.ne.s32.totalorder %s69, %s83
    %p85 = scmp.eq.s32.totalorder %s17, 0
    %p86 = por %p84, %p85
    %s87 = ssub.s32 %s11, %s18
    %p88 = scmp.eq.s32.totalorder %s87, 0
    %s90 = sadd.s32 %s89, 1
    %s91 = scalar_select %p88, %s89, %s90
    %p94 = pneg %p88
    %p95 = scmp.eq.s32.totalorder %s11, 1
    %p96 = por %p94, %p95
    %p97 = scmp.ne.s32.totalorder %s89, %s92
    %p98 = scmp.eq.s32.totalorder %s11, 0
    %p99 = por %p97, %p98
    %p100 = scmp.ne.s32.totalorder %s89, %s92
    %p101 = scmp.eq.s32.totalorder %s16, 1
    %p102 = por %p100, %p101
    %p103 = scmp.ne.s32.totalorder %s92, %s93
    %p104 = scmp.eq.s32.totalorder %s16, 0
    %p105 = por %p103, %p104
    %p106 = scmp.ne.s32.totalorder %s92, %s93
    %p107 = scmp.eq.s32.totalorder %s17, 1
    %p108 = por %p106, %p107
    %p110 = scmp.ne.s32.totalorder %s93, %s109
    %p111 = scmp.eq.s32.totalorder %s17, 0
    %p112 = por %p110, %p111
    %s113 = ssub.s32 %s11, %s18
    %p114 = scmp.eq.s32.totalorder %s113, 0
    %s116 = sadd.s32 %s115, 1
    %s117 = scalar_select %p114, %s115, %s116
    %p120 = pneg %p114
    %p121 = scmp.eq.s32.totalorder %s11, 1
    %p122 = por %p120, %p121
    %p123 = scmp.ne.s32.totalorder %s115, %s118
    %p124 = scmp.eq.s32.totalorder %s11, 0
    %p125 = por %p123, %p124
    %p126 = scmp.ne.s32.totalorder %s115, %s118
    %p127 = scmp.eq.s32.totalorder %s16, 1
    %p128 = por %p126, %p127
    %p129 = scmp.ne.s32.totalorder %s118, %s119
    %p130 = scmp.eq.s32.totalorder %s16, 0
    %p131 = por %p129, %p130
    %p132 = scmp.ne.s32.totalorder %s118, %s119
    %p133 = scmp.eq.s32.totalorder %s17, 1
    %p134 = por %p132, %p133
    %p136 = scmp.ne.s32.totalorder %s119, %s135
    %p137 = scmp.eq.s32.totalorder %s17, 0
    %p138 = por %p136, %p137
    %p139 = scmp.le.s32.totalorder 1, %s11
    %p140 = scmp.lt.s32.totalorder %s11, 3
    %p141 = pnand %p139, %p140
    %p142 = pneg %p141
    // Predicated region
    $region9: #{forward.16} parent=5 // pred_check
      _
    $region10: #{forward.16} parent=5 // pred_check_branch
      %144 = sbr.rel (%p141) target = $region12
    $region11: #{forward.16} parent=5 // pred_region
      %s145 = ssub.s32 %s11, 1
      // Predicated region
      $region13: #{forward.16} parent=11 // pred_check
        %p146 = pneg %p58
      $region14: #{forward.16} parent=11 // pred_check_branch
        %148 = sbr.rel (%p146) target = $region16
      $region15: #{forward.16} parent=11 // pred_region
        _
      $region16: #{forward.16} parent=11 // pred_fallthru
        _
      // Predicated region
      $region17: #{forward.16} parent=11 // pred_check
        %p149 = pneg %p79
      $region18: #{forward.16} parent=11 // pred_check_branch
        %151 = sbr.rel (%p149) target = $region20
      $region19: #{forward.16} parent=11 // pred_region
        _
      $region20: #{forward.16} parent=11 // pred_fallthru
        _
    $region12: #{forward.16} parent=5 // pred_fallthru
      _
    %p152 = scmp.lt.s32.totalorder %s11, 2
    // Predicated region
    $region21: #{forward.16} parent=5 // pred_check
      %p153 = pneg %p152
    $region22: #{forward.16} parent=5 // pred_check_branch
      %155 = sbr.rel (%p153) target = $region24
    $region23: #{forward.16} parent=5 // pred_region
      // Predicated region
      $region25: #{forward.16} parent=23 // pred_check
        %p156 = pneg %p31
      $region26: #{forward.16} parent=23 // pred_check_branch
        %158 = sbr.rel (%p156) target = $region28
      $region27: #{forward.16} parent=23 // pred_region
        %p159 = scmp.lt.s32.totalorder %s11, 1
        %s160 = scalar_select %p159, %s11, 1
        %s161 = smul.addr %s160, 6
        %s162 = smul.addr %s161, 4
        %s163 = scalar_lea.vmem %s0, %s162
      $region28: #{forward.16} parent=23 // pred_fallthru
        _
    $region24: #{forward.16} parent=5 // pred_fallthru
      _
    %p164 = scmp.le.s32.totalorder 1, %s11
    %p165 = scmp.lt.s32.totalorder %s11, 3
    %p166 = pnand %p164, %p165
    %p167 = pneg %p166
    // Predicated region
    $region29: #{forward.16} parent=5 // pred_check
      _
    $region30: #{forward.16} parent=5 // pred_check_branch
      %169 = sbr.rel (%p166) target = $region32
    $region31: #{forward.16} parent=5 // pred_region
      %s170 = ssub.s32 %s11, 1
      %p171 = scmp.lt.s32.totalorder %s16, 1
      %s172 = scalar_select %p171, %s16, 1
      %s173 = smul.addr %s172, 6
      %s174 = smul.addr %s173, 4
      %s175 = scalar_lea.vmem %s0, %s174
      %p176 = pneg %p37
      %p177 = pneg %p34
      %p178 = pneg %p58
      %p179 = pneg %p55
      %p180 = pneg %p79
      %p181 = pneg %p76
      %p182 = pneg %p105
      %p183 = pneg %p102
      %p184 = scmp.lt.s32.totalorder %s16, 1
      %s185 = scalar_select %p184, %s16, 1
      %s186 = smul.addr %s185, 2
      %s187 = scalar_lea.vmem %s3, %s186
      %p188 = pneg %p131
      %p189 = pneg %p128
      %p190 = scmp.lt.s32.totalorder %s16, 1
      %s191 = scalar_select %p190, %s16, 1
      %s192 = smul.addr %s191, 2
      %s193 = scalar_lea.vmem %s4, %s192
      %p194 = scmp.lt.s32.totalorder %s16, 1
      %s195 = scalar_select %p194, %s16, 1
      %s196 = smul.addr %s195, 6
      %s197 = smul.addr %s196, 4
      %s198 = scalar_lea.vmem %s0, %s197
      %p199 = scmp.lt.s32.totalorder %s16, 1
      %s200 = scalar_select %p199, %s16, 1
      %s201 = smul.addr %s200, 2
      %s202 = scalar_lea.vmem %s3, %s201
      %p203 = scmp.lt.s32.totalorder %s16, 1
      %s204 = scalar_select %p203, %s16, 1
      %s205 = smul.addr %s204, 2
      %s206 = scalar_lea.vmem %s4, %s205
      %v208 = vld [vmem:[%s198] sm:$0x33]
      %v209 = vld [vmem:[%s198 + $0x8] sm:$0x33]
      %v210 = vld [vmem:[%s198 + $0x10] sm:$0x33]
      %v211 = vld [vmem:[%s1] sm:$0xf]
      %v212 = vld [vmem:[%s1 + $0x4] sm:$0xf]
      %v213 = vld [vmem:[%s1 + $0x8] sm:$0xf]
      %v214 = vld [vmem:[%s1 + $0xc] sm:$0xf]
      %v215 = vld [vmem:[%s1 + $0x10] sm:$0xf]
      %v216 = vld [vmem:[%s1 + $0x14] sm:$0xf]
      %v217 = vld [vmem:[%s1 + $0x18] sm:$0xf]
      %v218 = vld [vmem:[%s1 + $0x1c] sm:$0xf]
      %v219 = vld [vmem:[%s1 + $0x20] sm:$0xf]
      %v220 = vld [vmem:[%s1 + $0x24] sm:$0xf]
      %v221 = vld [vmem:[%s1 + $0x28] sm:$0xf]
      %v222 = vld [vmem:[%s1 + $0x2c] sm:$0xf]
      %v223 = vld [vmem:[%s1 + $0x30] sm:$0xf]
      %v224 = vld [vmem:[%s1 + $0x34] sm:$0xf]
      %v225 = vld [vmem:[%s1 + $0x38] sm:$0xf]
      %v226 = vld [vmem:[%s1 + $0x3c] sm:$0xf]
      %v227 = vld [vmem:[%s1 + $0x40] sm:$0xf]
      %v228 = vld [vmem:[%s1 + $0x44] sm:$0xf]
      %v229 = vld [vmem:[%s1 + $0x48] sm:$0xf]
      %v230 = vld [vmem:[%s1 + $0x4c] sm:$0xf]
      %v231 = vld [vmem:[%s1 + $0x50] sm:$0xf]
      %v232 = vld [vmem:[%s1 + $0x54] sm:$0xf]
      %v233 = vld [vmem:[%s1 + $0x58] sm:$0xf]
      %v234 = vld [vmem:[%s1 + $0x5c] sm:$0xf]
      %v235 = vld [vmem:[%s1 + $0x60] sm:$0xf]
      %v236 = vld [vmem:[%s1 + $0x64] sm:$0xf]
      %v237 = vld [vmem:[%s1 + $0x68] sm:$0xf]
      %v238 = vld [vmem:[%s1 + $0x6c] sm:$0xf]
      %v239 = vld [vmem:[%s1 + $0x70] sm:$0xf]
      %v240 = vld [vmem:[%s1 + $0x74] sm:$0xf]
      %v241 = vld [vmem:[%s1 + $0x78] sm:$0xf]
      %v242 = vld [vmem:[%s1 + $0x7c] sm:$0xf]
      %v243 = vld [vmem:[%s1 + $0x80] sm:$0xf]
      %v244 = vld [vmem:[%s1 + $0x84] sm:$0xf]
      %v245 = vld [vmem:[%s1 + $0x88] sm:$0xf]
      %v246 = vld [vmem:[%s1 + $0x8c] sm:$0xf]
      %v247 = vld [vmem:[%s1 + $0x90] sm:$0xf]
      %v248 = vld [vmem:[%s1 + $0x94] sm:$0xf]
      %v249 = vld [vmem:[%s1 + $0x98] sm:$0xf]
      %v250 = vld [vmem:[%s1 + $0x9c] sm:$0xf]
      %v251 = vld [vmem:[%s1 + $0xa0] sm:$0xf]
      %v252 = vld [vmem:[%s1 + $0xa4] sm:$0xf]
      %v253 = vld [vmem:[%s1 + $0xa8] sm:$0xf]
      %v254 = vld [vmem:[%s1 + $0xac] sm:$0xf]
      %v255 = vld [vmem:[%s1 + $0xb0] sm:$0xf]
      %v256 = vld [vmem:[%s1 + $0xb4] sm:$0xf]
      %v257 = vld [vmem:[%s1 + $0xb8] sm:$0xf]
      %v258 = vld [vmem:[%s1 + $0xbc] sm:$0xf]
      %v259 = vld [vmem:[%s1 + $0xc0] sm:$0xf]
      %v260 = vld [vmem:[%s1 + $0xc4] sm:$0xf]
      %v261 = vld [vmem:[%s1 + $0xc8] sm:$0xf]
      %v262 = vld [vmem:[%s1 + $0xcc] sm:$0xf]
      %v263 = vld [vmem:[%s1 + $0xd0] sm:$0xf]
      %v264 = vld [vmem:[%s1 + $0xd4] sm:$0xf]
      %v265 = vld [vmem:[%s1 + $0xd8] sm:$0xf]
      %v266 = vld [vmem:[%s1 + $0xdc] sm:$0xf]
      %v267 = vld [vmem:[%s1 + $0xe0] sm:$0xf]
      %v268 = vld [vmem:[%s1 + $0xe4] sm:$0xf]
      %v269 = vld [vmem:[%s1 + $0xe8] sm:$0xf]
      %v270 = vld [vmem:[%s1 + $0xec] sm:$0xf]
      %v271 = vld [vmem:[%s1 + $0xf0] sm:$0xf]
      %v272 = vld [vmem:[%s1 + $0xf4] sm:$0xf]
      %v273 = vld [vmem:[%s1 + $0xf8] sm:$0xf]
      %v274 = vld [vmem:[%s1 + $0xfc] sm:$0xf]
      %v275 = vld [vmem:[%s1 + $0x100] sm:$0xf]
      %v276 = vld [vmem:[%s1 + $0x104] sm:$0xf]
      %v277 = vld [vmem:[%s1 + $0x108] sm:$0xf]
      %v278 = vld [vmem:[%s1 + $0x10c] sm:$0xf]
      %v279 = vld [vmem:[%s1 + $0x110] sm:$0xf]
      %v280 = vld [vmem:[%s1 + $0x114] sm:$0xf]
      %v281 = vld [vmem:[%s1 + $0x118] sm:$0xf]
      %v282 = vld [vmem:[%s1 + $0x11c] sm:$0xf]
      %v283 = vld [vmem:[%s1 + $0x120] sm:$0xf]
      %v284 = vld [vmem:[%s1 + $0x124] sm:$0xf]
      %v285 = vld [vmem:[%s1 + $0x128] sm:$0xf]
      %v286 = vld [vmem:[%s1 + $0x12c] sm:$0xf]
      %v287 = vld [vmem:[%s1 + $0x130] sm:$0xf]
      %v288 = vld [vmem:[%s1 + $0x134] sm:$0xf]
      %v289 = vld [vmem:[%s1 + $0x138] sm:$0xf]
      %v290 = vld [vmem:[%s1 + $0x13c] sm:$0xf]
      %v291 = vld [vmem:[%s1 + $0x140] sm:$0xf]
      %v292 = vld [vmem:[%s1 + $0x144] sm:$0xf]
      %v293 = vld [vmem:[%s1 + $0x148] sm:$0xf]
      %v294 = vld [vmem:[%s1 + $0x14c] sm:$0xf]
      %v295 = vld [vmem:[%s1 + $0x150] sm:$0xf]
      %v296 = vld [vmem:[%s1 + $0x154] sm:$0xf]
      %v297 = vld [vmem:[%s1 + $0x158] sm:$0xf]
      %v298 = vld [vmem:[%s1 + $0x15c] sm:$0xf]
      %v299 = vld [vmem:[%s1 + $0x160] sm:$0xf]
      %v300 = vld [vmem:[%s1 + $0x164] sm:$0xf]
      %v301 = vld [vmem:[%s1 + $0x168] sm:$0xf]
      %v302 = vld [vmem:[%s1 + $0x16c] sm:$0xf]
      %v303 = vld [vmem:[%s1 + $0x170] sm:$0xf]
      %v304 = vld [vmem:[%s1 + $0x174] sm:$0xf]
      %v305 = vld [vmem:[%s1 + $0x178] sm:$0xf]
      %v306 = vld [vmem:[%s1 + $0x17c] sm:$0xf]
      %v307 = vld [vmem:[%s198] sm:$0x77]
      %v308 = vld [vmem:[%s198 + $0x8] sm:$0x77]
      %v309 = vld [vmem:[%s198 + $0x10] sm:$0x77]
      %s310 = scalar_lea.vmem %s1, 384
      %v311 = vld [vmem:[%s310] sm:$0xf]
      %v312 = vld [vmem:[%s310 + $0x4] sm:$0xf]
      %v313 = vld [vmem:[%s310 + $0x8] sm:$0xf]
      %v314 = vld [vmem:[%s310 + $0xc] sm:$0xf]
      %v315 = vld [vmem:[%s310 + $0x10] sm:$0xf]
      %v316 = vld [vmem:[%s310 + $0x14] sm:$0xf]
      %v317 = vld [vmem:[%s310 + $0x18] sm:$0xf]
      %v318 = vld [vmem:[%s310 + $0x1c] sm:$0xf]
      %v319 = vld [vmem:[%s310 + $0x20] sm:$0xf]
      %v320 = vld [vmem:[%s310 + $0x24] sm:$0xf]
      %v321 = vld [vmem:[%s310 + $0x28] sm:$0xf]
      %v322 = vld [vmem:[%s310 + $0x2c] sm:$0xf]
      %v323 = vld [vmem:[%s310 + $0x30] sm:$0xf]
      %v324 = vld [vmem:[%s310 + $0x34] sm:$0xf]
      %v325 = vld [vmem:[%s310 + $0x38] sm:$0xf]
      %v326 = vld [vmem:[%s310 + $0x3c] sm:$0xf]
      %v327 = vld [vmem:[%s310 + $0x40] sm:$0xf]
      %v328 = vld [vmem:[%s310 + $0x44] sm:$0xf]
      %v329 = vld [vmem:[%s310 + $0x48] sm:$0xf]
      %v330 = vld [vmem:[%s310 + $0x4c] sm:$0xf]
      %v331 = vld [vmem:[%s310 + $0x50] sm:$0xf]
      %v332 = vld [vmem:[%s310 + $0x54] sm:$0xf]
      %v333 = vld [vmem:[%s310 + $0x58] sm:$0xf]
      %v334 = vld [vmem:[%s310 + $0x5c] sm:$0xf]
      %v335 = vld [vmem:[%s310 + $0x60] sm:$0xf]
      %v336 = vld [vmem:[%s310 + $0x64] sm:$0xf]
      %v337 = vld [vmem:[%s310 + $0x68] sm:$0xf]
      %v338 = vld [vmem:[%s310 + $0x6c] sm:$0xf]
      %v339 = vld [vmem:[%s310 + $0x70] sm:$0xf]
      %v340 = vld [vmem:[%s310 + $0x74] sm:$0xf]
      %v341 = vld [vmem:[%s310 + $0x78] sm:$0xf]
      %v342 = vld [vmem:[%s310 + $0x7c] sm:$0xf]
      %v343 = vld [vmem:[%s310 + $0x80] sm:$0xf]
      %v344 = vld [vmem:[%s310 + $0x84] sm:$0xf]
      %v345 = vld [vmem:[%s310 + $0x88] sm:$0xf]
      %v346 = vld [vmem:[%s310 + $0x8c] sm:$0xf]
      %v347 = vld [vmem:[%s310 + $0x90] sm:$0xf]
      %v348 = vld [vmem:[%s310 + $0x94] sm:$0xf]
      %v349 = vld [vmem:[%s310 + $0x98] sm:$0xf]
      %v350 = vld [vmem:[%s310 + $0x9c] sm:$0xf]
      %v351 = vld [vmem:[%s310 + $0xa0] sm:$0xf]
      %v352 = vld [vmem:[%s310 + $0xa4] sm:$0xf]
      %v353 = vld [vmem:[%s310 + $0xa8] sm:$0xf]
      %v354 = vld [vmem:[%s310 + $0xac] sm:$0xf]
      %v355 = vld [vmem:[%s310 + $0xb0] sm:$0xf]
      %v356 = vld [vmem:[%s310 + $0xb4] sm:$0xf]
      %v357 = vld [vmem:[%s310 + $0xb8] sm:$0xf]
      %v358 = vld [vmem:[%s310 + $0xbc] sm:$0xf]
      %v359 = vld [vmem:[%s310 + $0xc0] sm:$0xf]
      %v360 = vld [vmem:[%s310 + $0xc4] sm:$0xf]
      %v361 = vld [vmem:[%s310 + $0xc8] sm:$0xf]
      %v362 = vld [vmem:[%s310 + $0xcc] sm:$0xf]
      %v363 = vld [vmem:[%s310 + $0xd0] sm:$0xf]
      %v364 = vld [vmem:[%s310 + $0xd4] sm:$0xf]
      %v365 = vld [vmem:[%s310 + $0xd8] sm:$0xf]
      %v366 = vld [vmem:[%s310 + $0xdc] sm:$0xf]
      %v367 = vld [vmem:[%s310 + $0xe0] sm:$0xf]
      %v368 = vld [vmem:[%s310 + $0xe4] sm:$0xf]
      %v369 = vld [vmem:[%s310 + $0xe8] sm:$0xf]
      %v370 = vld [vmem:[%s310 + $0xec] sm:$0xf]
      %v371 = vld [vmem:[%s310 + $0xf0] sm:$0xf]
      %v372 = vld [vmem:[%s310 + $0xf4] sm:$0xf]
      %v373 = vld [vmem:[%s310 + $0xf8] sm:$0xf]
      %v374 = vld [vmem:[%s310 + $0xfc] sm:$0xf]
      %v375 = vld [vmem:[%s310 + $0x100] sm:$0xf]
      %v376 = vld [vmem:[%s310 + $0x104] sm:$0xf]
      %v377 = vld [vmem:[%s310 + $0x108] sm:$0xf]
      %v378 = vld [vmem:[%s310 + $0x10c] sm:$0xf]
      %v379 = vld [vmem:[%s310 + $0x110] sm:$0xf]
      %v380 = vld [vmem:[%s310 + $0x114] sm:$0xf]
      %v381 = vld [vmem:[%s310 + $0x118] sm:$0xf]
      %v382 = vld [vmem:[%s310 + $0x11c] sm:$0xf]
      %v383 = vld [vmem:[%s310 + $0x120] sm:$0xf]
      %v384 = vld [vmem:[%s310 + $0x124] sm:$0xf]
      %v385 = vld [vmem:[%s310 + $0x128] sm:$0xf]
      %v386 = vld [vmem:[%s310 + $0x12c] sm:$0xf]
      %v387 = vld [vmem:[%s310 + $0x130] sm:$0xf]
      %v388 = vld [vmem:[%s310 + $0x134] sm:$0xf]
      %v389 = vld [vmem:[%s310 + $0x138] sm:$0xf]
      %v390 = vld [vmem:[%s310 + $0x13c] sm:$0xf]
      %v391 = vld [vmem:[%s310 + $0x140] sm:$0xf]
      %v392 = vld [vmem:[%s310 + $0x144] sm:$0xf]
      %v393 = vld [vmem:[%s310 + $0x148] sm:$0xf]
      %v394 = vld [vmem:[%s310 + $0x14c] sm:$0xf]
      %v395 = vld [vmem:[%s310 + $0x150] sm:$0xf]
      %v396 = vld [vmem:[%s310 + $0x154] sm:$0xf]
      %v397 = vld [vmem:[%s310 + $0x158] sm:$0xf]
      %v398 = vld [vmem:[%s310 + $0x15c] sm:$0xf]
      %v399 = vld [vmem:[%s310 + $0x160] sm:$0xf]
      %v400 = vld [vmem:[%s310 + $0x164] sm:$0xf]
      %v401 = vld [vmem:[%s310 + $0x168] sm:$0xf]
      %v402 = vld [vmem:[%s310 + $0x16c] sm:$0xf]
      %v403 = vld [vmem:[%s310 + $0x170] sm:$0xf]
      %v404 = vld [vmem:[%s310 + $0x174] sm:$0xf]
      %v405 = vld [vmem:[%s310 + $0x178] sm:$0xf]
      %v406 = vld [vmem:[%s310 + $0x17c] sm:$0xf]
      %v410 = vunpack.c.l.b16 %v307
      %v411 = vunpack.c.h.b16 %v307
      %v412 = vunpack.c.l.b16 %v308
      %v413 = vunpack.c.h.b16 %v308
      %v414 = vunpack.c.l.b16 %v309
      %v415 = vunpack.c.h.b16 %v309
      %v416 = vpack.c.b16 %v410, %v410
      %v417 = vpack.c.b16 %v411, %v411
      %v418 = vpack.c.b16 %v412, %v412
      %v419 = vpack.c.b16 %v413, %v413
      %v420 = vpack.c.b16 %v414, %v414
      %v421 = vpack.c.b16 %v415, %v415
      %v423 = vshrl.u32 %v416, 16
      %v425 = vshll.u32 %v416, 16
      %v427 = vrot.slane %v425, 1
      %v428 = vor.u32 %v423, %v427
      %v430 = vshrl.u32 %v417, 16
      %v432 = vshll.u32 %v417, 16
      %v434 = vrot.slane %v432, 1
      %v435 = vor.u32 %v430, %v434
      %v437 = vshrl.u32 %v418, 16
      %v439 = vshll.u32 %v418, 16
      %v441 = vrot.slane %v439, 1
      %v442 = vor.u32 %v437, %v441
      %v444 = vshrl.u32 %v419, 16
      %v446 = vshll.u32 %v419, 16
      %v448 = vrot.slane %v446, 1
      %v449 = vor.u32 %v444, %v448
      %v451 = vshrl.u32 %v420, 16
      %v453 = vshll.u32 %v420, 16
      %v455 = vrot.slane %v453, 1
      %v456 = vor.u32 %v451, %v455
      %v458 = vshrl.u32 %v421, 16
      %v460 = vshll.u32 %v421, 16
      %v462 = vrot.slane %v460, 1
      %v463 = vor.u32 %v458, %v462
      %v566 = vunpack.c.l.b16 %v311
      %v567 = vunpack.c.l.b16 %v312
      %v568 = vunpack.c.l.b16 %v313
      %v569 = vunpack.c.l.b16 %v314
      %v570 = vunpack.c.l.b16 %v315
      %v571 = vunpack.c.l.b16 %v316
      %v572 = vunpack.c.l.b16 %v317
      %v573 = vunpack.c.l.b16 %v318
      %v574 = vunpack.c.l.b16 %v319
      %v575 = vunpack.c.l.b16 %v320
      %v576 = vunpack.c.l.b16 %v321
      %v577 = vunpack.c.l.b16 %v322
      %v578 = vunpack.c.l.b16 %v323
      %v579 = vunpack.c.l.b16 %v324
      %v580 = vunpack.c.l.b16 %v325
      %v581 = vunpack.c.l.b16 %v326
      %v582 = vunpack.c.l.b16 %v327
      %v583 = vunpack.c.l.b16 %v328
      %v584 = vunpack.c.l.b16 %v329
      %v585 = vunpack.c.l.b16 %v330
      %v586 = vunpack.c.l.b16 %v331
      %v587 = vunpack.c.l.b16 %v332
      %v588 = vunpack.c.l.b16 %v333
      %v589 = vunpack.c.l.b16 %v334
      %v590 = vunpack.c.l.b16 %v335
      %v591 = vunpack.c.l.b16 %v336
      %v592 = vunpack.c.l.b16 %v337
      %v593 = vunpack.c.l.b16 %v338
      %v594 = vunpack.c.l.b16 %v339
      %v595 = vunpack.c.l.b16 %v340
      %v596 = vunpack.c.l.b16 %v341
      %v597 = vunpack.c.l.b16 %v342
      %v598 = vunpack.c.l.b16 %v343
      %v599 = vunpack.c.l.b16 %v344
      %v600 = vunpack.c.l.b16 %v345
      %v601 = vunpack.c.l.b16 %v346
      %v602 = vunpack.c.l.b16 %v347
      %v603 = vunpack.c.l.b16 %v348
      %v604 = vunpack.c.l.b16 %v349
      %v605 = vunpack.c.l.b16 %v350
      %v606 = vunpack.c.l.b16 %v351
      %v607 = vunpack.c.l.b16 %v352
      %v608 = vunpack.c.l.b16 %v353
      %v609 = vunpack.c.l.b16 %v354
      %v610 = vunpack.c.l.b16 %v355
      %v611 = vunpack.c.l.b16 %v356
      %v612 = vunpack.c.l.b16 %v357
      %v613 = vunpack.c.l.b16 %v358
      %v614 = vunpack.c.l.b16 %v359
      %v615 = vunpack.c.l.b16 %v360
      %v616 = vunpack.c.l.b16 %v361
      %v617 = vunpack.c.l.b16 %v362
      %v618 = vunpack.c.l.b16 %v363
      %v619 = vunpack.c.l.b16 %v364
      %v620 = vunpack.c.l.b16 %v365
      %v621 = vunpack.c.l.b16 %v366
      %v622 = vunpack.c.l.b16 %v367
      %v623 = vunpack.c.l.b16 %v368
      %v624 = vunpack.c.l.b16 %v369
      %v625 = vunpack.c.l.b16 %v370
      %v626 = vunpack.c.l.b16 %v371
      %v627 = vunpack.c.l.b16 %v372
      %v628 = vunpack.c.l.b16 %v373
      %v629 = vunpack.c.l.b16 %v374
      %v630 = vunpack.c.l.b16 %v375
      %v631 = vunpack.c.l.b16 %v376
      %v632 = vunpack.c.l.b16 %v377
      %v633 = vunpack.c.l.b16 %v378
      %v634 = vunpack.c.l.b16 %v379
      %v635 = vunpack.c.l.b16 %v380
      %v636 = vunpack.c.l.b16 %v381
      %v637 = vunpack.c.l.b16 %v382
      %v638 = vunpack.c.l.b16 %v383
      %v639 = vunpack.c.l.b16 %v384
      %v640 = vunpack.c.l.b16 %v385
      %v641 = vunpack.c.l.b16 %v386
      %v642 = vunpack.c.l.b16 %v387
      %v643 = vunpack.c.l.b16 %v388
      %v644 = vunpack.c.l.b16 %v389
      %v645 = vunpack.c.l.b16 %v390
      %v646 = vunpack.c.l.b16 %v391
      %v647 = vunpack.c.l.b16 %v392
      %v648 = vunpack.c.l.b16 %v393
      %v649 = vunpack.c.l.b16 %v394
      %v650 = vunpack.c.l.b16 %v395
      %v651 = vunpack.c.l.b16 %v396
      %v652 = vunpack.c.l.b16 %v397
      %v653 = vunpack.c.l.b16 %v398
      %v654 = vunpack.c.l.b16 %v399
      %v655 = vunpack.c.l.b16 %v400
      %v656 = vunpack.c.l.b16 %v401
      %v657 = vunpack.c.l.b16 %v402
      %v658 = vunpack.c.l.b16 %v403
      %v659 = vunpack.c.l.b16 %v404
      %v660 = vunpack.c.l.b16 %v405
      %v661 = vunpack.c.l.b16 %v406
      %v662 = vpack.c.b16 %v567, %v566
      %v663 = vpack.c.b16 %v569, %v568
      %v664 = vpack.c.b16 %v571, %v570
      %v665 = vpack.c.b16 %v573, %v572
      %v666 = vpack.c.b16 %v575, %v574
      %v667 = vpack.c.b16 %v577, %v576
      %v668 = vpack.c.b16 %v579, %v578
      %v669 = vpack.c.b16 %v581, %v580
      %v670 = vpack.c.b16 %v583, %v582
      %v671 = vpack.c.b16 %v585, %v584
      %v672 = vpack.c.b16 %v587, %v586
      %v673 = vpack.c.b16 %v589, %v588
      %v674 = vpack.c.b16 %v591, %v590
      %v675 = vpack.c.b16 %v593, %v592
      %v676 = vpack.c.b16 %v595, %v594
      %v677 = vpack.c.b16 %v597, %v596
      %v678 = vpack.c.b16 %v599, %v598
      %v679 = vpack.c.b16 %v601, %v600
      %v680 = vpack.c.b16 %v603, %v602
      %v681 = vpack.c.b16 %v605, %v604
      %v682 = vpack.c.b16 %v607, %v606
      %v683 = vpack.c.b16 %v609, %v608
      %v684 = vpack.c.b16 %v611, %v610
      %v685 = vpack.c.b16 %v613, %v612
      %v686 = vpack.c.b16 %v615, %v614
      %v687 = vpack.c.b16 %v617, %v616
      %v688 = vpack.c.b16 %v619, %v618
      %v689 = vpack.c.b16 %v621, %v620
      %v690 = vpack.c.b16 %v623, %v622
      %v691 = vpack.c.b16 %v625, %v624
      %v692 = vpack.c.b16 %v627, %v626
      %v693 = vpack.c.b16 %v629, %v628
      %v694 = vpack.c.b16 %v631, %v630
      %v695 = vpack.c.b16 %v633, %v632
      %v696 = vpack.c.b16 %v635, %v634
      %v697 = vpack.c.b16 %v637, %v636
      %v698 = vpack.c.b16 %v639, %v638
      %v699 = vpack.c.b16 %v641, %v640
      %v700 = vpack.c.b16 %v643, %v642
      %v701 = vpack.c.b16 %v645, %v644
      %v702 = vpack.c.b16 %v647, %v646
      %v703 = vpack.c.b16 %v649, %v648
      %v704 = vpack.c.b16 %v651, %v650
      %v705 = vpack.c.b16 %v653, %v652
      %v706 = vpack.c.b16 %v655, %v654
      %v707 = vpack.c.b16 %v657, %v656
      %v708 = vpack.c.b16 %v659, %v658
      %v709 = vpack.c.b16 %v661, %v660
      %758 = vmatprep.subr.bf16.mxu0 0
      %759 = vmatpush1.bf16.msra.mxu0 %v662
      %760 = vmatprep.subr.bf16.mxu0 0
      %761 = vmatpush1.bf16.msra.mxu0 %v663
      %762 = vmatprep.subr.bf16.mxu0 0
      %763 = vmatpush1.bf16.msra.mxu0 %v664
      %764 = vmatprep.subr.bf16.mxu0 0
      %765 = vmatpush1.bf16.msra.mxu0 %v665
      %766 = vmatprep.subr.bf16.mxu0 0
      %767 = vmatpush1.bf16.msra.mxu0 %v666
      %768 = vmatprep.subr.bf16.mxu0 0
      %769 = vmatpush1.bf16.msra.mxu0 %v667
      %770 = vmatprep.subr.bf16.mxu0 0
      %771 = vmatpush1.bf16.msra.mxu0 %v668
      %772 = vmatprep.subr.bf16.mxu0 0
      %773 = vmatpush1.bf16.msra.mxu0 %v669
      %774 = vmatprep.subr.bf16.mxu0 0
      %775 = vmatpush1.bf16.msra.mxu0 %v670
      %776 = vmatprep.subr.bf16.mxu0 0
      %777 = vmatpush1.bf16.msra.mxu0 %v671
      %778 = vmatprep.subr.bf16.mxu0 0
      %779 = vmatpush1.bf16.msra.mxu0 %v672
      %780 = vmatprep.subr.bf16.mxu0 0
      %781 = vmatpush1.bf16.msra.mxu0 %v673
      %782 = vmatprep.subr.bf16.mxu0 0
      %783 = vmatpush1.bf16.msra.mxu0 %v674
      %784 = vmatprep.subr.bf16.mxu0 0
      %785 = vmatpush1.bf16.msra.mxu0 %v675
      %786 = vmatprep.subr.bf16.mxu0 0
      %787 = vmatpush1.bf16.msra.mxu0 %v676
      %788 = vmatprep.subr.bf16.mxu0 0
      %789 = vmatpush1.bf16.msra.mxu0 %v677
      %790 = vmatprep.mubr.bf16.mxu0 %v435
      %791 = vmatmul.mubr.bf16.gmra.mrb[0].mxu0 %v428
      %v792 = vpop.f32.mrb[0].mxu0
      %v793 = vadd.f32 0.0, %v792
      %v794 = vpop.f32.mrb[0].mxu0
      %v795 = vpop.f32.mrb[0].mxu0
      %v796 = vpop.f32.mrb[0].mxu0
      %797 = vdwg.mxu0
      %798 = vmatprep.subr.bf16.mxu0 0
      %799 = vmatpush1.bf16.msra.mxu0 %v678
      %800 = vmatprep.subr.bf16.mxu0 0
      %801 = vmatpush1.bf16.msra.mxu0 %v679
      %802 = vmatprep.subr.bf16.mxu0 0
      %803 = vmatpush1.bf16.msra.mxu0 %v680
      %804 = vmatprep.subr.bf16.mxu0 0
      %805 = vmatpush1.bf16.msra.mxu0 %v681
      %806 = vmatprep.subr.bf16.mxu0 0
      %807 = vmatpush1.bf16.msra.mxu0 %v682
      %808 = vmatprep.subr.bf16.mxu0 0
      %809 = vmatpush1.bf16.msra.mxu0 %v683
      %810 = vmatprep.subr.bf16.mxu0 0
      %811 = vmatpush1.bf16.msra.mxu0 %v684
      %812 = vmatprep.subr.bf16.mxu0 0
      %813 = vmatpush1.bf16.msra.mxu0 %v685
      %814 = vmatprep.subr.bf16.mxu0 0
      %815 = vmatpush1.bf16.msra.mxu0 %v686
      %816 = vmatprep.subr.bf16.mxu0 0
      %817 = vmatpush1.bf16.msra.mxu0 %v687
      %818 = vmatprep.subr.bf16.mxu0 0
      %819 = vmatpush1.bf16.msra.mxu0 %v688
      %820 = vmatprep.subr.bf16.mxu0 0
      %821 = vmatpush1.bf16.msra.mxu0 %v689
      %822 = vmatprep.subr.bf16.mxu0 0
      %823 = vmatpush1.bf16.msra.mxu0 %v690
      %824 = vmatprep.subr.bf16.mxu0 0
      %825 = vmatpush1.bf16.msra.mxu0 %v691
      %826 = vmatprep.subr.bf16.mxu0 0
      %827 = vmatpush1.bf16.msra.mxu0 %v692
      %828 = vmatprep.subr.bf16.mxu0 0
      %829 = vmatpush1.bf16.msra.mxu0 %v693
      %830 = vmatprep.mubr.bf16.mxu0 %v449
      %831 = vmatmul.mubr.bf16.gmra.mrb[0].mxu0 %v442
      %v832 = vpop.f32.mrb[0].mxu0
      %v833 = vadd.f32 %v793, %v832
      %v834 = vpop.f32.mrb[0].mxu0
      %v835 = vpop.f32.mrb[0].mxu0
      %v836 = vpop.f32.mrb[0].mxu0
      %837 = vdwg.mxu0
      %838 = vmatprep.subr.bf16.mxu0 0
      %839 = vmatpush1.bf16.msra.mxu0 %v694
      %840 = vmatprep.subr.bf16.mxu0 0
      %841 = vmatpush1.bf16.msra.mxu0 %v695
      %842 = vmatprep.subr.bf16.mxu0 0
      %843 = vmatpush1.bf16.msra.mxu0 %v696
      %844 = vmatprep.subr.bf16.mxu0 0
      %845 = vmatpush1.bf16.msra.mxu0 %v697
      %846 = vmatprep.subr.bf16.mxu0 0
      %847 = vmatpush1.bf16.msra.mxu0 %v698
      %848 = vmatprep.subr.bf16.mxu0 0
      %849 = vmatpush1.bf16.msra.mxu0 %v699
      %850 = vmatprep.subr.bf16.mxu0 0
      %851 = vmatpush1.bf16.msra.mxu0 %v700
      %852 = vmatprep.subr.bf16.mxu0 0
      %853 = vmatpush1.bf16.msra.mxu0 %v701
      %854 = vmatprep.subr.bf16.mxu0 0
      %855 = vmatpush1.bf16.msra.mxu0 %v702
      %856 = vmatprep.subr.bf16.mxu0 0
      %857 = vmatpush1.bf16.msra.mxu0 %v703
      %858 = vmatprep.subr.bf16.mxu0 0
      %859 = vmatpush1.bf16.msra.mxu0 %v704
      %860 = vmatprep.subr.bf16.mxu0 0
      %861 = vmatpush1.bf16.msra.mxu0 %v705
      %862 = vmatprep.subr.bf16.mxu0 0
      %863 = vmatpush1.bf16.msra.mxu0 %v706
      %864 = vmatprep.subr.bf16.mxu0 0
      %865 = vmatpush1.bf16.msra.mxu0 %v707
      %866 = vmatprep.subr.bf16.mxu0 0
      %867 = vmatpush1.bf16.msra.mxu0 %v708
      %868 = vmatprep.subr.bf16.mxu0 0
      %869 = vmatpush1.bf16.msra.mxu0 %v709
      %870 = vmatprep.mubr.bf16.mxu0 %v463
      %871 = vmatmul.mubr.bf16.gmra.mrb[0].mxu0 %v456
      %v872 = vpop.f32.mrb[0].mxu0
      %v873 = vadd.f32 %v833, %v872
      %v874 = vpop.f32.mrb[0].mxu0
      %v875 = vpop.f32.mrb[0].mxu0
      %v876 = vpop.f32.mrb[0].mxu0
      %877 = vdwg.mxu0
      %v881 = vunpack.c.l.b16 %v208
      %v882 = vunpack.c.h.b16 %v208
      %v883 = vunpack.c.l.b16 %v209
      %v884 = vunpack.c.h.b16 %v209
      %v885 = vunpack.c.l.b16 %v210
      %v886 = vunpack.c.h.b16 %v210
      %v887 = vpack.c.b16 %v881, %v881
      %v888 = vpack.c.b16 %v882, %v882
      %v889 = vpack.c.b16 %v883, %v883
      %v890 = vpack.c.b16 %v884, %v884
      %v891 = vpack.c.b16 %v885, %v885
      %v892 = vpack.c.b16 %v886, %v886
      %v995 = vunpack.c.l.b16 %v211
      %v996 = vunpack.c.l.b16 %v212
      %v997 = vunpack.c.l.b16 %v213
      %v998 = vunpack.c.l.b16 %v214
      %v999 = vunpack.c.l.b16 %v215
      %v1000 = vunpack.c.l.b16 %v216
      %v1001 = vunpack.c.l.b16 %v217
      %v1002 = vunpack.c.l.b16 %v218
      %v1003 = vunpack.c.l.b16 %v219
      %v1004 = vunpack.c.l.b16 %v220
      %v1005 = vunpack.c.l.b16 %v221
      %v1006 = vunpack.c.l.b16 %v222
      %v1007 = vunpack.c.l.b16 %v223
      %v1008 = vunpack.c.l.b16 %v224
      %v1009 = vunpack.c.l.b16 %v225
      %v1010 = vunpack.c.l.b16 %v226
      %v1011 = vunpack.c.l.b16 %v227
      %v1012 = vunpack.c.l.b16 %v228
      %v1013 = vunpack.c.l.b16 %v229
      %v1014 = vunpack.c.l.b16 %v230
      %v1015 = vunpack.c.l.b16 %v231
      %v1016 = vunpack.c.l.b16 %v232
      %v1017 = vunpack.c.l.b16 %v233
      %v1018 = vunpack.c.l.b16 %v234
      %v1019 = vunpack.c.l.b16 %v235
      %v1020 = vunpack.c.l.b16 %v236
      %v1021 = vunpack.c.l.b16 %v237
      %v1022 = vunpack.c.l.b16 %v238
      %v1023 = vunpack.c.l.b16 %v239
      %v1024 = vunpack.c.l.b16 %v240
      %v1025 = vunpack.c.l.b16 %v241
      %v1026 = vunpack.c.l.b16 %v242
      %v1027 = vunpack.c.l.b16 %v243
      %v1028 = vunpack.c.l.b16 %v244
      %v1029 = vunpack.c.l.b16 %v245
      %v1030 = vunpack.c.l.b16 %v246
      %v1031 = vunpack.c.l.b16 %v247
      %v1032 = vunpack.c.l.b16 %v248
      %v1033 = vunpack.c.l.b16 %v249
      %v1034 = vunpack.c.l.b16 %v250
      %v1035 = vunpack.c.l.b16 %v251
      %v1036 = vunpack.c.l.b16 %v252
      %v1037 = vunpack.c.l.b16 %v253
      %v1038 = vunpack.c.l.b16 %v254
      %v1039 = vunpack.c.l.b16 %v255
      %v1040 = vunpack.c.l.b16 %v256
      %v1041 = vunpack.c.l.b16 %v257
      %v1042 = vunpack.c.l.b16 %v258
      %v1043 = vunpack.c.l.b16 %v259
      %v1044 = vunpack.c.l.b16 %v260
      %v1045 = vunpack.c.l.b16 %v261
      %v1046 = vunpack.c.l.b16 %v262
      %v1047 = vunpack.c.l.b16 %v263
      %v1048 = vunpack.c.l.b16 %v264
      %v1049 = vunpack.c.l.b16 %v265
      %v1050 = vunpack.c.l.b16 %v266
      %v1051 = vunpack.c.l.b16 %v267
      %v1052 = vunpack.c.l.b16 %v268
      %v1053 = vunpack.c.l.b16 %v269
      %v1054 = vunpack.c.l.b16 %v270
      %v1055 = vunpack.c.l.b16 %v271
      %v1056 = vunpack.c.l.b16 %v272
      %v1057 = vunpack.c.l.b16 %v273
      %v1058 = vunpack.c.l.b16 %v274
      %v1059 = vunpack.c.l.b16 %v275
      %v1060 = vunpack.c.l.b16 %v276
      %v1061 = vunpack.c.l.b16 %v277
      %v1062 = vunpack.c.l.b16 %v278
      %v1063 = vunpack.c.l.b16 %v279
      %v1064 = vunpack.c.l.b16 %v280
      %v1065 = vunpack.c.l.b16 %v281
      %v1066 = vunpack.c.l.b16 %v282
      %v1067 = vunpack.c.l.b16 %v283
      %v1068 = vunpack.c.l.b16 %v284
      %v1069 = vunpack.c.l.b16 %v285
      %v1070 = vunpack.c.l.b16 %v286
      %v1071 = vunpack.c.l.b16 %v287
      %v1072 = vunpack.c.l.b16 %v288
      %v1073 = vunpack.c.l.b16 %v289
      %v1074 = vunpack.c.l.b16 %v290
      %v1075 = vunpack.c.l.b16 %v291
      %v1076 = vunpack.c.l.b16 %v292
      %v1077 = vunpack.c.l.b16 %v293
      %v1078 = vunpack.c.l.b16 %v294
      %v1079 = vunpack.c.l.b16 %v295
      %v1080 = vunpack.c.l.b16 %v296
      %v1081 = vunpack.c.l.b16 %v297
      %v1082 = vunpack.c.l.b16 %v298
      %v1083 = vunpack.c.l.b16 %v299
      %v1084 = vunpack.c.l.b16 %v300
      %v1085 = vunpack.c.l.b16 %v301
      %v1086 = vunpack.c.l.b16 %v302
      %v1087 = vunpack.c.l.b16 %v303
      %v1088 = vunpack.c.l.b16 %v304
      %v1089 = vunpack.c.l.b16 %v305
      %v1090 = vunpack.c.l.b16 %v306
      %v1091 = vpack.c.b16 %v996, %v995
      %v1092 = vpack.c.b16 %v998, %v997
      %v1093 = vpack.c.b16 %v1000, %v999
      %v1094 = vpack.c.b16 %v1002, %v1001
      %v1095 = vpack.c.b16 %v1004, %v1003
      %v1096 = vpack.c.b16 %v1006, %v1005
      %v1097 = vpack.c.b16 %v1008, %v1007
      %v1098 = vpack.c.b16 %v1010, %v1009
      %v1099 = vpack.c.b16 %v1012, %v1011
      %v1100 = vpack.c.b16 %v1014, %v1013
      %v1101 = vpack.c.b16 %v1016, %v1015
      %v1102 = vpack.c.b16 %v1018, %v1017
      %v1103 = vpack.c.b16 %v1020, %v1019
      %v1104 = vpack.c.b16 %v1022, %v1021
      %v1105 = vpack.c.b16 %v1024, %v1023
      %v1106 = vpack.c.b16 %v1026, %v1025
      %v1107 = vpack.c.b16 %v1028, %v1027
      %v1108 = vpack.c.b16 %v1030, %v1029
      %v1109 = vpack.c.b16 %v1032, %v1031
      %v1110 = vpack.c.b16 %v1034, %v1033
      %v1111 = vpack.c.b16 %v1036, %v1035
      %v1112 = vpack.c.b16 %v1038, %v1037
      %v1113 = vpack.c.b16 %v1040, %v1039
      %v1114 = vpack.c.b16 %v1042, %v1041
      %v1115 = vpack.c.b16 %v1044, %v1043
      %v1116 = vpack.c.b16 %v1046, %v1045
      %v1117 = vpack.c.b16 %v1048, %v1047
      %v1118 = vpack.c.b16 %v1050, %v1049
      %v1119 = vpack.c.b16 %v1052, %v1051
      %v1120 = vpack.c.b16 %v1054, %v1053
      %v1121 = vpack.c.b16 %v1056, %v1055
      %v1122 = vpack.c.b16 %v1058, %v1057
      %v1123 = vpack.c.b16 %v1060, %v1059
      %v1124 = vpack.c.b16 %v1062, %v1061
      %v1125 = vpack.c.b16 %v1064, %v1063
      %v1126 = vpack.c.b16 %v1066, %v1065
      %v1127 = vpack.c.b16 %v1068, %v1067
      %v1128 = vpack.c.b16 %v1070, %v1069
      %v1129 = vpack.c.b16 %v1072, %v1071
      %v1130 = vpack.c.b16 %v1074, %v1073
      %v1131 = vpack.c.b16 %v1076, %v1075
      %v1132 = vpack.c.b16 %v1078, %v1077
      %v1133 = vpack.c.b16 %v1080, %v1079
      %v1134 = vpack.c.b16 %v1082, %v1081
      %v1135 = vpack.c.b16 %v1084, %v1083
      %v1136 = vpack.c.b16 %v1086, %v1085
      %v1137 = vpack.c.b16 %v1088, %v1087
      %v1138 = vpack.c.b16 %v1090, %v1089
      %1187 = vmatprep.subr.bf16.mxu0 0
      %1188 = vmatpush1.bf16.msra.mxu0 %v1091
      %1189 = vmatprep.subr.bf16.mxu0 0
      %1190 = vmatpush1.bf16.msra.mxu0 %v1092
      %1191 = vmatprep.subr.bf16.mxu0 0
      %1192 = vmatpush1.bf16.msra.mxu0 %v1093
      %1193 = vmatprep.subr.bf16.mxu0 0
      %1194 = vmatpush1.bf16.msra.mxu0 %v1094
      %1195 = vmatprep.subr.bf16.mxu0 0
      %1196 = vmatpush1.bf16.msra.mxu0 %v1095
      %1197 = vmatprep.subr.bf16.mxu0 0
      %1198 = vmatpush1.bf16.msra.mxu0 %v1096
      %1199 = vmatprep.subr.bf16.mxu0 0
      %1200 = vmatpush1.bf16.msra.mxu0 %v1097
      %1201 = vmatprep.subr.bf16.mxu0 0
      %1202 = vmatpush1.bf16.msra.mxu0 %v1098
      %1203 = vmatprep.subr.bf16.mxu0 0
      %1204 = vmatpush1.bf16.msra.mxu0 %v1099
      %1205 = vmatprep.subr.bf16.mxu0 0
      %1206 = vmatpush1.bf16.msra.mxu0 %v1100
      %1207 = vmatprep.subr.bf16.mxu0 0
      %1208 = vmatpush1.bf16.msra.mxu0 %v1101
      %1209 = vmatprep.subr.bf16.mxu0 0
      %1210 = vmatpush1.bf16.msra.mxu0 %v1102
      %1211 = vmatprep.subr.bf16.mxu0 0
      %1212 = vmatpush1.bf16.msra.mxu0 %v1103
      %1213 = vmatprep.subr.bf16.mxu0 0
      %1214 = vmatpush1.bf16.msra.mxu0 %v1104
      %1215 = vmatprep.subr.bf16.mxu0 0
      %1216 = vmatpush1.bf16.msra.mxu0 %v1105
      %1217 = vmatprep.subr.bf16.mxu0 0
      %1218 = vmatpush1.bf16.msra.mxu0 %v1106
      %1219 = vmatprep.mubr.bf16.mxu0 %v888
      %1220 = vmatmul.mubr.bf16.gmra.mrb[0].mxu0 %v887
      %v1221 = vpop.f32.mrb[0].mxu0
      %v1222 = vadd.f32 %v873, %v1221
      %v1223 = vpop.f32.mrb[0].mxu0
      %v1224 = vpop.f32.mrb[0].mxu0
      %v1225 = vpop.f32.mrb[0].mxu0
      %1226 = vdwg.mxu0
      %1227 = vmatprep.subr.bf16.mxu0 0
      %1228 = vmatpush1.bf16.msra.mxu0 %v1107
      %1229 = vmatprep.subr.bf16.mxu0 0
      %1230 = vmatpush1.bf16.msra.mxu0 %v1108
      %1231 = vmatprep.subr.bf16.mxu0 0
      %1232 = vmatpush1.bf16.msra.mxu0 %v1109
      %1233 = vmatprep.subr.bf16.mxu0 0
      %1234 = vmatpush1.bf16.msra.mxu0 %v1110
      %1235 = vmatprep.subr.bf16.mxu0 0
      %1236 = vmatpush1.bf16.msra.mxu0 %v1111
      %1237 = vmatprep.subr.bf16.mxu0 0
      %1238 = vmatpush1.bf16.msra.mxu0 %v1112
      %1239 = vmatprep.subr.bf16.mxu0 0
      %1240 = vmatpush1.bf16.msra.mxu0 %v1113
      %1241 = vmatprep.subr.bf16.mxu0 0
      %1242 = vmatpush1.bf16.msra.mxu0 %v1114
      %1243 = vmatprep.subr.bf16.mxu0 0
      %1244 = vmatpush1.bf16.msra.mxu0 %v1115
      %1245 = vmatprep.subr.bf16.mxu0 0
      %1246 = vmatpush1.bf16.msra.mxu0 %v1116
      %1247 = vmatprep.subr.bf16.mxu0 0
      %1248 = vmatpush1.bf16.msra.mxu0 %v1117
      %1249 = vmatprep.subr.bf16.mxu0 0
      %1250 = vmatpush1.bf16.msra.mxu0 %v1118
      %1251 = vmatprep.subr.bf16.mxu0 0
      %1252 = vmatpush1.bf16.msra.mxu0 %v1119
      %1253 = vmatprep.subr.bf16.mxu0 0
      %1254 = vmatpush1.bf16.msra.mxu0 %v1120
      %1255 = vmatprep.subr.bf16.mxu0 0
      %1256 = vmatpush1.bf16.msra.mxu0 %v1121
      %1257 = vmatprep.subr.bf16.mxu0 0
      %1258 = vmatpush1.bf16.msra.mxu0 %v1122
      %1259 = vmatprep.mubr.bf16.mxu0 %v890
      %1260 = vmatmul.mubr.bf16.gmra.mrb[0].mxu0 %v889
      %v1261 = vpop.f32.mrb[0].mxu0
      %v1262 = vadd.f32 %v1222, %v1261
      %v1263 = vpop.f32.mrb[0].mxu0
      %v1264 = vpop.f32.mrb[0].mxu0
      %v1265 = vpop.f32.mrb[0].mxu0
      %1266 = vdwg.mxu0
      %1267 = vmatprep.subr.bf16.mxu0 0
      %1268 = vmatpush1.bf16.msra.mxu0 %v1123
      %1269 = vmatprep.subr.bf16.mxu0 0
      %1270 = vmatpush1.bf16.msra.mxu0 %v1124
      %1271 = vmatprep.subr.bf16.mxu0 0
      %1272 = vmatpush1.bf16.msra.mxu0 %v1125
      %1273 = vmatprep.subr.bf16.mxu0 0
      %1274 = vmatpush1.bf16.msra.mxu0 %v1126
      %1275 = vmatprep.subr.bf16.mxu0 0
      %1276 = vmatpush1.bf16.msra.mxu0 %v1127
      %1277 = vmatprep.subr.bf16.mxu0 0
      %1278 = vmatpush1.bf16.msra.mxu0 %v1128
      %1279 = vmatprep.subr.bf16.mxu0 0
      %1280 = vmatpush1.bf16.msra.mxu0 %v1129
      %1281 = vmatprep.subr.bf16.mxu0 0
      %1282 = vmatpush1.bf16.msra.mxu0 %v1130
      %1283 = vmatprep.subr.bf16.mxu0 0
      %1284 = vmatpush1.bf16.msra.mxu0 %v1131
      %1285 = vmatprep.subr.bf16.mxu0 0
      %1286 = vmatpush1.bf16.msra.mxu0 %v1132
      %1287 = vmatprep.subr.bf16.mxu0 0
      %1288 = vmatpush1.bf16.msra.mxu0 %v1133
      %1289 = vmatprep.subr.bf16.mxu0 0
      %1290 = vmatpush1.bf16.msra.mxu0 %v1134
      %1291 = vmatprep.subr.bf16.mxu0 0
      %1292 = vmatpush1.bf16.msra.mxu0 %v1135
      %1293 = vmatprep.subr.bf16.mxu0 0
      %1294 = vmatpush1.bf16.msra.mxu0 %v1136
      %1295 = vmatprep.subr.bf16.mxu0 0
      %1296 = vmatpush1.bf16.msra.mxu0 %v1137
      %1297 = vmatprep.subr.bf16.mxu0 0
      %1298 = vmatpush1.bf16.msra.mxu0 %v1138
      %1299 = vmatprep.mubr.bf16.mxu0 %v892
      %1300 = vmatmul.mubr.bf16.gmra.mrb[0].mxu0 %v891
      %v1301 = vpop.f32.mrb[0].mxu0
      %v1302 = vadd.f32 %v1262, %v1301
      %v1303 = vpop.f32.mrb[0].mxu0
      %v1304 = vpop.f32.mrb[0].mxu0
      %v1305 = vpop.f32.mrb[0].mxu0
      %1306 = vdwg.mxu0
      %v1307 = vld [vmem:[%s198] sm:$0x66]
      %v1308 = vld [vmem:[%s198 + $0x8] sm:$0x66]
      %v1309 = vld [vmem:[%s198 + $0x10] sm:$0x66]
      %s1310 = scalar_lea.vmem %s1, 768
      %v1311 = vld [vmem:[%s1310] sm:$0xf]
      %v1312 = vld [vmem:[%s1310 + $0x4] sm:$0xf]
      %v1313 = vld [vmem:[%s1310 + $0x8] sm:$0xf]
      %v1314 = vld [vmem:[%s1310 + $0xc] sm:$0xf]
      %v1315 = vld [vmem:[%s1310 + $0x10] sm:$0xf]
      %v1316 = vld [vmem:[%s1310 + $0x14] sm:$0xf]
      %v1317 = vld [vmem:[%s1310 + $0x18] sm:$0xf]
      %v1318 = vld [vmem:[%s1310 + $0x1c] sm:$0xf]
      %v1319 = vld [vmem:[%s1310 + $0x20] sm:$0xf]
      %v1320 = vld [vmem:[%s1310 + $0x24] sm:$0xf]
      %v1321 = vld [vmem:[%s1310 + $0x28] sm:$0xf]
      %v1322 = vld [vmem:[%s1310 + $0x2c] sm:$0xf]
      %v1323 = vld [vmem:[%s1310 + $0x30] sm:$0xf]
      %v1324 = vld [vmem:[%s1310 + $0x34] sm:$0xf]
      %v1325 = vld [vmem:[%s1310 + $0x38] sm:$0xf]
      %v1326 = vld [vmem:[%s1310 + $0x3c] sm:$0xf]
      %v1327 = vld [vmem:[%s1310 + $0x40] sm:$0xf]
      %v1328 = vld [vmem:[%s1310 + $0x44] sm:$0xf]
      %v1329 = vld [vmem:[%s1310 + $0x48] sm:$0xf]
      %v1330 = vld [vmem:[%s1310 + $0x4c] sm:$0xf]
      %v1331 = vld [vmem:[%s1310 + $0x50] sm:$0xf]
      %v1332 = vld [vmem:[%s1310 + $0x54] sm:$0xf]
      %v1333 = vld [vmem:[%s1310 + $0x58] sm:$0xf]
      %v1334 = vld [vmem:[%s1310 + $0x5c] sm:$0xf]
      %v1335 = vld [vmem:[%s1310 + $0x60] sm:$0xf]
      %v1336 = vld [vmem:[%s1310 + $0x64] sm:$0xf]
      %v1337 = vld [vmem:[%s1310 + $0x68] sm:$0xf]
      %v1338 = vld [vmem:[%s1310 + $0x6c] sm:$0xf]
      %v1339 = vld [vmem:[%s1310 + $0x70] sm:$0xf]
      %v1340 = vld [vmem:[%s1310 + $0x74] sm:$0xf]
      %v1341 = vld [vmem:[%s1310 + $0x78] sm:$0xf]
      %v1342 = vld [vmem:[%s1310 + $0x7c] sm:$0xf]
      %v1343 = vld [vmem:[%s1310 + $0x80] sm:$0xf]
      %v1344 = vld [vmem:[%s1310 + $0x84] sm:$0xf]
      %v1345 = vld [vmem:[%s1310 + $0x88] sm:$0xf]
      %v1346 = vld [vmem:[%s1310 + $0x8c] sm:$0xf]
      %v1347 = vld [vmem:[%s1310 + $0x90] sm:$0xf]
      %v1348 = vld [vmem:[%s1310 + $0x94] sm:$0xf]
      %v1349 = vld [vmem:[%s1310 + $0x98] sm:$0xf]
      %v1350 = vld [vmem:[%s1310 + $0x9c] sm:$0xf]
      %v1351 = vld [vmem:[%s1310 + $0xa0] sm:$0xf]
      %v1352 = vld [vmem:[%s1310 + $0xa4] sm:$0xf]
      %v1353 = vld [vmem:[%s1310 + $0xa8] sm:$0xf]
      %v1354 = vld [vmem:[%s1310 + $0xac] sm:$0xf]
      %v1355 = vld [vmem:[%s1310 + $0xb0] sm:$0xf]
      %v1356 = vld [vmem:[%s1310 + $0xb4] sm:$0xf]
      %v1357 = vld [vmem:[%s1310 + $0xb8] sm:$0xf]
      %v1358 = vld [vmem:[%s1310 + $0xbc] sm:$0xf]
      %v1359 = vld [vmem:[%s1310 + $0xc0] sm:$0xf]
      %v1360 = vld [vmem:[%s1310 + $0xc4] sm:$0xf]
      %v1361 = vld [vmem:[%s1310 + $0xc8] sm:$0xf]
      %v1362 = vld [vmem:[%s1310 + $0xcc] sm:$0xf]
      %v1363 = vld [vmem:[%s1310 + $0xd0] sm:$0xf]
      %v1364 = vld [vmem:[%s1310 + $0xd4] sm:$0xf]
      %v1365 = vld [vmem:[%s1310 + $0xd8] sm:$0xf]
      %v1366 = vld [vmem:[%s1310 + $0xdc] sm:$0xf]
      %v1367 = vld [vmem:[%s1310 + $0xe0] sm:$0xf]
      %v1368 = vld [vmem:[%s1310 + $0xe4] sm:$0xf]
      %v1369 = vld [vmem:[%s1310 + $0xe8] sm:$0xf]
      %v1370 = vld [vmem:[%s1310 + $0xec] sm:$0xf]
      %v1371 = vld [vmem:[%s1310 + $0xf0] sm:$0xf]
      %v1372 = vld [vmem:[%s1310 + $0xf4] sm:$0xf]
      %v1373 = vld [vmem:[%s1310 + $0xf8] sm:$0xf]
      %v1374 = vld [vmem:[%s1310 + $0xfc] sm:$0xf]
      %v1375 = vld [vmem:[%s1310 + $0x100] sm:$0xf]
      %v1376 = vld [vmem:[%s1310 + $0x104] sm:$0xf]
      %v1377 = vld [vmem:[%s1310 + $0x108] sm:$0xf]
      %v1378 = vld [vmem:[%s1310 + $0x10c] sm:$0xf]
      %v1379 = vld [vmem:[%s1310 + $0x110] sm:$0xf]
      %v1380 = vld [vmem:[%s1310 + $0x114] sm:$0xf]
      %v1381 = vld [vmem:[%s1310 + $0x118] sm:$0xf]
      %v1382 = vld [vmem:[%s1310 + $0x11c] sm:$0xf]
      %v1383 = vld [vmem:[%s1310 + $0x120] sm:$0xf]
      %v1384 = vld [vmem:[%s1310 + $0x124] sm:$0xf]
      %v1385 = vld [vmem:[%s1310 + $0x128] sm:$0xf]
      %v1386 = vld [vmem:[%s1310 + $0x12c] sm:$0xf]
      %v1387 = vld [vmem:[%s1310 + $0x130] sm:$0xf]
      %v1388 = vld [vmem:[%s1310 + $0x134] sm:$0xf]
      %v1389 = vld [vmem:[%s1310 + $0x138] sm:$0xf]
      %v1390 = vld [vmem:[%s1310 + $0x13c] sm:$0xf]
      %v1391 = vld [vmem:[%s1310 + $0x140] sm:$0xf]
      %v1392 = vld [vmem:[%s1310 + $0x144] sm:$0xf]
      %v1393 = vld [vmem:[%s1310 + $0x148] sm:$0xf]
      %v1394 = vld [vmem:[%s1310 + $0x14c] sm:$0xf]
      %v1395 = vld [vmem:[%s1310 + $0x150] sm:$0xf]
      %v1396 = vld [vmem:[%s1310 + $0x154] sm:$0xf]
      %v1397 = vld [vmem:[%s1310 + $0x158] sm:$0xf]
      %v1398 = vld [vmem:[%s1310 + $0x15c] sm:$0xf]
      %v1399 = vld [vmem:[%s1310 + $0x160] sm:$0xf]
      %v1400 = vld [vmem:[%s1310 + $0x164] sm:$0xf]
      %v1401 = vld [vmem:[%s1310 + $0x168] sm:$0xf]
      %v1402 = vld [vmem:[%s1310 + $0x16c] sm:$0xf]
      %v1403 = vld [vmem:[%s1310 + $0x170] sm:$0xf]
      %v1404 = vld [vmem:[%s1310 + $0x174] sm:$0xf]
      %v1405 = vld [vmem:[%s1310 + $0x178] sm:$0xf]
      %v1406 = vld [vmem:[%s1310 + $0x17c] sm:$0xf]
      %v1410 = vunpack.c.l.b16 %v1307
      %v1411 = vunpack.c.h.b16 %v1307
      %v1412 = vunpack.c.l.b16 %v1308
      %v1413 = vunpack.c.h.b16 %v1308
      %v1414 = vunpack.c.l.b16 %v1309
      %v1415 = vunpack.c.h.b16 %v1309
      %v1416 = vpack.c.b16 %v1410, %v1410
      %v1417 = vpack.c.b16 %v1411, %v1411
      %v1418 = vpack.c.b16 %v1412, %v1412
      %v1419 = vpack.c.b16 %v1413, %v1413
      %v1420 = vpack.c.b16 %v1414, %v1414
      %v1421 = vpack.c.b16 %v1415, %v1415
      %v1422 = vrot.slane %v1416, 1
      %v1423 = vrot.slane %v1417, 1
      %v1424 = vrot.slane %v1418, 1
      %v1425 = vrot.slane %v1419, 1
      %v1426 = vrot.slane %v1420, 1
      %v1427 = vrot.slane %v1421, 1
      %v1530 = vunpack.c.l.b16 %v1311
      %v1531 = vunpack.c.l.b16 %v1312
      %v1532 = vunpack.c.l.b16 %v1313
      %v1533 = vunpack.c.l.b16 %v1314
      %v1534 = vunpack.c.l.b16 %v1315
      %v1535 = vunpack.c.l.b16 %v1316
      %v1536 = vunpack.c.l.b16 %v1317
      %v1537 = vunpack.c.l.b16 %v1318
      %v1538 = vunpack.c.l.b16 %v1319
      %v1539 = vunpack.c.l.b16 %v1320
      %v1540 = vunpack.c.l.b16 %v1321
      %v1541 = vunpack.c.l.b16 %v1322
      %v1542 = vunpack.c.l.b16 %v1323
      %v1543 = vunpack.c.l.b16 %v1324
      %v1544 = vunpack.c.l.b16 %v1325
      %v1545 = vunpack.c.l.b16 %v1326
      %v1546 = vunpack.c.l.b16 %v1327
      %v1547 = vunpack.c.l.b16 %v1328
      %v1548 = vunpack.c.l.b16 %v1329
      %v1549 = vunpack.c.l.b16 %v1330
      %v1550 = vunpack.c.l.b16 %v1331
      %v1551 = vunpack.c.l.b16 %v1332
      %v1552 = vunpack.c.l.b16 %v1333
      %v1553 = vunpack.c.l.b16 %v1334
      %v1554 = vunpack.c.l.b16 %v1335
      %v1555 = vunpack.c.l.b16 %v1336
      %v1556 = vunpack.c.l.b16 %v1337
      %v1557 = vunpack.c.l.b16 %v1338
      %v1558 = vunpack.c.l.b16 %v1339
      %v1559 = vunpack.c.l.b16 %v1340
      %v1560 = vunpack.c.l.b16 %v1341
      %v1561 = vunpack.c.l.b16 %v1342
      %v1562 = vunpack.c.l.b16 %v1343
      %v1563 = vunpack.c.l.b16 %v1344
      %v1564 = vunpack.c.l.b16 %v1345
      %v1565 = vunpack.c.l.b16 %v1346
      %v1566 = vunpack.c.l.b16 %v1347
      %v1567 = vunpack.c.l.b16 %v1348
      %v1568 = vunpack.c.l.b16 %v1349
      %v1569 = vunpack.c.l.b16 %v1350
      %v1570 = vunpack.c.l.b16 %v1351
      %v1571 = vunpack.c.l.b16 %v1352
      %v1572 = vunpack.c.l.b16 %v1353
      %v1573 = vunpack.c.l.b16 %v1354
      %v1574 = vunpack.c.l.b16 %v1355
      %v1575 = vunpack.c.l.b16 %v1356
      %v1576 = vunpack.c.l.b16 %v1357
      %v1577 = vunpack.c.l.b16 %v1358
      %v1578 = vunpack.c.l.b16 %v1359
      %v1579 = vunpack.c.l.b16 %v1360
      %v1580 = vunpack.c.l.b16 %v1361
      %v1581 = vunpack.c.l.b16 %v1362
      %v1582 = vunpack.c.l.b16 %v1363
      %v1583 = vunpack.c.l.b16 %v1364
      %v1584 = vunpack.c.l.b16 %v1365
      %v1585 = vunpack.c.l.b16 %v1366
      %v1586 = vunpack.c.l.b16 %v1367
      %v1587 = vunpack.c.l.b16 %v1368
      %v1588 = vunpack.c.l.b16 %v1369
      %v1589 = vunpack.c.l.b16 %v1370
      %v1590 = vunpack.c.l.b16 %v1371
      %v1591 = vunpack.c.l.b16 %v1372
      %v1592 = vunpack.c.l.b16 %v1373
      %v1593 = vunpack.c.l.b16 %v1374
      %v1594 = vunpack.c.l.b16 %v1375
      %v1595 = vunpack.c.l.b16 %v1376
      %v1596 = vunpack.c.l.b16 %v1377
      %v1597 = vunpack.c.l.b16 %v1378
      %v1598 = vunpack.c.l.b16 %v1379
      %v1599 = vunpack.c.l.b16 %v1380
      %v1600 = vunpack.c.l.b16 %v1381
      %v1601 = vunpack.c.l.b16 %v1382
      %v1602 = vunpack.c.l.b16 %v1383
      %v1603 = vunpack.c.l.b16 %v1384
      %v1604 = vunpack.c.l.b16 %v1385
      %v1605 = vunpack.c.l.b16 %v1386
      %v1606 = vunpack.c.l.b16 %v1387
      %v1607 = vunpack.c.l.b16 %v1388
      %v1608 = vunpack.c.l.b16 %v1389
      %v1609 = vunpack.c.l.b16 %v1390
      %v1610 = vunpack.c.l.b16 %v1391
      %v1611 = vunpack.c.l.b16 %v1392
      %v1612 = vunpack.c.l.b16 %v1393
      %v1613 = vunpack.c.l.b16 %v1394
      %v1614 = vunpack.c.l.b16 %v1395
      %v1615 = vunpack.c.l.b16 %v1396
      %v1616 = vunpack.c.l.b16 %v1397
      %v1617 = vunpack.c.l.b16 %v1398
      %v1618 = vunpack.c.l.b16 %v1399
      %v1619 = vunpack.c.l.b16 %v1400
      %v1620 = vunpack.c.l.b16 %v1401
      %v1621 = vunpack.c.l.b16 %v1402
      %v1622 = vunpack.c.l.b16 %v1403
      %v1623 = vunpack.c.l.b16 %v1404
      %v1624 = vunpack.c.l.b16 %v1405
      %v1625 = vunpack.c.l.b16 %v1406
      %v1626 = vpack.c.b16 %v1531, %v1530
      %v1627 = vpack.c.b16 %v1533, %v1532
      %v1628 = vpack.c.b16 %v1535, %v1534
      %v1629 = vpack.c.b16 %v1537, %v1536
      %v1630 = vpack.c.b16 %v1539, %v1538
      %v1631 = vpack.c.b16 %v1541, %v1540
      %v1632 = vpack.c.b16 %v1543, %v1542
      %v1633 = vpack.c.b16 %v1545, %v1544
      %v1634 = vpack.c.b16 %v1547, %v1546
      %v1635 = vpack.c.b16 %v1549, %v1548
      %v1636 = vpack.c.b16 %v1551, %v1550
      %v1637 = vpack.c.b16 %v1553, %v1552
      %v1638 = vpack.c.b16 %v1555, %v1554
      %v1639 = vpack.c.b16 %v1557, %v1556
      %v1640 = vpack.c.b16 %v1559, %v1558
      %v1641 = vpack.c.b16 %v1561, %v1560
      %v1642 = vpack.c.b16 %v1563, %v1562
      %v1643 = vpack.c.b16 %v1565, %v1564
      %v1644 = vpack.c.b16 %v1567, %v1566
      %v1645 = vpack.c.b16 %v1569, %v1568
      %v1646 = vpack.c.b16 %v1571, %v1570
      %v1647 = vpack.c.b16 %v1573, %v1572
      %v1648 = vpack.c.b16 %v1575, %v1574
      %v1649 = vpack.c.b16 %v1577, %v1576
      %v1650 = vpack.c.b16 %v1579, %v1578
      %v1651 = vpack.c.b16 %v1581, %v1580
      %v1652 = vpack.c.b16 %v1583, %v1582
      %v1653 = vpack.c.b16 %v1585, %v1584
      %v1654 = vpack.c.b16 %v1587, %v1586
      %v1655 = vpack.c.b16 %v1589, %v1588
      %v1656 = vpack.c.b16 %v1591, %v1590
      %v1657 = vpack.c.b16 %v1593, %v1592
      %v1658 = vpack.c.b16 %v1595, %v1594
      %v1659 = vpack.c.b16 %v1597, %v1596
      %v1660 = vpack.c.b16 %v1599, %v1598
      %v1661 = vpack.c.b16 %v1601, %v1600
      %v1662 = vpack.c.b16 %v1603, %v1602
      %v1663 = vpack.c.b16 %v1605, %v1604
      %v1664 = vpack.c.b16 %v1607, %v1606
      %v1665 = vpack.c.b16 %v1609, %v1608
      %v1666 = vpack.c.b16 %v1611, %v1610
      %v1667 = vpack.c.b16 %v1613, %v1612
      %v1668 = vpack.c.b16 %v1615, %v1614
      %v1669 = vpack.c.b16 %v1617, %v1616
      %v1670 = vpack.c.b16 %v1619, %v1618
      %v1671 = vpack.c.b16 %v1621, %v1620
      %v1672 = vpack.c.b16 %v1623, %v1622
      %v1673 = vpack.c.b16 %v1625, %v1624
      %1722 = vmatprep.subr.bf16.mxu0 0
      %1723 = vmatpush1.bf16.msra.mxu0 %v1626
      %1724 = vmatprep.subr.bf16.mxu0 0
      %1725 = vmatpush1.bf16.msra.mxu0 %v1627
      %1726 = vmatprep.subr.bf16.mxu0 0
      %1727 = vmatpush1.bf16.msra.mxu0 %v1628
      %1728 = vmatprep.subr.bf16.mxu0 0
      %1729 = vmatpush1.bf16.msra.mxu0 %v1629
      %1730 = vmatprep.subr.bf16.mxu0 0
      %1731 = vmatpush1.bf16.msra.mxu0 %v1630
      %1732 = vmatprep.subr.bf16.mxu0 0
      %1733 = vmatpush1.bf16.msra.mxu0 %v1631
      %1734 = vmatprep.subr.bf16.mxu0 0
      %1735 = vmatpush1.bf16.msra.mxu0 %v1632
      %1736 = vmatprep.subr.bf16.mxu0 0
      %1737 = vmatpush1.bf16.msra.mxu0 %v1633
      %1738 = vmatprep.subr.bf16.mxu0 0
      %1739 = vmatpush1.bf16.msra.mxu0 %v1634
      %1740 = vmatprep.subr.bf16.mxu0 0
      %1741 = vmatpush1.bf16.msra.mxu0 %v1635
      %1742 = vmatprep.subr.bf16.mxu0 0
      %1743 = vmatpush1.bf16.msra.mxu0 %v1636
      %1744 = vmatprep.subr.bf16.mxu0 0
      %1745 = vmatpush1.bf16.msra.mxu0 %v1637
      %1746 = vmatprep.subr.bf16.mxu0 0
      %1747 = vmatpush1.bf16.msra.mxu0 %v1638
      %1748 = vmatprep.subr.bf16.mxu0 0
      %1749 = vmatpush1.bf16.msra.mxu0 %v1639
      %1750 = vmatprep.subr.bf16.mxu0 0
      %1751 = vmatpush1.bf16.msra.mxu0 %v1640
      %1752 = vmatprep.subr.bf16.mxu0 0
      %1753 = vmatpush1.bf16.msra.mxu0 %v1641
      %1754 = vmatprep.mubr.bf16.mxu0 %v1423
      %1755 = vmatmul.mubr.bf16.gmra.mrb[0].mxu0 %v1422
      %v1756 = vpop.f32.mrb[0].mxu0
      %v1757 = vadd.f32 0.0, %v1756
      %v1758 = vpop.f32.mrb[0].mxu0
      %v1759 = vpop.f32.mrb[0].mxu0
      %v1760 = vpop.f32.mrb[0].mxu0
      %1761 = vdwg.mxu0
      %1762 = vmatprep.subr.bf16.mxu0 0
      %1763 = vmatpush1.bf16.msra.mxu0 %v1642
      %1764 = vmatprep.subr.bf16.mxu0 0
      %1765 = vmatpush1.bf16.msra.mxu0 %v1643
      %1766 = vmatprep.subr.bf16.mxu0 0
      %1767 = vmatpush1.bf16.msra.mxu0 %v1644
      %1768 = vmatprep.subr.bf16.mxu0 0
      %1769 = vmatpush1.bf16.msra.mxu0 %v1645
      %1770 = vmatprep.subr.bf16.mxu0 0
      %1771 = vmatpush1.bf16.msra.mxu0 %v1646
      %1772 = vmatprep.subr.bf16.mxu0 0
      %1773 = vmatpush1.bf16.msra.mxu0 %v1647
      %1774 = vmatprep.subr.bf16.mxu0 0
      %1775 = vmatpush1.bf16.msra.mxu0 %v1648
      %1776 = vmatprep.subr.bf16.mxu0 0
      %1777 = vmatpush1.bf16.msra.mxu0 %v1649
      %1778 = vmatprep.subr.bf16.mxu0 0
      %1779 = vmatpush1.bf16.msra.mxu0 %v1650
      %1780 = vmatprep.subr.bf16.mxu0 0
      %1781 = vmatpush1.bf16.msra.mxu0 %v1651
      %1782 = vmatprep.subr.bf16.mxu0 0
      %1783 = vmatpush1.bf16.msra.mxu0 %v1652
      %1784 = vmatprep.subr.bf16.mxu0 0
      %1785 = vmatpush1.bf16.msra.mxu0 %v1653
      %1786 = vmatprep.subr.bf16.mxu0 0
      %1787 = vmatpush1.bf16.msra.mxu0 %v1654
      %1788 = vmatprep.subr.bf16.mxu0 0
      %1789 = vmatpush1.bf16.msra.mxu0 %v1655
      %1790 = vmatprep.subr.bf16.mxu0 0
      %1791 = vmatpush1.bf16.msra.mxu0 %v1656
      %1792 = vmatprep.subr.bf16.mxu0 0
      %1793 = vmatpush1.bf16.msra.mxu0 %v1657
      %1794 = vmatprep.mubr.bf16.mxu0 %v1425
      %1795 = vmatmul.mubr.bf16.gmra.mrb[0].mxu0 %v1424
      %v1796 = vpop.f32.mrb[0].mxu0
      %v1797 = vadd.f32 %v1757, %v1796
      %v1798 = vpop.f32.mrb[0].mxu0
      %v1799 = vpop.f32.mrb[0].mxu0
      %v1800 = vpop.f32.mrb[0].mxu0
      %1801 = vdwg.mxu0
      %1802 = vmatprep.subr.bf16.mxu0 0
      %1803 = vmatpush1.bf16.msra.mxu0 %v1658
      %1804 = vmatprep.subr.bf16.mxu0 0
      %1805 = vmatpush1.bf16.msra.mxu0 %v1659
      %1806 = vmatprep.subr.bf16.mxu0 0
      %1807 = vmatpush1.bf16.msra.mxu0 %v1660
      %1808 = vmatprep.subr.bf16.mxu0 0
      %1809 = vmatpush1.bf16.msra.mxu0 %v1661
      %1810 = vmatprep.subr.bf16.mxu0 0
      %1811 = vmatpush1.bf16.msra.mxu0 %v1662
      %1812 = vmatprep.subr.bf16.mxu0 0
      %1813 = vmatpush1.bf16.msra.mxu0 %v1663
      %1814 = vmatprep.subr.bf16.mxu0 0
      %1815 = vmatpush1.bf16.msra.mxu0 %v1664
      %1816 = vmatprep.subr.bf16.mxu0 0
      %1817 = vmatpush1.bf16.msra.mxu0 %v1665
      %1818 = vmatprep.subr.bf16.mxu0 0
      %1819 = vmatpush1.bf16.msra.mxu0 %v1666
      %1820 = vmatprep.subr.bf16.mxu0 0
      %1821 = vmatpush1.bf16.msra.mxu0 %v1667
      %1822 = vmatprep.subr.bf16.mxu0 0
      %1823 = vmatpush1.bf16.msra.mxu0 %v1668
      %1824 = vmatprep.subr.bf16.mxu0 0
      %1825 = vmatpush1.bf16.msra.mxu0 %v1669
      %1826 = vmatprep.subr.bf16.mxu0 0
      %1827 = vmatpush1.bf16.msra.mxu0 %v1670
      %1828 = vmatprep.subr.bf16.mxu0 0
      %1829 = vmatpush1.bf16.msra.mxu0 %v1671
      %1830 = vmatprep.subr.bf16.mxu0 0
      %1831 = vmatpush1.bf16.msra.mxu0 %v1672
      %1832 = vmatprep.subr.bf16.mxu0 0
      %1833 = vmatpush1.bf16.msra.mxu0 %v1673
      %1834 = vmatprep.mubr.bf16.mxu0 %v1427
      %1835 = vmatmul.mubr.bf16.gmra.mrb[0].mxu0 %v1426
      %v1836 = vpop.f32.mrb[0].mxu0
      %v1837 = vadd.f32 %v1797, %v1836
      %v1838 = vpop.f32.mrb[0].mxu0
      %v1839 = vpop.f32.mrb[0].mxu0
      %v1840 = vpop.f32.mrb[0].mxu0
      %1841 = vdwg.mxu0
      %v1842 = vadd.f32 %v1302, %v1837
      %v1843 = vld [vmem:[%s2] sm:$0x1]
      %v1845 = vlaneseq
      %v1846 = vshrl.u32 %v1845, 7
      %v1847 = vsub.s32 0, %v1846
      %v1848 = vrot.slane %v1843, %v1847
      %v1850 = vadd.f32 %v1842, %v1848
      %v1851 = vpack.c.bf16 %v1850, %v1850
      %1852 = vst [vmem:[%s202] sm:$0x3] %v1851
      %vm1853 = vcmask 1043456
      %v1854 = vsel %vm1853, %v1850, 0.0
      %v1855 = vrot.slane %v1854, 4
      %v1856 = vadd.f32 %v1854, %v1855
      %v1857 = vrot.slane %v1856, 2
      %v1858 = vadd.f32 %v1856, %v1857
      %v1859 = vrot.slane %v1858, 1
      %v1860 = vadd.f32 %v1858, %v1859
      %1861 = vst [vmem:[%s206] sm:$0x1] %v1860
      %v1862 = vmul.f32 %v1850, %v1850
      %v1863 = vsel %vm1853, %v1862, 0.0
      %v1864 = vrot.slane %v1863, 4
      %v1865 = vadd.f32 %v1863, %v1864
      %v1866 = vrot.slane %v1865, 2
      %v1867 = vadd.f32 %v1865, %v1866
      %v1868 = vrot.slane %v1867, 1
      %v1869 = vadd.f32 %v1867, %v1868
      %1870 = vst [vmem:[%s206 + $0x1] sm:$0x1] %v1869
      %p1871 = scmp.lt.s32.totalorder %s16, 1
      %s1872 = scalar_select %p1871, %s16, 1
      %s1873 = smul.addr %s1872, 2
      %s1874 = scalar_lea.vmem %s3, %s1873
      %p1875 = scmp.lt.s32.totalorder %s16, 1
      %s1876 = scalar_select %p1875, %s16, 1
      %s1877 = smul.addr %s1876, 2
      %s1878 = scalar_lea.vmem %s4, %s1877
      // Predicated region
      $region33: #{forward.16} parent=31 // pred_check
        %p1879 = pneg %p102
      $region34: #{forward.16} parent=31 // pred_check_branch
        %1881 = sbr.rel (%p1879) target = $region36
      $region35: #{forward.16} parent=31 // pred_region
        _
      $region36: #{forward.16} parent=31 // pred_fallthru
        _
      // Predicated region
      $region37: #{forward.16} parent=31 // pred_check
        %p1882 = pneg %p128
      $region38: #{forward.16} parent=31 // pred_check_branch
        %1884 = sbr.rel (%p1882) target = $region40
      $region39: #{forward.16} parent=31 // pred_region
        _
      $region40: #{forward.16} parent=31 // pred_fallthru
        _
    $region32: #{forward.16} parent=5 // pred_fallthru
      _
    %p1885 = scmp.le.s32.totalorder 2, %s11
    // Predicated region
    $region41: #{forward.16} parent=5 // pred_check
      %p1886 = pneg %p1885
    $region42: #{forward.16} parent=5 // pred_check_branch
      %1888 = sbr.rel (%p1886) target = $region44
    $region43: #{forward.16} parent=5 // pred_region
      %s1889 = ssub.s32 %s11, 2
      // Predicated region
      $region45: #{forward.16} parent=43 // pred_check
        %p1890 = pneg %p108
      $region46: #{forward.16} parent=43 // pred_check_branch
        %1892 = sbr.rel (%p1890) target = $region48
      $region47: #{forward.16} parent=43 // pred_region
        %p1893 = scmp.lt.s32.totalorder %s17, 1
        %s1894 = scalar_select %p1893, %s17, 1
        %s1895 = smul.addr %s1894, 2
        %s1896 = scalar_lea.vmem %s3, %s1895
      $region48: #{forward.16} parent=43 // pred_fallthru
        _
      // Predicated region
      $region49: #{forward.16} parent=43 // pred_check
        %p1897 = pneg %p134
      $region50: #{forward.16} parent=43 // pred_check_branch
        %1899 = sbr.rel (%p1897) target = $region52
      $region51: #{forward.16} parent=43 // pred_region
        %p1900 = scmp.lt.s32.totalorder %s17, 1
        %s1901 = scalar_select %p1900, %s17, 1
        %s1902 = smul.addr %s1901, 2
        %s1903 = scalar_lea.vmem %s4, %s1902
      $region52: #{forward.16} parent=43 // pred_fallthru
        _
    $region44: #{forward.16} parent=5 // pred_fallthru
      _
  $region6: #{forward.16} parent=0 // loop_footer
    %s15 = sadd.s32 1, %s11
  $region7: #{forward.16} parent=0 // loop_footer_branch
    %10 = sbr.rel target = $region3
  $region8: #{forward.16} parent=0 // loop_exit
    _

// kernel: forward.17
$region0: #{forward.17}
  #allocation0 [shape = 'u32[]', space=smem, size = 0x4, offset = 0x4, fixed_abs, tag = 'smem constant byte address 0x4 - core index']
  #allocation1 [shape = 'u32[144,128]{1,0:T(1,128)}', space=vmem, size = 0x12000, scoped, tag = 'internal scratch']
  %s0 = inlined_call_operand.vmem [shape: bf16[2,10,640], index: 0, kind: input, shape index: {}]
  %s1 = inlined_call_operand.vmem [shape: bf16[3,640,128], index: 1, kind: input, shape index: {}]
  %s2 = inlined_call_operand.vmem [shape: f32[1,128], index: 2, kind: input, shape index: {}]
  %s3 = inlined_call_operand.vmem [shape: bf16[2,8,128], index: 3, kind: output, shape index: {0}]
  %s4 = inlined_call_operand.vmem [shape: f32[2,2,128], index: 4, kind: output, shape index: {1}]
  %5 = xla_tuple %s3, %s4
  %s6 = sld [smem:[#allocation0]]
  $region53: #{forward.17} parent=0
    _
  %s8 = ssub.s32 1, %s6
  %s9 = scalar_select 0, %s8, %s6
  loop: start=0, step=1, limit=4
  $region2: #{forward.17} parent=0 // loop_pre_header
    _
  $region3: #{forward.17} parent=0 // loop_header
    %s11 = sphi 0, %s15
    %p12 = scmp.ge.s32.totalorder %s11, 4
    %s21 = sphi 0, %s23
    %s24 = sphi 0, %s21
    %s25 = sphi 0, %s24
    %s41 = sphi 0, %s25
    %s45 = sphi 0, %s45
    %s47 = sphi 0, %s45
    %s48 = sphi 0, %s47
    %s62 = sphi 0, %s48
    %s66 = sphi 0, %s66
    %s68 = sphi 0, %s66
    %s69 = sphi 0, %s68
    %s83 = sphi 0, %s69
    %s89 = sphi 0, %s91
    %s92 = sphi 0, %s89
    %s93 = sphi 0, %s92
    %s109 = sphi 0, %s93
    %s115 = sphi 0, %s117
    %s118 = sphi 0, %s115
    %s119 = sphi 0, %s118
    %s135 = sphi 0, %s119
  $region4: #{forward.17} parent=0 // loop_header_branch
    %14 = sbr.rel (%p12) target = $region8
  $region5: #{forward.17} parent=0 // loop_body
    %s16 = ssub.s32 %s11, 1
    %s17 = ssub.s32 %s11, 2
    %s18 = sadd.s32 %s11, 1
    %s19 = ssub.s32 %s11, %s18
    %p20 = scmp.eq.s32.totalorder %s19, 0
    %s22 = sadd.s32 %s21, 1
    %s23 = scalar_select %p20, %s21, %s22
    %p26 = pneg %p20
    %p27 = scmp.eq.s32.totalorder %s11, 1
    %p28 = por %p26, %p27
    %p29 = scmp.ne.s32.totalorder %s21, %s24
    %p30 = scmp.eq.s32.totalorder %s11, 0
    %p31 = por %p29, %p30
    %p32 = scmp.ne.s32.totalorder %s21, %s24
    %p33 = scmp.eq.s32.totalorder %s16, 1
    %p34 = por %p32, %p33
    %p35 = scmp.ne.s32.totalorder %s24, %s25
    %p36 = scmp.eq.s32.totalorder %s16, 0
    %p37 = por %p35, %p36
    %p38 = scmp.ne.s32.totalorder %s24, %s25
    %p39 = scmp.eq.s32.totalorder %s17, 1
    %p40 = por %p38, %p39
    %p42 = scmp.ne.s32.totalorder %s25, %s41
    %p43 = scmp.eq.s32.totalorder %s17, 0
    %p44 = por %p42, %p43
    %s46 = sadd.s32 %s45, 1
    %p49 = scmp.eq.s32.totalorder %s11, 1
    %p50 = scmp.ne.s32.totalorder %s45, %s47
    %p51 = scmp.eq.s32.totalorder %s11, 0
    %p52 = por %p50, %p51
    %p53 = scmp.ne.s32.totalorder %s45, %s47
    %p54 = scmp.eq.s32.totalorder %s16, 1
    %p55 = por %p53, %p54
    %p56 = scmp.ne.s32.totalorder %s47, %s48
    %p57 = scmp.eq.s32.totalorder %s16, 0
    %p58 = por %p56, %p57
    %p59 = scmp.ne.s32.totalorder %s47, %s48
    %p60 = scmp.eq.s32.totalorder %s17, 1
    %p61 = por %p59, %p60
    %p63 = scmp.ne.s32.totalorder %s48, %s62
    %p64 = scmp.eq.s32.totalorder %s17, 0
    %p65 = por %p63, %p64
    %s67 = sadd.s32 %s66, 1
    %p70 = scmp.eq.s32.totalorder %s11, 1
    %p71 = scmp.ne.s32.totalorder %s66, %s68
    %p72 = scmp.eq.s32.totalorder %s11, 0
    %p73 = por %p71, %p72
    %p74 = scmp.ne.s32.totalorder %s66, %s68
    %p75 = scmp.eq.s32.totalorder %s16, 1
    %p76 = por %p74, %p75
    %p77 = scmp.ne.s32.totalorder %s68, %s69
    %p78 = scmp.eq.s32.totalorder %s16, 0
    %p79 = por %p77, %p78
    %p80 = scmp.ne.s32.totalorder %s68, %s69
    %p81 = scmp.eq.s32.totalorder %s17, 1
    %p82 = por %p80, %p81
    %p84 = scmp.ne.s32.totalorder %s69, %s83
    %p85 = scmp.eq.s32.totalorder %s17, 0
    %p86 = por %p84, %p85
    %s87 = ssub.s32 %s11, %s18
    %p88 = scmp.eq.s32.totalorder %s87, 0
    %s90 = sadd.s32 %s89, 1
    %s91 = scalar_select %p88, %s89, %s90
    %p94 = pneg %p88
    %p95 = scmp.eq.s32.totalorder %s11, 1
    %p96 = por %p94, %p95
    %p97 = scmp.ne.s32.totalorder %s89, %s92
    %p98 = scmp.eq.s32.totalorder %s11, 0
    %p99 = por %p97, %p98
    %p100 = scmp.ne.s32.totalorder %s89, %s92
    %p101 = scmp.eq.s32.totalorder %s16, 1
    %p102 = por %p100, %p101
    %p103 = scmp.ne.s32.totalorder %s92, %s93
    %p104 = scmp.eq.s32.totalorder %s16, 0
    %p105 = por %p103, %p104
    %p106 = scmp.ne.s32.totalorder %s92, %s93
    %p107 = scmp.eq.s32.totalorder %s17, 1
    %p108 = por %p106, %p107
    %p110 = scmp.ne.s32.totalorder %s93, %s109
    %p111 = scmp.eq.s32.totalorder %s17, 0
    %p112 = por %p110, %p111
    %s113 = ssub.s32 %s11, %s18
    %p114 = scmp.eq.s32.totalorder %s113, 0
    %s116 = sadd.s32 %s115, 1
    %s117 = scalar_select %p114, %s115, %s116
    %p120 = pneg %p114
    %p121 = scmp.eq.s32.totalorder %s11, 1
    %p122 = por %p120, %p121
    %p123 = scmp.ne.s32.totalorder %s115, %s118
    %p124 = scmp.eq.s32.totalorder %s11, 0
    %p125 = por %p123, %p124
    %p126 = scmp.ne.s32.totalorder %s115, %s118
    %p127 = scmp.eq.s32.totalorder %s16, 1
    %p128 = por %p126, %p127
    %p129 = scmp.ne.s32.totalorder %s118, %s119
    %p130 = scmp.eq.s32.totalorder %s16, 0
    %p131 = por %p129, %p130
    %p132 = scmp.ne.s32.totalorder %s118, %s119
    %p133 = scmp.eq.s32.totalorder %s17, 1
    %p134 = por %p132, %p133
    %p136 = scmp.ne.s32.totalorder %s119, %s135
    %p137 = scmp.eq.s32.totalorder %s17, 0
    %p138 = por %p136, %p137
    %p139 = scmp.le.s32.totalorder 1, %s11
    %p140 = scmp.lt.s32.totalorder %s11, 3
    %p141 = pnand %p139, %p140
    %p142 = pneg %p141
    // Predicated region
    $region9: #{forward.17} parent=5 // pred_check
      _
    $region10: #{forward.17} parent=5 // pred_check_branch
      %144 = sbr.rel (%p141) target = $region12
    $region11: #{forward.17} parent=5 // pred_region
      %s145 = ssub.s32 %s11, 1
      // Predicated region
      $region13: #{forward.17} parent=11 // pred_check
        %p146 = pneg %p58
      $region14: #{forward.17} parent=11 // pred_check_branch
        %148 = sbr.rel (%p146) target = $region16
      $region15: #{forward.17} parent=11 // pred_region
        _
      $region16: #{forward.17} parent=11 // pred_fallthru
        _
      // Predicated region
      $region17: #{forward.17} parent=11 // pred_check
        %p149 = pneg %p79
      $region18: #{forward.17} parent=11 // pred_check_branch
        %151 = sbr.rel (%p149) target = $region20
      $region19: #{forward.17} parent=11 // pred_region
        _
      $region20: #{forward.17} parent=11 // pred_fallthru
        _
    $region12: #{forward.17} parent=5 // pred_fallthru
      _
    %p152 = scmp.lt.s32.totalorder %s11, 2
    // Predicated region
    $region21: #{forward.17} parent=5 // pred_check
      %p153 = pneg %p152
    $region22: #{forward.17} parent=5 // pred_check_branch
      %155 = sbr.rel (%p153) target = $region24
    $region23: #{forward.17} parent=5 // pred_region
      // Predicated region
      $region25: #{forward.17} parent=23 // pred_check
        %p156 = pneg %p31
      $region26: #{forward.17} parent=23 // pred_check_branch
        %158 = sbr.rel (%p156) target = $region28
      $region27: #{forward.17} parent=23 // pred_region
        %p159 = scmp.lt.s32.totalorder %s11, 1
        %s160 = scalar_select %p159, %s11, 1
        %s161 = smul.addr %s160, 10
        %s162 = smul.addr %s161, 4
        %s163 = scalar_lea.vmem %s0, %s162
      $region28: #{forward.17} parent=23 // pred_fallthru
        _
    $region24: #{forward.17} parent=5 // pred_fallthru
      _
    %p164 = scmp.le.s32.totalorder 1, %s11
    %p165 = scmp.lt.s32.totalorder %s11, 3
    %p166 = pnand %p164, %p165
    %p167 = pneg %p166
    // Predicated region
    $region29: #{forward.17} parent=5 // pred_check
      _
    $region30: #{forward.17} parent=5 // pred_check_branch
      %169 = sbr.rel (%p166) target = $region32
    $region31: #{forward.17} parent=5 // pred_region
      %s170 = ssub.s32 %s11, 1
      %p171 = scmp.lt.s32.totalorder %s16, 1
      %s172 = scalar_select %p171, %s16, 1
      %s173 = smul.addr %s172, 10
      %s174 = smul.addr %s173, 4
      %s175 = scalar_lea.vmem %s0, %s174
      %p176 = pneg %p37
      %p177 = pneg %p34
      %p178 = pneg %p58
      %p179 = pneg %p55
      %p180 = pneg %p79
      %p181 = pneg %p76
      %p182 = pneg %p105
      %p183 = pneg %p102
      %p184 = scmp.lt.s32.totalorder %s16, 1
      %s185 = scalar_select %p184, %s16, 1
      %s186 = smul.addr %s185, 4
      %s187 = scalar_lea.vmem %s3, %s186
      %p188 = pneg %p131
      %p189 = pneg %p128
      %p190 = scmp.lt.s32.totalorder %s16, 1
      %s191 = scalar_select %p190, %s16, 1
      %s192 = smul.addr %s191, 2
      %s193 = scalar_lea.vmem %s4, %s192
      %p194 = scmp.lt.s32.totalorder %s16, 1
      %s195 = scalar_select %p194, %s16, 1
      %s196 = smul.addr %s195, 10
      %s197 = smul.addr %s196, 4
      %s198 = scalar_lea.vmem %s0, %s197
      %p199 = scmp.lt.s32.totalorder %s16, 1
      %s200 = scalar_select %p199, %s16, 1
      %s201 = smul.addr %s200, 4
      %s202 = scalar_lea.vmem %s3, %s201
      %p203 = scmp.lt.s32.totalorder %s16, 1
      %s204 = scalar_select %p203, %s16, 1
      %s205 = smul.addr %s204, 2
      %s206 = scalar_lea.vmem %s4, %s205
      %v208 = vld [vmem:[%s198] sm:$0xff]
      %v209 = vld [vmem:[%s198 + $0x8] sm:$0xff]
      %v210 = vld [vmem:[%s198 + $0x10] sm:$0xf]
      %v211 = vld [vmem:[%s1] sm:$0xf]
      %v212 = vld [vmem:[%s1 + $0x4] sm:$0xf]
      %v213 = vld [vmem:[%s1 + $0x8] sm:$0xf]
      %v214 = vld [vmem:[%s1 + $0xc] sm:$0xf]
      %v215 = vld [vmem:[%s1 + $0x10] sm:$0xf]
      %v216 = vld [vmem:[%s1 + $0x14] sm:$0xf]
      %v217 = vld [vmem:[%s1 + $0x18] sm:$0xf]
      %v218 = vld [vmem:[%s1 + $0x1c] sm:$0xf]
      %v219 = vld [vmem:[%s1 + $0x20] sm:$0xf]
      %v220 = vld [vmem:[%s1 + $0x24] sm:$0xf]
      %v221 = vld [vmem:[%s1 + $0x28] sm:$0xf]
      %v222 = vld [vmem:[%s1 + $0x2c] sm:$0xf]
      %v223 = vld [vmem:[%s1 + $0x30] sm:$0xf]
      %v224 = vld [vmem:[%s1 + $0x34] sm:$0xf]
      %v225 = vld [vmem:[%s1 + $0x38] sm:$0xf]
      %v226 = vld [vmem:[%s1 + $0x3c] sm:$0xf]
      %v227 = vld [vmem:[%s1 + $0x40] sm:$0xf]
      %v228 = vld [vmem:[%s1 + $0x44] sm:$0xf]
      %v229 = vld [vmem:[%s1 + $0x48] sm:$0xf]
      %v230 = vld [vmem:[%s1 + $0x4c] sm:$0xf]
      %v231 = vld [vmem:[%s1 + $0x50] sm:$0xf]
      %v232 = vld [vmem:[%s1 + $0x54] sm:$0xf]
      %v233 = vld [vmem:[%s1 + $0x58] sm:$0xf]
      %v234 = vld [vmem:[%s1 + $0x5c] sm:$0xf]
      %v235 = vld [vmem:[%s1 + $0x60] sm:$0xf]
      %v236 = vld [vmem:[%s1 + $0x64] sm:$0xf]
      %v237 = vld [vmem:[%s1 + $0x68] sm:$0xf]
      %v238 = vld [vmem:[%s1 + $0x6c] sm:$0xf]
      %v239 = vld [vmem:[%s1 + $0x70] sm:$0xf]
      %v240 = vld [vmem:[%s1 + $0x74] sm:$0xf]
      %v241 = vld [vmem:[%s1 + $0x78] sm:$0xf]
      %v242 = vld [vmem:[%s1 + $0x7c] sm:$0xf]
      %v243 = vld [vmem:[%s1 + $0x80] sm:$0xf]
      %v244 = vld [vmem:[%s1 + $0x84] sm:$0xf]
      %v245 = vld [vmem:[%s1 + $0x88] sm:$0xf]
      %v246 = vld [vmem:[%s1 + $0x8c] sm:$0xf]
      %v247 = vld [vmem:[%s1 + $0x90] sm:$0xf]
      %v248 = vld [vmem:[%s1 + $0x94] sm:$0xf]
      %v249 = vld [vmem:[%s1 + $0x98] sm:$0xf]
      %v250 = vld [vmem:[%s1 + $0x9c] sm:$0xf]
      %v251 = vld [vmem:[%s1 + $0xa0] sm:$0xf]
      %v252 = vld [vmem:[%s1 + $0xa4] sm:$0xf]
      %v253 = vld [vmem:[%s1 + $0xa8] sm:$0xf]
      %v254 = vld [vmem:[%s1 + $0xac] sm:$0xf]
      %v255 = vld [vmem:[%s1 + $0xb0] sm:$0xf]
      %v256 = vld [vmem:[%s1 + $0xb4] sm:$0xf]
      %v257 = vld [vmem:[%s1 + $0xb8] sm:$0xf]
      %v258 = vld [vmem:[%s1 + $0xbc] sm:$0xf]
      %v259 = vld [vmem:[%s1 + $0xc0] sm:$0xf]
      %v260 = vld [vmem:[%s1 + $0xc4] sm:$0xf]
      %v261 = vld [vmem:[%s1 + $0xc8] sm:$0xf]
      %v262 = vld [vmem:[%s1 + $0xcc] sm:$0xf]
      %v263 = vld [vmem:[%s1 + $0xd0] sm:$0xf]
      %v264 = vld [vmem:[%s1 + $0xd4] sm:$0xf]
      %v265 = vld [vmem:[%s1 + $0xd8] sm:$0xf]
      %v266 = vld [vmem:[%s1 + $0xdc] sm:$0xf]
      %v267 = vld [vmem:[%s1 + $0xe0] sm:$0xf]
      %v268 = vld [vmem:[%s1 + $0xe4] sm:$0xf]
      %v269 = vld [vmem:[%s1 + $0xe8] sm:$0xf]
      %v270 = vld [vmem:[%s1 + $0xec] sm:$0xf]
      %v271 = vld [vmem:[%s1 + $0xf0] sm:$0xf]
      %v272 = vld [vmem:[%s1 + $0xf4] sm:$0xf]
      %v273 = vld [vmem:[%s1 + $0xf8] sm:$0xf]
      %v274 = vld [vmem:[%s1 + $0xfc] sm:$0xf]
      %v275 = vld [vmem:[%s1 + $0x100] sm:$0xf]
      %v276 = vld [vmem:[%s1 + $0x104] sm:$0xf]
      %v277 = vld [vmem:[%s1 + $0x108] sm:$0xf]
      %v278 = vld [vmem:[%s1 + $0x10c] sm:$0xf]
      %v279 = vld [vmem:[%s1 + $0x110] sm:$0xf]
      %v280 = vld [vmem:[%s1 + $0x114] sm:$0xf]
      %v281 = vld [vmem:[%s1 + $0x118] sm:$0xf]
      %v282 = vld [vmem:[%s1 + $0x11c] sm:$0xf]
      %v283 = vld [vmem:[%s1 + $0x120] sm:$0xf]
      %v284 = vld [vmem:[%s1 + $0x124] sm:$0xf]
      %v285 = vld [vmem:[%s1 + $0x128] sm:$0xf]
      %v286 = vld [vmem:[%s1 + $0x12c] sm:$0xf]
      %v287 = vld [vmem:[%s1 + $0x130] sm:$0xf]
      %v288 = vld [vmem:[%s1 + $0x134] sm:$0xf]
      %v289 = vld [vmem:[%s1 + $0x138] sm:$0xf]
      %v290 = vld [vmem:[%s1 + $0x13c] sm:$0xf]
      %v291 = vld [vmem:[%s198 + $0x14] sm:$0x11]
      %v292 = vld [vmem:[%s198 + $0x1c] sm:$0x11]
      %v293 = vld [vmem:[%s198 + $0x24] sm:$0x1]
      %s294 = scalar_lea.vmem %s1, 320
      %v295 = vld [vmem:[%s294] sm:$0xf]
      %v296 = vld [vmem:[%s294 + $0x4] sm:$0xf]
      %v297 = vld [vmem:[%s294 + $0x8] sm:$0xf]
      %v298 = vld [vmem:[%s294 + $0xc] sm:$0xf]
      %v299 = vld [vmem:[%s294 + $0x10] sm:$0xf]
      %v300 = vld [vmem:[%s294 + $0x14] sm:$0xf]
      %v301 = vld [vmem:[%s294 + $0x18] sm:$0xf]
      %v302 = vld [vmem:[%s294 + $0x1c] sm:$0xf]
      %v303 = vld [vmem:[%s294 + $0x20] sm:$0xf]
      %v304 = vld [vmem:[%s294 + $0x24] sm:$0xf]
      %v305 = vld [vmem:[%s294 + $0x28] sm:$0xf]
      %v306 = vld [vmem:[%s294 + $0x2c] sm:$0xf]
      %v307 = vld [vmem:[%s294 + $0x30] sm:$0xf]
      %v308 = vld [vmem:[%s294 + $0x34] sm:$0xf]
      %v309 = vld [vmem:[%s294 + $0x38] sm:$0xf]
      %v310 = vld [vmem:[%s294 + $0x3c] sm:$0xf]
      %v311 = vld [vmem:[%s294 + $0x40] sm:$0xf]
      %v312 = vld [vmem:[%s294 + $0x44] sm:$0xf]
      %v313 = vld [vmem:[%s294 + $0x48] sm:$0xf]
      %v314 = vld [vmem:[%s294 + $0x4c] sm:$0xf]
      %v315 = vld [vmem:[%s294 + $0x50] sm:$0xf]
      %v316 = vld [vmem:[%s294 + $0x54] sm:$0xf]
      %v317 = vld [vmem:[%s294 + $0x58] sm:$0xf]
      %v318 = vld [vmem:[%s294 + $0x5c] sm:$0xf]
      %v319 = vld [vmem:[%s294 + $0x60] sm:$0xf]
      %v320 = vld [vmem:[%s294 + $0x64] sm:$0xf]
      %v321 = vld [vmem:[%s294 + $0x68] sm:$0xf]
      %v322 = vld [vmem:[%s294 + $0x6c] sm:$0xf]
      %v323 = vld [vmem:[%s294 + $0x70] sm:$0xf]
      %v324 = vld [vmem:[%s294 + $0x74] sm:$0xf]
      %v325 = vld [vmem:[%s294 + $0x78] sm:$0xf]
      %v326 = vld [vmem:[%s294 + $0x7c] sm:$0xf]
      %v327 = vld [vmem:[%s294 + $0x80] sm:$0xf]
      %v328 = vld [vmem:[%s294 + $0x84] sm:$0xf]
      %v329 = vld [vmem:[%s294 + $0x88] sm:$0xf]
      %v330 = vld [vmem:[%s294 + $0x8c] sm:$0xf]
      %v331 = vld [vmem:[%s294 + $0x90] sm:$0xf]
      %v332 = vld [vmem:[%s294 + $0x94] sm:$0xf]
      %v333 = vld [vmem:[%s294 + $0x98] sm:$0xf]
      %v334 = vld [vmem:[%s294 + $0x9c] sm:$0xf]
      %v335 = vld [vmem:[%s294 + $0xa0] sm:$0xf]
      %v336 = vld [vmem:[%s294 + $0xa4] sm:$0xf]
      %v337 = vld [vmem:[%s294 + $0xa8] sm:$0xf]
      %v338 = vld [vmem:[%s294 + $0xac] sm:$0xf]
      %v339 = vld [vmem:[%s294 + $0xb0] sm:$0xf]
      %v340 = vld [vmem:[%s294 + $0xb4] sm:$0xf]
      %v341 = vld [vmem:[%s294 + $0xb8] sm:$0xf]
      %v342 = vld [vmem:[%s294 + $0xbc] sm:$0xf]
      %v343 = vld [vmem:[%s294 + $0xc0] sm:$0xf]
      %v344 = vld [vmem:[%s294 + $0xc4] sm:$0xf]
      %v345 = vld [vmem:[%s294 + $0xc8] sm:$0xf]
      %v346 = vld [vmem:[%s294 + $0xcc] sm:$0xf]
      %v347 = vld [vmem:[%s294 + $0xd0] sm:$0xf]
      %v348 = vld [vmem:[%s294 + $0xd4] sm:$0xf]
      %v349 = vld [vmem:[%s294 + $0xd8] sm:$0xf]
      %v350 = vld [vmem:[%s294 + $0xdc] sm:$0xf]
      %v351 = vld [vmem:[%s294 + $0xe0] sm:$0xf]
      %v352 = vld [vmem:[%s294 + $0xe4] sm:$0xf]
      %v353 = vld [vmem:[%s294 + $0xe8] sm:$0xf]
      %v354 = vld [vmem:[%s294 + $0xec] sm:$0xf]
      %v355 = vld [vmem:[%s294 + $0xf0] sm:$0xf]
      %v356 = vld [vmem:[%s294 + $0xf4] sm:$0xf]
      %v357 = vld [vmem:[%s294 + $0xf8] sm:$0xf]
      %v358 = vld [vmem:[%s294 + $0xfc] sm:$0xf]
      %v359 = vld [vmem:[%s294 + $0x100] sm:$0xf]
      %v360 = vld [vmem:[%s294 + $0x104] sm:$0xf]
      %v361 = vld [vmem:[%s294 + $0x108] sm:$0xf]
      %v362 = vld [vmem:[%s294 + $0x10c] sm:$0xf]
      %v363 = vld [vmem:[%s294 + $0x110] sm:$0xf]
      %v364 = vld [vmem:[%s294 + $0x114] sm:$0xf]
      %v365 = vld [vmem:[%s294 + $0x118] sm:$0xf]
      %v366 = vld [vmem:[%s294 + $0x11c] sm:$0xf]
      %v367 = vld [vmem:[%s294 + $0x120] sm:$0xf]
      %v368 = vld [vmem:[%s294 + $0x124] sm:$0xf]
      %v369 = vld [vmem:[%s294 + $0x128] sm:$0xf]
      %v370 = vld [vmem:[%s294 + $0x12c] sm:$0xf]
      %v371 = vld [vmem:[%s294 + $0x130] sm:$0xf]
      %v372 = vld [vmem:[%s294 + $0x134] sm:$0xf]
      %v373 = vld [vmem:[%s294 + $0x138] sm:$0xf]
      %v374 = vld [vmem:[%s294 + $0x13c] sm:$0xf]
      %v381 = vunpack.c.l.b16 %v208
      %v382 = vunpack.c.h.b16 %v208
      %v383 = vunpack.c.l.b16 %v209
      %v384 = vunpack.c.h.b16 %v209
      %v385 = vunpack.c.l.b16 %v210
      %v386 = vunpack.c.l.b16 %v291
      %v387 = vunpack.c.h.b16 %v291
      %v388 = vunpack.c.l.b16 %v292
      %v389 = vunpack.c.h.b16 %v292
      %v390 = vunpack.c.l.b16 %v293
      %v391 = vpack.c.b16 %v386, %v381
      %v392 = vpack.c.b16 %v387, %v382
      %v393 = vpack.c.b16 %v388, %v383
      %v394 = vpack.c.b16 %v389, %v384
      %v395 = vpack.c.b16 %v390, %v385
      %v397 = vshrl.u32 %v391, 16
      %v399 = vshll.u32 %v391, 16
      %v401 = vrot.slane %v399, 1
      %v402 = vor.u32 %v397, %v401
      %v404 = vshrl.u32 %v392, 16
      %v406 = vshll.u32 %v392, 16
      %v408 = vrot.slane %v406, 1
      %v409 = vor.u32 %v404, %v408
      %v411 = vshrl.u32 %v393, 16
      %v413 = vshll.u32 %v393, 16
      %v415 = vrot.slane %v413, 1
      %v416 = vor.u32 %v411, %v415
      %v418 = vshrl.u32 %v394, 16
      %v420 = vshll.u32 %v394, 16
      %v422 = vrot.slane %v420, 1
      %v423 = vor.u32 %v418, %v422
      %v425 = vshrl.u32 %v395, 16
      %v427 = vshll.u32 %v395, 16
      %v429 = vrot.slane %v427, 1
      %v430 = vor.u32 %v425, %v429
      %v516 = vunpack.c.l.b16 %v295
      %v517 = vunpack.c.l.b16 %v296
      %v518 = vunpack.c.l.b16 %v297
      %v519 = vunpack.c.l.b16 %v298
      %v520 = vunpack.c.l.b16 %v299
      %v521 = vunpack.c.l.b16 %v300
      %v522 = vunpack.c.l.b16 %v301
      %v523 = vunpack.c.l.b16 %v302
      %v524 = vunpack.c.l.b16 %v303
      %v525 = vunpack.c.l.b16 %v304
      %v526 = vunpack.c.l.b16 %v305
      %v527 = vunpack.c.l.b16 %v306
      %v528 = vunpack.c.l.b16 %v307
      %v529 = vunpack.c.l.b16 %v308
      %v530 = vunpack.c.l.b16 %v309
      %v531 = vunpack.c.l.b16 %v310
      %v532 = vunpack.c.l.b16 %v311
      %v533 = vunpack.c.l.b16 %v312
      %v534 = vunpack.c.l.b16 %v313
      %v535 = vunpack.c.l.b16 %v314
      %v536 = vunpack.c.l.b16 %v315
      %v537 = vunpack.c.l.b16 %v316
      %v538 = vunpack.c.l.b16 %v317
      %v539 = vunpack.c.l.b16 %v318
      %v540 = vunpack.c.l.b16 %v319
      %v541 = vunpack.c.l.b16 %v320
      %v542 = vunpack.c.l.b16 %v321
      %v543 = vunpack.c.l.b16 %v322
      %v544 = vunpack.c.l.b16 %v323
      %v545 = vunpack.c.l.b16 %v324
      %v546 = vunpack.c.l.b16 %v325
      %v547 = vunpack.c.l.b16 %v326
      %v548 = vunpack.c.l.b16 %v327
      %v549 = vunpack.c.l.b16 %v328
      %v550 = vunpack.c.l.b16 %v329
      %v551 = vunpack.c.l.b16 %v330
      %v552 = vunpack.c.l.b16 %v331
      %v553 = vunpack.c.l.b16 %v332
      %v554 = vunpack.c.l.b16 %v333
      %v555 = vunpack.c.l.b16 %v334
      %v556 = vunpack.c.l.b16 %v335
      %v557 = vunpack.c.l.b16 %v336
      %v558 = vunpack.c.l.b16 %v337
      %v559 = vunpack.c.l.b16 %v338
      %v560 = vunpack.c.l.b16 %v339
      %v561 = vunpack.c.l.b16 %v340
      %v562 = vunpack.c.l.b16 %v341
      %v563 = vunpack.c.l.b16 %v342
      %v564 = vunpack.c.l.b16 %v343
      %v565 = vunpack.c.l.b16 %v344
      %v566 = vunpack.c.l.b16 %v345
      %v567 = vunpack.c.l.b16 %v346
      %v568 = vunpack.c.l.b16 %v347
      %v569 = vunpack.c.l.b16 %v348
      %v570 = vunpack.c.l.b16 %v349
      %v571 = vunpack.c.l.b16 %v350
      %v572 = vunpack.c.l.b16 %v351
      %v573 = vunpack.c.l.b16 %v352
      %v574 = vunpack.c.l.b16 %v353
      %v575 = vunpack.c.l.b16 %v354
      %v576 = vunpack.c.l.b16 %v355
      %v577 = vunpack.c.l.b16 %v356
      %v578 = vunpack.c.l.b16 %v357
      %v579 = vunpack.c.l.b16 %v358
      %v580 = vunpack.c.l.b16 %v359
      %v581 = vunpack.c.l.b16 %v360
      %v582 = vunpack.c.l.b16 %v361
      %v583 = vunpack.c.l.b16 %v362
      %v584 = vunpack.c.l.b16 %v363
      %v585 = vunpack.c.l.b16 %v364
      %v586 = vunpack.c.l.b16 %v365
      %v587 = vunpack.c.l.b16 %v366
      %v588 = vunpack.c.l.b16 %v367
      %v589 = vunpack.c.l.b16 %v368
      %v590 = vunpack.c.l.b16 %v369
      %v591 = vunpack.c.l.b16 %v370
      %v592 = vunpack.c.l.b16 %v371
      %v593 = vunpack.c.l.b16 %v372
      %v594 = vunpack.c.l.b16 %v373
      %v595 = vunpack.c.l.b16 %v374
      %v596 = vpack.c.b16 %v517, %v516
      %v597 = vpack.c.b16 %v519, %v518
      %v598 = vpack.c.b16 %v521, %v520
      %v599 = vpack.c.b16 %v523, %v522
      %v600 = vpack.c.b16 %v525, %v524
      %v601 = vpack.c.b16 %v527, %v526
      %v602 = vpack.c.b16 %v529, %v528
      %v603 = vpack.c.b16 %v531, %v530
      %v604 = vpack.c.b16 %v533, %v532
      %v605 = vpack.c.b16 %v535, %v534
      %v606 = vpack.c.b16 %v537, %v536
      %v607 = vpack.c.b16 %v539, %v538
      %v608 = vpack.c.b16 %v541, %v540
      %v609 = vpack.c.b16 %v543, %v542
      %v610 = vpack.c.b16 %v545, %v544
      %v611 = vpack.c.b16 %v547, %v546
      %v612 = vpack.c.b16 %v549, %v548
      %v613 = vpack.c.b16 %v551, %v550
      %v614 = vpack.c.b16 %v553, %v552
      %v615 = vpack.c.b16 %v555, %v554
      %v616 = vpack.c.b16 %v557, %v556
      %v617 = vpack.c.b16 %v559, %v558
      %v618 = vpack.c.b16 %v561, %v560
      %v619 = vpack.c.b16 %v563, %v562
      %v620 = vpack.c.b16 %v565, %v564
      %v621 = vpack.c.b16 %v567, %v566
      %v622 = vpack.c.b16 %v569, %v568
      %v623 = vpack.c.b16 %v571, %v570
      %v624 = vpack.c.b16 %v573, %v572
      %v625 = vpack.c.b16 %v575, %v574
      %v626 = vpack.c.b16 %v577, %v576
      %v627 = vpack.c.b16 %v579, %v578
      %v628 = vpack.c.b16 %v581, %v580
      %v629 = vpack.c.b16 %v583, %v582
      %v630 = vpack.c.b16 %v585, %v584
      %v631 = vpack.c.b16 %v587, %v586
      %v632 = vpack.c.b16 %v589, %v588
      %v633 = vpack.c.b16 %v591, %v590
      %v634 = vpack.c.b16 %v593, %v592
      %v635 = vpack.c.b16 %v595, %v594
      %676 = vmatprep.subr.bf16.mxu0 0
      %677 = vmatpush1.bf16.msra.mxu0 %v596
      %678 = vmatprep.subr.bf16.mxu0 0
      %679 = vmatpush1.bf16.msra.mxu0 %v597
      %680 = vmatprep.subr.bf16.mxu0 0
      %681 = vmatpush1.bf16.msra.mxu0 %v598
      %682 = vmatprep.subr.bf16.mxu0 0
      %683 = vmatpush1.bf16.msra.mxu0 %v599
      %684 = vmatprep.subr.bf16.mxu0 0
      %685 = vmatpush1.bf16.msra.mxu0 %v600
      %686 = vmatprep.subr.bf16.mxu0 0
      %687 = vmatpush1.bf16.msra.mxu0 %v601
      %688 = vmatprep.subr.bf16.mxu0 0
      %689 = vmatpush1.bf16.msra.mxu0 %v602
      %690 = vmatprep.subr.bf16.mxu0 0
      %691 = vmatpush1.bf16.msra.mxu0 %v603
      %692 = vmatprep.subr.bf16.mxu0 0
      %693 = vmatpush1.bf16.msra.mxu0 %v604
      %694 = vmatprep.subr.bf16.mxu0 0
      %695 = vmatpush1.bf16.msra.mxu0 %v605
      %696 = vmatprep.subr.bf16.mxu0 0
      %697 = vmatpush1.bf16.msra.mxu0 %v606
      %698 = vmatprep.subr.bf16.mxu0 0
      %699 = vmatpush1.bf16.msra.mxu0 %v607
      %700 = vmatprep.subr.bf16.mxu0 0
      %701 = vmatpush1.bf16.msra.mxu0 %v608
      %702 = vmatprep.subr.bf16.mxu0 0
      %703 = vmatpush1.bf16.msra.mxu0 %v609
      %704 = vmatprep.subr.bf16.mxu0 0
      %705 = vmatpush1.bf16.msra.mxu0 %v610
      %706 = vmatprep.subr.bf16.mxu0 0
      %707 = vmatpush1.bf16.msra.mxu0 %v611
      %708 = vmatprep.mubr.bf16.mxu0 %v409
      %709 = vmatmul.mubr.bf16.gmra.mrb[0].mxu0 %v402
      %v710 = vpop.f32.mrb[0].mxu0
      %v711 = vadd.f32 0.0, %v710
      %v712 = vpop.f32.mrb[0].mxu0
      %v713 = vpop.f32.mrb[0].mxu0
      %v714 = vpop.f32.mrb[0].mxu0
      %715 = vdwg.mxu0
      %716 = vmatprep.subr.bf16.mxu0 0
      %717 = vmatpush1.bf16.msra.mxu0 %v612
      %718 = vmatprep.subr.bf16.mxu0 0
      %719 = vmatpush1.bf16.msra.mxu0 %v613
      %720 = vmatprep.subr.bf16.mxu0 0
      %721 = vmatpush1.bf16.msra.mxu0 %v614
      %722 = vmatprep.subr.bf16.mxu0 0
      %723 = vmatpush1.bf16.msra.mxu0 %v615
      %724 = vmatprep.subr.bf16.mxu0 0
      %725 = vmatpush1.bf16.msra.mxu0 %v616
      %726 = vmatprep.subr.bf16.mxu0 0
      %727 = vmatpush1.bf16.msra.mxu0 %v617
      %728 = vmatprep.subr.bf16.mxu0 0
      %729 = vmatpush1.bf16.msra.mxu0 %v618
      %730 = vmatprep.subr.bf16.mxu0 0
      %731 = vmatpush1.bf16.msra.mxu0 %v619
      %732 = vmatprep.subr.bf16.mxu0 0
      %733 = vmatpush1.bf16.msra.mxu0 %v620
      %734 = vmatprep.subr.bf16.mxu0 0
      %735 = vmatpush1.bf16.msra.mxu0 %v621
      %736 = vmatprep.subr.bf16.mxu0 0
      %737 = vmatpush1.bf16.msra.mxu0 %v622
      %738 = vmatprep.subr.bf16.mxu0 0
      %739 = vmatpush1.bf16.msra.mxu0 %v623
      %740 = vmatprep.subr.bf16.mxu0 0
      %741 = vmatpush1.bf16.msra.mxu0 %v624
      %742 = vmatprep.subr.bf16.mxu0 0
      %743 = vmatpush1.bf16.msra.mxu0 %v625
      %744 = vmatprep.subr.bf16.mxu0 0
      %745 = vmatpush1.bf16.msra.mxu0 %v626
      %746 = vmatprep.subr.bf16.mxu0 0
      %747 = vmatpush1.bf16.msra.mxu0 %v627
      %748 = vmatprep.mubr.bf16.mxu0 %v423
      %749 = vmatmul.mubr.bf16.gmra.mrb[0].mxu0 %v416
      %v750 = vpop.f32.mrb[0].mxu0
      %v751 = vadd.f32 %v711, %v750
      %v752 = vpop.f32.mrb[0].mxu0
      %v753 = vpop.f32.mrb[0].mxu0
      %v754 = vpop.f32.mrb[0].mxu0
      %755 = vdwg.mxu0
      %756 = vmatprep.subr.bf16.mxu0 0
      %757 = vmatpush1.bf16.msra.mxu0 %v628
      %758 = vmatprep.subr.bf16.mxu0 0
      %759 = vmatpush1.bf16.msra.mxu0 %v629
      %760 = vmatprep.subr.bf16.mxu0 0
      %761 = vmatpush1.bf16.msra.mxu0 %v630
      %762 = vmatprep.subr.bf16.mxu0 0
      %763 = vmatpush1.bf16.msra.mxu0 %v631
      %764 = vmatprep.subr.bf16.mxu0 0
      %765 = vmatpush1.bf16.msra.mxu0 %v632
      %766 = vmatprep.subr.bf16.mxu0 0
      %767 = vmatpush1.bf16.msra.mxu0 %v633
      %768 = vmatprep.subr.bf16.mxu0 0
      %769 = vmatpush1.bf16.msra.mxu0 %v634
      %770 = vmatprep.subr.bf16.mxu0 0
      %771 = vmatpush1.bf16.msra.mxu0 %v635
      %772 = vmatprep.subr.bf16.mxu0 0
      %773 = vmatpush1.bf16.msra.mxu0 0
      %774 = vmatprep.subr.bf16.mxu0 0
      %775 = vmatpush1.bf16.msra.mxu0 0
      %776 = vmatprep.subr.bf16.mxu0 0
      %777 = vmatpush1.bf16.msra.mxu0 0
      %778 = vmatprep.subr.bf16.mxu0 0
      %779 = vmatpush1.bf16.msra.mxu0 0
      %780 = vmatprep.subr.bf16.mxu0 0
      %781 = vmatpush1.bf16.msra.mxu0 0
      %782 = vmatprep.subr.bf16.mxu0 0
      %783 = vmatpush1.bf16.msra.mxu0 0
      %784 = vmatprep.subr.bf16.mxu0 0
      %785 = vmatpush1.bf16.msra.mxu0 0
      %786 = vmatprep.subr.bf16.mxu0 0
      %787 = vmatpush1.bf16.msra.mxu0 0
      %788 = vmatprep.mubr.bf16.mxu0 0
      %789 = vmatmul.mubr.bf16.gmra.mrb[0].mxu0 %v430
      %v790 = vpop.f32.mrb[0].mxu0
      %v791 = vadd.f32 %v751, %v790
      %v792 = vpop.f32.mrb[0].mxu0
      %v793 = vpop.f32.mrb[0].mxu0
      %v794 = vpop.f32.mrb[0].mxu0
      %795 = vdwg.mxu0
      %v796 = vpack.c.b16 %v381, %v381
      %v797 = vpack.c.b16 %v382, %v382
      %v798 = vpack.c.b16 %v383, %v383
      %v799 = vpack.c.b16 %v384, %v384
      %v800 = vpack.c.b16 %v385, %v385
      %v886 = vunpack.c.l.b16 %v211
      %v887 = vunpack.c.l.b16 %v212
      %v888 = vunpack.c.l.b16 %v213
      %v889 = vunpack.c.l.b16 %v214
      %v890 = vunpack.c.l.b16 %v215
      %v891 = vunpack.c.l.b16 %v216
      %v892 = vunpack.c.l.b16 %v217
      %v893 = vunpack.c.l.b16 %v218
      %v894 = vunpack.c.l.b16 %v219
      %v895 = vunpack.c.l.b16 %v220
      %v896 = vunpack.c.l.b16 %v221
      %v897 = vunpack.c.l.b16 %v222
      %v898 = vunpack.c.l.b16 %v223
      %v899 = vunpack.c.l.b16 %v224
      %v900 = vunpack.c.l.b16 %v225
      %v901 = vunpack.c.l.b16 %v226
      %v902 = vunpack.c.l.b16 %v227
      %v903 = vunpack.c.l.b16 %v228
      %v904 = vunpack.c.l.b16 %v229
      %v905 = vunpack.c.l.b16 %v230
      %v906 = vunpack.c.l.b16 %v231
      %v907 = vunpack.c.l.b16 %v232
      %v908 = vunpack.c.l.b16 %v233
      %v909 = vunpack.c.l.b16 %v234
      %v910 = vunpack.c.l.b16 %v235
      %v911 = vunpack.c.l.b16 %v236
      %v912 = vunpack.c.l.b16 %v237
      %v913 = vunpack.c.l.b16 %v238
      %v914 = vunpack.c.l.b16 %v239
      %v915 = vunpack.c.l.b16 %v240
      %v916 = vunpack.c.l.b16 %v241
      %v917 = vunpack.c.l.b16 %v242
      %v918 = vunpack.c.l.b16 %v243
      %v919 = vunpack.c.l.b16 %v244
      %v920 = vunpack.c.l.b16 %v245
      %v921 = vunpack.c.l.b16 %v246
      %v922 = vunpack.c.l.b16 %v247
      %v923 = vunpack.c.l.b16 %v248
      %v924 = vunpack.c.l.b16 %v249
      %v925 = vunpack.c.l.b16 %v250
      %v926 = vunpack.c.l.b16 %v251
      %v927 = vunpack.c.l.b16 %v252
      %v928 = vunpack.c.l.b16 %v253
      %v929 = vunpack.c.l.b16 %v254
      %v930 = vunpack.c.l.b16 %v255
      %v931 = vunpack.c.l.b16 %v256
      %v932 = vunpack.c.l.b16 %v257
      %v933 = vunpack.c.l.b16 %v258
      %v934 = vunpack.c.l.b16 %v259
      %v935 = vunpack.c.l.b16 %v260
      %v936 = vunpack.c.l.b16 %v261
      %v937 = vunpack.c.l.b16 %v262
      %v938 = vunpack.c.l.b16 %v263
      %v939 = vunpack.c.l.b16 %v264
      %v940 = vunpack.c.l.b16 %v265
      %v941 = vunpack.c.l.b16 %v266
      %v942 = vunpack.c.l.b16 %v267
      %v943 = vunpack.c.l.b16 %v268
      %v944 = vunpack.c.l.b16 %v269
      %v945 = vunpack.c.l.b16 %v270
      %v946 = vunpack.c.l.b16 %v271
      %v947 = vunpack.c.l.b16 %v272
      %v948 = vunpack.c.l.b16 %v273
      %v949 = vunpack.c.l.b16 %v274
      %v950 = vunpack.c.l.b16 %v275
      %v951 = vunpack.c.l.b16 %v276
      %v952 = vunpack.c.l.b16 %v277
      %v953 = vunpack.c.l.b16 %v278
      %v954 = vunpack.c.l.b16 %v279
      %v955 = vunpack.c.l.b16 %v280
      %v956 = vunpack.c.l.b16 %v281
      %v957 = vunpack.c.l.b16 %v282
      %v958 = vunpack.c.l.b16 %v283
      %v959 = vunpack.c.l.b16 %v284
      %v960 = vunpack.c.l.b16 %v285
      %v961 = vunpack.c.l.b16 %v286
      %v962 = vunpack.c.l.b16 %v287
      %v963 = vunpack.c.l.b16 %v288
      %v964 = vunpack.c.l.b16 %v289
      %v965 = vunpack.c.l.b16 %v290
      %v966 = vpack.c.b16 %v887, %v886
      %v967 = vpack.c.b16 %v889, %v888
      %v968 = vpack.c.b16 %v891, %v890
      %v969 = vpack.c.b16 %v893, %v892
      %v970 = vpack.c.b16 %v895, %v894
      %v971 = vpack.c.b16 %v897, %v896
      %v972 = vpack.c.b16 %v899, %v898
      %v973 = vpack.c.b16 %v901, %v900
      %v974 = vpack.c.b16 %v903, %v902
      %v975 = vpack.c.b16 %v905, %v904
      %v976 = vpack.c.b16 %v907, %v906
      %v977 = vpack.c.b16 %v909, %v908
      %v978 = vpack.c.b16 %v911, %v910
      %v979 = vpack.c.b16 %v913, %v912
      %v980 = vpack.c.b16 %v915, %v914
      %v981 = vpack.c.b16 %v917, %v916
      %v982 = vpack.c.b16 %v919, %v918
      %v983 = vpack.c.b16 %v921, %v920
      %v984 = vpack.c.b16 %v923, %v922
      %v985 = vpack.c.b16 %v925, %v924
      %v986 = vpack.c.b16 %v927, %v926
      %v987 = vpack.c.b16 %v929, %v928
      %v988 = vpack.c.b16 %v931, %v930
      %v989 = vpack.c.b16 %v933, %v932
      %v990 = vpack.c.b16 %v935, %v934
      %v991 = vpack.c.b16 %v937, %v936
      %v992 = vpack.c.b16 %v939, %v938
      %v993 = vpack.c.b16 %v941, %v940
      %v994 = vpack.c.b16 %v943, %v942
      %v995 = vpack.c.b16 %v945, %v944
      %v996 = vpack.c.b16 %v947, %v946
      %v997 = vpack.c.b16 %v949, %v948
      %v998 = vpack.c.b16 %v951, %v950
      %v999 = vpack.c.b16 %v953, %v952
      %v1000 = vpack.c.b16 %v955, %v954
      %v1001 = vpack.c.b16 %v957, %v956
      %v1002 = vpack.c.b16 %v959, %v958
      %v1003 = vpack.c.b16 %v961, %v960
      %v1004 = vpack.c.b16 %v963, %v962
      %v1005 = vpack.c.b16 %v965, %v964
      %1046 = vmatprep.subr.bf16.mxu0 0
      %1047 = vmatpush1.bf16.msra.mxu0 %v966
      %1048 = vmatprep.subr.bf16.mxu0 0
      %1049 = vmatpush1.bf16.msra.mxu0 %v967
      %1050 = vmatprep.subr.bf16.mxu0 0
      %1051 = vmatpush1.bf16.msra.mxu0 %v968
      %1052 = vmatprep.subr.bf16.mxu0 0
      %1053 = vmatpush1.bf16.msra.mxu0 %v969
      %1054 = vmatprep.subr.bf16.mxu0 0
      %1055 = vmatpush1.bf16.msra.mxu0 %v970
      %1056 = vmatprep.subr.bf16.mxu0 0
      %1057 = vmatpush1.bf16.msra.mxu0 %v971
      %1058 = vmatprep.subr.bf16.mxu0 0
      %1059 = vmatpush1.bf16.msra.mxu0 %v972
      %1060 = vmatprep.subr.bf16.mxu0 0
      %1061 = vmatpush1.bf16.msra.mxu0 %v973
      %1062 = vmatprep.subr.bf16.mxu0 0
      %1063 = vmatpush1.bf16.msra.mxu0 %v974
      %1064 = vmatprep.subr.bf16.mxu0 0
      %1065 = vmatpush1.bf16.msra.mxu0 %v975
      %1066 = vmatprep.subr.bf16.mxu0 0
      %1067 = vmatpush1.bf16.msra.mxu0 %v976
      %1068 = vmatprep.subr.bf16.mxu0 0
      %1069 = vmatpush1.bf16.msra.mxu0 %v977
      %1070 = vmatprep.subr.bf16.mxu0 0
      %1071 = vmatpush1.bf16.msra.mxu0 %v978
      %1072 = vmatprep.subr.bf16.mxu0 0
      %1073 = vmatpush1.bf16.msra.mxu0 %v979
      %1074 = vmatprep.subr.bf16.mxu0 0
      %1075 = vmatpush1.bf16.msra.mxu0 %v980
      %1076 = vmatprep.subr.bf16.mxu0 0
      %1077 = vmatpush1.bf16.msra.mxu0 %v981
      %1078 = vmatprep.mubr.bf16.mxu0 %v797
      %1079 = vmatmul.mubr.bf16.gmra.mrb[0].mxu0 %v796
      %v1080 = vpop.f32.mrb[0].mxu0
      %v1081 = vadd.f32 %v791, %v1080
      %v1082 = vpop.f32.mrb[0].mxu0
      %v1083 = vpop.f32.mrb[0].mxu0
      %v1084 = vpop.f32.mrb[0].mxu0
      %1085 = vdwg.mxu0
      %1086 = vmatprep.subr.bf16.mxu0 0
      %1087 = vmatpush1.bf16.msra.mxu0 %v982
      %1088 = vmatprep.subr.bf16.mxu0 0
      %1089 = vmatpush1.bf16.msra.mxu0 %v983
      %1090 = vmatprep.subr.bf16.mxu0 0
      %1091 = vmatpush1.bf16.msra.mxu0 %v984
      %1092 = vmatprep.subr.bf16.mxu0 0
      %1093 = vmatpush1.bf16.msra.mxu0 %v985
      %1094 = vmatprep.subr.bf16.mxu0 0
      %1095 = vmatpush1.bf16.msra.mxu0 %v986
      %1096 = vmatprep.subr.bf16.mxu0 0
      %1097 = vmatpush1.bf16.msra.mxu0 %v987
      %1098 = vmatprep.subr.bf16.mxu0 0
      %1099 = vmatpush1.bf16.msra.mxu0 %v988
      %1100 = vmatprep.subr.bf16.mxu0 0
      %1101 = vmatpush1.bf16.msra.mxu0 %v989
      %1102 = vmatprep.subr.bf16.mxu0 0
      %1103 = vmatpush1.bf16.msra.mxu0 %v990
      %1104 = vmatprep.subr.bf16.mxu0 0
      %1105 = vmatpush1.bf16.msra.mxu0 %v991
      %1106 = vmatprep.subr.bf16.mxu0 0
      %1107 = vmatpush1.bf16.msra.mxu0 %v992
      %1108 = vmatprep.subr.bf16.mxu0 0
      %1109 = vmatpush1.bf16.msra.mxu0 %v993
      %1110 = vmatprep.subr.bf16.mxu0 0
      %1111 = vmatpush1.bf16.msra.mxu0 %v994
      %1112 = vmatprep.subr.bf16.mxu0 0
      %1113 = vmatpush1.bf16.msra.mxu0 %v995
      %1114 = vmatprep.subr.bf16.mxu0 0
      %1115 = vmatpush1.bf16.msra.mxu0 %v996
      %1116 = vmatprep.subr.bf16.mxu0 0
      %1117 = vmatpush1.bf16.msra.mxu0 %v997
      %1118 = vmatprep.mubr.bf16.mxu0 %v799
      %1119 = vmatmul.mubr.bf16.gmra.mrb[0].mxu0 %v798
      %v1120 = vpop.f32.mrb[0].mxu0
      %v1121 = vadd.f32 %v1081, %v1120
      %v1122 = vpop.f32.mrb[0].mxu0
      %v1123 = vpop.f32.mrb[0].mxu0
      %v1124 = vpop.f32.mrb[0].mxu0
      %1125 = vdwg.mxu0
      %1126 = vmatprep.subr.bf16.mxu0 0
      %1127 = vmatpush1.bf16.msra.mxu0 %v998
      %1128 = vmatprep.subr.bf16.mxu0 0
      %1129 = vmatpush1.bf16.msra.mxu0 %v999
      %1130 = vmatprep.subr.bf16.mxu0 0
      %1131 = vmatpush1.bf16.msra.mxu0 %v1000
      %1132 = vmatprep.subr.bf16.mxu0 0
      %1133 = vmatpush1.bf16.msra.mxu0 %v1001
      %1134 = vmatprep.subr.bf16.mxu0 0
      %1135 = vmatpush1.bf16.msra.mxu0 %v1002
      %1136 = vmatprep.subr.bf16.mxu0 0
      %1137 = vmatpush1.bf16.msra.mxu0 %v1003
      %1138 = vmatprep.subr.bf16.mxu0 0
      %1139 = vmatpush1.bf16.msra.mxu0 %v1004
      %1140 = vmatprep.subr.bf16.mxu0 0
      %1141 = vmatpush1.bf16.msra.mxu0 %v1005
      %1142 = vmatprep.subr.bf16.mxu0 0
      %1143 = vmatpush1.bf16.msra.mxu0 0
      %1144 = vmatprep.subr.bf16.mxu0 0
      %1145 = vmatpush1.bf16.msra.mxu0 0
      %1146 = vmatprep.subr.bf16.mxu0 0
      %1147 = vmatpush1.bf16.msra.mxu0 0
      %1148 = vmatprep.subr.bf16.mxu0 0
      %1149 = vmatpush1.bf16.msra.mxu0 0
      %1150 = vmatprep.subr.bf16.mxu0 0
      %1151 = vmatpush1.bf16.msra.mxu0 0
      %1152 = vmatprep.subr.bf16.mxu0 0
      %1153 = vmatpush1.bf16.msra.mxu0 0
      %1154 = vmatprep.subr.bf16.mxu0 0
      %1155 = vmatpush1.bf16.msra.mxu0 0
      %1156 = vmatprep.subr.bf16.mxu0 0
      %1157 = vmatpush1.bf16.msra.mxu0 0
      %1158 = vmatprep.mubr.bf16.mxu0 0
      %1159 = vmatmul.mubr.bf16.gmra.mrb[0].mxu0 %v800
      %v1160 = vpop.f32.mrb[0].mxu0
      %v1161 = vadd.f32 %v1121, %v1160
      %v1162 = vpop.f32.mrb[0].mxu0
      %v1163 = vpop.f32.mrb[0].mxu0
      %v1164 = vpop.f32.mrb[0].mxu0
      %1165 = vdwg.mxu0
      %v1166 = vld [vmem:[%s198] sm:$0xee]
      %v1167 = vld [vmem:[%s198 + $0x8] sm:$0xee]
      %v1168 = vld [vmem:[%s198 + $0x10] sm:$0xe]
      %s1169 = scalar_lea.vmem %s1, 640
      %v1170 = vld [vmem:[%s1169] sm:$0xf]
      %v1171 = vld [vmem:[%s1169 + $0x4] sm:$0xf]
      %v1172 = vld [vmem:[%s1169 + $0x8] sm:$0xf]
      %v1173 = vld [vmem:[%s1169 + $0xc] sm:$0xf]
      %v1174 = vld [vmem:[%s1169 + $0x10] sm:$0xf]
      %v1175 = vld [vmem:[%s1169 + $0x14] sm:$0xf]
      %v1176 = vld [vmem:[%s1169 + $0x18] sm:$0xf]
      %v1177 = vld [vmem:[%s1169 + $0x1c] sm:$0xf]
      %v1178 = vld [vmem:[%s1169 + $0x20] sm:$0xf]
      %v1179 = vld [vmem:[%s1169 + $0x24] sm:$0xf]
      %v1180 = vld [vmem:[%s1169 + $0x28] sm:$0xf]
      %v1181 = vld [vmem:[%s1169 + $0x2c] sm:$0xf]
      %v1182 = vld [vmem:[%s1169 + $0x30] sm:$0xf]
      %v1183 = vld [vmem:[%s1169 + $0x34] sm:$0xf]
      %v1184 = vld [vmem:[%s1169 + $0x38] sm:$0xf]
      %v1185 = vld [vmem:[%s1169 + $0x3c] sm:$0xf]
      %v1186 = vld [vmem:[%s1169 + $0x40] sm:$0xf]
      %v1187 = vld [vmem:[%s1169 + $0x44] sm:$0xf]
      %v1188 = vld [vmem:[%s1169 + $0x48] sm:$0xf]
      %v1189 = vld [vmem:[%s1169 + $0x4c] sm:$0xf]
      %v1190 = vld [vmem:[%s1169 + $0x50] sm:$0xf]
      %v1191 = vld [vmem:[%s1169 + $0x54] sm:$0xf]
      %v1192 = vld [vmem:[%s1169 + $0x58] sm:$0xf]
      %v1193 = vld [vmem:[%s1169 + $0x5c] sm:$0xf]
      %v1194 = vld [vmem:[%s1169 + $0x60] sm:$0xf]
      %v1195 = vld [vmem:[%s1169 + $0x64] sm:$0xf]
      %v1196 = vld [vmem:[%s1169 + $0x68] sm:$0xf]
      %v1197 = vld [vmem:[%s1169 + $0x6c] sm:$0xf]
      %v1198 = vld [vmem:[%s1169 + $0x70] sm:$0xf]
      %v1199 = vld [vmem:[%s1169 + $0x74] sm:$0xf]
      %v1200 = vld [vmem:[%s1169 + $0x78] sm:$0xf]
      %v1201 = vld [vmem:[%s1169 + $0x7c] sm:$0xf]
      %v1202 = vld [vmem:[%s1169 + $0x80] sm:$0xf]
      %v1203 = vld [vmem:[%s1169 + $0x84] sm:$0xf]
      %v1204 = vld [vmem:[%s1169 + $0x88] sm:$0xf]
      %v1205 = vld [vmem:[%s1169 + $0x8c] sm:$0xf]
      %v1206 = vld [vmem:[%s1169 + $0x90] sm:$0xf]
      %v1207 = vld [vmem:[%s1169 + $0x94] sm:$0xf]
      %v1208 = vld [vmem:[%s1169 + $0x98] sm:$0xf]
      %v1209 = vld [vmem:[%s1169 + $0x9c] sm:$0xf]
      %v1210 = vld [vmem:[%s1169 + $0xa0] sm:$0xf]
      %v1211 = vld [vmem:[%s1169 + $0xa4] sm:$0xf]
      %v1212 = vld [vmem:[%s1169 + $0xa8] sm:$0xf]
      %v1213 = vld [vmem:[%s1169 + $0xac] sm:$0xf]
      %v1214 = vld [vmem:[%s1169 + $0xb0] sm:$0xf]
      %v1215 = vld [vmem:[%s1169 + $0xb4] sm:$0xf]
      %v1216 = vld [vmem:[%s1169 + $0xb8] sm:$0xf]
      %v1217 = vld [vmem:[%s1169 + $0xbc] sm:$0xf]
      %v1218 = vld [vmem:[%s1169 + $0xc0] sm:$0xf]
      %v1219 = vld [vmem:[%s1169 + $0xc4] sm:$0xf]
      %v1220 = vld [vmem:[%s1169 + $0xc8] sm:$0xf]
      %v1221 = vld [vmem:[%s1169 + $0xcc] sm:$0xf]
      %v1222 = vld [vmem:[%s1169 + $0xd0] sm:$0xf]
      %v1223 = vld [vmem:[%s1169 + $0xd4] sm:$0xf]
      %v1224 = vld [vmem:[%s1169 + $0xd8] sm:$0xf]
      %v1225 = vld [vmem:[%s1169 + $0xdc] sm:$0xf]
      %v1226 = vld [vmem:[%s1169 + $0xe0] sm:$0xf]
      %v1227 = vld [vmem:[%s1169 + $0xe4] sm:$0xf]
      %v1228 = vld [vmem:[%s1169 + $0xe8] sm:$0xf]
      %v1229 = vld [vmem:[%s1169 + $0xec] sm:$0xf]
      %v1230 = vld [vmem:[%s1169 + $0xf0] sm:$0xf]
      %v1231 = vld [vmem:[%s1169 + $0xf4] sm:$0xf]
      %v1232 = vld [vmem:[%s1169 + $0xf8] sm:$0xf]
      %v1233 = vld [vmem:[%s1169 + $0xfc] sm:$0xf]
      %v1234 = vld [vmem:[%s1169 + $0x100] sm:$0xf]
      %v1235 = vld [vmem:[%s1169 + $0x104] sm:$0xf]
      %v1236 = vld [vmem:[%s1169 + $0x108] sm:$0xf]
      %v1237 = vld [vmem:[%s1169 + $0x10c] sm:$0xf]
      %v1238 = vld [vmem:[%s1169 + $0x110] sm:$0xf]
      %v1239 = vld [vmem:[%s1169 + $0x114] sm:$0xf]
      %v1240 = vld [vmem:[%s1169 + $0x118] sm:$0xf]
      %v1241 = vld [vmem:[%s1169 + $0x11c] sm:$0xf]
      %v1242 = vld [vmem:[%s1169 + $0x120] sm:$0xf]
      %v1243 = vld [vmem:[%s1169 + $0x124] sm:$0xf]
      %v1244 = vld [vmem:[%s1169 + $0x128] sm:$0xf]
      %v1245 = vld [vmem:[%s1169 + $0x12c] sm:$0xf]
      %v1246 = vld [vmem:[%s1169 + $0x130] sm:$0xf]
      %v1247 = vld [vmem:[%s1169 + $0x134] sm:$0xf]
      %v1248 = vld [vmem:[%s1169 + $0x138] sm:$0xf]
      %v1249 = vld [vmem:[%s1169 + $0x13c] sm:$0xf]
      %v1253 = vunpack.c.l.b16 %v1166
      %v1254 = vunpack.c.h.b16 %v1166
      %v1255 = vunpack.c.l.b16 %v1167
      %v1256 = vunpack.c.h.b16 %v1167
      %v1257 = vunpack.c.l.b16 %v1168
      %v1258 = vpack.c.b16 %v386, %v1253
      %v1259 = vpack.c.b16 %v387, %v1254
      %v1260 = vpack.c.b16 %v388, %v1255
      %v1261 = vpack.c.b16 %v389, %v1256
      %v1262 = vpack.c.b16 %v390, %v1257
      %v1263 = vrot.slane %v1258, 1
      %v1264 = vrot.slane %v1259, 1
      %v1265 = vrot.slane %v1260, 1
      %v1266 = vrot.slane %v1261, 1
      %v1267 = vrot.slane %v1262, 1
      %v1353 = vunpack.c.l.b16 %v1170
      %v1354 = vunpack.c.l.b16 %v1171
      %v1355 = vunpack.c.l.b16 %v1172
      %v1356 = vunpack.c.l.b16 %v1173
      %v1357 = vunpack.c.l.b16 %v1174
      %v1358 = vunpack.c.l.b16 %v1175
      %v1359 = vunpack.c.l.b16 %v1176
      %v1360 = vunpack.c.l.b16 %v1177
      %v1361 = vunpack.c.l.b16 %v1178
      %v1362 = vunpack.c.l.b16 %v1179
      %v1363 = vunpack.c.l.b16 %v1180
      %v1364 = vunpack.c.l.b16 %v1181
      %v1365 = vunpack.c.l.b16 %v1182
      %v1366 = vunpack.c.l.b16 %v1183
      %v1367 = vunpack.c.l.b16 %v1184
      %v1368 = vunpack.c.l.b16 %v1185
      %v1369 = vunpack.c.l.b16 %v1186
      %v1370 = vunpack.c.l.b16 %v1187
      %v1371 = vunpack.c.l.b16 %v1188
      %v1372 = vunpack.c.l.b16 %v1189
      %v1373 = vunpack.c.l.b16 %v1190
      %v1374 = vunpack.c.l.b16 %v1191
      %v1375 = vunpack.c.l.b16 %v1192
      %v1376 = vunpack.c.l.b16 %v1193
      %v1377 = vunpack.c.l.b16 %v1194
      %v1378 = vunpack.c.l.b16 %v1195
      %v1379 = vunpack.c.l.b16 %v1196
      %v1380 = vunpack.c.l.b16 %v1197
      %v1381 = vunpack.c.l.b16 %v1198
      %v1382 = vunpack.c.l.b16 %v1199
      %v1383 = vunpack.c.l.b16 %v1200
      %v1384 = vunpack.c.l.b16 %v1201
      %v1385 = vunpack.c.l.b16 %v1202
      %v1386 = vunpack.c.l.b16 %v1203
      %v1387 = vunpack.c.l.b16 %v1204
      %v1388 = vunpack.c.l.b16 %v1205
      %v1389 = vunpack.c.l.b16 %v1206
      %v1390 = vunpack.c.l.b16 %v1207
      %v1391 = vunpack.c.l.b16 %v1208
      %v1392 = vunpack.c.l.b16 %v1209
      %v1393 = vunpack.c.l.b16 %v1210
      %v1394 = vunpack.c.l.b16 %v1211
      %v1395 = vunpack.c.l.b16 %v1212
      %v1396 = vunpack.c.l.b16 %v1213
      %v1397 = vunpack.c.l.b16 %v1214
      %v1398 = vunpack.c.l.b16 %v1215
      %v1399 = vunpack.c.l.b16 %v1216
      %v1400 = vunpack.c.l.b16 %v1217
      %v1401 = vunpack.c.l.b16 %v1218
      %v1402 = vunpack.c.l.b16 %v1219
      %v1403 = vunpack.c.l.b16 %v1220
      %v1404 = vunpack.c.l.b16 %v1221
      %v1405 = vunpack.c.l.b16 %v1222
      %v1406 = vunpack.c.l.b16 %v1223
      %v1407 = vunpack.c.l.b16 %v1224
      %v1408 = vunpack.c.l.b16 %v1225
      %v1409 = vunpack.c.l.b16 %v1226
      %v1410 = vunpack.c.l.b16 %v1227
      %v1411 = vunpack.c.l.b16 %v1228
      %v1412 = vunpack.c.l.b16 %v1229
      %v1413 = vunpack.c.l.b16 %v1230
      %v1414 = vunpack.c.l.b16 %v1231
      %v1415 = vunpack.c.l.b16 %v1232
      %v1416 = vunpack.c.l.b16 %v1233
      %v1417 = vunpack.c.l.b16 %v1234
      %v1418 = vunpack.c.l.b16 %v1235
      %v1419 = vunpack.c.l.b16 %v1236
      %v1420 = vunpack.c.l.b16 %v1237
      %v1421 = vunpack.c.l.b16 %v1238
      %v1422 = vunpack.c.l.b16 %v1239
      %v1423 = vunpack.c.l.b16 %v1240
      %v1424 = vunpack.c.l.b16 %v1241
      %v1425 = vunpack.c.l.b16 %v1242
      %v1426 = vunpack.c.l.b16 %v1243
      %v1427 = vunpack.c.l.b16 %v1244
      %v1428 = vunpack.c.l.b16 %v1245
      %v1429 = vunpack.c.l.b16 %v1246
      %v1430 = vunpack.c.l.b16 %v1247
      %v1431 = vunpack.c.l.b16 %v1248
      %v1432 = vunpack.c.l.b16 %v1249
      %v1433 = vpack.c.b16 %v1354, %v1353
      %v1434 = vpack.c.b16 %v1356, %v1355
      %v1435 = vpack.c.b16 %v1358, %v1357
      %v1436 = vpack.c.b16 %v1360, %v1359
      %v1437 = vpack.c.b16 %v1362, %v1361
      %v1438 = vpack.c.b16 %v1364, %v1363
      %v1439 = vpack.c.b16 %v1366, %v1365
      %v1440 = vpack.c.b16 %v1368, %v1367
      %v1441 = vpack.c.b16 %v1370, %v1369
      %v1442 = vpack.c.b16 %v1372, %v1371
      %v1443 = vpack.c.b16 %v1374, %v1373
      %v1444 = vpack.c.b16 %v1376, %v1375
      %v1445 = vpack.c.b16 %v1378, %v1377
      %v1446 = vpack.c.b16 %v1380, %v1379
      %v1447 = vpack.c.b16 %v1382, %v1381
      %v1448 = vpack.c.b16 %v1384, %v1383
      %v1449 = vpack.c.b16 %v1386, %v1385
      %v1450 = vpack.c.b16 %v1388, %v1387
      %v1451 = vpack.c.b16 %v1390, %v1389
      %v1452 = vpack.c.b16 %v1392, %v1391
      %v1453 = vpack.c.b16 %v1394, %v1393
      %v1454 = vpack.c.b16 %v1396, %v1395
      %v1455 = vpack.c.b16 %v1398, %v1397
      %v1456 = vpack.c.b16 %v1400, %v1399
      %v1457 = vpack.c.b16 %v1402, %v1401
      %v1458 = vpack.c.b16 %v1404, %v1403
      %v1459 = vpack.c.b16 %v1406, %v1405
      %v1460 = vpack.c.b16 %v1408, %v1407
      %v1461 = vpack.c.b16 %v1410, %v1409
      %v1462 = vpack.c.b16 %v1412, %v1411
      %v1463 = vpack.c.b16 %v1414, %v1413
      %v1464 = vpack.c.b16 %v1416, %v1415
      %v1465 = vpack.c.b16 %v1418, %v1417
      %v1466 = vpack.c.b16 %v1420, %v1419
      %v1467 = vpack.c.b16 %v1422, %v1421
      %v1468 = vpack.c.b16 %v1424, %v1423
      %v1469 = vpack.c.b16 %v1426, %v1425
      %v1470 = vpack.c.b16 %v1428, %v1427
      %v1471 = vpack.c.b16 %v1430, %v1429
      %v1472 = vpack.c.b16 %v1432, %v1431
      %1513 = vmatprep.subr.bf16.mxu0 0
      %1514 = vmatpush1.bf16.msra.mxu0 %v1433
      %1515 = vmatprep.subr.bf16.mxu0 0
      %1516 = vmatpush1.bf16.msra.mxu0 %v1434
      %1517 = vmatprep.subr.bf16.mxu0 0
      %1518 = vmatpush1.bf16.msra.mxu0 %v1435
      %1519 = vmatprep.subr.bf16.mxu0 0
      %1520 = vmatpush1.bf16.msra.mxu0 %v1436
      %1521 = vmatprep.subr.bf16.mxu0 0
      %1522 = vmatpush1.bf16.msra.mxu0 %v1437
      %1523 = vmatprep.subr.bf16.mxu0 0
      %1524 = vmatpush1.bf16.msra.mxu0 %v1438
      %1525 = vmatprep.subr.bf16.mxu0 0
      %1526 = vmatpush1.bf16.msra.mxu0 %v1439
      %1527 = vmatprep.subr.bf16.mxu0 0
      %1528 = vmatpush1.bf16.msra.mxu0 %v1440
      %1529 = vmatprep.subr.bf16.mxu0 0
      %1530 = vmatpush1.bf16.msra.mxu0 %v1441
      %1531 = vmatprep.subr.bf16.mxu0 0
      %1532 = vmatpush1.bf16.msra.mxu0 %v1442
      %1533 = vmatprep.subr.bf16.mxu0 0
      %1534 = vmatpush1.bf16.msra.mxu0 %v1443
      %1535 = vmatprep.subr.bf16.mxu0 0
      %1536 = vmatpush1.bf16.msra.mxu0 %v1444
      %1537 = vmatprep.subr.bf16.mxu0 0
      %1538 = vmatpush1.bf16.msra.mxu0 %v1445
      %1539 = vmatprep.subr.bf16.mxu0 0
      %1540 = vmatpush1.bf16.msra.mxu0 %v1446
      %1541 = vmatprep.subr.bf16.mxu0 0
      %1542 = vmatpush1.bf16.msra.mxu0 %v1447
      %1543 = vmatprep.subr.bf16.mxu0 0
      %1544 = vmatpush1.bf16.msra.mxu0 %v1448
      %1545 = vmatprep.mubr.bf16.mxu0 %v1264
      %1546 = vmatmul.mubr.bf16.gmra.mrb[0].mxu0 %v1263
      %v1547 = vpop.f32.mrb[0].mxu0
      %v1548 = vadd.f32 0.0, %v1547
      %v1549 = vpop.f32.mrb[0].mxu0
      %v1550 = vpop.f32.mrb[0].mxu0
      %v1551 = vpop.f32.mrb[0].mxu0
      %1552 = vdwg.mxu0
      %1553 = vmatprep.subr.bf16.mxu0 0
      %1554 = vmatpush1.bf16.msra.mxu0 %v1449
      %1555 = vmatprep.subr.bf16.mxu0 0
      %1556 = vmatpush1.bf16.msra.mxu0 %v1450
      %1557 = vmatprep.subr.bf16.mxu0 0
      %1558 = vmatpush1.bf16.msra.mxu0 %v1451
      %1559 = vmatprep.subr.bf16.mxu0 0
      %1560 = vmatpush1.bf16.msra.mxu0 %v1452
      %1561 = vmatprep.subr.bf16.mxu0 0
      %1562 = vmatpush1.bf16.msra.mxu0 %v1453
      %1563 = vmatprep.subr.bf16.mxu0 0
      %1564 = vmatpush1.bf16.msra.mxu0 %v1454
      %1565 = vmatprep.subr.bf16.mxu0 0
      %1566 = vmatpush1.bf16.msra.mxu0 %v1455
      %1567 = vmatprep.subr.bf16.mxu0 0
      %1568 = vmatpush1.bf16.msra.mxu0 %v1456
      %1569 = vmatprep.subr.bf16.mxu0 0
      %1570 = vmatpush1.bf16.msra.mxu0 %v1457
      %1571 = vmatprep.subr.bf16.mxu0 0
      %1572 = vmatpush1.bf16.msra.mxu0 %v1458
      %1573 = vmatprep.subr.bf16.mxu0 0
      %1574 = vmatpush1.bf16.msra.mxu0 %v1459
      %1575 = vmatprep.subr.bf16.mxu0 0
      %1576 = vmatpush1.bf16.msra.mxu0 %v1460
      %1577 = vmatprep.subr.bf16.mxu0 0
      %1578 = vmatpush1.bf16.msra.mxu0 %v1461
      %1579 = vmatprep.subr.bf16.mxu0 0
      %1580 = vmatpush1.bf16.msra.mxu0 %v1462
      %1581 = vmatprep.subr.bf16.mxu0 0
      %1582 = vmatpush1.bf16.msra.mxu0 %v1463
      %1583 = vmatprep.subr.bf16.mxu0 0
      %1584 = vmatpush1.bf16.msra.mxu0 %v1464
      %1585 = vmatprep.mubr.bf16.mxu0 %v1266
      %1586 = vmatmul.mubr.bf16.gmra.mrb[0].mxu0 %v1265
      %v1587 = vpop.f32.mrb[0].mxu0
      %v1588 = vadd.f32 %v1548, %v1587
      %v1589 = vpop.f32.mrb[0].mxu0
      %v1590 = vpop.f32.mrb[0].mxu0
      %v1591 = vpop.f32.mrb[0].mxu0
      %1592 = vdwg.mxu0
      %1593 = vmatprep.subr.bf16.mxu0 0
      %1594 = vmatpush1.bf16.msra.mxu0 %v1465
      %1595 = vmatprep.subr.bf16.mxu0 0
      %1596 = vmatpush1.bf16.msra.mxu0 %v1466
      %1597 = vmatprep.subr.bf16.mxu0 0
      %1598 = vmatpush1.bf16.msra.mxu0 %v1467
      %1599 = vmatprep.subr.bf16.mxu0 0
      %1600 = vmatpush1.bf16.msra.mxu0 %v1468
      %1601 = vmatprep.subr.bf16.mxu0 0
      %1602 = vmatpush1.bf16.msra.mxu0 %v1469
      %1603 = vmatprep.subr.bf16.mxu0 0
      %1604 = vmatpush1.bf16.msra.mxu0 %v1470
      %1605 = vmatprep.subr.bf16.mxu0 0
      %1606 = vmatpush1.bf16.msra.mxu0 %v1471
      %1607 = vmatprep.subr.bf16.mxu0 0
      %1608 = vmatpush1.bf16.msra.mxu0 %v1472
      %1609 = vmatprep.subr.bf16.mxu0 0
      %1610 = vmatpush1.bf16.msra.mxu0 0
      %1611 = vmatprep.subr.bf16.mxu0 0
      %1612 = vmatpush1.bf16.msra.mxu0 0
      %1613 = vmatprep.subr.bf16.mxu0 0
      %1614 = vmatpush1.bf16.msra.mxu0 0
      %1615 = vmatprep.subr.bf16.mxu0 0
      %1616 = vmatpush1.bf16.msra.mxu0 0
      %1617 = vmatprep.subr.bf16.mxu0 0
      %1618 = vmatpush1.bf16.msra.mxu0 0
      %1619 = vmatprep.subr.bf16.mxu0 0
      %1620 = vmatpush1.bf16.msra.mxu0 0
      %1621 = vmatprep.subr.bf16.mxu0 0
      %1622 = vmatpush1.bf16.msra.mxu0 0
      %1623 = vmatprep.subr.bf16.mxu0 0
      %1624 = vmatpush1.bf16.msra.mxu0 0
      %1625 = vmatprep.mubr.bf16.mxu0 0
      %1626 = vmatmul.mubr.bf16.gmra.mrb[0].mxu0 %v1267
      %v1627 = vpop.f32.mrb[0].mxu0
      %v1628 = vadd.f32 %v1588, %v1627
      %v1629 = vpop.f32.mrb[0].mxu0
      %v1630 = vpop.f32.mrb[0].mxu0
      %v1631 = vpop.f32.mrb[0].mxu0
      %1632 = vdwg.mxu0
      %v1633 = vadd.f32 %v1161, %v1628
      %v1634 = vld [vmem:[%s2] sm:$0x1]
      %v1636 = vlaneseq
      %v1637 = vshrl.u32 %v1636, 7
      %v1638 = vsub.s32 0, %v1637
      %v1639 = vrot.slane %v1634, %v1638
      %v1641 = vadd.f32 %v1633, %v1639
      %v1642 = vpack.c.bf16 %v1641, %v1641
      %1643 = vst [vmem:[%s202] sm:$0xf] %v1642
      %v1644 = vrot.slane %v1641, 4
      %v1645 = vadd.f32 %v1641, %v1644
      %v1646 = vrot.slane %v1645, 2
      %v1647 = vadd.f32 %v1645, %v1646
      %v1648 = vrot.slane %v1647, 1
      %v1649 = vadd.f32 %v1647, %v1648
      %1650 = vst [vmem:[%s206] sm:$0x1] %v1649
      %v1651 = vmul.f32 %v1641, %v1641
      %v1652 = vrot.slane %v1651, 4
      %v1653 = vadd.f32 %v1651, %v1652
      %v1654 = vrot.slane %v1653, 2
      %v1655 = vadd.f32 %v1653, %v1654
      %v1656 = vrot.slane %v1655, 1
      %v1657 = vadd.f32 %v1655, %v1656
      %1658 = vst [vmem:[%s206 + $0x1] sm:$0x1] %v1657
      %p1659 = scmp.lt.s32.totalorder %s16, 1
      %s1660 = scalar_select %p1659, %s16, 1
      %s1661 = smul.addr %s1660, 4
      %s1662 = scalar_lea.vmem %s3, %s1661
      %p1663 = scmp.lt.s32.totalorder %s16, 1
      %s1664 = scalar_select %p1663, %s16, 1
      %s1665 = smul.addr %s1664, 2
      %s1666 = scalar_lea.vmem %s4, %s1665
      // Predicated region
      $region33: #{forward.17} parent=31 // pred_check
        %p1667 = pneg %p102
      $region34: #{forward.17} parent=31 // pred_check_branch
        %1669 = sbr.rel (%p1667) target = $region36
      $region35: #{forward.17} parent=31 // pred_region
        _
      $region36: #{forward.17} parent=31 // pred_fallthru
        _
      // Predicated region
      $region37: #{forward.17} parent=31 // pred_check
        %p1670 = pneg %p128
      $region38: #{forward.17} parent=31 // pred_check_branch
        %1672 = sbr.rel (%p1670) target = $region40
      $region39: #{forward.17} parent=31 // pred_region
        _
      $region40: #{forward.17} parent=31 // pred_fallthru
        _
    $region32: #{forward.17} parent=5 // pred_fallthru
      _
    %p1673 = scmp.le.s32.totalorder 2, %s11
    // Predicated region
    $region41: #{forward.17} parent=5 // pred_check
      %p1674 = pneg %p1673
    $region42: #{forward.17} parent=5 // pred_check_branch
      %1676 = sbr.rel (%p1674) target = $region44
    $region43: #{forward.17} parent=5 // pred_region
      %s1677 = ssub.s32 %s11, 2
      // Predicated region
      $region45: #{forward.17} parent=43 // pred_check
        %p1678 = pneg %p108
      $region46: #{forward.17} parent=43 // pred_check_branch
        %1680 = sbr.rel (%p1678) target = $region48
      $region47: #{forward.17} parent=43 // pred_region
        %p1681 = scmp.lt.s32.totalorder %s17, 1
        %s1682 = scalar_select %p1681, %s17, 1
        %s1683 = smul.addr %s1682, 4
        %s1684 = scalar_lea.vmem %s3, %s1683
      $region48: #{forward.17} parent=43 // pred_fallthru
        _
      // Predicated region
      $region49: #{forward.17} parent=43 // pred_check
        %p1685 = pneg %p134
      $region50: #{forward.17} parent=43 // pred_check_branch
        %1687 = sbr.rel (%p1685) target = $region52
      $region51: #{forward.17} parent=43 // pred_region
        %p1688 = scmp.lt.s32.totalorder %s17, 1
        %s1689 = scalar_select %p1688, %s17, 1
        %s1690 = smul.addr %s1689, 2
        %s1691 = scalar_lea.vmem %s4, %s1690
      $region52: #{forward.17} parent=43 // pred_fallthru
        _
    $region44: #{forward.17} parent=5 // pred_fallthru
      _
  $region6: #{forward.17} parent=0 // loop_footer
    %s15 = sadd.s32 1, %s11
  $region7: #{forward.17} parent=0 // loop_footer_branch
    %10 = sbr.rel target = $region3
  $region8: #{forward.17} parent=0 // loop_exit
    _

// kernel: forward.18
$region0: #{forward.18}
  #allocation0 [shape = 'u32[]', space=smem, size = 0x4, offset = 0x4, fixed_abs, tag = 'smem constant byte address 0x4 - core index']
  #allocation1 [shape = 'u32[144,128]{1,0:T(1,128)}', space=vmem, size = 0x12000, scoped, tag = 'internal scratch']
  %s0 = inlined_call_operand.vmem [shape: bf16[2,18,576], index: 0, kind: input, shape index: {}]
  %s1 = inlined_call_operand.vmem [shape: bf16[3,576,128], index: 1, kind: input, shape index: {}]
  %s2 = inlined_call_operand.vmem [shape: f32[1,128], index: 2, kind: input, shape index: {}]
  %s3 = inlined_call_operand.vmem [shape: bf16[2,16,128], index: 3, kind: output, shape index: {0}]
  %s4 = inlined_call_operand.vmem [shape: f32[2,2,128], index: 4, kind: output, shape index: {1}]
  %5 = xla_tuple %s3, %s4
  %s6 = sld [smem:[#allocation0]]
  $region53: #{forward.18} parent=0
    _
  %s8 = ssub.s32 1, %s6
  %s9 = scalar_select 0, %s8, %s6
  loop: start=0, step=1, limit=4
  $region2: #{forward.18} parent=0 // loop_pre_header
    _
  $region3: #{forward.18} parent=0 // loop_header
    %s11 = sphi 0, %s15
    %p12 = scmp.ge.s32.totalorder %s11, 4
    %s21 = sphi 0, %s23
    %s24 = sphi 0, %s21
    %s25 = sphi 0, %s24
    %s41 = sphi 0, %s25
    %s45 = sphi 0, %s45
    %s47 = sphi 0, %s45
    %s48 = sphi 0, %s47
    %s62 = sphi 0, %s48
    %s66 = sphi 0, %s66
    %s68 = sphi 0, %s66
    %s69 = sphi 0, %s68
    %s83 = sphi 0, %s69
    %s89 = sphi 0, %s91
    %s92 = sphi 0, %s89
    %s93 = sphi 0, %s92
    %s109 = sphi 0, %s93
    %s115 = sphi 0, %s117
    %s118 = sphi 0, %s115
    %s119 = sphi 0, %s118
    %s135 = sphi 0, %s119
  $region4: #{forward.18} parent=0 // loop_header_branch
    %14 = sbr.rel (%p12) target = $region8
  $region5: #{forward.18} parent=0 // loop_body
    %s16 = ssub.s32 %s11, 1
    %s17 = ssub.s32 %s11, 2
    %s18 = sadd.s32 %s11, 1
    %s19 = ssub.s32 %s11, %s18
    %p20 = scmp.eq.s32.totalorder %s19, 0
    %s22 = sadd.s32 %s21, 1
    %s23 = scalar_select %p20, %s21, %s22
    %p26 = pneg %p20
    %p27 = scmp.eq.s32.totalorder %s11, 1
    %p28 = por %p26, %p27
    %p29 = scmp.ne.s32.totalorder %s21, %s24
    %p30 = scmp.eq.s32.totalorder %s11, 0
    %p31 = por %p29, %p30
    %p32 = scmp.ne.s32.totalorder %s21, %s24
    %p33 = scmp.eq.s32.totalorder %s16, 1
    %p34 = por %p32, %p33
    %p35 = scmp.ne.s32.totalorder %s24, %s25
    %p36 = scmp.eq.s32.totalorder %s16, 0
    %p37 = por %p35, %p36
    %p38 = scmp.ne.s32.totalorder %s24, %s25
    %p39 = scmp.eq.s32.totalorder %s17, 1
    %p40 = por %p38, %p39
    %p42 = scmp.ne.s32.totalorder %s25, %s41
    %p43 = scmp.eq.s32.totalorder %s17, 0
    %p44 = por %p42, %p43
    %s46 = sadd.s32 %s45, 1
    %p49 = scmp.eq.s32.totalorder %s11, 1
    %p50 = scmp.ne.s32.totalorder %s45, %s47
    %p51 = scmp.eq.s32.totalorder %s11, 0
    %p52 = por %p50, %p51
    %p53 = scmp.ne.s32.totalorder %s45, %s47
    %p54 = scmp.eq.s32.totalorder %s16, 1
    %p55 = por %p53, %p54
    %p56 = scmp.ne.s32.totalorder %s47, %s48
    %p57 = scmp.eq.s32.totalorder %s16, 0
    %p58 = por %p56, %p57
    %p59 = scmp.ne.s32.totalorder %s47, %s48
    %p60 = scmp.eq.s32.totalorder %s17, 1
    %p61 = por %p59, %p60
    %p63 = scmp.ne.s32.totalorder %s48, %s62
    %p64 = scmp.eq.s32.totalorder %s17, 0
    %p65 = por %p63, %p64
    %s67 = sadd.s32 %s66, 1
    %p70 = scmp.eq.s32.totalorder %s11, 1
    %p71 = scmp.ne.s32.totalorder %s66, %s68
    %p72 = scmp.eq.s32.totalorder %s11, 0
    %p73 = por %p71, %p72
    %p74 = scmp.ne.s32.totalorder %s66, %s68
    %p75 = scmp.eq.s32.totalorder %s16, 1
    %p76 = por %p74, %p75
    %p77 = scmp.ne.s32.totalorder %s68, %s69
    %p78 = scmp.eq.s32.totalorder %s16, 0
    %p79 = por %p77, %p78
    %p80 = scmp.ne.s32.totalorder %s68, %s69
    %p81 = scmp.eq.s32.totalorder %s17, 1
    %p82 = por %p80, %p81
    %p84 = scmp.ne.s32.totalorder %s69, %s83
    %p85 = scmp.eq.s32.totalorder %s17, 0
    %p86 = por %p84, %p85
    %s87 = ssub.s32 %s11, %s18
    %p88 = scmp.eq.s32.totalorder %s87, 0
    %s90 = sadd.s32 %s89, 1
    %s91 = scalar_select %p88, %s89, %s90
    %p94 = pneg %p88
    %p95 = scmp.eq.s32.totalorder %s11, 1
    %p96 = por %p94, %p95
    %p97 = scmp.ne.s32.totalorder %s89, %s92
    %p98 = scmp.eq.s32.totalorder %s11, 0
    %p99 = por %p97, %p98
    %p100 = scmp.ne.s32.totalorder %s89, %s92
    %p101 = scmp.eq.s32.totalorder %s16, 1
    %p102 = por %p100, %p101
    %p103 = scmp.ne.s32.totalorder %s92, %s93
    %p104 = scmp.eq.s32.totalorder %s16, 0
    %p105 = por %p103, %p104
    %p106 = scmp.ne.s32.totalorder %s92, %s93
    %p107 = scmp.eq.s32.totalorder %s17, 1
    %p108 = por %p106, %p107
    %p110 = scmp.ne.s32.totalorder %s93, %s109
    %p111 = scmp.eq.s32.totalorder %s17, 0
    %p112 = por %p110, %p111
    %s113 = ssub.s32 %s11, %s18
    %p114 = scmp.eq.s32.totalorder %s113, 0
    %s116 = sadd.s32 %s115, 1
    %s117 = scalar_select %p114, %s115, %s116
    %p120 = pneg %p114
    %p121 = scmp.eq.s32.totalorder %s11, 1
    %p122 = por %p120, %p121
    %p123 = scmp.ne.s32.totalorder %s115, %s118
    %p124 = scmp.eq.s32.totalorder %s11, 0
    %p125 = por %p123, %p124
    %p126 = scmp.ne.s32.totalorder %s115, %s118
    %p127 = scmp.eq.s32.totalorder %s16, 1
    %p128 = por %p126, %p127
    %p129 = scmp.ne.s32.totalorder %s118, %s119
    %p130 = scmp.eq.s32.totalorder %s16, 0
    %p131 = por %p129, %p130
    %p132 = scmp.ne.s32.totalorder %s118, %s119
    %p133 = scmp.eq.s32.totalorder %s17, 1
    %p134 = por %p132, %p133
    %p136 = scmp.ne.s32.totalorder %s119, %s135
    %p137 = scmp.eq.s32.totalorder %s17, 0
    %p138 = por %p136, %p137
    %p139 = scmp.le.s32.totalorder 1, %s11
    %p140 = scmp.lt.s32.totalorder %s11, 3
    %p141 = pnand %p139, %p140
    %p142 = pneg %p141
    // Predicated region
    $region9: #{forward.18} parent=5 // pred_check
      _
    $region10: #{forward.18} parent=5 // pred_check_branch
      %144 = sbr.rel (%p141) target = $region12
    $region11: #{forward.18} parent=5 // pred_region
      %s145 = ssub.s32 %s11, 1
      // Predicated region
      $region13: #{forward.18} parent=11 // pred_check
        %p146 = pneg %p58
      $region14: #{forward.18} parent=11 // pred_check_branch
        %148 = sbr.rel (%p146) target = $region16
      $region15: #{forward.18} parent=11 // pred_region
        _
      $region16: #{forward.18} parent=11 // pred_fallthru
        _
      // Predicated region
      $region17: #{forward.18} parent=11 // pred_check
        %p149 = pneg %p79
      $region18: #{forward.18} parent=11 // pred_check_branch
        %151 = sbr.rel (%p149) target = $region20
      $region19: #{forward.18} parent=11 // pred_region
        _
      $region20: #{forward.18} parent=11 // pred_fallthru
        _
    $region12: #{forward.18} parent=5 // pred_fallthru
      _
    %p152 = scmp.lt.s32.totalorder %s11, 2
    // Predicated region
    $region21: #{forward.18} parent=5 // pred_check
      %p153 = pneg %p152
    $region22: #{forward.18} parent=5 // pred_check_branch
      %155 = sbr.rel (%p153) target = $region24
    $region23: #{forward.18} parent=5 // pred_region
      // Predicated region
      $region25: #{forward.18} parent=23 // pred_check
        %p156 = pneg %p31
      $region26: #{forward.18} parent=23 // pred_check_branch
        %158 = sbr.rel (%p156) target = $region28
      $region27: #{forward.18} parent=23 // pred_region
        %p159 = scmp.lt.s32.totalorder %s11, 1
        %s160 = scalar_select %p159, %s11, 1
        %s161 = smul.addr %s160, 15
        %s162 = smul.addr %s161, 4
        %s163 = scalar_lea.vmem %s0, %s162
      $region28: #{forward.18} parent=23 // pred_fallthru
        _
    $region24: #{forward.18} parent=5 // pred_fallthru
      _
    %p164 = scmp.le.s32.totalorder 1, %s11
    %p165 = scmp.lt.s32.totalorder %s11, 3
    %p166 = pnand %p164, %p165
    %p167 = pneg %p166
    // Predicated region
    $region29: #{forward.18} parent=5 // pred_check
      _
    $region30: #{forward.18} parent=5 // pred_check_branch
      %169 = sbr.rel (%p166) target = $region32
    $region31: #{forward.18} parent=5 // pred_region
      %s170 = ssub.s32 %s11, 1
      %p171 = scmp.lt.s32.totalorder %s16, 1
      %s172 = scalar_select %p171, %s16, 1
      %s173 = smul.addr %s172, 15
      %s174 = smul.addr %s173, 4
      %s175 = scalar_lea.vmem %s0, %s174
      %p176 = pneg %p37
      %p177 = pneg %p34
      %p178 = pneg %p58
      %p179 = pneg %p55
      %p180 = pneg %p79
      %p181 = pneg %p76
      %p182 = pneg %p105
      %p183 = pneg %p102
      %p184 = scmp.lt.s32.totalorder %s16, 1
      %s185 = scalar_select %p184, %s16, 1
      %s186 = smul.addr %s185, 2
      %s187 = smul.addr %s186, 4
      %s188 = scalar_lea.vmem %s3, %s187
      %p189 = pneg %p131
      %p190 = pneg %p128
      %p191 = scmp.lt.s32.totalorder %s16, 1
      %s192 = scalar_select %p191, %s16, 1
      %s193 = smul.addr %s192, 2
      %s194 = scalar_lea.vmem %s4, %s193
      %p195 = scmp.lt.s32.totalorder %s16, 1
      %s196 = scalar_select %p195, %s16, 1
      %s197 = smul.addr %s196, 15
      %s198 = smul.addr %s197, 4
      %s199 = scalar_lea.vmem %s0, %s198
      %p200 = scmp.lt.s32.totalorder %s16, 1
      %s201 = scalar_select %p200, %s16, 1
      %s202 = smul.addr %s201, 2
      %s203 = smul.addr %s202, 4
      %s204 = scalar_lea.vmem %s3, %s203
      %p205 = scmp.lt.s32.totalorder %s16, 1
      %s206 = scalar_select %p205, %s16, 1
      %s207 = smul.addr %s206, 2
      %s208 = scalar_lea.vmem %s4, %s207
      %v210 = vld [vmem:[%s199] sm:$0xff]
      %v211 = vld [vmem:[%s199 + $0x8] sm:$0xff]
      %v212 = vld [vmem:[%s199 + $0x10] sm:$0xf]
      %v213 = vld [vmem:[%s199 + $0x14] sm:$0xff]
      %v214 = vld [vmem:[%s199 + $0x1c] sm:$0xff]
      %v215 = vld [vmem:[%s199 + $0x24] sm:$0xf]
      %v216 = vld [vmem:[%s1] sm:$0xf]
      %v217 = vld [vmem:[%s1 + $0x4] sm:$0xf]
      %v218 = vld [vmem:[%s1 + $0x8] sm:$0xf]
      %v219 = vld [vmem:[%s1 + $0xc] sm:$0xf]
      %v220 = vld [vmem:[%s1 + $0x10] sm:$0xf]
      %v221 = vld [vmem:[%s1 + $0x14] sm:$0xf]
      %v222 = vld [vmem:[%s1 + $0x18] sm:$0xf]
      %v223 = vld [vmem:[%s1 + $0x1c] sm:$0xf]
      %v224 = vld [vmem:[%s1 + $0x20] sm:$0xf]
      %v225 = vld [vmem:[%s1 + $0x24] sm:$0xf]
      %v226 = vld [vmem:[%s1 + $0x28] sm:$0xf]
      %v227 = vld [vmem:[%s1 + $0x2c] sm:$0xf]
      %v228 = vld [vmem:[%s1 + $0x30] sm:$0xf]
      %v229 = vld [vmem:[%s1 + $0x34] sm:$0xf]
      %v230 = vld [vmem:[%s1 + $0x38] sm:$0xf]
      %v231 = vld [vmem:[%s1 + $0x3c] sm:$0xf]
      %v232 = vld [vmem:[%s1 + $0x40] sm:$0xf]
      %v233 = vld [vmem:[%s1 + $0x44] sm:$0xf]
      %v234 = vld [vmem:[%s1 + $0x48] sm:$0xf]
      %v235 = vld [vmem:[%s1 + $0x4c] sm:$0xf]
      %v236 = vld [vmem:[%s1 + $0x50] sm:$0xf]
      %v237 = vld [vmem:[%s1 + $0x54] sm:$0xf]
      %v238 = vld [vmem:[%s1 + $0x58] sm:$0xf]
      %v239 = vld [vmem:[%s1 + $0x5c] sm:$0xf]
      %v240 = vld [vmem:[%s1 + $0x60] sm:$0xf]
      %v241 = vld [vmem:[%s1 + $0x64] sm:$0xf]
      %v242 = vld [vmem:[%s1 + $0x68] sm:$0xf]
      %v243 = vld [vmem:[%s1 + $0x6c] sm:$0xf]
      %v244 = vld [vmem:[%s1 + $0x70] sm:$0xf]
      %v245 = vld [vmem:[%s1 + $0x74] sm:$0xf]
      %v246 = vld [vmem:[%s1 + $0x78] sm:$0xf]
      %v247 = vld [vmem:[%s1 + $0x7c] sm:$0xf]
      %v248 = vld [vmem:[%s1 + $0x80] sm:$0xf]
      %v249 = vld [vmem:[%s1 + $0x84] sm:$0xf]
      %v250 = vld [vmem:[%s1 + $0x88] sm:$0xf]
      %v251 = vld [vmem:[%s1 + $0x8c] sm:$0xf]
      %v252 = vld [vmem:[%s1 + $0x90] sm:$0xf]
      %v253 = vld [vmem:[%s1 + $0x94] sm:$0xf]
      %v254 = vld [vmem:[%s1 + $0x98] sm:$0xf]
      %v255 = vld [vmem:[%s1 + $0x9c] sm:$0xf]
      %v256 = vld [vmem:[%s1 + $0xa0] sm:$0xf]
      %v257 = vld [vmem:[%s1 + $0xa4] sm:$0xf]
      %v258 = vld [vmem:[%s1 + $0xa8] sm:$0xf]
      %v259 = vld [vmem:[%s1 + $0xac] sm:$0xf]
      %v260 = vld [vmem:[%s1 + $0xb0] sm:$0xf]
      %v261 = vld [vmem:[%s1 + $0xb4] sm:$0xf]
      %v262 = vld [vmem:[%s1 + $0xb8] sm:$0xf]
      %v263 = vld [vmem:[%s1 + $0xbc] sm:$0xf]
      %v264 = vld [vmem:[%s1 + $0xc0] sm:$0xf]
      %v265 = vld [vmem:[%s1 + $0xc4] sm:$0xf]
      %v266 = vld [vmem:[%s1 + $0xc8] sm:$0xf]
      %v267 = vld [vmem:[%s1 + $0xcc] sm:$0xf]
      %v268 = vld [vmem:[%s1 + $0xd0] sm:$0xf]
      %v269 = vld [vmem:[%s1 + $0xd4] sm:$0xf]
      %v270 = vld [vmem:[%s1 + $0xd8] sm:$0xf]
      %v271 = vld [vmem:[%s1 + $0xdc] sm:$0xf]
      %v272 = vld [vmem:[%s1 + $0xe0] sm:$0xf]
      %v273 = vld [vmem:[%s1 + $0xe4] sm:$0xf]
      %v274 = vld [vmem:[%s1 + $0xe8] sm:$0xf]
      %v275 = vld [vmem:[%s1 + $0xec] sm:$0xf]
      %v276 = vld [vmem:[%s1 + $0xf0] sm:$0xf]
      %v277 = vld [vmem:[%s1 + $0xf4] sm:$0xf]
      %v278 = vld [vmem:[%s1 + $0xf8] sm:$0xf]
      %v279 = vld [vmem:[%s1 + $0xfc] sm:$0xf]
      %v280 = vld [vmem:[%s1 + $0x100] sm:$0xf]
      %v281 = vld [vmem:[%s1 + $0x104] sm:$0xf]
      %v282 = vld [vmem:[%s1 + $0x108] sm:$0xf]
      %v283 = vld [vmem:[%s1 + $0x10c] sm:$0xf]
      %v284 = vld [vmem:[%s1 + $0x110] sm:$0xf]
      %v285 = vld [vmem:[%s1 + $0x114] sm:$0xf]
      %v286 = vld [vmem:[%s1 + $0x118] sm:$0xf]
      %v287 = vld [vmem:[%s1 + $0x11c] sm:$0xf]
      %v288 = vld [vmem:[%s199 + $0x28] sm:$0x11]
      %v289 = vld [vmem:[%s199 + $0x30] sm:$0x11]
      %v290 = vld [vmem:[%s199 + $0x38] sm:$0x1]
      %s291 = scalar_lea.vmem %s1, 288
      %v292 = vld [vmem:[%s291] sm:$0xf]
      %v293 = vld [vmem:[%s291 + $0x4] sm:$0xf]
      %v294 = vld [vmem:[%s291 + $0x8] sm:$0xf]
      %v295 = vld [vmem:[%s291 + $0xc] sm:$0xf]
      %v296 = vld [vmem:[%s291 + $0x10] sm:$0xf]
      %v297 = vld [vmem:[%s291 + $0x14] sm:$0xf]
      %v298 = vld [vmem:[%s291 + $0x18] sm:$0xf]
      %v299 = vld [vmem:[%s291 + $0x1c] sm:$0xf]
      %v300 = vld [vmem:[%s291 + $0x20] sm:$0xf]
      %v301 = vld [vmem:[%s291 + $0x24] sm:$0xf]
      %v302 = vld [vmem:[%s291 + $0x28] sm:$0xf]
      %v303 = vld [vmem:[%s291 + $0x2c] sm:$0xf]
      %v304 = vld [vmem:[%s291 + $0x30] sm:$0xf]
      %v305 = vld [vmem:[%s291 + $0x34] sm:$0xf]
      %v306 = vld [vmem:[%s291 + $0x38] sm:$0xf]
      %v307 = vld [vmem:[%s291 + $0x3c] sm:$0xf]
      %v308 = vld [vmem:[%s291 + $0x40] sm:$0xf]
      %v309 = vld [vmem:[%s291 + $0x44] sm:$0xf]
      %v310 = vld [vmem:[%s291 + $0x48] sm:$0xf]
      %v311 = vld [vmem:[%s291 + $0x4c] sm:$0xf]
      %v312 = vld [vmem:[%s291 + $0x50] sm:$0xf]
      %v313 = vld [vmem:[%s291 + $0x54] sm:$0xf]
      %v314 = vld [vmem:[%s291 + $0x58] sm:$0xf]
      %v315 = vld [vmem:[%s291 + $0x5c] sm:$0xf]
      %v316 = vld [vmem:[%s291 + $0x60] sm:$0xf]
      %v317 = vld [vmem:[%s291 + $0x64] sm:$0xf]
      %v318 = vld [vmem:[%s291 + $0x68] sm:$0xf]
      %v319 = vld [vmem:[%s291 + $0x6c] sm:$0xf]
      %v320 = vld [vmem:[%s291 + $0x70] sm:$0xf]
      %v321 = vld [vmem:[%s291 + $0x74] sm:$0xf]
      %v322 = vld [vmem:[%s291 + $0x78] sm:$0xf]
      %v323 = vld [vmem:[%s291 + $0x7c] sm:$0xf]
      %v324 = vld [vmem:[%s291 + $0x80] sm:$0xf]
      %v325 = vld [vmem:[%s291 + $0x84] sm:$0xf]
      %v326 = vld [vmem:[%s291 + $0x88] sm:$0xf]
      %v327 = vld [vmem:[%s291 + $0x8c] sm:$0xf]
      %v328 = vld [vmem:[%s291 + $0x90] sm:$0xf]
      %v329 = vld [vmem:[%s291 + $0x94] sm:$0xf]
      %v330 = vld [vmem:[%s291 + $0x98] sm:$0xf]
      %v331 = vld [vmem:[%s291 + $0x9c] sm:$0xf]
      %v332 = vld [vmem:[%s291 + $0xa0] sm:$0xf]
      %v333 = vld [vmem:[%s291 + $0xa4] sm:$0xf]
      %v334 = vld [vmem:[%s291 + $0xa8] sm:$0xf]
      %v335 = vld [vmem:[%s291 + $0xac] sm:$0xf]
      %v336 = vld [vmem:[%s291 + $0xb0] sm:$0xf]
      %v337 = vld [vmem:[%s291 + $0xb4] sm:$0xf]
      %v338 = vld [vmem:[%s291 + $0xb8] sm:$0xf]
      %v339 = vld [vmem:[%s291 + $0xbc] sm:$0xf]
      %v340 = vld [vmem:[%s291 + $0xc0] sm:$0xf]
      %v341 = vld [vmem:[%s291 + $0xc4] sm:$0xf]
      %v342 = vld [vmem:[%s291 + $0xc8] sm:$0xf]
      %v343 = vld [vmem:[%s291 + $0xcc] sm:$0xf]
      %v344 = vld [vmem:[%s291 + $0xd0] sm:$0xf]
      %v345 = vld [vmem:[%s291 + $0xd4] sm:$0xf]
      %v346 = vld [vmem:[%s291 + $0xd8] sm:$0xf]
      %v347 = vld [vmem:[%s291 + $0xdc] sm:$0xf]
      %v348 = vld [vmem:[%s291 + $0xe0] sm:$0xf]
      %v349 = vld [vmem:[%s291 + $0xe4] sm:$0xf]
      %v350 = vld [vmem:[%s291 + $0xe8] sm:$0xf]
      %v351 = vld [vmem:[%s291 + $0xec] sm:$0xf]
      %v352 = vld [vmem:[%s291 + $0xf0] sm:$0xf]
      %v353 = vld [vmem:[%s291 + $0xf4] sm:$0xf]
      %v354 = vld [vmem:[%s291 + $0xf8] sm:$0xf]
      %v355 = vld [vmem:[%s291 + $0xfc] sm:$0xf]
      %v356 = vld [vmem:[%s291 + $0x100] sm:$0xf]
      %v357 = vld [vmem:[%s291 + $0x104] sm:$0xf]
      %v358 = vld [vmem:[%s291 + $0x108] sm:$0xf]
      %v359 = vld [vmem:[%s291 + $0x10c] sm:$0xf]
      %v360 = vld [vmem:[%s291 + $0x110] sm:$0xf]
      %v361 = vld [vmem:[%s291 + $0x114] sm:$0xf]
      %v362 = vld [vmem:[%s291 + $0x118] sm:$0xf]
      %v363 = vld [vmem:[%s291 + $0x11c] sm:$0xf]
      %v373 = vunpack.c.l.b16 %v210
      %v374 = vunpack.c.h.b16 %v210
      %v375 = vunpack.c.l.b16 %v211
      %v376 = vunpack.c.h.b16 %v211
      %v377 = vunpack.c.l.b16 %v212
      %v378 = vunpack.c.l.b16 %v213
      %v379 = vunpack.c.h.b16 %v213
      %v380 = vunpack.c.l.b16 %v214
      %v381 = vunpack.c.h.b16 %v214
      %v382 = vunpack.c.l.b16 %v215
      %v383 = vunpack.c.l.b16 %v288
      %v384 = vunpack.c.h.b16 %v288
      %v385 = vunpack.c.l.b16 %v289
      %v386 = vunpack.c.h.b16 %v289
      %v387 = vunpack.c.l.b16 %v290
      %v388 = vpack.c.b16 %v378, %v373
      %v389 = vpack.c.b16 %v379, %v374
      %v390 = vpack.c.b16 %v380, %v375
      %v391 = vpack.c.b16 %v381, %v376
      %v392 = vpack.c.b16 %v382, %v377
      %v393 = vpack.c.b16 %v383, %v383
      %v394 = vpack.c.b16 %v384, %v384
      %v395 = vpack.c.b16 %v385, %v385
      %v396 = vpack.c.b16 %v386, %v386
      %v397 = vpack.c.b16 %v387, %v387
      %vm398 = vsmask.f32 7424
      %v400 = vshrl.u32 %v388, 16
      %v402 = vshll.u32 %v388, 16
      %v404 = vrot.slane %v402, 1
      %v405 = vor.u32 %v400, %v404
      %v407 = vshll.u32 %v393, 16
      %v409 = vrot.slane %v407, 1
      %v410 = vsel %vm398, %v405, %v409
      %v412 = vshrl.u32 %v389, 16
      %v414 = vshll.u32 %v389, 16
      %v416 = vrot.slane %v414, 1
      %v417 = vor.u32 %v412, %v416
      %v419 = vshll.u32 %v394, 16
      %v421 = vrot.slane %v419, 1
      %v422 = vsel %vm398, %v417, %v421
      %v424 = vshrl.u32 %v390, 16
      %v426 = vshll.u32 %v390, 16
      %v428 = vrot.slane %v426, 1
      %v429 = vor.u32 %v424, %v428
      %v431 = vshll.u32 %v395, 16
      %v433 = vrot.slane %v431, 1
      %v434 = vsel %vm398, %v429, %v433
      %v436 = vshrl.u32 %v391, 16
      %v438 = vshll.u32 %v391, 16
      %v440 = vrot.slane %v438, 1
      %v441 = vor.u32 %v436, %v440
      %v443 = vshll.u32 %v396, 16
      %v445 = vrot.slane %v443, 1
      %v446 = vsel %vm398, %v441, %v445
      %v448 = vshrl.u32 %v392, 16
      %v450 = vshll.u32 %v392, 16
      %v452 = vrot.slane %v450, 1
      %v453 = vor.u32 %v448, %v452
      %v455 = vshll.u32 %v397, 16
      %v457 = vrot.slane %v455, 1
      %v458 = vsel %vm398, %v453, %v457
      %v535 = vunpack.c.l.b16 %v292
      %v536 = vunpack.c.l.b16 %v293
      %v537 = vunpack.c.l.b16 %v294
      %v538 = vunpack.c.l.b16 %v295
      %v539 = vunpack.c.l.b16 %v296
      %v540 = vunpack.c.l.b16 %v297
      %v541 = vunpack.c.l.b16 %v298
      %v542 = vunpack.c.l.b16 %v299
      %v543 = vunpack.c.l.b16 %v300
      %v544 = vunpack.c.l.b16 %v301
      %v545 = vunpack.c.l.b16 %v302
      %v546 = vunpack.c.l.b16 %v303
      %v547 = vunpack.c.l.b16 %v304
      %v548 = vunpack.c.l.b16 %v305
      %v549 = vunpack.c.l.b16 %v306
      %v550 = vunpack.c.l.b16 %v307
      %v551 = vunpack.c.l.b16 %v308
      %v552 = vunpack.c.l.b16 %v309
      %v553 = vunpack.c.l.b16 %v310
      %v554 = vunpack.c.l.b16 %v311
      %v555 = vunpack.c.l.b16 %v312
      %v556 = vunpack.c.l.b16 %v313
      %v557 = vunpack.c.l.b16 %v314
      %v558 = vunpack.c.l.b16 %v315
      %v559 = vunpack.c.l.b16 %v316
      %v560 = vunpack.c.l.b16 %v317
      %v561 = vunpack.c.l.b16 %v318
      %v562 = vunpack.c.l.b16 %v319
      %v563 = vunpack.c.l.b16 %v320
      %v564 = vunpack.c.l.b16 %v321
      %v565 = vunpack.c.l.b16 %v322
      %v566 = vunpack.c.l.b16 %v323
      %v567 = vunpack.c.l.b16 %v324
      %v568 = vunpack.c.l.b16 %v325
      %v569 = vunpack.c.l.b16 %v326
      %v570 = vunpack.c.l.b16 %v327
      %v571 = vunpack.c.l.b16 %v328
      %v572 = vunpack.c.l.b16 %v329
      %v573 = vunpack.c.l.b16 %v330
      %v574 = vunpack.c.l.b16 %v331
      %v575 = vunpack.c.l.b16 %v332
      %v576 = vunpack.c.l.b16 %v333
      %v577 = vunpack.c.l.b16 %v334
      %v578 = vunpack.c.l.b16 %v335
      %v579 = vunpack.c.l.b16 %v336
      %v580 = vunpack.c.l.b16 %v337
      %v581 = vunpack.c.l.b16 %v338
      %v582 = vunpack.c.l.b16 %v339
      %v583 = vunpack.c.l.b16 %v340
      %v584 = vunpack.c.l.b16 %v341
      %v585 = vunpack.c.l.b16 %v342
      %v586 = vunpack.c.l.b16 %v343
      %v587 = vunpack.c.l.b16 %v344
      %v588 = vunpack.c.l.b16 %v345
      %v589 = vunpack.c.l.b16 %v346
      %v590 = vunpack.c.l.b16 %v347
      %v591 = vunpack.c.l.b16 %v348
      %v592 = vunpack.c.l.b16 %v349
      %v593 = vunpack.c.l.b16 %v350
      %v594 = vunpack.c.l.b16 %v351
      %v595 = vunpack.c.l.b16 %v352
      %v596 = vunpack.c.l.b16 %v353
      %v597 = vunpack.c.l.b16 %v354
      %v598 = vunpack.c.l.b16 %v355
      %v599 = vunpack.c.l.b16 %v356
      %v600 = vunpack.c.l.b16 %v357
      %v601 = vunpack.c.l.b16 %v358
      %v602 = vunpack.c.l.b16 %v359
      %v603 = vunpack.c.l.b16 %v360
      %v604 = vunpack.c.l.b16 %v361
      %v605 = vunpack.c.l.b16 %v362
      %v606 = vunpack.c.l.b16 %v363
      %v607 = vpack.c.b16 %v536, %v535
      %v608 = vpack.c.b16 %v538, %v537
      %v609 = vpack.c.b16 %v540, %v539
      %v610 = vpack.c.b16 %v542, %v541
      %v611 = vpack.c.b16 %v544, %v543
      %v612 = vpack.c.b16 %v546, %v545
      %v613 = vpack.c.b16 %v548, %v547
      %v614 = vpack.c.b16 %v550, %v549
      %v615 = vpack.c.b16 %v552, %v551
      %v616 = vpack.c.b16 %v554, %v553
      %v617 = vpack.c.b16 %v556, %v555
      %v618 = vpack.c.b16 %v558, %v557
      %v619 = vpack.c.b16 %v560, %v559
      %v620 = vpack.c.b16 %v562, %v561
      %v621 = vpack.c.b16 %v564, %v563
      %v622 = vpack.c.b16 %v566, %v565
      %v623 = vpack.c.b16 %v568, %v567
      %v624 = vpack.c.b16 %v570, %v569
      %v625 = vpack.c.b16 %v572, %v571
      %v626 = vpack.c.b16 %v574, %v573
      %v627 = vpack.c.b16 %v576, %v575
      %v628 = vpack.c.b16 %v578, %v577
      %v629 = vpack.c.b16 %v580, %v579
      %v630 = vpack.c.b16 %v582, %v581
      %v631 = vpack.c.b16 %v584, %v583
      %v632 = vpack.c.b16 %v586, %v585
      %v633 = vpack.c.b16 %v588, %v587
      %v634 = vpack.c.b16 %v590, %v589
      %v635 = vpack.c.b16 %v592, %v591
      %v636 = vpack.c.b16 %v594, %v593
      %v637 = vpack.c.b16 %v596, %v595
      %v638 = vpack.c.b16 %v598, %v597
      %v639 = vpack.c.b16 %v600, %v599
      %v640 = vpack.c.b16 %v602, %v601
      %v641 = vpack.c.b16 %v604, %v603
      %v642 = vpack.c.b16 %v606, %v605
      %vm679 = vcmask 523264
      %v681 = vsel %vm679, %v458, 0
      %683 = vmatprep.subr.bf16.mxu0 0
      %684 = vmatpush1.bf16.msra.mxu0 %v607
      %685 = vmatprep.subr.bf16.mxu0 0
      %686 = vmatpush1.bf16.msra.mxu0 %v608
      %687 = vmatprep.subr.bf16.mxu0 0
      %688 = vmatpush1.bf16.msra.mxu0 %v609
      %689 = vmatprep.subr.bf16.mxu0 0
      %690 = vmatpush1.bf16.msra.mxu0 %v610
      %691 = vmatprep.subr.bf16.mxu0 0
      %692 = vmatpush1.bf16.msra.mxu0 %v611
      %693 = vmatprep.subr.bf16.mxu0 0
      %694 = vmatpush1.bf16.msra.mxu0 %v612
      %695 = vmatprep.subr.bf16.mxu0 0
      %696 = vmatpush1.bf16.msra.mxu0 %v613
      %697 = vmatprep.subr.bf16.mxu0 0
      %698 = vmatpush1.bf16.msra.mxu0 %v614
      %699 = vmatprep.subr.bf16.mxu0 0
      %700 = vmatpush1.bf16.msra.mxu0 %v615
      %701 = vmatprep.subr.bf16.mxu0 0
      %702 = vmatpush1.bf16.msra.mxu0 %v616
      %703 = vmatprep.subr.bf16.mxu0 0
      %704 = vmatpush1.bf16.msra.mxu0 %v617
      %705 = vmatprep.subr.bf16.mxu0 0
      %706 = vmatpush1.bf16.msra.mxu0 %v618
      %707 = vmatprep.subr.bf16.mxu0 0
      %708 = vmatpush1.bf16.msra.mxu0 %v619
      %709 = vmatprep.subr.bf16.mxu0 0
      %710 = vmatpush1.bf16.msra.mxu0 %v620
      %711 = vmatprep.subr.bf16.mxu0 0
      %712 = vmatpush1.bf16.msra.mxu0 %v621
      %713 = vmatprep.subr.bf16.mxu0 0
      %714 = vmatpush1.bf16.msra.mxu0 %v622
      %715 = vmatprep.mubr.bf16.mxu0 %v422
      %716 = vmatmul.mubr.bf16.gmra.mrb[0].mxu0 %v410
      %v717 = vpop.f32.mrb[0].mxu0
      %v718 = vadd.f32 0.0, %v717
      %v719 = vpop.f32.mrb[0].mxu0
      %v720 = vpop.f32.mrb[0].mxu0
      %v721 = vadd.f32 0.0, %v720
      %v722 = vpop.f32.mrb[0].mxu0
      %723 = vdwg.mxu0
      %724 = vmatprep.subr.bf16.mxu0 0
      %725 = vmatpush1.bf16.msra.mxu0 %v623
      %726 = vmatprep.subr.bf16.mxu0 0
      %727 = vmatpush1.bf16.msra.mxu0 %v624
      %728 = vmatprep.subr.bf16.mxu0 0
      %729 = vmatpush1.bf16.msra.mxu0 %v625
      %730 = vmatprep.subr.bf16.mxu0 0
      %731 = vmatpush1.bf16.msra.mxu0 %v626
      %732 = vmatprep.subr.bf16.mxu0 0
      %733 = vmatpush1.bf16.msra.mxu0 %v627
      %734 = vmatprep.subr.bf16.mxu0 0
      %735 = vmatpush1.bf16.msra.mxu0 %v628
      %736 = vmatprep.subr.bf16.mxu0 0
      %737 = vmatpush1.bf16.msra.mxu0 %v629
      %738 = vmatprep.subr.bf16.mxu0 0
      %739 = vmatpush1.bf16.msra.mxu0 %v630
      %740 = vmatprep.subr.bf16.mxu0 0
      %741 = vmatpush1.bf16.msra.mxu0 %v631
      %742 = vmatprep.subr.bf16.mxu0 0
      %743 = vmatpush1.bf16.msra.mxu0 %v632
      %744 = vmatprep.subr.bf16.mxu0 0
      %745 = vmatpush1.bf16.msra.mxu0 %v633
      %746 = vmatprep.subr.bf16.mxu0 0
      %747 = vmatpush1.bf16.msra.mxu0 %v634
      %748 = vmatprep.subr.bf16.mxu0 0
      %749 = vmatpush1.bf16.msra.mxu0 %v635
      %750 = vmatprep.subr.bf16.mxu0 0
      %751 = vmatpush1.bf16.msra.mxu0 %v636
      %752 = vmatprep.subr.bf16.mxu0 0
      %753 = vmatpush1.bf16.msra.mxu0 %v637
      %754 = vmatprep.subr.bf16.mxu0 0
      %755 = vmatpush1.bf16.msra.mxu0 %v638
      %756 = vmatprep.mubr.bf16.mxu0 %v446
      %757 = vmatmul.mubr.bf16.gmra.mrb[0].mxu0 %v434
      %v758 = vpop.f32.mrb[0].mxu0
      %v759 = vadd.f32 %v718, %v758
      %v760 = vpop.f32.mrb[0].mxu0
      %v761 = vpop.f32.mrb[0].mxu0
      %v762 = vadd.f32 %v721, %v761
      %v763 = vpop.f32.mrb[0].mxu0
      %764 = vdwg.mxu0
      %765 = vmatprep.subr.bf16.mxu0 0
      %766 = vmatpush1.bf16.msra.mxu0 %v639
      %767 = vmatprep.subr.bf16.mxu0 0
      %768 = vmatpush1.bf16.msra.mxu0 %v640
      %769 = vmatprep.subr.bf16.mxu0 0
      %770 = vmatpush1.bf16.msra.mxu0 %v641
      %771 = vmatprep.subr.bf16.mxu0 0
      %772 = vmatpush1.bf16.msra.mxu0 %v642
      %773 = vmatprep.subr.bf16.mxu0 0
      %774 = vmatpush1.bf16.msra.mxu0 0
      %775 = vmatprep.subr.bf16.mxu0 0
      %776 = vmatpush1.bf16.msra.mxu0 0
      %777 = vmatprep.subr.bf16.mxu0 0
      %778 = vmatpush1.bf16.msra.mxu0 0
      %779 = vmatprep.subr.bf16.mxu0 0
      %780 = vmatpush1.bf16.msra.mxu0 0
      %781 = vmatprep.subr.bf16.mxu0 0
      %782 = vmatpush1.bf16.msra.mxu0 0
      %783 = vmatprep.subr.bf16.mxu0 0
      %784 = vmatpush1.bf16.msra.mxu0 0
      %785 = vmatprep.subr.bf16.mxu0 0
      %786 = vmatpush1.bf16.msra.mxu0 0
      %787 = vmatprep.subr.bf16.mxu0 0
      %788 = vmatpush1.bf16.msra.mxu0 0
      %789 = vmatprep.subr.bf16.mxu0 0
      %790 = vmatpush1.bf16.msra.mxu0 0
      %791 = vmatprep.subr.bf16.mxu0 0
      %792 = vmatpush1.bf16.msra.mxu0 0
      %793 = vmatprep.subr.bf16.mxu0 0
      %794 = vmatpush1.bf16.msra.mxu0 0
      %795 = vmatprep.subr.bf16.mxu0 0
      %796 = vmatpush1.bf16.msra.mxu0 0
      %797 = vmatprep.mubr.bf16.mxu0 0
      %798 = vmatmul.mubr.bf16.gmra.mrb[0].mxu0 %v681
      %v799 = vpop.f32.mrb[0].mxu0
      %v800 = vadd.f32 %v759, %v799
      %v801 = vpop.f32.mrb[0].mxu0
      %v802 = vpop.f32.mrb[0].mxu0
      %v803 = vadd.f32 %v762, %v802
      %v804 = vpop.f32.mrb[0].mxu0
      %805 = vdwg.mxu0
      %v882 = vunpack.c.l.b16 %v216
      %v883 = vunpack.c.l.b16 %v217
      %v884 = vunpack.c.l.b16 %v218
      %v885 = vunpack.c.l.b16 %v219
      %v886 = vunpack.c.l.b16 %v220
      %v887 = vunpack.c.l.b16 %v221
      %v888 = vunpack.c.l.b16 %v222
      %v889 = vunpack.c.l.b16 %v223
      %v890 = vunpack.c.l.b16 %v224
      %v891 = vunpack.c.l.b16 %v225
      %v892 = vunpack.c.l.b16 %v226
      %v893 = vunpack.c.l.b16 %v227
      %v894 = vunpack.c.l.b16 %v228
      %v895 = vunpack.c.l.b16 %v229
      %v896 = vunpack.c.l.b16 %v230
      %v897 = vunpack.c.l.b16 %v231
      %v898 = vunpack.c.l.b16 %v232
      %v899 = vunpack.c.l.b16 %v233
      %v900 = vunpack.c.l.b16 %v234
      %v901 = vunpack.c.l.b16 %v235
      %v902 = vunpack.c.l.b16 %v236
      %v903 = vunpack.c.l.b16 %v237
      %v904 = vunpack.c.l.b16 %v238
      %v905 = vunpack.c.l.b16 %v239
      %v906 = vunpack.c.l.b16 %v240
      %v907 = vunpack.c.l.b16 %v241
      %v908 = vunpack.c.l.b16 %v242
      %v909 = vunpack.c.l.b16 %v243
      %v910 = vunpack.c.l.b16 %v244
      %v911 = vunpack.c.l.b16 %v245
      %v912 = vunpack.c.l.b16 %v246
      %v913 = vunpack.c.l.b16 %v247
      %v914 = vunpack.c.l.b16 %v248
      %v915 = vunpack.c.l.b16 %v249
      %v916 = vunpack.c.l.b16 %v250
      %v917 = vunpack.c.l.b16 %v251
      %v918 = vunpack.c.l.b16 %v252
      %v919 = vunpack.c.l.b16 %v253
      %v920 = vunpack.c.l.b16 %v254
      %v921 = vunpack.c.l.b16 %v255
      %v922 = vunpack.c.l.b16 %v256
      %v923 = vunpack.c.l.b16 %v257
      %v924 = vunpack.c.l.b16 %v258
      %v925 = vunpack.c.l.b16 %v259
      %v926 = vunpack.c.l.b16 %v260
      %v927 = vunpack.c.l.b16 %v261
      %v928 = vunpack.c.l.b16 %v262
      %v929 = vunpack.c.l.b16 %v263
      %v930 = vunpack.c.l.b16 %v264
      %v931 = vunpack.c.l.b16 %v265
      %v932 = vunpack.c.l.b16 %v266
      %v933 = vunpack.c.l.b16 %v267
      %v934 = vunpack.c.l.b16 %v268
      %v935 = vunpack.c.l.b16 %v269
      %v936 = vunpack.c.l.b16 %v270
      %v937 = vunpack.c.l.b16 %v271
      %v938 = vunpack.c.l.b16 %v272
      %v939 = vunpack.c.l.b16 %v273
      %v940 = vunpack.c.l.b16 %v274
      %v941 = vunpack.c.l.b16 %v275
      %v942 = vunpack.c.l.b16 %v276
      %v943 = vunpack.c.l.b16 %v277
      %v944 = vunpack.c.l.b16 %v278
      %v945 = vunpack.c.l.b16 %v279
      %v946 = vunpack.c.l.b16 %v280
      %v947 = vunpack.c.l.b16 %v281
      %v948 = vunpack.c.l.b16 %v282
      %v949 = vunpack.c.l.b16 %v283
      %v950 = vunpack.c.l.b16 %v284
      %v951 = vunpack.c.l.b16 %v285
      %v952 = vunpack.c.l.b16 %v286
      %v953 = vunpack.c.l.b16 %v287
      %v954 = vpack.c.b16 %v883, %v882
      %v955 = vpack.c.b16 %v885, %v884
      %v956 = vpack.c.b16 %v887, %v886
      %v957 = vpack.c.b16 %v889, %v888
      %v958 = vpack.c.b16 %v891, %v890
      %v959 = vpack.c.b16 %v893, %v892
      %v960 = vpack.c.b16 %v895, %v894
      %v961 = vpack.c.b16 %v897, %v896
      %v962 = vpack.c.b16 %v899, %v898
      %v963 = vpack.c.b16 %v901, %v900
      %v964 = vpack.c.b16 %v903, %v902
      %v965 = vpack.c.b16 %v905, %v904
      %v966 = vpack.c.b16 %v907, %v906
      %v967 = vpack.c.b16 %v909, %v908
      %v968 = vpack.c.b16 %v911, %v910
      %v969 = vpack.c.b16 %v913, %v912
      %v970 = vpack.c.b16 %v915, %v914
      %v971 = vpack.c.b16 %v917, %v916
      %v972 = vpack.c.b16 %v919, %v918
      %v973 = vpack.c.b16 %v921, %v920
      %v974 = vpack.c.b16 %v923, %v922
      %v975 = vpack.c.b16 %v925, %v924
      %v976 = vpack.c.b16 %v927, %v926
      %v977 = vpack.c.b16 %v929, %v928
      %v978 = vpack.c.b16 %v931, %v930
      %v979 = vpack.c.b16 %v933, %v932
      %v980 = vpack.c.b16 %v935, %v934
      %v981 = vpack.c.b16 %v937, %v936
      %v982 = vpack.c.b16 %v939, %v938
      %v983 = vpack.c.b16 %v941, %v940
      %v984 = vpack.c.b16 %v943, %v942
      %v985 = vpack.c.b16 %v945, %v944
      %v986 = vpack.c.b16 %v947, %v946
      %v987 = vpack.c.b16 %v949, %v948
      %v988 = vpack.c.b16 %v951, %v950
      %v989 = vpack.c.b16 %v953, %v952
      %v1026 = vsel %vm679, %v392, 0
      %1028 = vmatprep.subr.bf16.mxu0 0
      %1029 = vmatpush1.bf16.msra.mxu0 %v954
      %1030 = vmatprep.subr.bf16.mxu0 0
      %1031 = vmatpush1.bf16.msra.mxu0 %v955
      %1032 = vmatprep.subr.bf16.mxu0 0
      %1033 = vmatpush1.bf16.msra.mxu0 %v956
      %1034 = vmatprep.subr.bf16.mxu0 0
      %1035 = vmatpush1.bf16.msra.mxu0 %v957
      %1036 = vmatprep.subr.bf16.mxu0 0
      %1037 = vmatpush1.bf16.msra.mxu0 %v958
      %1038 = vmatprep.subr.bf16.mxu0 0
      %1039 = vmatpush1.bf16.msra.mxu0 %v959
      %1040 = vmatprep.subr.bf16.mxu0 0
      %1041 = vmatpush1.bf16.msra.mxu0 %v960
      %1042 = vmatprep.subr.bf16.mxu0 0
      %1043 = vmatpush1.bf16.msra.mxu0 %v961
      %1044 = vmatprep.subr.bf16.mxu0 0
      %1045 = vmatpush1.bf16.msra.mxu0 %v962
      %1046 = vmatprep.subr.bf16.mxu0 0
      %1047 = vmatpush1.bf16.msra.mxu0 %v963
      %1048 = vmatprep.subr.bf16.mxu0 0
      %1049 = vmatpush1.bf16.msra.mxu0 %v964
      %1050 = vmatprep.subr.bf16.mxu0 0
      %1051 = vmatpush1.bf16.msra.mxu0 %v965
      %1052 = vmatprep.subr.bf16.mxu0 0
      %1053 = vmatpush1.bf16.msra.mxu0 %v966
      %1054 = vmatprep.subr.bf16.mxu0 0
      %1055 = vmatpush1.bf16.msra.mxu0 %v967
      %1056 = vmatprep.subr.bf16.mxu0 0
      %1057 = vmatpush1.bf16.msra.mxu0 %v968
      %1058 = vmatprep.subr.bf16.mxu0 0
      %1059 = vmatpush1.bf16.msra.mxu0 %v969
      %1060 = vmatprep.mubr.bf16.mxu0 %v389
      %1061 = vmatmul.mubr.bf16.gmra.mrb[0].mxu0 %v388
      %v1062 = vpop.f32.mrb[0].mxu0
      %v1063 = vadd.f32 %v800, %v1062
      %v1064 = vpop.f32.mrb[0].mxu0
      %v1065 = vpop.f32.mrb[0].mxu0
      %v1066 = vadd.f32 %v803, %v1065
      %v1067 = vpop.f32.mrb[0].mxu0
      %1068 = vdwg.mxu0
      %1069 = vmatprep.subr.bf16.mxu0 0
      %1070 = vmatpush1.bf16.msra.mxu0 %v970
      %1071 = vmatprep.subr.bf16.mxu0 0
      %1072 = vmatpush1.bf16.msra.mxu0 %v971
      %1073 = vmatprep.subr.bf16.mxu0 0
      %1074 = vmatpush1.bf16.msra.mxu0 %v972
      %1075 = vmatprep.subr.bf16.mxu0 0
      %1076 = vmatpush1.bf16.msra.mxu0 %v973
      %1077 = vmatprep.subr.bf16.mxu0 0
      %1078 = vmatpush1.bf16.msra.mxu0 %v974
      %1079 = vmatprep.subr.bf16.mxu0 0
      %1080 = vmatpush1.bf16.msra.mxu0 %v975
      %1081 = vmatprep.subr.bf16.mxu0 0
      %1082 = vmatpush1.bf16.msra.mxu0 %v976
      %1083 = vmatprep.subr.bf16.mxu0 0
      %1084 = vmatpush1.bf16.msra.mxu0 %v977
      %1085 = vmatprep.subr.bf16.mxu0 0
      %1086 = vmatpush1.bf16.msra.mxu0 %v978
      %1087 = vmatprep.subr.bf16.mxu0 0
      %1088 = vmatpush1.bf16.msra.mxu0 %v979
      %1089 = vmatprep.subr.bf16.mxu0 0
      %1090 = vmatpush1.bf16.msra.mxu0 %v980
      %1091 = vmatprep.subr.bf16.mxu0 0
      %1092 = vmatpush1.bf16.msra.mxu0 %v981
      %1093 = vmatprep.subr.bf16.mxu0 0
      %1094 = vmatpush1.bf16.msra.mxu0 %v982
      %1095 = vmatprep.subr.bf16.mxu0 0
      %1096 = vmatpush1.bf16.msra.mxu0 %v983
      %1097 = vmatprep.subr.bf16.mxu0 0
      %1098 = vmatpush1.bf16.msra.mxu0 %v984
      %1099 = vmatprep.subr.bf16.mxu0 0
      %1100 = vmatpush1.bf16.msra.mxu0 %v985
      %1101 = vmatprep.mubr.bf16.mxu0 %v391
      %1102 = vmatmul.mubr.bf16.gmra.mrb[0].mxu0 %v390
      %v1103 = vpop.f32.mrb[0].mxu0
      %v1104 = vadd.f32 %v1063, %v1103
      %v1105 = vpop.f32.mrb[0].mxu0
      %v1106 = vpop.f32.mrb[0].mxu0
      %v1107 = vadd.f32 %v1066, %v1106
      %v1108 = vpop.f32.mrb[0].mxu0
      %1109 = vdwg.mxu0
      %1110 = vmatprep.subr.bf16.mxu0 0
      %1111 = vmatpush1.bf16.msra.mxu0 %v986
      %1112 = vmatprep.subr.bf16.mxu0 0
      %1113 = vmatpush1.bf16.msra.mxu0 %v987
      %1114 = vmatprep.subr.bf16.mxu0 0
      %1115 = vmatpush1.bf16.msra.mxu0 %v988
      %1116 = vmatprep.subr.bf16.mxu0 0
      %1117 = vmatpush1.bf16.msra.mxu0 %v989
      %1118 = vmatprep.subr.bf16.mxu0 0
      %1119 = vmatpush1.bf16.msra.mxu0 0
      %1120 = vmatprep.subr.bf16.mxu0 0
      %1121 = vmatpush1.bf16.msra.mxu0 0
      %1122 = vmatprep.subr.bf16.mxu0 0
      %1123 = vmatpush1.bf16.msra.mxu0 0
      %1124 = vmatprep.subr.bf16.mxu0 0
      %1125 = vmatpush1.bf16.msra.mxu0 0
      %1126 = vmatprep.subr.bf16.mxu0 0
      %1127 = vmatpush1.bf16.msra.mxu0 0
      %1128 = vmatprep.subr.bf16.mxu0 0
      %1129 = vmatpush1.bf16.msra.mxu0 0
      %1130 = vmatprep.subr.bf16.mxu0 0
      %1131 = vmatpush1.bf16.msra.mxu0 0
      %1132 = vmatprep.subr.bf16.mxu0 0
      %1133 = vmatpush1.bf16.msra.mxu0 0
      %1134 = vmatprep.subr.bf16.mxu0 0
      %1135 = vmatpush1.bf16.msra.mxu0 0
      %1136 = vmatprep.subr.bf16.mxu0 0
      %1137 = vmatpush1.bf16.msra.mxu0 0
      %1138 = vmatprep.subr.bf16.mxu0 0
      %1139 = vmatpush1.bf16.msra.mxu0 0
      %1140 = vmatprep.subr.bf16.mxu0 0
      %1141 = vmatpush1.bf16.msra.mxu0 0
      %1142 = vmatprep.mubr.bf16.mxu0 0
      %1143 = vmatmul.mubr.bf16.gmra.mrb[0].mxu0 %v1026
      %v1144 = vpop.f32.mrb[0].mxu0
      %v1145 = vadd.f32 %v1104, %v1144
      %v1146 = vpop.f32.mrb[0].mxu0
      %v1147 = vpop.f32.mrb[0].mxu0
      %v1148 = vadd.f32 %v1107, %v1147
      %v1149 = vpop.f32.mrb[0].mxu0
      %1150 = vdwg.mxu0
      %v1151 = vld [vmem:[%s199] sm:$0xee]
      %v1152 = vld [vmem:[%s199 + $0x8] sm:$0xee]
      %v1153 = vld [vmem:[%s199 + $0x10] sm:$0xe]
      %s1154 = scalar_lea.vmem %s1, 576
      %v1155 = vld [vmem:[%s1154] sm:$0xf]
      %v1156 = vld [vmem:[%s1154 + $0x4] sm:$0xf]
      %v1157 = vld [vmem:[%s1154 + $0x8] sm:$0xf]
      %v1158 = vld [vmem:[%s1154 + $0xc] sm:$0xf]
      %v1159 = vld [vmem:[%s1154 + $0x10] sm:$0xf]
      %v1160 = vld [vmem:[%s1154 + $0x14] sm:$0xf]
      %v1161 = vld [vmem:[%s1154 + $0x18] sm:$0xf]
      %v1162 = vld [vmem:[%s1154 + $0x1c] sm:$0xf]
      %v1163 = vld [vmem:[%s1154 + $0x20] sm:$0xf]
      %v1164 = vld [vmem:[%s1154 + $0x24] sm:$0xf]
      %v1165 = vld [vmem:[%s1154 + $0x28] sm:$0xf]
      %v1166 = vld [vmem:[%s1154 + $0x2c] sm:$0xf]
      %v1167 = vld [vmem:[%s1154 + $0x30] sm:$0xf]
      %v1168 = vld [vmem:[%s1154 + $0x34] sm:$0xf]
      %v1169 = vld [vmem:[%s1154 + $0x38] sm:$0xf]
      %v1170 = vld [vmem:[%s1154 + $0x3c] sm:$0xf]
      %v1171 = vld [vmem:[%s1154 + $0x40] sm:$0xf]
      %v1172 = vld [vmem:[%s1154 + $0x44] sm:$0xf]
      %v1173 = vld [vmem:[%s1154 + $0x48] sm:$0xf]
      %v1174 = vld [vmem:[%s1154 + $0x4c] sm:$0xf]
      %v1175 = vld [vmem:[%s1154 + $0x50] sm:$0xf]
      %v1176 = vld [vmem:[%s1154 + $0x54] sm:$0xf]
      %v1177 = vld [vmem:[%s1154 + $0x58] sm:$0xf]
      %v1178 = vld [vmem:[%s1154 + $0x5c] sm:$0xf]
      %v1179 = vld [vmem:[%s1154 + $0x60] sm:$0xf]
      %v1180 = vld [vmem:[%s1154 + $0x64] sm:$0xf]
      %v1181 = vld [vmem:[%s1154 + $0x68] sm:$0xf]
      %v1182 = vld [vmem:[%s1154 + $0x6c] sm:$0xf]
      %v1183 = vld [vmem:[%s1154 + $0x70] sm:$0xf]
      %v1184 = vld [vmem:[%s1154 + $0x74] sm:$0xf]
      %v1185 = vld [vmem:[%s1154 + $0x78] sm:$0xf]
      %v1186 = vld [vmem:[%s1154 + $0x7c] sm:$0xf]
      %v1187 = vld [vmem:[%s1154 + $0x80] sm:$0xf]
      %v1188 = vld [vmem:[%s1154 + $0x84] sm:$0xf]
      %v1189 = vld [vmem:[%s1154 + $0x88] sm:$0xf]
      %v1190 = vld [vmem:[%s1154 + $0x8c] sm:$0xf]
      %v1191 = vld [vmem:[%s1154 + $0x90] sm:$0xf]
      %v1192 = vld [vmem:[%s1154 + $0x94] sm:$0xf]
      %v1193 = vld [vmem:[%s1154 + $0x98] sm:$0xf]
      %v1194 = vld [vmem:[%s1154 + $0x9c] sm:$0xf]
      %v1195 = vld [vmem:[%s1154 + $0xa0] sm:$0xf]
      %v1196 = vld [vmem:[%s1154 + $0xa4] sm:$0xf]
      %v1197 = vld [vmem:[%s1154 + $0xa8] sm:$0xf]
      %v1198 = vld [vmem:[%s1154 + $0xac] sm:$0xf]
      %v1199 = vld [vmem:[%s1154 + $0xb0] sm:$0xf]
      %v1200 = vld [vmem:[%s1154 + $0xb4] sm:$0xf]
      %v1201 = vld [vmem:[%s1154 + $0xb8] sm:$0xf]
      %v1202 = vld [vmem:[%s1154 + $0xbc] sm:$0xf]
      %v1203 = vld [vmem:[%s1154 + $0xc0] sm:$0xf]
      %v1204 = vld [vmem:[%s1154 + $0xc4] sm:$0xf]
      %v1205 = vld [vmem:[%s1154 + $0xc8] sm:$0xf]
      %v1206 = vld [vmem:[%s1154 + $0xcc] sm:$0xf]
      %v1207 = vld [vmem:[%s1154 + $0xd0] sm:$0xf]
      %v1208 = vld [vmem:[%s1154 + $0xd4] sm:$0xf]
      %v1209 = vld [vmem:[%s1154 + $0xd8] sm:$0xf]
      %v1210 = vld [vmem:[%s1154 + $0xdc] sm:$0xf]
      %v1211 = vld [vmem:[%s1154 + $0xe0] sm:$0xf]
      %v1212 = vld [vmem:[%s1154 + $0xe4] sm:$0xf]
      %v1213 = vld [vmem:[%s1154 + $0xe8] sm:$0xf]
      %v1214 = vld [vmem:[%s1154 + $0xec] sm:$0xf]
      %v1215 = vld [vmem:[%s1154 + $0xf0] sm:$0xf]
      %v1216 = vld [vmem:[%s1154 + $0xf4] sm:$0xf]
      %v1217 = vld [vmem:[%s1154 + $0xf8] sm:$0xf]
      %v1218 = vld [vmem:[%s1154 + $0xfc] sm:$0xf]
      %v1219 = vld [vmem:[%s1154 + $0x100] sm:$0xf]
      %v1220 = vld [vmem:[%s1154 + $0x104] sm:$0xf]
      %v1221 = vld [vmem:[%s1154 + $0x108] sm:$0xf]
      %v1222 = vld [vmem:[%s1154 + $0x10c] sm:$0xf]
      %v1223 = vld [vmem:[%s1154 + $0x110] sm:$0xf]
      %v1224 = vld [vmem:[%s1154 + $0x114] sm:$0xf]
      %v1225 = vld [vmem:[%s1154 + $0x118] sm:$0xf]
      %v1226 = vld [vmem:[%s1154 + $0x11c] sm:$0xf]
      %v1230 = vunpack.c.l.b16 %v1151
      %v1231 = vunpack.c.h.b16 %v1151
      %v1232 = vunpack.c.l.b16 %v1152
      %v1233 = vunpack.c.h.b16 %v1152
      %v1234 = vunpack.c.l.b16 %v1153
      %v1235 = vpack.c.b16 %v378, %v1230
      %v1236 = vpack.c.b16 %v379, %v1231
      %v1237 = vpack.c.b16 %v380, %v1232
      %v1238 = vpack.c.b16 %v381, %v1233
      %v1239 = vpack.c.b16 %v382, %v1234
      %vm1240 = vcmask 1046528
      %v1241 = vrot.slane %v1235, 1
      %v1242 = vrot.slane %v393, 1
      %v1243 = vsel %vm1240, %v1241, %v1242
      %v1244 = vrot.slane %v1236, 1
      %v1245 = vrot.slane %v394, 1
      %v1246 = vsel %vm1240, %v1244, %v1245
      %v1247 = vrot.slane %v1237, 1
      %v1248 = vrot.slane %v395, 1
      %v1249 = vsel %vm1240, %v1247, %v1248
      %v1250 = vrot.slane %v1238, 1
      %v1251 = vrot.slane %v396, 1
      %v1252 = vsel %vm1240, %v1250, %v1251
      %v1253 = vrot.slane %v1239, 1
      %v1254 = vrot.slane %v397, 1
      %v1255 = vsel %vm1240, %v1253, %v1254
      %v1332 = vunpack.c.l.b16 %v1155
      %v1333 = vunpack.c.l.b16 %v1156
      %v1334 = vunpack.c.l.b16 %v1157
      %v1335 = vunpack.c.l.b16 %v1158
      %v1336 = vunpack.c.l.b16 %v1159
      %v1337 = vunpack.c.l.b16 %v1160
      %v1338 = vunpack.c.l.b16 %v1161
      %v1339 = vunpack.c.l.b16 %v1162
      %v1340 = vunpack.c.l.b16 %v1163
      %v1341 = vunpack.c.l.b16 %v1164
      %v1342 = vunpack.c.l.b16 %v1165
      %v1343 = vunpack.c.l.b16 %v1166
      %v1344 = vunpack.c.l.b16 %v1167
      %v1345 = vunpack.c.l.b16 %v1168
      %v1346 = vunpack.c.l.b16 %v1169
      %v1347 = vunpack.c.l.b16 %v1170
      %v1348 = vunpack.c.l.b16 %v1171
      %v1349 = vunpack.c.l.b16 %v1172
      %v1350 = vunpack.c.l.b16 %v1173
      %v1351 = vunpack.c.l.b16 %v1174
      %v1352 = vunpack.c.l.b16 %v1175
      %v1353 = vunpack.c.l.b16 %v1176
      %v1354 = vunpack.c.l.b16 %v1177
      %v1355 = vunpack.c.l.b16 %v1178
      %v1356 = vunpack.c.l.b16 %v1179
      %v1357 = vunpack.c.l.b16 %v1180
      %v1358 = vunpack.c.l.b16 %v1181
      %v1359 = vunpack.c.l.b16 %v1182
      %v1360 = vunpack.c.l.b16 %v1183
      %v1361 = vunpack.c.l.b16 %v1184
      %v1362 = vunpack.c.l.b16 %v1185
      %v1363 = vunpack.c.l.b16 %v1186
      %v1364 = vunpack.c.l.b16 %v1187
      %v1365 = vunpack.c.l.b16 %v1188
      %v1366 = vunpack.c.l.b16 %v1189
      %v1367 = vunpack.c.l.b16 %v1190
      %v1368 = vunpack.c.l.b16 %v1191
      %v1369 = vunpack.c.l.b16 %v1192
      %v1370 = vunpack.c.l.b16 %v1193
      %v1371 = vunpack.c.l.b16 %v1194
      %v1372 = vunpack.c.l.b16 %v1195
      %v1373 = vunpack.c.l.b16 %v1196
      %v1374 = vunpack.c.l.b16 %v1197
      %v1375 = vunpack.c.l.b16 %v1198
      %v1376 = vunpack.c.l.b16 %v1199
      %v1377 = vunpack.c.l.b16 %v1200
      %v1378 = vunpack.c.l.b16 %v1201
      %v1379 = vunpack.c.l.b16 %v1202
      %v1380 = vunpack.c.l.b16 %v1203
      %v1381 = vunpack.c.l.b16 %v1204
      %v1382 = vunpack.c.l.b16 %v1205
      %v1383 = vunpack.c.l.b16 %v1206
      %v1384 = vunpack.c.l.b16 %v1207
      %v1385 = vunpack.c.l.b16 %v1208
      %v1386 = vunpack.c.l.b16 %v1209
      %v1387 = vunpack.c.l.b16 %v1210
      %v1388 = vunpack.c.l.b16 %v1211
      %v1389 = vunpack.c.l.b16 %v1212
      %v1390 = vunpack.c.l.b16 %v1213
      %v1391 = vunpack.c.l.b16 %v1214
      %v1392 = vunpack.c.l.b16 %v1215
      %v1393 = vunpack.c.l.b16 %v1216
      %v1394 = vunpack.c.l.b16 %v1217
      %v1395 = vunpack.c.l.b16 %v1218
      %v1396 = vunpack.c.l.b16 %v1219
      %v1397 = vunpack.c.l.b16 %v1220
      %v1398 = vunpack.c.l.b16 %v1221
      %v1399 = vunpack.c.l.b16 %v1222
      %v1400 = vunpack.c.l.b16 %v1223
      %v1401 = vunpack.c.l.b16 %v1224
      %v1402 = vunpack.c.l.b16 %v1225
      %v1403 = vunpack.c.l.b16 %v1226
      %v1404 = vpack.c.b16 %v1333, %v1332
      %v1405 = vpack.c.b16 %v1335, %v1334
      %v1406 = vpack.c.b16 %v1337, %v1336
      %v1407 = vpack.c.b16 %v1339, %v1338
      %v1408 = vpack.c.b16 %v1341, %v1340
      %v1409 = vpack.c.b16 %v1343, %v1342
      %v1410 = vpack.c.b16 %v1345, %v1344
      %v1411 = vpack.c.b16 %v1347, %v1346
      %v1412 = vpack.c.b16 %v1349, %v1348
      %v1413 = vpack.c.b16 %v1351, %v1350
      %v1414 = vpack.c.b16 %v1353, %v1352
      %v1415 = vpack.c.b16 %v1355, %v1354
      %v1416 = vpack.c.b16 %v1357, %v1356
      %v1417 = vpack.c.b16 %v1359, %v1358
      %v1418 = vpack.c.b16 %v1361, %v1360
      %v1419 = vpack.c.b16 %v1363, %v1362
      %v1420 = vpack.c.b16 %v1365, %v1364
      %v1421 = vpack.c.b16 %v1367, %v1366
      %v1422 = vpack.c.b16 %v1369, %v1368
      %v1423 = vpack.c.b16 %v1371, %v1370
      %v1424 = vpack.c.b16 %v1373, %v1372
      %v1425 = vpack.c.b16 %v1375, %v1374
      %v1426 = vpack.c.b16 %v1377, %v1376
      %v1427 = vpack.c.b16 %v1379, %v1378
      %v1428 = vpack.c.b16 %v1381, %v1380
      %v1429 = vpack.c.b16 %v1383, %v1382
      %v1430 = vpack.c.b16 %v1385, %v1384
      %v1431 = vpack.c.b16 %v1387, %v1386
      %v1432 = vpack.c.b16 %v1389, %v1388
      %v1433 = vpack.c.b16 %v1391, %v1390
      %v1434 = vpack.c.b16 %v1393, %v1392
      %v1435 = vpack.c.b16 %v1395, %v1394
      %v1436 = vpack.c.b16 %v1397, %v1396
      %v1437 = vpack.c.b16 %v1399, %v1398
      %v1438 = vpack.c.b16 %v1401, %v1400
      %v1439 = vpack.c.b16 %v1403, %v1402
      %v1477 = vsel %vm679, %v1255, 0
      %1479 = vmatprep.subr.bf16.mxu0 0
      %1480 = vmatpush1.bf16.msra.mxu0 %v1404
      %1481 = vmatprep.subr.bf16.mxu0 0
      %1482 = vmatpush1.bf16.msra.mxu0 %v1405
      %1483 = vmatprep.subr.bf16.mxu0 0
      %1484 = vmatpush1.bf16.msra.mxu0 %v1406
      %1485 = vmatprep.subr.bf16.mxu0 0
      %1486 = vmatpush1.bf16.msra.mxu0 %v1407
      %1487 = vmatprep.subr.bf16.mxu0 0
      %1488 = vmatpush1.bf16.msra.mxu0 %v1408
      %1489 = vmatprep.subr.bf16.mxu0 0
      %1490 = vmatpush1.bf16.msra.mxu0 %v1409
      %1491 = vmatprep.subr.bf16.mxu0 0
      %1492 = vmatpush1.bf16.msra.mxu0 %v1410
      %1493 = vmatprep.subr.bf16.mxu0 0
      %1494 = vmatpush1.bf16.msra.mxu0 %v1411
      %1495 = vmatprep.subr.bf16.mxu0 0
      %1496 = vmatpush1.bf16.msra.mxu0 %v1412
      %1497 = vmatprep.subr.bf16.mxu0 0
      %1498 = vmatpush1.bf16.msra.mxu0 %v1413
      %1499 = vmatprep.subr.bf16.mxu0 0
      %1500 = vmatpush1.bf16.msra.mxu0 %v1414
      %1501 = vmatprep.subr.bf16.mxu0 0
      %1502 = vmatpush1.bf16.msra.mxu0 %v1415
      %1503 = vmatprep.subr.bf16.mxu0 0
      %1504 = vmatpush1.bf16.msra.mxu0 %v1416
      %1505 = vmatprep.subr.bf16.mxu0 0
      %1506 = vmatpush1.bf16.msra.mxu0 %v1417
      %1507 = vmatprep.subr.bf16.mxu0 0
      %1508 = vmatpush1.bf16.msra.mxu0 %v1418
      %1509 = vmatprep.subr.bf16.mxu0 0
      %1510 = vmatpush1.bf16.msra.mxu0 %v1419
      %1511 = vmatprep.mubr.bf16.mxu0 %v1246
      %1512 = vmatmul.mubr.bf16.gmra.mrb[0].mxu0 %v1243
      %v1513 = vpop.f32.mrb[0].mxu0
      %v1514 = vadd.f32 0.0, %v1513
      %v1515 = vpop.f32.mrb[0].mxu0
      %v1516 = vpop.f32.mrb[0].mxu0
      %v1517 = vadd.f32 0.0, %v1516
      %v1518 = vpop.f32.mrb[0].mxu0
      %1519 = vdwg.mxu0
      %1520 = vmatprep.subr.bf16.mxu0 0
      %1521 = vmatpush1.bf16.msra.mxu0 %v1420
      %1522 = vmatprep.subr.bf16.mxu0 0
      %1523 = vmatpush1.bf16.msra.mxu0 %v1421
      %1524 = vmatprep.subr.bf16.mxu0 0
      %1525 = vmatpush1.bf16.msra.mxu0 %v1422
      %1526 = vmatprep.subr.bf16.mxu0 0
      %1527 = vmatpush1.bf16.msra.mxu0 %v1423
      %1528 = vmatprep.subr.bf16.mxu0 0
      %1529 = vmatpush1.bf16.msra.mxu0 %v1424
      %1530 = vmatprep.subr.bf16.mxu0 0
      %1531 = vmatpush1.bf16.msra.mxu0 %v1425
      %1532 = vmatprep.subr.bf16.mxu0 0
      %1533 = vmatpush1.bf16.msra.mxu0 %v1426
      %1534 = vmatprep.subr.bf16.mxu0 0
      %1535 = vmatpush1.bf16.msra.mxu0 %v1427
      %1536 = vmatprep.subr.bf16.mxu0 0
      %1537 = vmatpush1.bf16.msra.mxu0 %v1428
      %1538 = vmatprep.subr.bf16.mxu0 0
      %1539 = vmatpush1.bf16.msra.mxu0 %v1429
      %1540 = vmatprep.subr.bf16.mxu0 0
      %1541 = vmatpush1.bf16.msra.mxu0 %v1430
      %1542 = vmatprep.subr.bf16.mxu0 0
      %1543 = vmatpush1.bf16.msra.mxu0 %v1431
      %1544 = vmatprep.subr.bf16.mxu0 0
      %1545 = vmatpush1.bf16.msra.mxu0 %v1432
      %1546 = vmatprep.subr.bf16.mxu0 0
      %1547 = vmatpush1.bf16.msra.mxu0 %v1433
      %1548 = vmatprep.subr.bf16.mxu0 0
      %1549 = vmatpush1.bf16.msra.mxu0 %v1434
      %1550 = vmatprep.subr.bf16.mxu0 0
      %1551 = vmatpush1.bf16.msra.mxu0 %v1435
      %1552 = vmatprep.mubr.bf16.mxu0 %v1252
      %1553 = vmatmul.mubr.bf16.gmra.mrb[0].mxu0 %v1249
      %v1554 = vpop.f32.mrb[0].mxu0
      %v1555 = vadd.f32 %v1514, %v1554
      %v1556 = vpop.f32.mrb[0].mxu0
      %v1557 = vpop.f32.mrb[0].mxu0
      %v1558 = vadd.f32 %v1517, %v1557
      %v1559 = vpop.f32.mrb[0].mxu0
      %1560 = vdwg.mxu0
      %1561 = vmatprep.subr.bf16.mxu0 0
      %1562 = vmatpush1.bf16.msra.mxu0 %v1436
      %1563 = vmatprep.subr.bf16.mxu0 0
      %1564 = vmatpush1.bf16.msra.mxu0 %v1437
      %1565 = vmatprep.subr.bf16.mxu0 0
      %1566 = vmatpush1.bf16.msra.mxu0 %v1438
      %1567 = vmatprep.subr.bf16.mxu0 0
      %1568 = vmatpush1.bf16.msra.mxu0 %v1439
      %1569 = vmatprep.subr.bf16.mxu0 0
      %1570 = vmatpush1.bf16.msra.mxu0 0
      %1571 = vmatprep.subr.bf16.mxu0 0
      %1572 = vmatpush1.bf16.msra.mxu0 0
      %1573 = vmatprep.subr.bf16.mxu0 0
      %1574 = vmatpush1.bf16.msra.mxu0 0
      %1575 = vmatprep.subr.bf16.mxu0 0
      %1576 = vmatpush1.bf16.msra.mxu0 0
      %1577 = vmatprep.subr.bf16.mxu0 0
      %1578 = vmatpush1.bf16.msra.mxu0 0
      %1579 = vmatprep.subr.bf16.mxu0 0
      %1580 = vmatpush1.bf16.msra.mxu0 0
      %1581 = vmatprep.subr.bf16.mxu0 0
      %1582 = vmatpush1.bf16.msra.mxu0 0
      %1583 = vmatprep.subr.bf16.mxu0 0
      %1584 = vmatpush1.bf16.msra.mxu0 0
      %1585 = vmatprep.subr.bf16.mxu0 0
      %1586 = vmatpush1.bf16.msra.mxu0 0
      %1587 = vmatprep.subr.bf16.mxu0 0
      %1588 = vmatpush1.bf16.msra.mxu0 0
      %1589 = vmatprep.subr.bf16.mxu0 0
      %1590 = vmatpush1.bf16.msra.mxu0 0
      %1591 = vmatprep.subr.bf16.mxu0 0
      %1592 = vmatpush1.bf16.msra.mxu0 0
      %1593 = vmatprep.mubr.bf16.mxu0 0
      %1594 = vmatmul.mubr.bf16.gmra.mrb[0].mxu0 %v1477
      %v1595 = vpop.f32.mrb[0].mxu0
      %v1596 = vadd.f32 %v1555, %v1595
      %v1597 = vpop.f32.mrb[0].mxu0
      %v1598 = vpop.f32.mrb[0].mxu0
      %v1599 = vadd.f32 %v1558, %v1598
      %v1600 = vpop.f32.mrb[0].mxu0
      %1601 = vdwg.mxu0
      %v1602 = vadd.f32 %v1145, %v1596
      %v1603 = vadd.f32 %v1148, %v1599
      %v1604 = vld [vmem:[%s2] sm:$0x1]
      %v1606 = vlaneseq
      %v1607 = vshrl.u32 %v1606, 7
      %v1608 = vsub.s32 0, %v1607
      %v1609 = vrot.slane %v1604, %v1608
      %v1611 = vadd.f32 %v1602, %v1609
      %v1612 = vadd.f32 %v1603, %v1609
      %v1613 = vpack.c.bf16 %v1612, %v1611
      %v1615 = vunpack.c.l.b16 %v1613
      %v1616 = vunpack.c.h.b16 %v1613
      %v1617 = vpack.c.b16 %v1615, %v1615
      %v1618 = vpack.c.b16 %v1616, %v1616
      %1621 = vst [vmem:[%s204] sm:$0xf] %v1617
      %1622 = vst [vmem:[%s204 + $0x4] sm:$0xf] %v1618
      %v1623 = vadd.f32 %v1611, %v1612
      %v1624 = vrot.slane %v1623, 4
      %v1625 = vadd.f32 %v1623, %v1624
      %v1626 = vrot.slane %v1625, 2
      %v1627 = vadd.f32 %v1625, %v1626
      %v1628 = vrot.slane %v1627, 1
      %v1629 = vadd.f32 %v1627, %v1628
      %1630 = vst [vmem:[%s208] sm:$0x1] %v1629
      %v1631 = vmul.f32 %v1611, %v1611
      %v1632 = vmul.f32 %v1612, %v1612
      %v1633 = vadd.f32 %v1631, %v1632
      %v1634 = vrot.slane %v1633, 4
      %v1635 = vadd.f32 %v1633, %v1634
      %v1636 = vrot.slane %v1635, 2
      %v1637 = vadd.f32 %v1635, %v1636
      %v1638 = vrot.slane %v1637, 1
      %v1639 = vadd.f32 %v1637, %v1638
      %1640 = vst [vmem:[%s208 + $0x1] sm:$0x1] %v1639
      %p1641 = scmp.lt.s32.totalorder %s16, 1
      %s1642 = scalar_select %p1641, %s16, 1
      %s1643 = smul.addr %s1642, 2
      %s1644 = smul.addr %s1643, 4
      %s1645 = scalar_lea.vmem %s3, %s1644
      %p1646 = scmp.lt.s32.totalorder %s16, 1
      %s1647 = scalar_select %p1646, %s16, 1
      %s1648 = smul.addr %s1647, 2
      %s1649 = scalar_lea.vmem %s4, %s1648
      // Predicated region
      $region33: #{forward.18} parent=31 // pred_check
        %p1650 = pneg %p102
      $region34: #{forward.18} parent=31 // pred_check_branch
        %1652 = sbr.rel (%p1650) target = $region36
      $region35: #{forward.18} parent=31 // pred_region
        _
      $region36: #{forward.18} parent=31 // pred_fallthru
        _
      // Predicated region
      $region37: #{forward.18} parent=31 // pred_check
        %p1653 = pneg %p128
      $region38: #{forward.18} parent=31 // pred_check_branch
        %1655 = sbr.rel (%p1653) target = $region40
      $region39: #{forward.18} parent=31 // pred_region
        _
      $region40: #{forward.18} parent=31 // pred_fallthru
        _
    $region32: #{forward.18} parent=5 // pred_fallthru
      _
    %p1656 = scmp.le.s32.totalorder 2, %s11
    // Predicated region
    $region41: #{forward.18} parent=5 // pred_check
      %p1657 = pneg %p1656
    $region42: #{forward.18} parent=5 // pred_check_branch
      %1659 = sbr.rel (%p1657) target = $region44
    $region43: #{forward.18} parent=5 // pred_region
      %s1660 = ssub.s32 %s11, 2
      // Predicated region
      $region45: #{forward.18} parent=43 // pred_check
        %p1661 = pneg %p108
      $region46: #{forward.18} parent=43 // pred_check_branch
        %1663 = sbr.rel (%p1661) target = $region48
      $region47: #{forward.18} parent=43 // pred_region
        %p1664 = scmp.lt.s32.totalorder %s17, 1
        %s1665 = scalar_select %p1664, %s17, 1
        %s1666 = smul.addr %s1665, 2
        %s1667 = smul.addr %s1666, 4
        %s1668 = scalar_lea.vmem %s3, %s1667
      $region48: #{forward.18} parent=43 // pred_fallthru
        _
      // Predicated region
      $region49: #{forward.18} parent=43 // pred_check
        %p1669 = pneg %p134
      $region50: #{forward.18} parent=43 // pred_check_branch
        %1671 = sbr.rel (%p1669) target = $region52
      $region51: #{forward.18} parent=43 // pred_region
        %p1672 = scmp.lt.s32.totalorder %s17, 1
        %s1673 = scalar_select %p1672, %s17, 1
        %s1674 = smul.addr %s1673, 2
        %s1675 = scalar_lea.vmem %s4, %s1674
      $region52: #{forward.18} parent=43 // pred_fallthru
        _
    $region44: #{forward.18} parent=5 // pred_fallthru
      _
  $region6: #{forward.18} parent=0 // loop_footer
    %s15 = sadd.s32 1, %s11
  $region7: #{forward.18} parent=0 // loop_footer_branch
    %10 = sbr.rel target = $region3
  $region8: #{forward.18} parent=0 // loop_exit
    _

// kernel: forward.19
$region0: #{forward.19}
  #allocation0 [shape = 'u32[]', space=smem, size = 0x4, offset = 0x4, fixed_abs, tag = 'smem constant byte address 0x4 - core index']
  #allocation1 [shape = 'u32[144,128]{1,0:T(1,128)}', space=vmem, size = 0x12000, scoped, tag = 'internal scratch']
  %s0 = inlined_call_operand.vmem [shape: bf16[2,18,288], index: 0, kind: input, shape index: {}]
  %s1 = inlined_call_operand.vmem [shape: bf16[3,288,192], index: 1, kind: input, shape index: {}]
  %s2 = inlined_call_operand.vmem [shape: f32[1,192], index: 2, kind: input, shape index: {}]
  %s3 = inlined_call_operand.vmem [shape: f32[2,16,192], index: 3, kind: output, shape index: {}]
  %s4 = sld [smem:[#allocation0]]
  $region45: #{forward.19} parent=0
    _
  %s6 = ssub.s32 1, %s4
  %s7 = scalar_select 0, %s6, %s4
  loop: start=0, step=1, limit=4
  $region2: #{forward.19} parent=0 // loop_pre_header
    _
  $region3: #{forward.19} parent=0 // loop_header
    %s9 = sphi 0, %s13
    %p10 = scmp.ge.s32.totalorder %s9, 4
    %s19 = sphi 0, %s21
    %s22 = sphi 0, %s19
    %s23 = sphi 0, %s22
    %s39 = sphi 0, %s23
    %s43 = sphi 0, %s43
    %s45 = sphi 0, %s43
    %s46 = sphi 0, %s45
    %s60 = sphi 0, %s46
    %s64 = sphi 0, %s64
    %s66 = sphi 0, %s64
    %s67 = sphi 0, %s66
    %s81 = sphi 0, %s67
    %s87 = sphi 0, %s89
    %s90 = sphi 0, %s87
    %s91 = sphi 0, %s90
    %s107 = sphi 0, %s91
  $region4: #{forward.19} parent=0 // loop_header_branch
    %12 = sbr.rel (%p10) target = $region8
  $region5: #{forward.19} parent=0 // loop_body
    %s14 = ssub.s32 %s9, 1
    %s15 = ssub.s32 %s9, 2
    %s16 = sadd.s32 %s9, 1
    %s17 = ssub.s32 %s9, %s16
    %p18 = scmp.eq.s32.totalorder %s17, 0
    %s20 = sadd.s32 %s19, 1
    %s21 = scalar_select %p18, %s19, %s20
    %p24 = pneg %p18
    %p25 = scmp.eq.s32.totalorder %s9, 1
    %p26 = por %p24, %p25
    %p27 = scmp.ne.s32.totalorder %s19, %s22
    %p28 = scmp.eq.s32.totalorder %s9, 0
    %p29 = por %p27, %p28
    %p30 = scmp.ne.s32.totalorder %s19, %s22
    %p31 = scmp.eq.s32.totalorder %s14, 1
    %p32 = por %p30, %p31
    %p33 = scmp.ne.s32.totalorder %s22, %s23
    %p34 = scmp.eq.s32.totalorder %s14, 0
    %p35 = por %p33, %p34
    %p36 = scmp.ne.s32.totalorder %s22, %s23
    %p37 = scmp.eq.s32.totalorder %s15, 1
    %p38 = por %p36, %p37
    %p40 = scmp.ne.s32.totalorder %s23, %s39
    %p41 = scmp.eq.s32.totalorder %s15, 0
    %p42 = por %p40, %p41
    %s44 = sadd.s32 %s43, 1
    %p47 = scmp.eq.s32.totalorder %s9, 1
    %p48 = scmp.ne.s32.totalorder %s43, %s45
    %p49 = scmp.eq.s32.totalorder %s9, 0
    %p50 = por %p48, %p49
    %p51 = scmp.ne.s32.totalorder %s43, %s45
    %p52 = scmp.eq.s32.totalorder %s14, 1
    %p53 = por %p51, %p52
    %p54 = scmp.ne.s32.totalorder %s45, %s46
    %p55 = scmp.eq.s32.totalorder %s14, 0
    %p56 = por %p54, %p55
    %p57 = scmp.ne.s32.totalorder %s45, %s46
    %p58 = scmp.eq.s32.totalorder %s15, 1
    %p59 = por %p57, %p58
    %p61 = scmp.ne.s32.totalorder %s46, %s60
    %p62 = scmp.eq.s32.totalorder %s15, 0
    %p63 = por %p61, %p62
    %s65 = sadd.s32 %s64, 1
    %p68 = scmp.eq.s32.totalorder %s9, 1
    %p69 = scmp.ne.s32.totalorder %s64, %s66
    %p70 = scmp.eq.s32.totalorder %s9, 0
    %p71 = por %p69, %p70
    %p72 = scmp.ne.s32.totalorder %s64, %s66
    %p73 = scmp.eq.s32.totalorder %s14, 1
    %p74 = por %p72, %p73
    %p75 = scmp.ne.s32.totalorder %s66, %s67
    %p76 = scmp.eq.s32.totalorder %s14, 0
    %p77 = por %p75, %p76
    %p78 = scmp.ne.s32.totalorder %s66, %s67
    %p79 = scmp.eq.s32.totalorder %s15, 1
    %p80 = por %p78, %p79
    %p82 = scmp.ne.s32.totalorder %s67, %s81
    %p83 = scmp.eq.s32.totalorder %s15, 0
    %p84 = por %p82, %p83
    %s85 = ssub.s32 %s9, %s16
    %p86 = scmp.eq.s32.totalorder %s85, 0
    %s88 = sadd.s32 %s87, 1
    %s89 = scalar_select %p86, %s87, %s88
    %p92 = pneg %p86
    %p93 = scmp.eq.s32.totalorder %s9, 1
    %p94 = por %p92, %p93
    %p95 = scmp.ne.s32.totalorder %s87, %s90
    %p96 = scmp.eq.s32.totalorder %s9, 0
    %p97 = por %p95, %p96
    %p98 = scmp.ne.s32.totalorder %s87, %s90
    %p99 = scmp.eq.s32.totalorder %s14, 1
    %p100 = por %p98, %p99
    %p101 = scmp.ne.s32.totalorder %s90, %s91
    %p102 = scmp.eq.s32.totalorder %s14, 0
    %p103 = por %p101, %p102
    %p104 = scmp.ne.s32.totalorder %s90, %s91
    %p105 = scmp.eq.s32.totalorder %s15, 1
    %p106 = por %p104, %p105
    %p108 = scmp.ne.s32.totalorder %s91, %s107
    %p109 = scmp.eq.s32.totalorder %s15, 0
    %p110 = por %p108, %p109
    %p111 = scmp.le.s32.totalorder 1, %s9
    %p112 = scmp.lt.s32.totalorder %s9, 3
    %p113 = pnand %p111, %p112
    %p114 = pneg %p113
    // Predicated region
    $region9: #{forward.19} parent=5 // pred_check
      _
    $region10: #{forward.19} parent=5 // pred_check_branch
      %116 = sbr.rel (%p113) target = $region12
    $region11: #{forward.19} parent=5 // pred_region
      %s117 = ssub.s32 %s9, 1
      // Predicated region
      $region13: #{forward.19} parent=11 // pred_check
        %p118 = pneg %p56
      $region14: #{forward.19} parent=11 // pred_check_branch
        %120 = sbr.rel (%p118) target = $region16
      $region15: #{forward.19} parent=11 // pred_region
        _
      $region16: #{forward.19} parent=11 // pred_fallthru
        _
      // Predicated region
      $region17: #{forward.19} parent=11 // pred_check
        %p121 = pneg %p77
      $region18: #{forward.19} parent=11 // pred_check_branch
        %123 = sbr.rel (%p121) target = $region20
      $region19: #{forward.19} parent=11 // pred_region
        _
      $region20: #{forward.19} parent=11 // pred_fallthru
        _
    $region12: #{forward.19} parent=5 // pred_fallthru
      _
    %p124 = scmp.lt.s32.totalorder %s9, 2
    // Predicated region
    $region21: #{forward.19} parent=5 // pred_check
      %p125 = pneg %p124
    $region22: #{forward.19} parent=5 // pred_check_branch
      %127 = sbr.rel (%p125) target = $region24
    $region23: #{forward.19} parent=5 // pred_region
      // Predicated region
      $region25: #{forward.19} parent=23 // pred_check
        %p128 = pneg %p29
      $region26: #{forward.19} parent=23 // pred_check_branch
        %130 = sbr.rel (%p128) target = $region28
      $region27: #{forward.19} parent=23 // pred_region
        %p131 = scmp.lt.s32.totalorder %s9, 1
        %s132 = scalar_select %p131, %s9, 1
        %s133 = smul.addr %s132, 9
        %s134 = smul.addr %s133, 4
        %s135 = scalar_lea.vmem %s0, %s134
      $region28: #{forward.19} parent=23 // pred_fallthru
        _
    $region24: #{forward.19} parent=5 // pred_fallthru
      _
    %p136 = scmp.le.s32.totalorder 1, %s9
    %p137 = scmp.lt.s32.totalorder %s9, 3
    %p138 = pnand %p136, %p137
    %p139 = pneg %p138
    // Predicated region
    $region29: #{forward.19} parent=5 // pred_check
      _
    $region30: #{forward.19} parent=5 // pred_check_branch
      %141 = sbr.rel (%p138) target = $region32
    $region31: #{forward.19} parent=5 // pred_region
      %s142 = ssub.s32 %s9, 1
      %p143 = scmp.lt.s32.totalorder %s14, 1
      %s144 = scalar_select %p143, %s14, 1
      %s145 = smul.addr %s144, 9
      %s146 = smul.addr %s145, 4
      %s147 = scalar_lea.vmem %s0, %s146
      %p148 = pneg %p35
      %p149 = pneg %p32
      %p150 = pneg %p56
      %p151 = pneg %p53
      %p152 = pneg %p77
      %p153 = pneg %p74
      %p154 = pneg %p103
      %p155 = pneg %p100
      %p156 = scmp.lt.s32.totalorder %s14, 1
      %s157 = scalar_select %p156, %s14, 1
      %s158 = smul.addr %s157, 4
      %s159 = smul.addr %s158, 8
      %s160 = scalar_lea.vmem %s3, %s159
      %p161 = scmp.lt.s32.totalorder %s14, 1
      %s162 = scalar_select %p161, %s14, 1
      %s163 = smul.addr %s162, 9
      %s164 = smul.addr %s163, 4
      %s165 = scalar_lea.vmem %s0, %s164
      %p166 = scmp.lt.s32.totalorder %s14, 1
      %s167 = scalar_select %p166, %s14, 1
      %s168 = smul.addr %s167, 4
      %s169 = smul.addr %s168, 8
      %s170 = scalar_lea.vmem %s3, %s169
      %v172 = vld [vmem:[%s165] sm:$0xff]
      %v173 = vld [vmem:[%s165 + $0x8] sm:$0xf]
      %v174 = vld [vmem:[%s165 + $0xc] sm:$0xff]
      %v175 = vld [vmem:[%s165 + $0x14] sm:$0xf]
      %v176 = vld [vmem:[%s1] sm:$0xff]
      %v177 = vld [vmem:[%s1 + $0x8] sm:$0xff]
      %v178 = vld [vmem:[%s1 + $0x10] sm:$0xff]
      %v179 = vld [vmem:[%s1 + $0x18] sm:$0xff]
      %v180 = vld [vmem:[%s1 + $0x20] sm:$0xff]
      %v181 = vld [vmem:[%s1 + $0x28] sm:$0xff]
      %v182 = vld [vmem:[%s1 + $0x30] sm:$0xff]
      %v183 = vld [vmem:[%s1 + $0x38] sm:$0xff]
      %v184 = vld [vmem:[%s1 + $0x40] sm:$0xff]
      %v185 = vld [vmem:[%s1 + $0x48] sm:$0xff]
      %v186 = vld [vmem:[%s1 + $0x50] sm:$0xff]
      %v187 = vld [vmem:[%s1 + $0x58] sm:$0xff]
      %v188 = vld [vmem:[%s1 + $0x60] sm:$0xff]
      %v189 = vld [vmem:[%s1 + $0x68] sm:$0xff]
      %v190 = vld [vmem:[%s1 + $0x70] sm:$0xff]
      %v191 = vld [vmem:[%s1 + $0x78] sm:$0xff]
      %v192 = vld [vmem:[%s1 + $0x80] sm:$0xff]
      %v193 = vld [vmem:[%s1 + $0x88] sm:$0xff]
      %v194 = vld [vmem:[%s1 + $0x90] sm:$0xff]
      %v195 = vld [vmem:[%s1 + $0x98] sm:$0xff]
      %v196 = vld [vmem:[%s1 + $0xa0] sm:$0xff]
      %v197 = vld [vmem:[%s1 + $0xa8] sm:$0xff]
      %v198 = vld [vmem:[%s1 + $0xb0] sm:$0xff]
      %v199 = vld [vmem:[%s1 + $0xb8] sm:$0xff]
      %v200 = vld [vmem:[%s1 + $0xc0] sm:$0xff]
      %v201 = vld [vmem:[%s1 + $0xc8] sm:$0xff]
      %v202 = vld [vmem:[%s1 + $0xd0] sm:$0xff]
      %v203 = vld [vmem:[%s1 + $0xd8] sm:$0xff]
      %v204 = vld [vmem:[%s1 + $0xe0] sm:$0xff]
      %v205 = vld [vmem:[%s1 + $0xe8] sm:$0xff]
      %v206 = vld [vmem:[%s1 + $0xf0] sm:$0xff]
      %v207 = vld [vmem:[%s1 + $0xf8] sm:$0xff]
      %v208 = vld [vmem:[%s1 + $0x100] sm:$0xff]
      %v209 = vld [vmem:[%s1 + $0x108] sm:$0xff]
      %v210 = vld [vmem:[%s1 + $0x110] sm:$0xff]
      %v211 = vld [vmem:[%s1 + $0x118] sm:$0xff]
      %v212 = vld [vmem:[%s165 + $0x18] sm:$0x11]
      %v213 = vld [vmem:[%s165 + $0x20] sm:$0x1]
      %s214 = scalar_lea.vmem %s1, 288
      %v215 = vld [vmem:[%s214] sm:$0xff]
      %v216 = vld [vmem:[%s214 + $0x8] sm:$0xff]
      %v217 = vld [vmem:[%s214 + $0x10] sm:$0xff]
      %v218 = vld [vmem:[%s214 + $0x18] sm:$0xff]
      %v219 = vld [vmem:[%s214 + $0x20] sm:$0xff]
      %v220 = vld [vmem:[%s214 + $0x28] sm:$0xff]
      %v221 = vld [vmem:[%s214 + $0x30] sm:$0xff]
      %v222 = vld [vmem:[%s214 + $0x38] sm:$0xff]
      %v223 = vld [vmem:[%s214 + $0x40] sm:$0xff]
      %v224 = vld [vmem:[%s214 + $0x48] sm:$0xff]
      %v225 = vld [vmem:[%s214 + $0x50] sm:$0xff]
      %v226 = vld [vmem:[%s214 + $0x58] sm:$0xff]
      %v227 = vld [vmem:[%s214 + $0x60] sm:$0xff]
      %v228 = vld [vmem:[%s214 + $0x68] sm:$0xff]
      %v229 = vld [vmem:[%s214 + $0x70] sm:$0xff]
      %v230 = vld [vmem:[%s214 + $0x78] sm:$0xff]
      %v231 = vld [vmem:[%s214 + $0x80] sm:$0xff]
      %v232 = vld [vmem:[%s214 + $0x88] sm:$0xff]
      %v233 = vld [vmem:[%s214 + $0x90] sm:$0xff]
      %v234 = vld [vmem:[%s214 + $0x98] sm:$0xff]
      %v235 = vld [vmem:[%s214 + $0xa0] sm:$0xff]
      %v236 = vld [vmem:[%s214 + $0xa8] sm:$0xff]
      %v237 = vld [vmem:[%s214 + $0xb0] sm:$0xff]
      %v238 = vld [vmem:[%s214 + $0xb8] sm:$0xff]
      %v239 = vld [vmem:[%s214 + $0xc0] sm:$0xff]
      %v240 = vld [vmem:[%s214 + $0xc8] sm:$0xff]
      %v241 = vld [vmem:[%s214 + $0xd0] sm:$0xff]
      %v242 = vld [vmem:[%s214 + $0xd8] sm:$0xff]
      %v243 = vld [vmem:[%s214 + $0xe0] sm:$0xff]
      %v244 = vld [vmem:[%s214 + $0xe8] sm:$0xff]
      %v245 = vld [vmem:[%s214 + $0xf0] sm:$0xff]
      %v246 = vld [vmem:[%s214 + $0xf8] sm:$0xff]
      %v247 = vld [vmem:[%s214 + $0x100] sm:$0xff]
      %v248 = vld [vmem:[%s214 + $0x108] sm:$0xff]
      %v249 = vld [vmem:[%s214 + $0x110] sm:$0xff]
      %v250 = vld [vmem:[%s214 + $0x118] sm:$0xff]
      %v257 = vunpack.c.l.b16 %v172
      %v258 = vunpack.c.h.b16 %v172
      %v259 = vunpack.c.l.b16 %v173
      %v260 = vunpack.c.l.b16 %v174
      %v261 = vunpack.c.h.b16 %v174
      %v262 = vunpack.c.l.b16 %v175
      %v263 = vunpack.c.l.b16 %v212
      %v264 = vunpack.c.h.b16 %v212
      %v265 = vunpack.c.l.b16 %v213
      %v266 = vpack.c.b16 %v260, %v257
      %v267 = vpack.c.b16 %v261, %v258
      %v268 = vpack.c.b16 %v262, %v259
      %v269 = vpack.c.b16 %v263, %v263
      %v270 = vpack.c.b16 %v264, %v264
      %v271 = vpack.c.b16 %v265, %v265
      %vm272 = vsmask.f32 7424
      %v274 = vshrl.u32 %v266, 16
      %v276 = vshll.u32 %v266, 16
      %v278 = vrot.slane %v276, 1
      %v279 = vor.u32 %v274, %v278
      %v281 = vshll.u32 %v269, 16
      %v283 = vrot.slane %v281, 1
      %v284 = vsel %vm272, %v279, %v283
      %v286 = vshrl.u32 %v267, 16
      %v288 = vshll.u32 %v267, 16
      %v290 = vrot.slane %v288, 1
      %v291 = vor.u32 %v286, %v290
      %v293 = vshll.u32 %v270, 16
      %v295 = vrot.slane %v293, 1
      %v296 = vsel %vm272, %v291, %v295
      %v298 = vshrl.u32 %v268, 16
      %v300 = vshll.u32 %v268, 16
      %v302 = vrot.slane %v300, 1
      %v303 = vor.u32 %v298, %v302
      %v305 = vshll.u32 %v271, 16
      %v307 = vrot.slane %v305, 1
      %v308 = vsel %vm272, %v303, %v307
      %v347 = vunpack.c.l.b16 %v215
      %v348 = vunpack.c.h.b16 %v215
      %v349 = vunpack.c.l.b16 %v216
      %v350 = vunpack.c.h.b16 %v216
      %v351 = vunpack.c.l.b16 %v217
      %v352 = vunpack.c.h.b16 %v217
      %v353 = vunpack.c.l.b16 %v218
      %v354 = vunpack.c.h.b16 %v218
      %v355 = vunpack.c.l.b16 %v219
      %v356 = vunpack.c.h.b16 %v219
      %v357 = vunpack.c.l.b16 %v220
      %v358 = vunpack.c.h.b16 %v220
      %v359 = vunpack.c.l.b16 %v221
      %v360 = vunpack.c.h.b16 %v221
      %v361 = vunpack.c.l.b16 %v222
      %v362 = vunpack.c.h.b16 %v222
      %v363 = vunpack.c.l.b16 %v223
      %v364 = vunpack.c.h.b16 %v223
      %v365 = vunpack.c.l.b16 %v224
      %v366 = vunpack.c.h.b16 %v224
      %v367 = vunpack.c.l.b16 %v225
      %v368 = vunpack.c.h.b16 %v225
      %v369 = vunpack.c.l.b16 %v226
      %v370 = vunpack.c.h.b16 %v226
      %v371 = vunpack.c.l.b16 %v227
      %v372 = vunpack.c.h.b16 %v227
      %v373 = vunpack.c.l.b16 %v228
      %v374 = vunpack.c.h.b16 %v228
      %v375 = vunpack.c.l.b16 %v229
      %v376 = vunpack.c.h.b16 %v229
      %v377 = vunpack.c.l.b16 %v230
      %v378 = vunpack.c.h.b16 %v230
      %v379 = vunpack.c.l.b16 %v231
      %v380 = vunpack.c.h.b16 %v231
      %v381 = vunpack.c.l.b16 %v232
      %v382 = vunpack.c.h.b16 %v232
      %v383 = vunpack.c.l.b16 %v233
      %v384 = vunpack.c.h.b16 %v233
      %v385 = vunpack.c.l.b16 %v234
      %v386 = vunpack.c.h.b16 %v234
      %v387 = vunpack.c.l.b16 %v235
      %v388 = vunpack.c.h.b16 %v235
      %v389 = vunpack.c.l.b16 %v236
      %v390 = vunpack.c.h.b16 %v236
      %v391 = vunpack.c.l.b16 %v237
      %v392 = vunpack.c.h.b16 %v237
      %v393 = vunpack.c.l.b16 %v238
      %v394 = vunpack.c.h.b16 %v238
      %v395 = vunpack.c.l.b16 %v239
      %v396 = vunpack.c.h.b16 %v239
      %v397 = vunpack.c.l.b16 %v240
      %v398 = vunpack.c.h.b16 %v240
      %v399 = vunpack.c.l.b16 %v241
      %v400 = vunpack.c.h.b16 %v241
      %v401 = vunpack.c.l.b16 %v242
      %v402 = vunpack.c.h.b16 %v242
      %v403 = vunpack.c.l.b16 %v243
      %v404 = vunpack.c.h.b16 %v243
      %v405 = vunpack.c.l.b16 %v244
      %v406 = vunpack.c.h.b16 %v244
      %v407 = vunpack.c.l.b16 %v245
      %v408 = vunpack.c.h.b16 %v245
      %v409 = vunpack.c.l.b16 %v246
      %v410 = vunpack.c.h.b16 %v246
      %v411 = vunpack.c.l.b16 %v247
      %v412 = vunpack.c.h.b16 %v247
      %v413 = vunpack.c.l.b16 %v248
      %v414 = vunpack.c.h.b16 %v248
      %v415 = vunpack.c.l.b16 %v249
      %v416 = vunpack.c.h.b16 %v249
      %v417 = vunpack.c.l.b16 %v250
      %v418 = vunpack.c.h.b16 %v250
      %v419 = vpack.c.b16 %v349, %v347
      %v420 = vpack.c.b16 %v350, %v348
      %v421 = vpack.c.b16 %v353, %v351
      %v422 = vpack.c.b16 %v354, %v352
      %v423 = vpack.c.b16 %v357, %v355
      %v424 = vpack.c.b16 %v358, %v356
      %v425 = vpack.c.b16 %v361, %v359
      %v426 = vpack.c.b16 %v362, %v360
      %v427 = vpack.c.b16 %v365, %v363
      %v428 = vpack.c.b16 %v366, %v364
      %v429 = vpack.c.b16 %v369, %v367
      %v430 = vpack.c.b16 %v370, %v368
      %v431 = vpack.c.b16 %v373, %v371
      %v432 = vpack.c.b16 %v374, %v372
      %v433 = vpack.c.b16 %v377, %v375
      %v434 = vpack.c.b16 %v378, %v376
      %v435 = vpack.c.b16 %v381, %v379
      %v436 = vpack.c.b16 %v382, %v380
      %v437 = vpack.c.b16 %v385, %v383
      %v438 = vpack.c.b16 %v386, %v384
      %v439 = vpack.c.b16 %v389, %v387
      %v440 = vpack.c.b16 %v390, %v388
      %v441 = vpack.c.b16 %v393, %v391
      %v442 = vpack.c.b16 %v394, %v392
      %v443 = vpack.c.b16 %v397, %v395
      %v444 = vpack.c.b16 %v398, %v396
      %v445 = vpack.c.b16 %v401, %v399
      %v446 = vpack.c.b16 %v402, %v400
      %v447 = vpack.c.b16 %v405, %v403
      %v448 = vpack.c.b16 %v406, %v404
      %v449 = vpack.c.b16 %v409, %v407
      %v450 = vpack.c.b16 %v410, %v408
      %v451 = vpack.c.b16 %v413, %v411
      %v452 = vpack.c.b16 %v414, %v412
      %v453 = vpack.c.b16 %v417, %v415
      %v454 = vpack.c.b16 %v418, %v416
      %vm491 = vcmask 261120
      %v493 = vsel %vm491, %v308, 0
      %495 = vmatprep.subr.bf16.mxu0 %v420
      %496 = vmatpush1.bf16.msra.mxu0 %v419
      %497 = vmatprep.subr.bf16.mxu0 %v422
      %498 = vmatpush1.bf16.msra.mxu0 %v421
      %499 = vmatprep.subr.bf16.mxu0 %v424
      %500 = vmatpush1.bf16.msra.mxu0 %v423
      %501 = vmatprep.subr.bf16.mxu0 %v426
      %502 = vmatpush1.bf16.msra.mxu0 %v425
      %503 = vmatprep.subr.bf16.mxu0 %v428
      %504 = vmatpush1.bf16.msra.mxu0 %v427
      %505 = vmatprep.subr.bf16.mxu0 %v430
      %506 = vmatpush1.bf16.msra.mxu0 %v429
      %507 = vmatprep.subr.bf16.mxu0 %v432
      %508 = vmatpush1.bf16.msra.mxu0 %v431
      %509 = vmatprep.subr.bf16.mxu0 %v434
      %510 = vmatpush1.bf16.msra.mxu0 %v433
      %511 = vmatprep.subr.bf16.mxu0 %v436
      %512 = vmatpush1.bf16.msra.mxu0 %v435
      %513 = vmatprep.subr.bf16.mxu0 %v438
      %514 = vmatpush1.bf16.msra.mxu0 %v437
      %515 = vmatprep.subr.bf16.mxu0 %v440
      %516 = vmatpush1.bf16.msra.mxu0 %v439
      %517 = vmatprep.subr.bf16.mxu0 %v442
      %518 = vmatpush1.bf16.msra.mxu0 %v441
      %519 = vmatprep.subr.bf16.mxu0 %v444
      %520 = vmatpush1.bf16.msra.mxu0 %v443
      %521 = vmatprep.subr.bf16.mxu0 %v446
      %522 = vmatpush1.bf16.msra.mxu0 %v445
      %523 = vmatprep.subr.bf16.mxu0 %v448
      %524 = vmatpush1.bf16.msra.mxu0 %v447
      %525 = vmatprep.subr.bf16.mxu0 %v450
      %526 = vmatpush1.bf16.msra.mxu0 %v449
      %527 = vmatprep.mubr.bf16.mxu0 %v296
      %528 = vmatmul.mubr.bf16.gmra.mrb[0].mxu0 %v284
      %v529 = vpop.f32.mrb[0].mxu0
      %v530 = vadd.f32 0.0, %v529
      %v531 = vpop.f32.mrb[0].mxu0
      %v532 = vadd.f32 0.0, %v531
      %v533 = vpop.f32.mrb[0].mxu0
      %v534 = vadd.f32 0.0, %v533
      %v535 = vpop.f32.mrb[0].mxu0
      %v536 = vadd.f32 0.0, %v535
      %537 = vdwg.mxu0
      %538 = vmatprep.subr.bf16.mxu0 %v452
      %539 = vmatpush1.bf16.msra.mxu0 %v451
      %540 = vmatprep.subr.bf16.mxu0 %v454
      %541 = vmatpush1.bf16.msra.mxu0 %v453
      %542 = vmatprep.subr.bf16.mxu0 0
      %543 = vmatpush1.bf16.msra.mxu0 0
      %544 = vmatprep.subr.bf16.mxu0 0
      %545 = vmatpush1.bf16.msra.mxu0 0
      %546 = vmatprep.subr.bf16.mxu0 0
      %547 = vmatpush1.bf16.msra.mxu0 0
      %548 = vmatprep.subr.bf16.mxu0 0
      %549 = vmatpush1.bf16.msra.mxu0 0
      %550 = vmatprep.subr.bf16.mxu0 0
      %551 = vmatpush1.bf16.msra.mxu0 0
      %552 = vmatprep.subr.bf16.mxu0 0
      %553 = vmatpush1.bf16.msra.mxu0 0
      %554 = vmatprep.subr.bf16.mxu0 0
      %555 = vmatpush1.bf16.msra.mxu0 0
      %556 = vmatprep.subr.bf16.mxu0 0
      %557 = vmatpush1.bf16.msra.mxu0 0
      %558 = vmatprep.subr.bf16.mxu0 0
      %559 = vmatpush1.bf16.msra.mxu0 0
      %560 = vmatprep.subr.bf16.mxu0 0
      %561 = vmatpush1.bf16.msra.mxu0 0
      %562 = vmatprep.subr.bf16.mxu0 0
      %563 = vmatpush1.bf16.msra.mxu0 0
      %564 = vmatprep.subr.bf16.mxu0 0
      %565 = vmatpush1.bf16.msra.mxu0 0
      %566 = vmatprep.subr.bf16.mxu0 0
      %567 = vmatpush1.bf16.msra.mxu0 0
      %568 = vmatprep.subr.bf16.mxu0 0
      %569 = vmatpush1.bf16.msra.mxu0 0
      %570 = vmatprep.mubr.bf16.mxu0 0
      %571 = vmatmul.mubr.bf16.gmra.mrb[0].mxu0 %v493
      %v572 = vpop.f32.mrb[0].mxu0
      %v573 = vadd.f32 %v530, %v572
      %v574 = vpop.f32.mrb[0].mxu0
      %v575 = vadd.f32 %v532, %v574
      %v576 = vpop.f32.mrb[0].mxu0
      %v577 = vadd.f32 %v534, %v576
      %v578 = vpop.f32.mrb[0].mxu0
      %v579 = vadd.f32 %v536, %v578
      %580 = vdwg.mxu0
      %v619 = vunpack.c.l.b16 %v176
      %v620 = vunpack.c.h.b16 %v176
      %v621 = vunpack.c.l.b16 %v177
      %v622 = vunpack.c.h.b16 %v177
      %v623 = vunpack.c.l.b16 %v178
      %v624 = vunpack.c.h.b16 %v178
      %v625 = vunpack.c.l.b16 %v179
      %v626 = vunpack.c.h.b16 %v179
      %v627 = vunpack.c.l.b16 %v180
      %v628 = vunpack.c.h.b16 %v180
      %v629 = vunpack.c.l.b16 %v181
      %v630 = vunpack.c.h.b16 %v181
      %v631 = vunpack.c.l.b16 %v182
      %v632 = vunpack.c.h.b16 %v182
      %v633 = vunpack.c.l.b16 %v183
      %v634 = vunpack.c.h.b16 %v183
      %v635 = vunpack.c.l.b16 %v184
      %v636 = vunpack.c.h.b16 %v184
      %v637 = vunpack.c.l.b16 %v185
      %v638 = vunpack.c.h.b16 %v185
      %v639 = vunpack.c.l.b16 %v186
      %v640 = vunpack.c.h.b16 %v186
      %v641 = vunpack.c.l.b16 %v187
      %v642 = vunpack.c.h.b16 %v187
      %v643 = vunpack.c.l.b16 %v188
      %v644 = vunpack.c.h.b16 %v188
      %v645 = vunpack.c.l.b16 %v189
      %v646 = vunpack.c.h.b16 %v189
      %v647 = vunpack.c.l.b16 %v190
      %v648 = vunpack.c.h.b16 %v190
      %v649 = vunpack.c.l.b16 %v191
      %v650 = vunpack.c.h.b16 %v191
      %v651 = vunpack.c.l.b16 %v192
      %v652 = vunpack.c.h.b16 %v192
      %v653 = vunpack.c.l.b16 %v193
      %v654 = vunpack.c.h.b16 %v193
      %v655 = vunpack.c.l.b16 %v194
      %v656 = vunpack.c.h.b16 %v194
      %v657 = vunpack.c.l.b16 %v195
      %v658 = vunpack.c.h.b16 %v195
      %v659 = vunpack.c.l.b16 %v196
      %v660 = vunpack.c.h.b16 %v196
      %v661 = vunpack.c.l.b16 %v197
      %v662 = vunpack.c.h.b16 %v197
      %v663 = vunpack.c.l.b16 %v198
      %v664 = vunpack.c.h.b16 %v198
      %v665 = vunpack.c.l.b16 %v199
      %v666 = vunpack.c.h.b16 %v199
      %v667 = vunpack.c.l.b16 %v200
      %v668 = vunpack.c.h.b16 %v200
      %v669 = vunpack.c.l.b16 %v201
      %v670 = vunpack.c.h.b16 %v201
      %v671 = vunpack.c.l.b16 %v202
      %v672 = vunpack.c.h.b16 %v202
      %v673 = vunpack.c.l.b16 %v203
      %v674 = vunpack.c.h.b16 %v203
      %v675 = vunpack.c.l.b16 %v204
      %v676 = vunpack.c.h.b16 %v204
      %v677 = vunpack.c.l.b16 %v205
      %v678 = vunpack.c.h.b16 %v205
      %v679 = vunpack.c.l.b16 %v206
      %v680 = vunpack.c.h.b16 %v206
      %v681 = vunpack.c.l.b16 %v207
      %v682 = vunpack.c.h.b16 %v207
      %v683 = vunpack.c.l.b16 %v208
      %v684 = vunpack.c.h.b16 %v208
      %v685 = vunpack.c.l.b16 %v209
      %v686 = vunpack.c.h.b16 %v209
      %v687 = vunpack.c.l.b16 %v210
      %v688 = vunpack.c.h.b16 %v210
      %v689 = vunpack.c.l.b16 %v211
      %v690 = vunpack.c.h.b16 %v211
      %v691 = vpack.c.b16 %v621, %v619
      %v692 = vpack.c.b16 %v622, %v620
      %v693 = vpack.c.b16 %v625, %v623
      %v694 = vpack.c.b16 %v626, %v624
      %v695 = vpack.c.b16 %v629, %v627
      %v696 = vpack.c.b16 %v630, %v628
      %v697 = vpack.c.b16 %v633, %v631
      %v698 = vpack.c.b16 %v634, %v632
      %v699 = vpack.c.b16 %v637, %v635
      %v700 = vpack.c.b16 %v638, %v636
      %v701 = vpack.c.b16 %v641, %v639
      %v702 = vpack.c.b16 %v642, %v640
      %v703 = vpack.c.b16 %v645, %v643
      %v704 = vpack.c.b16 %v646, %v644
      %v705 = vpack.c.b16 %v649, %v647
      %v706 = vpack.c.b16 %v650, %v648
      %v707 = vpack.c.b16 %v653, %v651
      %v708 = vpack.c.b16 %v654, %v652
      %v709 = vpack.c.b16 %v657, %v655
      %v710 = vpack.c.b16 %v658, %v656
      %v711 = vpack.c.b16 %v661, %v659
      %v712 = vpack.c.b16 %v662, %v660
      %v713 = vpack.c.b16 %v665, %v663
      %v714 = vpack.c.b16 %v666, %v664
      %v715 = vpack.c.b16 %v669, %v667
      %v716 = vpack.c.b16 %v670, %v668
      %v717 = vpack.c.b16 %v673, %v671
      %v718 = vpack.c.b16 %v674, %v672
      %v719 = vpack.c.b16 %v677, %v675
      %v720 = vpack.c.b16 %v678, %v676
      %v721 = vpack.c.b16 %v681, %v679
      %v722 = vpack.c.b16 %v682, %v680
      %v723 = vpack.c.b16 %v685, %v683
      %v724 = vpack.c.b16 %v686, %v684
      %v725 = vpack.c.b16 %v689, %v687
      %v726 = vpack.c.b16 %v690, %v688
      %v763 = vsel %vm491, %v268, 0
      %765 = vmatprep.subr.bf16.mxu0 %v692
      %766 = vmatpush1.bf16.msra.mxu0 %v691
      %767 = vmatprep.subr.bf16.mxu0 %v694
      %768 = vmatpush1.bf16.msra.mxu0 %v693
      %769 = vmatprep.subr.bf16.mxu0 %v696
      %770 = vmatpush1.bf16.msra.mxu0 %v695
      %771 = vmatprep.subr.bf16.mxu0 %v698
      %772 = vmatpush1.bf16.msra.mxu0 %v697
      %773 = vmatprep.subr.bf16.mxu0 %v700
      %774 = vmatpush1.bf16.msra.mxu0 %v699
      %775 = vmatprep.subr.bf16.mxu0 %v702
      %776 = vmatpush1.bf16.msra.mxu0 %v701
      %777 = vmatprep.subr.bf16.mxu0 %v704
      %778 = vmatpush1.bf16.msra.mxu0 %v703
      %779 = vmatprep.subr.bf16.mxu0 %v706
      %780 = vmatpush1.bf16.msra.mxu0 %v705
      %781 = vmatprep.subr.bf16.mxu0 %v708
      %782 = vmatpush1.bf16.msra.mxu0 %v707
      %783 = vmatprep.subr.bf16.mxu0 %v710
      %784 = vmatpush1.bf16.msra.mxu0 %v709
      %785 = vmatprep.subr.bf16.mxu0 %v712
      %786 = vmatpush1.bf16.msra.mxu0 %v711
      %787 = vmatprep.subr.bf16.mxu0 %v714
      %788 = vmatpush1.bf16.msra.mxu0 %v713
      %789 = vmatprep.subr.bf16.mxu0 %v716
      %790 = vmatpush1.bf16.msra.mxu0 %v715
      %791 = vmatprep.subr.bf16.mxu0 %v718
      %792 = vmatpush1.bf16.msra.mxu0 %v717
      %793 = vmatprep.subr.bf16.mxu0 %v720
      %794 = vmatpush1.bf16.msra.mxu0 %v719
      %795 = vmatprep.subr.bf16.mxu0 %v722
      %796 = vmatpush1.bf16.msra.mxu0 %v721
      %797 = vmatprep.mubr.bf16.mxu0 %v267
      %798 = vmatmul.mubr.bf16.gmra.mrb[0].mxu0 %v266
      %v799 = vpop.f32.mrb[0].mxu0
      %v800 = vadd.f32 %v573, %v799
      %v801 = vpop.f32.mrb[0].mxu0
      %v802 = vadd.f32 %v575, %v801
      %v803 = vpop.f32.mrb[0].mxu0
      %v804 = vadd.f32 %v577, %v803
      %v805 = vpop.f32.mrb[0].mxu0
      %v806 = vadd.f32 %v579, %v805
      %807 = vdwg.mxu0
      %808 = vmatprep.subr.bf16.mxu0 %v724
      %809 = vmatpush1.bf16.msra.mxu0 %v723
      %810 = vmatprep.subr.bf16.mxu0 %v726
      %811 = vmatpush1.bf16.msra.mxu0 %v725
      %812 = vmatprep.subr.bf16.mxu0 0
      %813 = vmatpush1.bf16.msra.mxu0 0
      %814 = vmatprep.subr.bf16.mxu0 0
      %815 = vmatpush1.bf16.msra.mxu0 0
      %816 = vmatprep.subr.bf16.mxu0 0
      %817 = vmatpush1.bf16.msra.mxu0 0
      %818 = vmatprep.subr.bf16.mxu0 0
      %819 = vmatpush1.bf16.msra.mxu0 0
      %820 = vmatprep.subr.bf16.mxu0 0
      %821 = vmatpush1.bf16.msra.mxu0 0
      %822 = vmatprep.subr.bf16.mxu0 0
      %823 = vmatpush1.bf16.msra.mxu0 0
      %824 = vmatprep.subr.bf16.mxu0 0
      %825 = vmatpush1.bf16.msra.mxu0 0
      %826 = vmatprep.subr.bf16.mxu0 0
      %827 = vmatpush1.bf16.msra.mxu0 0
      %828 = vmatprep.subr.bf16.mxu0 0
      %829 = vmatpush1.bf16.msra.mxu0 0
      %830 = vmatprep.subr.bf16.mxu0 0
      %831 = vmatpush1.bf16.msra.mxu0 0
      %832 = vmatprep.subr.bf16.mxu0 0
      %833 = vmatpush1.bf16.msra.mxu0 0
      %834 = vmatprep.subr.bf16.mxu0 0
      %835 = vmatpush1.bf16.msra.mxu0 0
      %836 = vmatprep.subr.bf16.mxu0 0
      %837 = vmatpush1.bf16.msra.mxu0 0
      %838 = vmatprep.subr.bf16.mxu0 0
      %839 = vmatpush1.bf16.msra.mxu0 0
      %840 = vmatprep.mubr.bf16.mxu0 0
      %841 = vmatmul.mubr.bf16.gmra.mrb[0].mxu0 %v763
      %v842 = vpop.f32.mrb[0].mxu0
      %v843 = vadd.f32 %v800, %v842
      %v844 = vpop.f32.mrb[0].mxu0
      %v845 = vadd.f32 %v802, %v844
      %v846 = vpop.f32.mrb[0].mxu0
      %v847 = vadd.f32 %v804, %v846
      %v848 = vpop.f32.mrb[0].mxu0
      %v849 = vadd.f32 %v806, %v848
      %850 = vdwg.mxu0
      %v851 = vld [vmem:[%s165] sm:$0xee]
      %v852 = vld [vmem:[%s165 + $0x8] sm:$0xe]
      %s853 = scalar_lea.vmem %s1, 576
      %v854 = vld [vmem:[%s853] sm:$0xff]
      %v855 = vld [vmem:[%s853 + $0x8] sm:$0xff]
      %v856 = vld [vmem:[%s853 + $0x10] sm:$0xff]
      %v857 = vld [vmem:[%s853 + $0x18] sm:$0xff]
      %v858 = vld [vmem:[%s853 + $0x20] sm:$0xff]
      %v859 = vld [vmem:[%s853 + $0x28] sm:$0xff]
      %v860 = vld [vmem:[%s853 + $0x30] sm:$0xff]
      %v861 = vld [vmem:[%s853 + $0x38] sm:$0xff]
      %v862 = vld [vmem:[%s853 + $0x40] sm:$0xff]
      %v863 = vld [vmem:[%s853 + $0x48] sm:$0xff]
      %v864 = vld [vmem:[%s853 + $0x50] sm:$0xff]
      %v865 = vld [vmem:[%s853 + $0x58] sm:$0xff]
      %v866 = vld [vmem:[%s853 + $0x60] sm:$0xff]
      %v867 = vld [vmem:[%s853 + $0x68] sm:$0xff]
      %v868 = vld [vmem:[%s853 + $0x70] sm:$0xff]
      %v869 = vld [vmem:[%s853 + $0x78] sm:$0xff]
      %v870 = vld [vmem:[%s853 + $0x80] sm:$0xff]
      %v871 = vld [vmem:[%s853 + $0x88] sm:$0xff]
      %v872 = vld [vmem:[%s853 + $0x90] sm:$0xff]
      %v873 = vld [vmem:[%s853 + $0x98] sm:$0xff]
      %v874 = vld [vmem:[%s853 + $0xa0] sm:$0xff]
      %v875 = vld [vmem:[%s853 + $0xa8] sm:$0xff]
      %v876 = vld [vmem:[%s853 + $0xb0] sm:$0xff]
      %v877 = vld [vmem:[%s853 + $0xb8] sm:$0xff]
      %v878 = vld [vmem:[%s853 + $0xc0] sm:$0xff]
      %v879 = vld [vmem:[%s853 + $0xc8] sm:$0xff]
      %v880 = vld [vmem:[%s853 + $0xd0] sm:$0xff]
      %v881 = vld [vmem:[%s853 + $0xd8] sm:$0xff]
      %v882 = vld [vmem:[%s853 + $0xe0] sm:$0xff]
      %v883 = vld [vmem:[%s853 + $0xe8] sm:$0xff]
      %v884 = vld [vmem:[%s853 + $0xf0] sm:$0xff]
      %v885 = vld [vmem:[%s853 + $0xf8] sm:$0xff]
      %v886 = vld [vmem:[%s853 + $0x100] sm:$0xff]
      %v887 = vld [vmem:[%s853 + $0x108] sm:$0xff]
      %v888 = vld [vmem:[%s853 + $0x110] sm:$0xff]
      %v889 = vld [vmem:[%s853 + $0x118] sm:$0xff]
      %v892 = vunpack.c.l.b16 %v851
      %v893 = vunpack.c.h.b16 %v851
      %v894 = vunpack.c.l.b16 %v852
      %v895 = vpack.c.b16 %v260, %v892
      %v896 = vpack.c.b16 %v261, %v893
      %v897 = vpack.c.b16 %v262, %v894
      %vm898 = vcmask 1046528
      %v899 = vrot.slane %v895, 1
      %v900 = vrot.slane %v269, 1
      %v901 = vsel %vm898, %v899, %v900
      %v902 = vrot.slane %v896, 1
      %v903 = vrot.slane %v270, 1
      %v904 = vsel %vm898, %v902, %v903
      %v905 = vrot.slane %v897, 1
      %v906 = vrot.slane %v271, 1
      %v907 = vsel %vm898, %v905, %v906
      %v946 = vunpack.c.l.b16 %v854
      %v947 = vunpack.c.h.b16 %v854
      %v948 = vunpack.c.l.b16 %v855
      %v949 = vunpack.c.h.b16 %v855
      %v950 = vunpack.c.l.b16 %v856
      %v951 = vunpack.c.h.b16 %v856
      %v952 = vunpack.c.l.b16 %v857
      %v953 = vunpack.c.h.b16 %v857
      %v954 = vunpack.c.l.b16 %v858
      %v955 = vunpack.c.h.b16 %v858
      %v956 = vunpack.c.l.b16 %v859
      %v957 = vunpack.c.h.b16 %v859
      %v958 = vunpack.c.l.b16 %v860
      %v959 = vunpack.c.h.b16 %v860
      %v960 = vunpack.c.l.b16 %v861
      %v961 = vunpack.c.h.b16 %v861
      %v962 = vunpack.c.l.b16 %v862
      %v963 = vunpack.c.h.b16 %v862
      %v964 = vunpack.c.l.b16 %v863
      %v965 = vunpack.c.h.b16 %v863
      %v966 = vunpack.c.l.b16 %v864
      %v967 = vunpack.c.h.b16 %v864
      %v968 = vunpack.c.l.b16 %v865
      %v969 = vunpack.c.h.b16 %v865
      %v970 = vunpack.c.l.b16 %v866
      %v971 = vunpack.c.h.b16 %v866
      %v972 = vunpack.c.l.b16 %v867
      %v973 = vunpack.c.h.b16 %v867
      %v974 = vunpack.c.l.b16 %v868
      %v975 = vunpack.c.h.b16 %v868
      %v976 = vunpack.c.l.b16 %v869
      %v977 = vunpack.c.h.b16 %v869
      %v978 = vunpack.c.l.b16 %v870
      %v979 = vunpack.c.h.b16 %v870
      %v980 = vunpack.c.l.b16 %v871
      %v981 = vunpack.c.h.b16 %v871
      %v982 = vunpack.c.l.b16 %v872
      %v983 = vunpack.c.h.b16 %v872
      %v984 = vunpack.c.l.b16 %v873
      %v985 = vunpack.c.h.b16 %v873
      %v986 = vunpack.c.l.b16 %v874
      %v987 = vunpack.c.h.b16 %v874
      %v988 = vunpack.c.l.b16 %v875
      %v989 = vunpack.c.h.b16 %v875
      %v990 = vunpack.c.l.b16 %v876
      %v991 = vunpack.c.h.b16 %v876
      %v992 = vunpack.c.l.b16 %v877
      %v993 = vunpack.c.h.b16 %v877
      %v994 = vunpack.c.l.b16 %v878
      %v995 = vunpack.c.h.b16 %v878
      %v996 = vunpack.c.l.b16 %v879
      %v997 = vunpack.c.h.b16 %v879
      %v998 = vunpack.c.l.b16 %v880
      %v999 = vunpack.c.h.b16 %v880
      %v1000 = vunpack.c.l.b16 %v881
      %v1001 = vunpack.c.h.b16 %v881
      %v1002 = vunpack.c.l.b16 %v882
      %v1003 = vunpack.c.h.b16 %v882
      %v1004 = vunpack.c.l.b16 %v883
      %v1005 = vunpack.c.h.b16 %v883
      %v1006 = vunpack.c.l.b16 %v884
      %v1007 = vunpack.c.h.b16 %v884
      %v1008 = vunpack.c.l.b16 %v885
      %v1009 = vunpack.c.h.b16 %v885
      %v1010 = vunpack.c.l.b16 %v886
      %v1011 = vunpack.c.h.b16 %v886
      %v1012 = vunpack.c.l.b16 %v887
      %v1013 = vunpack.c.h.b16 %v887
      %v1014 = vunpack.c.l.b16 %v888
      %v1015 = vunpack.c.h.b16 %v888
      %v1016 = vunpack.c.l.b16 %v889
      %v1017 = vunpack.c.h.b16 %v889
      %v1018 = vpack.c.b16 %v948, %v946
      %v1019 = vpack.c.b16 %v949, %v947
      %v1020 = vpack.c.b16 %v952, %v950
      %v1021 = vpack.c.b16 %v953, %v951
      %v1022 = vpack.c.b16 %v956, %v954
      %v1023 = vpack.c.b16 %v957, %v955
      %v1024 = vpack.c.b16 %v960, %v958
      %v1025 = vpack.c.b16 %v961, %v959
      %v1026 = vpack.c.b16 %v964, %v962
      %v1027 = vpack.c.b16 %v965, %v963
      %v1028 = vpack.c.b16 %v968, %v966
      %v1029 = vpack.c.b16 %v969, %v967
      %v1030 = vpack.c.b16 %v972, %v970
      %v1031 = vpack.c.b16 %v973, %v971
      %v1032 = vpack.c.b16 %v976, %v974
      %v1033 = vpack.c.b16 %v977, %v975
      %v1034 = vpack.c.b16 %v980, %v978
      %v1035 = vpack.c.b16 %v981, %v979
      %v1036 = vpack.c.b16 %v984, %v982
      %v1037 = vpack.c.b16 %v985, %v983
      %v1038 = vpack.c.b16 %v988, %v986
      %v1039 = vpack.c.b16 %v989, %v987
      %v1040 = vpack.c.b16 %v992, %v990
      %v1041 = vpack.c.b16 %v993, %v991
      %v1042 = vpack.c.b16 %v996, %v994
      %v1043 = vpack.c.b16 %v997, %v995
      %v1044 = vpack.c.b16 %v1000, %v998
      %v1045 = vpack.c.b16 %v1001, %v999
      %v1046 = vpack.c.b16 %v1004, %v1002
      %v1047 = vpack.c.b16 %v1005, %v1003
      %v1048 = vpack.c.b16 %v1008, %v1006
      %v1049 = vpack.c.b16 %v1009, %v1007
      %v1050 = vpack.c.b16 %v1012, %v1010
      %v1051 = vpack.c.b16 %v1013, %v1011
      %v1052 = vpack.c.b16 %v1016, %v1014
      %v1053 = vpack.c.b16 %v1017, %v1015
      %v1091 = vsel %vm491, %v907, 0
      %1093 = vmatprep.subr.bf16.mxu0 %v1019
      %1094 = vmatpush1.bf16.msra.mxu0 %v1018
      %1095 = vmatprep.subr.bf16.mxu0 %v1021
      %1096 = vmatpush1.bf16.msra.mxu0 %v1020
      %1097 = vmatprep.subr.bf16.mxu0 %v1023
      %1098 = vmatpush1.bf16.msra.mxu0 %v1022
      %1099 = vmatprep.subr.bf16.mxu0 %v1025
      %1100 = vmatpush1.bf16.msra.mxu0 %v1024
      %1101 = vmatprep.subr.bf16.mxu0 %v1027
      %1102 = vmatpush1.bf16.msra.mxu0 %v1026
      %1103 = vmatprep.subr.bf16.mxu0 %v1029
      %1104 = vmatpush1.bf16.msra.mxu0 %v1028
      %1105 = vmatprep.subr.bf16.mxu0 %v1031
      %1106 = vmatpush1.bf16.msra.mxu0 %v1030
      %1107 = vmatprep.subr.bf16.mxu0 %v1033
      %1108 = vmatpush1.bf16.msra.mxu0 %v1032
      %1109 = vmatprep.subr.bf16.mxu0 %v1035
      %1110 = vmatpush1.bf16.msra.mxu0 %v1034
      %1111 = vmatprep.subr.bf16.mxu0 %v1037
      %1112 = vmatpush1.bf16.msra.mxu0 %v1036
      %1113 = vmatprep.subr.bf16.mxu0 %v1039
      %1114 = vmatpush1.bf16.msra.mxu0 %v1038
      %1115 = vmatprep.subr.bf16.mxu0 %v1041
      %1116 = vmatpush1.bf16.msra.mxu0 %v1040
      %1117 = vmatprep.subr.bf16.mxu0 %v1043
      %1118 = vmatpush1.bf16.msra.mxu0 %v1042
      %1119 = vmatprep.subr.bf16.mxu0 %v1045
      %1120 = vmatpush1.bf16.msra.mxu0 %v1044
      %1121 = vmatprep.subr.bf16.mxu0 %v1047
      %1122 = vmatpush1.bf16.msra.mxu0 %v1046
      %1123 = vmatprep.subr.bf16.mxu0 %v1049
      %1124 = vmatpush1.bf16.msra.mxu0 %v1048
      %1125 = vmatprep.mubr.bf16.mxu0 %v904
      %1126 = vmatmul.mubr.bf16.gmra.mrb[0].mxu0 %v901
      %v1127 = vpop.f32.mrb[0].mxu0
      %v1128 = vadd.f32 0.0, %v1127
      %v1129 = vpop.f32.mrb[0].mxu0
      %v1130 = vadd.f32 0.0, %v1129
      %v1131 = vpop.f32.mrb[0].mxu0
      %v1132 = vadd.f32 0.0, %v1131
      %v1133 = vpop.f32.mrb[0].mxu0
      %v1134 = vadd.f32 0.0, %v1133
      %1135 = vdwg.mxu0
      %1136 = vmatprep.subr.bf16.mxu0 %v1051
      %1137 = vmatpush1.bf16.msra.mxu0 %v1050
      %1138 = vmatprep.subr.bf16.mxu0 %v1053
      %1139 = vmatpush1.bf16.msra.mxu0 %v1052
      %1140 = vmatprep.subr.bf16.mxu0 0
      %1141 = vmatpush1.bf16.msra.mxu0 0
      %1142 = vmatprep.subr.bf16.mxu0 0
      %1143 = vmatpush1.bf16.msra.mxu0 0
      %1144 = vmatprep.subr.bf16.mxu0 0
      %1145 = vmatpush1.bf16.msra.mxu0 0
      %1146 = vmatprep.subr.bf16.mxu0 0
      %1147 = vmatpush1.bf16.msra.mxu0 0
      %1148 = vmatprep.subr.bf16.mxu0 0
      %1149 = vmatpush1.bf16.msra.mxu0 0
      %1150 = vmatprep.subr.bf16.mxu0 0
      %1151 = vmatpush1.bf16.msra.mxu0 0
      %1152 = vmatprep.subr.bf16.mxu0 0
      %1153 = vmatpush1.bf16.msra.mxu0 0
      %1154 = vmatprep.subr.bf16.mxu0 0
      %1155 = vmatpush1.bf16.msra.mxu0 0
      %1156 = vmatprep.subr.bf16.mxu0 0
      %1157 = vmatpush1.bf16.msra.mxu0 0
      %1158 = vmatprep.subr.bf16.mxu0 0
      %1159 = vmatpush1.bf16.msra.mxu0 0
      %1160 = vmatprep.subr.bf16.mxu0 0
      %1161 = vmatpush1.bf16.msra.mxu0 0
      %1162 = vmatprep.subr.bf16.mxu0 0
      %1163 = vmatpush1.bf16.msra.mxu0 0
      %1164 = vmatprep.subr.bf16.mxu0 0
      %1165 = vmatpush1.bf16.msra.mxu0 0
      %1166 = vmatprep.subr.bf16.mxu0 0
      %1167 = vmatpush1.bf16.msra.mxu0 0
      %1168 = vmatprep.mubr.bf16.mxu0 0
      %1169 = vmatmul.mubr.bf16.gmra.mrb[0].mxu0 %v1091
      %v1170 = vpop.f32.mrb[0].mxu0
      %v1171 = vadd.f32 %v1128, %v1170
      %v1172 = vpop.f32.mrb[0].mxu0
      %v1173 = vadd.f32 %v1130, %v1172
      %v1174 = vpop.f32.mrb[0].mxu0
      %v1175 = vadd.f32 %v1132, %v1174
      %v1176 = vpop.f32.mrb[0].mxu0
      %v1177 = vadd.f32 %v1134, %v1176
      %1178 = vdwg.mxu0
      %v1179 = vadd.f32 %v843, %v1171
      %v1180 = vadd.f32 %v845, %v1173
      %v1181 = vadd.f32 %v847, %v1175
      %v1182 = vadd.f32 %v849, %v1177
      %v1183 = vld [vmem:[%s2] sm:$0x3]
      %v1185 = vlaneseq
      %v1186 = vshrl.u32 %v1185, 7
      %v1187 = vsub.s32 0, %v1186
      %v1188 = vrot.slane %v1183, %v1187
      %v1189 = vlaneseq
      %v1190 = vshrl.u32 %v1189, 7
      %v1191 = vsub.s32 1, %v1190
      %v1192 = vrot.slane %v1183, %v1191
      %v1195 = vadd.f32 %v1179, %v1188
      %v1196 = vadd.f32 %v1180, %v1192
      %v1197 = vadd.f32 %v1181, %v1188
      %v1198 = vadd.f32 %v1182, %v1192
      %1199 = vst [vmem:[%s170] sm:$0xff] %v1195
      %vm1200 = vcmask 523264
      %1201 = vst.msk [vmem:[%s170 + $0x8] sm:$0xff] %vm1200, %v1196
      %1202 = vst [vmem:[%s170 + $0x10] sm:$0xff] %v1197
      %1203 = vst.msk [vmem:[%s170 + $0x18] sm:$0xff] %vm1200, %v1198
      %p1204 = scmp.lt.s32.totalorder %s14, 1
      %s1205 = scalar_select %p1204, %s14, 1
      %s1206 = smul.addr %s1205, 4
      %s1207 = smul.addr %s1206, 8
      %s1208 = scalar_lea.vmem %s3, %s1207
      // Predicated region
      $region33: #{forward.19} parent=31 // pred_check
        %p1209 = pneg %p100
      $region34: #{forward.19} parent=31 // pred_check_branch
        %1211 = sbr.rel (%p1209) target = $region36
      $region35: #{forward.19} parent=31 // pred_region
        _
      $region36: #{forward.19} parent=31 // pred_fallthru
        _
    $region32: #{forward.19} parent=5 // pred_fallthru
      _
    %p1212 = scmp.le.s32.totalorder 2, %s9
    // Predicated region
    $region37: #{forward.19} parent=5 // pred_check
      %p1213 = pneg %p1212
    $region38: #{forward.19} parent=5 // pred_check_branch
      %1215 = sbr.rel (%p1213) target = $region40
    $region39: #{forward.19} parent=5 // pred_region
      %s1216 = ssub.s32 %s9, 2
      // Predicated region
      $region41: #{forward.19} parent=39 // pred_check
        %p1217 = pneg %p106
      $region42: #{forward.19} parent=39 // pred_check_branch
        %1219 = sbr.rel (%p1217) target = $region44
      $region43: #{forward.19} parent=39 // pred_region
        %p1220 = scmp.lt.s32.totalorder %s15, 1
        %s1221 = scalar_select %p1220, %s15, 1
        %s1222 = smul.addr %s1221, 4
        %s1223 = smul.addr %s1222, 8
        %s1224 = scalar_lea.vmem %s3, %s1223
      $region44: #{forward.19} parent=39 // pred_fallthru
        _
    $region40: #{forward.19} parent=5 // pred_fallthru
      _
  $region6: #{forward.19} parent=0 // loop_footer
    %s13 = sadd.s32 1, %s9
  $region7: #{forward.19} parent=0 // loop_footer_branch
    %8 = sbr.rel target = $region3
  $region8: #{forward.19} parent=0 // loop_exit
    _

</llo_original>
